<compile_context>
chip_gen: v7x
topology: tpu7x:2x2x1
jax: 0.10.0
libtpu: 0.0.40
codegen_flags: <defaults>
</compile_context>

<pallas_src>
import functools

import numpy as np
import jax
import jax.numpy as jnp
from jax.experimental import pallas as pl
from jax.experimental.pallas import tpu as pltpu

NEG_SLOPE = 0.01  # nn.LeakyReLU() default


# ----------------------------------------------------------------------------
# Kernel A: 3x3 conv (+ folded BN) + bias + LeakyReLU.
# Input block is the zero-padded image of one batch element; the 9 taps are
# read as shifted (H*W, Cin) slabs and fed to the MXU, accumulating in f32.
# ----------------------------------------------------------------------------
def _conv3_kernel(x_ref, w_ref, b_ref, o_ref, *, H, W, neg_slope):
    c_out = o_ref.shape[-1]
    acc = jnp.zeros((H * W, c_out), jnp.float32)
    for t in range(9):
        ky, kx = divmod(t, 3)
        tap = x_ref[0, ky:ky + H, kx:kx + W, :].reshape(H * W, -1)   # bf16
        acc = acc + jnp.dot(tap, w_ref[t], preferred_element_type=jnp.float32)
    y = acc + b_ref[...]
    y = jnp.where(y >= 0.0, y, neg_slope * y)
    o_ref[...] = y.reshape(1, H, W, c_out).astype(o_ref.dtype)


def conv3x3_bn_lrelu(x, w9, bias, *, out_dtype=jnp.float32, neg_slope=NEG_SLOPE):
    """x: (N,H,W,Cin).  w9: (9,Cin,Cout) bf16 (BN scale folded).  bias: (Cout,) f32."""
    N, H, W, Cin = x.shape
    Cout = w9.shape[-1]
    Hp, Wp = H + 2, W + 2
    xp = jnp.pad(x, ((0, 0), (1, 1), (1, 1), (0, 0))).astype(jnp.bfloat16)
    kernel = functools.partial(_conv3_kernel, H=H, W=W, neg_slope=neg_slope)
    return pl.pallas_call(
        kernel,
        out_shape=jax.ShapeDtypeStruct((N, H, W, Cout), out_dtype),
        grid=(N,),
        in_specs=[
            pl.BlockSpec((1, Hp, Wp, Cin), lambda n: (n, 0, 0, 0)),
            pl.BlockSpec((9, Cin, Cout), lambda n: (0, 0, 0)),
            pl.BlockSpec((1, Cout), lambda n: (0, 0)),
        ],
        out_specs=pl.BlockSpec((1, H, W, Cout), lambda n: (n, 0, 0, 0)),
        compiler_params=pltpu.CompilerParams(dimension_semantics=("parallel",)),
    )(xp, w9, bias.reshape(1, Cout))


# ----------------------------------------------------------------------------
# Kernel B: fused [1x1 conv over a *virtual* channel concat] -> [3x3 conv +
# folded BN + bias + LeakyReLU].  The concat is expressed as a sum of per-source
# matmuls (split weight rows); the 1x1 result is written into a zero-padded
# VMEM scratch and consumed by the 3x3 taps without touching HBM.
# ----------------------------------------------------------------------------
def _fused_1x1_3x3_kernel(*refs, n_in, H, W, neg_slope):
    x_refs = refs[:n_in]
    w1_refs = refs[n_in:2 * n_in]
    b1_ref, w3_ref, b3_ref, o_ref, mid_ref = refs[2 * n_in:]
    c_mid = w3_ref.shape[1]
    c_out = o_ref.shape[-1]

    # --- 1x1 stage: mid = sum_i x_i @ w1_i + b1   (f32 accumulate on MXU)
    mid_acc = jnp.zeros((H * W, c_mid), jnp.float32)
    for i in range(n_in):
        xi = x_refs[i][0].reshape(H * W, -1)                         # bf16
        mid_acc = mid_acc + jnp.dot(xi, w1_refs[i][...],
                                    preferred_element_type=jnp.float32)
    mid = (mid_acc + b1_ref[...]).astype(mid_ref.dtype)

    # --- place into zero-padded scratch (stays in VMEM)
    mid_ref[...] = jnp.zeros_like(mid_ref)
    mid_ref[1:1 + H, 1:1 + W, :] = mid.reshape(H, W, c_mid)

    # --- 3x3 stage: 9 shifted matmuls + bias + LeakyReLU
    acc = jnp.zeros((H * W, c_out), jnp.float32)
    for t in range(9):
        ky, kx = divmod(t, 3)
        tap = mid_ref[ky:ky + H, kx:kx + W, :].reshape(H * W, -1)
        acc = acc + jnp.dot(tap, w3_ref[t], preferred_element_type=jnp.float32)
    y = acc + b3_ref[...]
    y = jnp.where(y >= 0.0, y, neg_slope * y)
    o_ref[...] = y.reshape(1, H, W, c_out).astype(o_ref.dtype)


def fused_1x1_then_3x3(xs, w1s, b1, w3, b3, *, out_dtype=jnp.float32,
                       neg_slope=NEG_SLOPE):
    """xs: list of (N,H,W,Ci).  w1s: list of (Ci,Cm) bf16.  b1: (Cm,) f32.
    w3: (9,Cm,Cout) bf16 (BN folded).  b3: (Cout,) f32."""
    n_in = len(xs)
    N, H, W, _ = xs[0].shape
    C_mid, C_out = w3.shape[1], w3.shape[2]
    Hp, Wp = H + 2, W + 2
    kernel = functools.partial(_fused_1x1_3x3_kernel, n_in=n_in, H=H, W=W,
                               neg_slope=neg_slope)
    in_specs, args = [], []
    for x in xs:
        Ci = x.shape[-1]
        in_specs.append(pl.BlockSpec((1, H, W, Ci), lambda n: (n, 0, 0, 0)))
        args.append(x.astype(jnp.bfloat16))
    for w1 in w1s:
        in_specs.append(pl.BlockSpec(w1.shape, lambda n: (0, 0)))
        args.append(w1)
    in_specs.append(pl.BlockSpec((1, C_mid), lambda n: (0, 0)))
    args.append(b1.reshape(1, C_mid))
    in_specs.append(pl.BlockSpec((9, C_mid, C_out), lambda n: (0, 0, 0)))
    args.append(w3)
    in_specs.append(pl.BlockSpec((1, C_out), lambda n: (0, 0)))
    args.append(b3.reshape(1, C_out))
    return pl.pallas_call(
        kernel,
        out_shape=jax.ShapeDtypeStruct((N, H, W, C_out), out_dtype),
        grid=(N,),
        in_specs=in_specs,
        out_specs=pl.BlockSpec((1, H, W, C_out), lambda n: (n, 0, 0, 0)),
        scratch_shapes=[pltpu.VMEM((Hp, Wp, C_mid), jnp.bfloat16)],
        compiler_params=pltpu.CompilerParams(dimension_semantics=("parallel",)),
    )(*args)


# ----------------------------------------------------------------------------
# Random patch copy (the in-place d[:, :, x:x+h//4, y:y+w//4] = r[...] loop).
# Pure data movement over tiny patches -> plain JAX dynamic_update_slice.
# ----------------------------------------------------------------------------
def random_patch_copy(r, d, key, num=5):
    N, H, W, C = r.shape
    ph, pw = H // 4, W // 4
    keys = jax.random.split(key, num)
    for i in range(num):
        kx, ky = jax.random.split(keys[i])
        x0 = jax.random.randint(kx, (), 0, H - ph)
        y0 = jax.random.randint(ky, (), 0, W - pw)
        piece = jax.lax.dynamic_slice(r, (0, x0, y0, 0), (N, ph, pw, C))
        d = jax.lax.dynamic_update_slice(d, piece, (0, x0, y0, 0))
    return d


# ----------------------------------------------------------------------------
# Deterministic parameter init (shapes from CFI.__init__), BN folded,
# ChannelShuffle folded into conv_cat2's 1x1 weight rows, weights cast to bf16.
# ----------------------------------------------------------------------------
def init_params(key, C):
    it = iter(jax.random.split(key, 32))

    def conv3_w(cin, cout):
        return jax.random.normal(next(it), (9, cin, cout), jnp.float32) / np.sqrt(9 * cin)

    def conv1_w(cin, cout):
        return jax.random.normal(next(it), (cin, cout), jnp.float32) / np.sqrt(cin)

    def bias(cout):
        return 0.05 * jax.random.normal(next(it), (cout,), jnp.float32)

    def bn(cout):
        g = 1.0 + 0.1 * jax.random.normal(next(it), (cout,), jnp.float32)
        b = 0.1 * jax.random.normal(next(it), (cout,), jnp.float32)
        m = 0.1 * jax.random.normal(next(it), (cout,), jnp.float32)
        v = jnp.abs(1.0 + 0.1 * jax.random.normal(next(it), (cout,), jnp.float32))
        return g, b, m, v

    def fold_bn(w, bconv, g, b, m, v, eps=1e-5):
        s = g * jax.lax.rsqrt(v + eps)          # fold scale into W before bf16 cast
        return (w * s).astype(jnp.bfloat16), (bconv - m) * s + b

    params = {}

    # conv_r / conv_d : Conv3x3(C,C) + BN + LeakyReLU
    for name in ('conv_r', 'conv_d'):
        params[name] = fold_bn(conv3_w(C, C), bias(C), *bn(C))

    # conv_cat1 : Conv1x1(2C->C) -> Conv3x3(C->C) -> BN -> LeakyReLU
    w1, b1 = conv1_w(2 * C, C), bias(C)
    w3f, b3f = fold_bn(conv3_w(C, C), bias(C), *bn(C))
    params['cat1_w1'] = [w1[:C].astype(jnp.bfloat16), w1[C:].astype(jnp.bfloat16)]
    params['cat1_b1'] = b1
    params['cat1_w3'] = w3f
    params['cat1_b3'] = b3f

    # conv_cat2 : ChannelShuffle(4) -> Conv1x1(3C->C) -> Conv3x3(C->C) -> BN -> LReLU
    w1, b1 = conv1_w(3 * C, C), bias(C)
    w3f, b3f = fold_bn(conv3_w(C, C), bias(C), *bn(C))
    groups, c3 = 4, 3 * C
    cpg = c3 // groups
    j = np.arange(c3)
    perm = (j % groups) * cpg + (j // groups)      # shuffled[j] = cat[perm[j]]
    w1_perm = w1[np.argsort(perm)]                 # cat @ w1_perm == shuffle(cat) @ w1
    params['cat2_w1'] = [w1_perm[:C].astype(jnp.bfloat16),
                         w1_perm[C:2 * C].astype(jnp.bfloat16),
                         w1_perm[2 * C:].astype(jnp.bfloat16)]
    params['cat2_b1'] = b1
    params['cat2_w3'] = w3f
    params['cat2_b3'] = b3f
    return params


# ----------------------------------------------------------------------------
# CFI forward
# ----------------------------------------------------------------------------
def cfi_forward(params, r, d, fus, patch_key):
    # NCHW -> NHWC
    r = jnp.transpose(r, (0, 2, 3, 1))
    d = jnp.transpose(d, (0, 2, 3, 1))
    fus = jnp.transpose(fus, (0, 2, 3, 1))

    w_r, b_r = params['conv_r']
    w_d, b_d = params['conv_d']
    r1 = conv3x3_bn_lrelu(r, w_r, b_r, out_dtype=jnp.bfloat16)
    d1 = conv3x3_bn_lrelu(d, w_d, b_d, out_dtype=jnp.bfloat16)

    # rd1 = conv_cat1(cat(r1, d1))   -- concat folded into split 1x1 weights
    rd1 = fused_1x1_then_3x3([r1, d1], params['cat1_w1'], params['cat1_b1'],
                             params['cat1_w3'], params['cat1_b3'],
                             out_dtype=jnp.bfloat16)

    # in-place random patch copy r1 -> d1 (happens after rd1 in the reference)
    d2 = random_patch_copy(r1, d1, patch_key, num=5)

    # rd2 = conv_cat2(channel_shuffle(cat(rd1, d2, fus)))
    #  -- shuffle + concat folded into the permuted/split 1x1 weights
    rd2 = fused_1x1_then_3x3([rd1, d2, fus], params['cat2_w1'], params['cat2_b1'],
                             params['cat2_w3'], params['cat2_b3'],
                             out_dtype=jnp.float32)
    return jnp.transpose(rd2, (0, 3, 1, 2))        # back to NCHW


if __name__ == "__main__":
    key = jax.random.PRNGKey(0)
    kp, kr, kd, kf, kpatch = jax.random.split(key, 5)
    N, C, H, W = 2, 128, 8, 8
    r = jax.random.normal(kr, (N, C, H, W), jnp.float32)
    d = jax.random.normal(kd, (N, C, H, W), jnp.float32)
    fus = jax.random.normal(kf, (N, C, H, W), jnp.float32)
    params = init_params(kp, C)

    out = jax.jit(cfi_forward)(params, r, d, fus, kpatch)
    out = jax.block_until_ready(out)
    assert out.shape == (N, C, H, W), out.shape
    assert bool(jnp.all(jnp.isfinite(out)))
    print("KERNEL_OK")
</pallas_src>

<mosaic_0001>
module attributes {stable_mosaic.version = 11 : i64} {
  func.func @_conv3_kernel(%arg0: i32, %arg1: memref<1x10x10x128xbf16, #tpu.memory_space<vmem>>, %arg2: memref<9x128x128xbf16, #tpu.memory_space<vmem>>, %arg3: memref<1x128xf32, #tpu.memory_space<vmem>>, %arg4: memref<1x8x8x128xbf16, #tpu.memory_space<vmem>>) attributes {dimension_semantics = [#tpu.dimension_semantics<parallel>], iteration_bounds = array<i64: 2>, scalar_prefetch = 0 : i64, scratch_operands = 0 : i64, tpu.core_type = #tpu.core_type<tc>, window_params = [{transform_indices = @transform_0, window_bounds = array<i64: 1, 10, 10, 128>}, {pipeline_mode = #tpu.pipeline_mode<synchronous>, transform_indices = @transform_1, window_bounds = array<i64: 9, 128, 128>}, {pipeline_mode = #tpu.pipeline_mode<synchronous>, transform_indices = @transform_2, window_bounds = array<i64: 1, 128>}, {transform_indices = @transform_3, window_bounds = array<i64: 1, 8, 8, 128>}]} {
    %cst = arith.constant 0.000000e+00 : f32
    %0 = vector.broadcast %cst : f32 to vector<64x128xf32>
    %c0 = arith.constant 0 : index
    %c0_0 = arith.constant 0 : index
    %c0_1 = arith.constant 0 : index
    %c0_2 = arith.constant 0 : index
    %1 = vector.load %arg1[%c0, %c0_0, %c0_1, %c0_2] : memref<1x10x10x128xbf16, #tpu.memory_space<vmem>>, vector<1x8x8x128xbf16>
    %2 = vector.shape_cast %1 : vector<1x8x8x128xbf16> to vector<8x8x128xbf16>
    %3 = vector.shape_cast %2 : vector<8x8x128xbf16> to vector<64x128xbf16>
    %c0_3 = arith.constant 0 : index
    %c0_4 = arith.constant 0 : index
    %c0_5 = arith.constant 0 : index
    %4 = vector.load %arg2[%c0_3, %c0_4, %c0_5] : memref<9x128x128xbf16, #tpu.memory_space<vmem>>, vector<1x128x128xbf16>
    %5 = vector.shape_cast %4 : vector<1x128x128xbf16> to vector<128x128xbf16>
    %cst_6 = arith.constant dense<0.000000e+00> : vector<64x128xf32>
    %6 = tpu.matmul %3, %5, %cst_6 {dimension_numbers = #tpu.dot_dimension_numbers<[1], [0], [0], [1], [0, 0, 1, 1], [], []>} : vector<64x128xbf16>, vector<128x128xbf16>, vector<64x128xf32> -> vector<64x128xf32>
    %7 = arith.addf %0, %6 : vector<64x128xf32>
    %c0_7 = arith.constant 0 : index
    %c0_8 = arith.constant 0 : index
    %c1 = arith.constant 1 : index
    %c0_9 = arith.constant 0 : index
    %8 = vector.load %arg1[%c0_7, %c0_8, %c1, %c0_9] : memref<1x10x10x128xbf16, #tpu.memory_space<vmem>>, vector<1x8x8x128xbf16>
    %9 = vector.shape_cast %8 : vector<1x8x8x128xbf16> to vector<8x8x128xbf16>
    %10 = vector.shape_cast %9 : vector<8x8x128xbf16> to vector<64x128xbf16>
    %c1_10 = arith.constant 1 : index
    %c0_11 = arith.constant 0 : index
    %c0_12 = arith.constant 0 : index
    %11 = vector.load %arg2[%c1_10, %c0_11, %c0_12] : memref<9x128x128xbf16, #tpu.memory_space<vmem>>, vector<1x128x128xbf16>
    %12 = vector.shape_cast %11 : vector<1x128x128xbf16> to vector<128x128xbf16>
    %cst_13 = arith.constant dense<0.000000e+00> : vector<64x128xf32>
    %13 = tpu.matmul %10, %12, %cst_13 {dimension_numbers = #tpu.dot_dimension_numbers<[1], [0], [0], [1], [0, 0, 1, 1], [], []>} : vector<64x128xbf16>, vector<128x128xbf16>, vector<64x128xf32> -> vector<64x128xf32>
    %14 = arith.addf %7, %13 : vector<64x128xf32>
    %c0_14 = arith.constant 0 : index
    %c0_15 = arith.constant 0 : index
    %c2 = arith.constant 2 : index
    %c0_16 = arith.constant 0 : index
    %15 = vector.load %arg1[%c0_14, %c0_15, %c2, %c0_16] : memref<1x10x10x128xbf16, #tpu.memory_space<vmem>>, vector<1x8x8x128xbf16>
    %16 = vector.shape_cast %15 : vector<1x8x8x128xbf16> to vector<8x8x128xbf16>
    %17 = vector.shape_cast %16 : vector<8x8x128xbf16> to vector<64x128xbf16>
    %c2_17 = arith.constant 2 : index
    %c0_18 = arith.constant 0 : index
    %c0_19 = arith.constant 0 : index
    %18 = vector.load %arg2[%c2_17, %c0_18, %c0_19] : memref<9x128x128xbf16, #tpu.memory_space<vmem>>, vector<1x128x128xbf16>
    %19 = vector.shape_cast %18 : vector<1x128x128xbf16> to vector<128x128xbf16>
    %cst_20 = arith.constant dense<0.000000e+00> : vector<64x128xf32>
    %20 = tpu.matmul %17, %19, %cst_20 {dimension_numbers = #tpu.dot_dimension_numbers<[1], [0], [0], [1], [0, 0, 1, 1], [], []>} : vector<64x128xbf16>, vector<128x128xbf16>, vector<64x128xf32> -> vector<64x128xf32>
    %21 = arith.addf %14, %20 : vector<64x128xf32>
    %c0_21 = arith.constant 0 : index
    %c1_22 = arith.constant 1 : index
    %c0_23 = arith.constant 0 : index
    %c0_24 = arith.constant 0 : index
    %22 = vector.load %arg1[%c0_21, %c1_22, %c0_23, %c0_24] : memref<1x10x10x128xbf16, #tpu.memory_space<vmem>>, vector<1x8x8x128xbf16>
    %23 = vector.shape_cast %22 : vector<1x8x8x128xbf16> to vector<8x8x128xbf16>
    %24 = vector.shape_cast %23 : vector<8x8x128xbf16> to vector<64x128xbf16>
    %c3 = arith.constant 3 : index
    %c0_25 = arith.constant 0 : index
    %c0_26 = arith.constant 0 : index
    %25 = vector.load %arg2[%c3, %c0_25, %c0_26] : memref<9x128x128xbf16, #tpu.memory_space<vmem>>, vector<1x128x128xbf16>
    %26 = vector.shape_cast %25 : vector<1x128x128xbf16> to vector<128x128xbf16>
    %cst_27 = arith.constant dense<0.000000e+00> : vector<64x128xf32>
    %27 = tpu.matmul %24, %26, %cst_27 {dimension_numbers = #tpu.dot_dimension_numbers<[1], [0], [0], [1], [0, 0, 1, 1], [], []>} : vector<64x128xbf16>, vector<128x128xbf16>, vector<64x128xf32> -> vector<64x128xf32>
    %28 = arith.addf %21, %27 : vector<64x128xf32>
    %c0_28 = arith.constant 0 : index
    %c1_29 = arith.constant 1 : index
    %c1_30 = arith.constant 1 : index
    %c0_31 = arith.constant 0 : index
    %29 = vector.load %arg1[%c0_28, %c1_29, %c1_30, %c0_31] : memref<1x10x10x128xbf16, #tpu.memory_space<vmem>>, vector<1x8x8x128xbf16>
    %30 = vector.shape_cast %29 : vector<1x8x8x128xbf16> to vector<8x8x128xbf16>
    %31 = vector.shape_cast %30 : vector<8x8x128xbf16> to vector<64x128xbf16>
    %c4 = arith.constant 4 : index
    %c0_32 = arith.constant 0 : index
    %c0_33 = arith.constant 0 : index
    %32 = vector.load %arg2[%c4, %c0_32, %c0_33] : memref<9x128x128xbf16, #tpu.memory_space<vmem>>, vector<1x128x128xbf16>
    %33 = vector.shape_cast %32 : vector<1x128x128xbf16> to vector<128x128xbf16>
    %cst_34 = arith.constant dense<0.000000e+00> : vector<64x128xf32>
    %34 = tpu.matmul %31, %33, %cst_34 {dimension_numbers = #tpu.dot_dimension_numbers<[1], [0], [0], [1], [0, 0, 1, 1], [], []>} : vector<64x128xbf16>, vector<128x128xbf16>, vector<64x128xf32> -> vector<64x128xf32>
    %35 = arith.addf %28, %34 : vector<64x128xf32>
    %c0_35 = arith.constant 0 : index
    %c1_36 = arith.constant 1 : index
    %c2_37 = arith.constant 2 : index
    %c0_38 = arith.constant 0 : index
    %36 = vector.load %arg1[%c0_35, %c1_36, %c2_37, %c0_38] : memref<1x10x10x128xbf16, #tpu.memory_space<vmem>>, vector<1x8x8x128xbf16>
    %37 = vector.shape_cast %36 : vector<1x8x8x128xbf16> to vector<8x8x128xbf16>
    %38 = vector.shape_cast %37 : vector<8x8x128xbf16> to vector<64x128xbf16>
    %c5 = arith.constant 5 : index
    %c0_39 = arith.constant 0 : index
    %c0_40 = arith.constant 0 : index
    %39 = vector.load %arg2[%c5, %c0_39, %c0_40] : memref<9x128x128xbf16, #tpu.memory_space<vmem>>, vector<1x128x128xbf16>
    %40 = vector.shape_cast %39 : vector<1x128x128xbf16> to vector<128x128xbf16>
    %cst_41 = arith.constant dense<0.000000e+00> : vector<64x128xf32>
    %41 = tpu.matmul %38, %40, %cst_41 {dimension_numbers = #tpu.dot_dimension_numbers<[1], [0], [0], [1], [0, 0, 1, 1], [], []>} : vector<64x128xbf16>, vector<128x128xbf16>, vector<64x128xf32> -> vector<64x128xf32>
    %42 = arith.addf %35, %41 : vector<64x128xf32>
    %c0_42 = arith.constant 0 : index
    %c2_43 = arith.constant 2 : index
    %c0_44 = arith.constant 0 : index
    %c0_45 = arith.constant 0 : index
    %43 = vector.load %arg1[%c0_42, %c2_43, %c0_44, %c0_45] : memref<1x10x10x128xbf16, #tpu.memory_space<vmem>>, vector<1x8x8x128xbf16>
    %44 = vector.shape_cast %43 : vector<1x8x8x128xbf16> to vector<8x8x128xbf16>
    %45 = vector.shape_cast %44 : vector<8x8x128xbf16> to vector<64x128xbf16>
    %c6 = arith.constant 6 : index
    %c0_46 = arith.constant 0 : index
    %c0_47 = arith.constant 0 : index
    %46 = vector.load %arg2[%c6, %c0_46, %c0_47] : memref<9x128x128xbf16, #tpu.memory_space<vmem>>, vector<1x128x128xbf16>
    %47 = vector.shape_cast %46 : vector<1x128x128xbf16> to vector<128x128xbf16>
    %cst_48 = arith.constant dense<0.000000e+00> : vector<64x128xf32>
    %48 = tpu.matmul %45, %47, %cst_48 {dimension_numbers = #tpu.dot_dimension_numbers<[1], [0], [0], [1], [0, 0, 1, 1], [], []>} : vector<64x128xbf16>, vector<128x128xbf16>, vector<64x128xf32> -> vector<64x128xf32>
    %49 = arith.addf %42, %48 : vector<64x128xf32>
    %c0_49 = arith.constant 0 : index
    %c2_50 = arith.constant 2 : index
    %c1_51 = arith.constant 1 : index
    %c0_52 = arith.constant 0 : index
    %50 = vector.load %arg1[%c0_49, %c2_50, %c1_51, %c0_52] : memref<1x10x10x128xbf16, #tpu.memory_space<vmem>>, vector<1x8x8x128xbf16>
    %51 = vector.shape_cast %50 : vector<1x8x8x128xbf16> to vector<8x8x128xbf16>
    %52 = vector.shape_cast %51 : vector<8x8x128xbf16> to vector<64x128xbf16>
    %c7 = arith.constant 7 : index
    %c0_53 = arith.constant 0 : index
    %c0_54 = arith.constant 0 : index
    %53 = vector.load %arg2[%c7, %c0_53, %c0_54] : memref<9x128x128xbf16, #tpu.memory_space<vmem>>, vector<1x128x128xbf16>
    %54 = vector.shape_cast %53 : vector<1x128x128xbf16> to vector<128x128xbf16>
    %cst_55 = arith.constant dense<0.000000e+00> : vector<64x128xf32>
    %55 = tpu.matmul %52, %54, %cst_55 {dimension_numbers = #tpu.dot_dimension_numbers<[1], [0], [0], [1], [0, 0, 1, 1], [], []>} : vector<64x128xbf16>, vector<128x128xbf16>, vector<64x128xf32> -> vector<64x128xf32>
    %56 = arith.addf %49, %55 : vector<64x128xf32>
    %c0_56 = arith.constant 0 : index
    %c2_57 = arith.constant 2 : index
    %c2_58 = arith.constant 2 : index
    %c0_59 = arith.constant 0 : index
    %57 = vector.load %arg1[%c0_56, %c2_57, %c2_58, %c0_59] : memref<1x10x10x128xbf16, #tpu.memory_space<vmem>>, vector<1x8x8x128xbf16>
    %58 = vector.shape_cast %57 : vector<1x8x8x128xbf16> to vector<8x8x128xbf16>
    %59 = vector.shape_cast %58 : vector<8x8x128xbf16> to vector<64x128xbf16>
    %c8 = arith.constant 8 : index
    %c0_60 = arith.constant 0 : index
    %c0_61 = arith.constant 0 : index
    %60 = vector.load %arg2[%c8, %c0_60, %c0_61] : memref<9x128x128xbf16, #tpu.memory_space<vmem>>, vector<1x128x128xbf16>
    %61 = vector.shape_cast %60 : vector<1x128x128xbf16> to vector<128x128xbf16>
    %cst_62 = arith.constant dense<0.000000e+00> : vector<64x128xf32>
    %62 = tpu.matmul %59, %61, %cst_62 {dimension_numbers = #tpu.dot_dimension_numbers<[1], [0], [0], [1], [0, 0, 1, 1], [], []>} : vector<64x128xbf16>, vector<128x128xbf16>, vector<64x128xf32> -> vector<64x128xf32>
    %63 = arith.addf %56, %62 : vector<64x128xf32>
    %c0_63 = arith.constant 0 : index
    %c0_64 = arith.constant 0 : index
    %64 = vector.load %arg3[%c0_63, %c0_64] : memref<1x128xf32, #tpu.memory_space<vmem>>, vector<1x128xf32>
    %65 = vector.broadcast %64 : vector<1x128xf32> to vector<64x128xf32>
    %66 = arith.addf %63, %65 : vector<64x128xf32>
    %cst_65 = arith.constant 0.000000e+00 : f32
    %67 = vector.broadcast %cst_65 : f32 to vector<64x128xf32>
    %68 = arith.cmpf oge, %66, %67 : vector<64x128xf32>
    %cst_66 = arith.constant 0.00999999977 : f32
    %69 = vector.broadcast %cst_66 : f32 to vector<64x128xf32>
    %70 = arith.mulf %69, %66 : vector<64x128xf32>
    %71 = arith.select %68, %66, %70 : vector<64x128xi1>, vector<64x128xf32>
    %72 = vector.shape_cast %71 : vector<64x128xf32> to vector<1x8x8x128xf32>
    %73 = arith.truncf %72 : vector<1x8x8x128xf32> to vector<1x8x8x128xbf16>
    %c0_67 = arith.constant 0 : index
    %c0_68 = arith.constant 0 : index
    %c0_69 = arith.constant 0 : index
    %c0_70 = arith.constant 0 : index
    %74 = vector.load %arg4[%c0_67, %c0_68, %c0_69, %c0_70] : memref<1x8x8x128xbf16, #tpu.memory_space<vmem>>, vector<1x8x8x128xbf16>
    tpu.vector_store %arg4[%c0_67, %c0_68, %c0_69, %c0_70], %73 {strides = array<i32>} : memref<1x8x8x128xbf16, #tpu.memory_space<vmem>>, vector<1x8x8x128xbf16>,
    return
  }
  func.func @transform_0(%arg0: i32) -> (i32, i32, i32, i32) {
    %c0_i32 = arith.constant 0 : i32
    %c0_i32_0 = arith.constant 0 : i32
    %c0_i32_1 = arith.constant 0 : i32
    %c0_i32_2 = arith.constant 0 : i32
    return %arg0, %c0_i32, %c0_i32_0, %c0_i32_1 : i32, i32, i32, i32
  }
  func.func @transform_1(%arg0: i32) -> (i32, i32, i32) {
    %c0_i32 = arith.constant 0 : i32
    %c0_i32_0 = arith.constant 0 : i32
    %c0_i32_1 = arith.constant 0 : i32
    %c0_i32_2 = arith.constant 0 : i32
    return %c0_i32, %c0_i32_0, %c0_i32_1 : i32, i32, i32
  }
  func.func @transform_2(%arg0: i32) -> (i32, i32) {
    %c0_i32 = arith.constant 0 : i32
    %c0_i32_0 = arith.constant 0 : i32
    %c0_i32_1 = arith.constant 0 : i32
    return %c0_i32, %c0_i32_0 : i32, i32
  }
  func.func @transform_3(%arg0: i32) -> (i32, i32, i32, i32) {
    %c0_i32 = arith.constant 0 : i32
    %c0_i32_0 = arith.constant 0 : i32
    %c0_i32_1 = arith.constant 0 : i32
    %c0_i32_2 = arith.constant 0 : i32
    return %arg0, %c0_i32, %c0_i32_0, %c0_i32_1 : i32, i32, i32, i32
  }
}

module attributes {stable_mosaic.version = 11 : i64} {
  func.func @_fused_1x1_3x3_kernel(%arg0: i32, %arg1: memref<1x8x8x128xbf16, #tpu.memory_space<vmem>>, %arg2: memref<1x8x8x128xbf16, #tpu.memory_space<vmem>>, %arg3: memref<128x128xbf16, #tpu.memory_space<vmem>>, %arg4: memref<128x128xbf16, #tpu.memory_space<vmem>>, %arg5: memref<1x128xf32, #tpu.memory_space<vmem>>, %arg6: memref<9x128x128xbf16, #tpu.memory_space<vmem>>, %arg7: memref<1x128xf32, #tpu.memory_space<vmem>>, %arg8: memref<1x8x8x128xbf16, #tpu.memory_space<vmem>>, %arg9: memref<10x10x128xbf16, #tpu.memory_space<vmem>>) attributes {dimension_semantics = [#tpu.dimension_semantics<parallel>], iteration_bounds = array<i64: 2>, scalar_prefetch = 0 : i64, scratch_operands = 1 : i64, tpu.core_type = #tpu.core_type<tc>, window_params = [{transform_indices = @transform_0, window_bounds = array<i64: 1, 8, 8, 128>}, {transform_indices = @transform_1, window_bounds = array<i64: 1, 8, 8, 128>}, {pipeline_mode = #tpu.pipeline_mode<synchronous>, transform_indices = @transform_2, window_bounds = array<i64: 128, 128>}, {pipeline_mode = #tpu.pipeline_mode<synchronous>, transform_indices = @transform_3, window_bounds = array<i64: 128, 128>}, {pipeline_mode = #tpu.pipeline_mode<synchronous>, transform_indices = @transform_4, window_bounds = array<i64: 1, 128>}, {pipeline_mode = #tpu.pipeline_mode<synchronous>, transform_indices = @transform_5, window_bounds = array<i64: 9, 128, 128>}, {pipeline_mode = #tpu.pipeline_mode<synchronous>, transform_indices = @transform_6, window_bounds = array<i64: 1, 128>}, {transform_indices = @transform_7, window_bounds = array<i64: 1, 8, 8, 128>}]} {
    %cst = arith.constant 0.000000e+00 : f32
    %0 = vector.broadcast %cst : f32 to vector<64x128xf32>
    %c0 = arith.constant 0 : index
    %c0_0 = arith.constant 0 : index
    %c0_1 = arith.constant 0 : index
    %c0_2 = arith.constant 0 : index
    %1 = vector.load %arg1[%c0, %c0_0, %c0_1, %c0_2] : memref<1x8x8x128xbf16, #tpu.memory_space<vmem>>, vector<1x8x8x128xbf16>
    %2 = vector.shape_cast %1 : vector<1x8x8x128xbf16> to vector<8x8x128xbf16>
    %3 = vector.shape_cast %2 : vector<8x8x128xbf16> to vector<64x128xbf16>
    %c0_3 = arith.constant 0 : index
    %c0_4 = arith.constant 0 : index
    %4 = vector.load %arg3[%c0_3, %c0_4] : memref<128x128xbf16, #tpu.memory_space<vmem>>, vector<128x128xbf16>
    %cst_5 = arith.constant dense<0.000000e+00> : vector<64x128xf32>
    %5 = tpu.matmul %3, %4, %cst_5 {dimension_numbers = #tpu.dot_dimension_numbers<[1], [0], [0], [1], [0, 0, 1, 1], [], []>} : vector<64x128xbf16>, vector<128x128xbf16>, vector<64x128xf32> -> vector<64x128xf32>
    %6 = arith.addf %0, %5 : vector<64x128xf32>
    %c0_6 = arith.constant 0 : index
    %c0_7 = arith.constant 0 : index
    %c0_8 = arith.constant 0 : index
    %c0_9 = arith.constant 0 : index
    %7 = vector.load %arg2[%c0_6, %c0_7, %c0_8, %c0_9] : memref<1x8x8x128xbf16, #tpu.memory_space<vmem>>, vector<1x8x8x128xbf16>
    %8 = vector.shape_cast %7 : vector<1x8x8x128xbf16> to vector<8x8x128xbf16>
    %9 = vector.shape_cast %8 : vector<8x8x128xbf16> to vector<64x128xbf16>
    %c0_10 = arith.constant 0 : index
    %c0_11 = arith.constant 0 : index
    %10 = vector.load %arg4[%c0_10, %c0_11] : memref<128x128xbf16, #tpu.memory_space<vmem>>, vector<128x128xbf16>
    %cst_12 = arith.constant dense<0.000000e+00> : vector<64x128xf32>
    %11 = tpu.matmul %9, %10, %cst_12 {dimension_numbers = #tpu.dot_dimension_numbers<[1], [0], [0], [1], [0, 0, 1, 1], [], []>} : vector<64x128xbf16>, vector<128x128xbf16>, vector<64x128xf32> -> vector<64x128xf32>
    %12 = arith.addf %6, %11 : vector<64x128xf32>
    %c0_13 = arith.constant 0 : index
    %c0_14 = arith.constant 0 : index
    %13 = vector.load %arg5[%c0_13, %c0_14] : memref<1x128xf32, #tpu.memory_space<vmem>>, vector<1x128xf32>
    %14 = vector.broadcast %13 : vector<1x128xf32> to vector<64x128xf32>
    %15 = arith.addf %12, %14 : vector<64x128xf32>
    %16 = arith.truncf %15 : vector<64x128xf32> to vector<64x128xbf16>
    %cst_15 = arith.constant 0.000000e+00 : bf16
    %17 = vector.broadcast %cst_15 : bf16 to vector<10x10x128xbf16>
    %c0_16 = arith.constant 0 : index
    %c0_17 = arith.constant 0 : index
    %c0_18 = arith.constant 0 : index
    %18 = vector.load %arg9[%c0_16, %c0_17, %c0_18] : memref<10x10x128xbf16, #tpu.memory_space<vmem>>, vector<10x10x128xbf16>
    tpu.vector_store %arg9[%c0_16, %c0_17, %c0_18], %17 {strides = array<i32>} : memref<10x10x128xbf16, #tpu.memory_space<vmem>>, vector<10x10x128xbf16>,
    %19 = vector.shape_cast %16 : vector<64x128xbf16> to vector<8x8x128xbf16>
    %c1 = arith.constant 1 : index
    %c1_19 = arith.constant 1 : index
    %c0_20 = arith.constant 0 : index
    %20 = vector.load %arg9[%c1, %c1_19, %c0_20] : memref<10x10x128xbf16, #tpu.memory_space<vmem>>, vector<8x8x128xbf16>
    tpu.vector_store %arg9[%c1, %c1_19, %c0_20], %19 {strides = array<i32>} : memref<10x10x128xbf16, #tpu.memory_space<vmem>>, vector<8x8x128xbf16>,
    %cst_21 = arith.constant 0.000000e+00 : f32
    %21 = vector.broadcast %cst_21 : f32 to vector<64x128xf32>
    %c0_22 = arith.constant 0 : index
    %c0_23 = arith.constant 0 : index
    %c0_24 = arith.constant 0 : index
    %22 = vector.load %arg9[%c0_22, %c0_23, %c0_24] : memref<10x10x128xbf16, #tpu.memory_space<vmem>>, vector<8x8x128xbf16>
    %23 = vector.shape_cast %22 : vector<8x8x128xbf16> to vector<64x128xbf16>
    %c0_25 = arith.constant 0 : index
    %c0_26 = arith.constant 0 : index
    %c0_27 = arith.constant 0 : index
    %24 = vector.load %arg6[%c0_25, %c0_26, %c0_27] : memref<9x128x128xbf16, #tpu.memory_space<vmem>>, vector<1x128x128xbf16>
    %25 = vector.shape_cast %24 : vector<1x128x128xbf16> to vector<128x128xbf16>
    %cst_28 = arith.constant dense<0.000000e+00> : vector<64x128xf32>
    %26 = tpu.matmul %23, %25, %cst_28 {dimension_numbers = #tpu.dot_dimension_numbers<[1], [0], [0], [1], [0, 0, 1, 1], [], []>} : vector<64x128xbf16>, vector<128x128xbf16>, vector<64x128xf32> -> vector<64x128xf32>
    %27 = arith.addf %21, %26 : vector<64x128xf32>
    %c0_29 = arith.constant 0 : index
    %c1_30 = arith.constant 1 : index
    %c0_31 = arith.constant 0 : index
    %28 = vector.load %arg9[%c0_29, %c1_30, %c0_31] : memref<10x10x128xbf16, #tpu.memory_space<vmem>>, vector<8x8x128xbf16>
    %29 = vector.shape_cast %28 : vector<8x8x128xbf16> to vector<64x128xbf16>
    %c1_32 = arith.constant 1 : index
    %c0_33 = arith.constant 0 : index
    %c0_34 = arith.constant 0 : index
    %30 = vector.load %arg6[%c1_32, %c0_33, %c0_34] : memref<9x128x128xbf16, #tpu.memory_space<vmem>>, vector<1x128x128xbf16>
    %31 = vector.shape_cast %30 : vector<1x128x128xbf16> to vector<128x128xbf16>
    %cst_35 = arith.constant dense<0.000000e+00> : vector<64x128xf32>
    %32 = tpu.matmul %29, %31, %cst_35 {dimension_numbers = #tpu.dot_dimension_numbers<[1], [0], [0], [1], [0, 0, 1, 1], [], []>} : vector<64x128xbf16>, vector<128x128xbf16>, vector<64x128xf32> -> vector<64x128xf32>
    %33 = arith.addf %27, %32 : vector<64x128xf32>
    %c0_36 = arith.constant 0 : index
    %c2 = arith.constant 2 : index
    %c0_37 = arith.constant 0 : index
    %34 = vector.load %arg9[%c0_36, %c2, %c0_37] : memref<10x10x128xbf16, #tpu.memory_space<vmem>>, vector<8x8x128xbf16>
    %35 = vector.shape_cast %34 : vector<8x8x128xbf16> to vector<64x128xbf16>
    %c2_38 = arith.constant 2 : index
    %c0_39 = arith.constant 0 : index
    %c0_40 = arith.constant 0 : index
    %36 = vector.load %arg6[%c2_38, %c0_39, %c0_40] : memref<9x128x128xbf16, #tpu.memory_space<vmem>>, vector<1x128x128xbf16>
    %37 = vector.shape_cast %36 : vector<1x128x128xbf16> to vector<128x128xbf16>
    %cst_41 = arith.constant dense<0.000000e+00> : vector<64x128xf32>
    %38 = tpu.matmul %35, %37, %cst_41 {dimension_numbers = #tpu.dot_dimension_numbers<[1], [0], [0], [1], [0, 0, 1, 1], [], []>} : vector<64x128xbf16>, vector<128x128xbf16>, vector<64x128xf32> -> vector<64x128xf32>
    %39 = arith.addf %33, %38 : vector<64x128xf32>
    %c1_42 = arith.constant 1 : index
    %c0_43 = arith.constant 0 : index
    %c0_44 = arith.constant 0 : index
    %40 = vector.load %arg9[%c1_42, %c0_43, %c0_44] : memref<10x10x128xbf16, #tpu.memory_space<vmem>>, vector<8x8x128xbf16>
    %41 = vector.shape_cast %40 : vector<8x8x128xbf16> to vector<64x128xbf16>
    %c3 = arith.constant 3 : index
    %c0_45 = arith.constant 0 : index
    %c0_46 = arith.constant 0 : index
    %42 = vector.load %arg6[%c3, %c0_45, %c0_46] : memref<9x128x128xbf16, #tpu.memory_space<vmem>>, vector<1x128x128xbf16>
    %43 = vector.shape_cast %42 : vector<1x128x128xbf16> to vector<128x128xbf16>
    %cst_47 = arith.constant dense<0.000000e+00> : vector<64x128xf32>
    %44 = tpu.matmul %41, %43, %cst_47 {dimension_numbers = #tpu.dot_dimension_numbers<[1], [0], [0], [1], [0, 0, 1, 1], [], []>} : vector<64x128xbf16>, vector<128x128xbf16>, vector<64x128xf32> -> vector<64x128xf32>
    %45 = arith.addf %39, %44 : vector<64x128xf32>
    %c1_48 = arith.constant 1 : index
    %c1_49 = arith.constant 1 : index
    %c0_50 = arith.constant 0 : index
    %46 = vector.load %arg9[%c1_48, %c1_49, %c0_50] : memref<10x10x128xbf16, #tpu.memory_space<vmem>>, vector<8x8x128xbf16>
    %47 = vector.shape_cast %46 : vector<8x8x128xbf16> to vector<64x128xbf16>
    %c4 = arith.constant 4 : index
    %c0_51 = arith.constant 0 : index
    %c0_52 = arith.constant 0 : index
    %48 = vector.load %arg6[%c4, %c0_51, %c0_52] : memref<9x128x128xbf16, #tpu.memory_space<vmem>>, vector<1x128x128xbf16>
    %49 = vector.shape_cast %48 : vector<1x128x128xbf16> to vector<128x128xbf16>
    %cst_53 = arith.constant dense<0.000000e+00> : vector<64x128xf32>
    %50 = tpu.matmul %47, %49, %cst_53 {dimension_numbers = #tpu.dot_dimension_numbers<[1], [0], [0], [1], [0, 0, 1, 1], [], []>} : vector<64x128xbf16>, vector<128x128xbf16>, vector<64x128xf32> -> vector<64x128xf32>
    %51 = arith.addf %45, %50 : vector<64x128xf32>
    %c1_54 = arith.constant 1 : index
    %c2_55 = arith.constant 2 : index
    %c0_56 = arith.constant 0 : index
    %52 = vector.load %arg9[%c1_54, %c2_55, %c0_56] : memref<10x10x128xbf16, #tpu.memory_space<vmem>>, vector<8x8x128xbf16>
    %53 = vector.shape_cast %52 : vector<8x8x128xbf16> to vector<64x128xbf16>
    %c5 = arith.constant 5 : index
    %c0_57 = arith.constant 0 : index
    %c0_58 = arith.constant 0 : index
    %54 = vector.load %arg6[%c5, %c0_57, %c0_58] : memref<9x128x128xbf16, #tpu.memory_space<vmem>>, vector<1x128x128xbf16>
    %55 = vector.shape_cast %54 : vector<1x128x128xbf16> to vector<128x128xbf16>
    %cst_59 = arith.constant dense<0.000000e+00> : vector<64x128xf32>
    %56 = tpu.matmul %53, %55, %cst_59 {dimension_numbers = #tpu.dot_dimension_numbers<[1], [0], [0], [1], [0, 0, 1, 1], [], []>} : vector<64x128xbf16>, vector<128x128xbf16>, vector<64x128xf32> -> vector<64x128xf32>
    %57 = arith.addf %51, %56 : vector<64x128xf32>
    %c2_60 = arith.constant 2 : index
    %c0_61 = arith.constant 0 : index
    %c0_62 = arith.constant 0 : index
    %58 = vector.load %arg9[%c2_60, %c0_61, %c0_62] : memref<10x10x128xbf16, #tpu.memory_space<vmem>>, vector<8x8x128xbf16>
    %59 = vector.shape_cast %58 : vector<8x8x128xbf16> to vector<64x128xbf16>
    %c6 = arith.constant 6 : index
    %c0_63 = arith.constant 0 : index
    %c0_64 = arith.constant 0 : index
    %60 = vector.load %arg6[%c6, %c0_63, %c0_64] : memref<9x128x128xbf16, #tpu.memory_space<vmem>>, vector<1x128x128xbf16>
    %61 = vector.shape_cast %60 : vector<1x128x128xbf16> to vector<128x128xbf16>
    %cst_65 = arith.constant dense<0.000000e+00> : vector<64x128xf32>
    %62 = tpu.matmul %59, %61, %cst_65 {dimension_numbers = #tpu.dot_dimension_numbers<[1], [0], [0], [1], [0, 0, 1, 1], [], []>} : vector<64x128xbf16>, vector<128x128xbf16>, vector<64x128xf32> -> vector<64x128xf32>
    %63 = arith.addf %57, %62 : vector<64x128xf32>
    %c2_66 = arith.constant 2 : index
    %c1_67 = arith.constant 1 : index
    %c0_68 = arith.constant 0 : index
    %64 = vector.load %arg9[%c2_66, %c1_67, %c0_68] : memref<10x10x128xbf16, #tpu.memory_space<vmem>>, vector<8x8x128xbf16>
    %65 = vector.shape_cast %64 : vector<8x8x128xbf16> to vector<64x128xbf16>
    %c7 = arith.constant 7 : index
    %c0_69 = arith.constant 0 : index
    %c0_70 = arith.constant 0 : index
    %66 = vector.load %arg6[%c7, %c0_69, %c0_70] : memref<9x128x128xbf16, #tpu.memory_space<vmem>>, vector<1x128x128xbf16>
    %67 = vector.shape_cast %66 : vector<1x128x128xbf16> to vector<128x128xbf16>
    %cst_71 = arith.constant dense<0.000000e+00> : vector<64x128xf32>
    %68 = tpu.matmul %65, %67, %cst_71 {dimension_numbers = #tpu.dot_dimension_numbers<[1], [0], [0], [1], [0, 0, 1, 1], [], []>} : vector<64x128xbf16>, vector<128x128xbf16>, vector<64x128xf32> -> vector<64x128xf32>
    %69 = arith.addf %63, %68 : vector<64x128xf32>
    %c2_72 = arith.constant 2 : index
    %c2_73 = arith.constant 2 : index
    %c0_74 = arith.constant 0 : index
    %70 = vector.load %arg9[%c2_72, %c2_73, %c0_74] : memref<10x10x128xbf16, #tpu.memory_space<vmem>>, vector<8x8x128xbf16>
    %71 = vector.shape_cast %70 : vector<8x8x128xbf16> to vector<64x128xbf16>
    %c8 = arith.constant 8 : index
    %c0_75 = arith.constant 0 : index
    %c0_76 = arith.constant 0 : index
    %72 = vector.load %arg6[%c8, %c0_75, %c0_76] : memref<9x128x128xbf16, #tpu.memory_space<vmem>>, vector<1x128x128xbf16>
    %73 = vector.shape_cast %72 : vector<1x128x128xbf16> to vector<128x128xbf16>
    %cst_77 = arith.constant dense<0.000000e+00> : vector<64x128xf32>
    %74 = tpu.matmul %71, %73, %cst_77 {dimension_numbers = #tpu.dot_dimension_numbers<[1], [0], [0], [1], [0, 0, 1, 1], [], []>} : vector<64x128xbf16>, vector<128x128xbf16>, vector<64x128xf32> -> vector<64x128xf32>
    %75 = arith.addf %69, %74 : vector<64x128xf32>
    %c0_78 = arith.constant 0 : index
    %c0_79 = arith.constant 0 : index
    %76 = vector.load %arg7[%c0_78, %c0_79] : memref<1x128xf32, #tpu.memory_space<vmem>>, vector<1x128xf32>
    %77 = vector.broadcast %76 : vector<1x128xf32> to vector<64x128xf32>
    %78 = arith.addf %75, %77 : vector<64x128xf32>
    %cst_80 = arith.constant 0.000000e+00 : f32
    %79 = vector.broadcast %cst_80 : f32 to vector<64x128xf32>
    %80 = arith.cmpf oge, %78, %79 : vector<64x128xf32>
    %cst_81 = arith.constant 0.00999999977 : f32
    %81 = vector.broadcast %cst_81 : f32 to vector<64x128xf32>
    %82 = arith.mulf %81, %78 : vector<64x128xf32>
    %83 = arith.select %80, %78, %82 : vector<64x128xi1>, vector<64x128xf32>
    %84 = vector.shape_cast %83 : vector<64x128xf32> to vector<1x8x8x128xf32>
    %85 = arith.truncf %84 : vector<1x8x8x128xf32> to vector<1x8x8x128xbf16>
    %c0_82 = arith.constant 0 : index
    %c0_83 = arith.constant 0 : index
    %c0_84 = arith.constant 0 : index
    %c0_85 = arith.constant 0 : index
    %86 = vector.load %arg8[%c0_82, %c0_83, %c0_84, %c0_85] : memref<1x8x8x128xbf16, #tpu.memory_space<vmem>>, vector<1x8x8x128xbf16>
    tpu.vector_store %arg8[%c0_82, %c0_83, %c0_84, %c0_85], %85 {strides = array<i32>} : memref<1x8x8x128xbf16, #tpu.memory_space<vmem>>, vector<1x8x8x128xbf16>,
    return
  }
  func.func @transform_0(%arg0: i32) -> (i32, i32, i32, i32) {
    %c0_i32 = arith.constant 0 : i32
    %c0_i32_0 = arith.constant 0 : i32
    %c0_i32_1 = arith.constant 0 : i32
    %c0_i32_2 = arith.constant 0 : i32
    return %arg0, %c0_i32, %c0_i32_0, %c0_i32_1 : i32, i32, i32, i32
  }
  func.func @transform_1(%arg0: i32) -> (i32, i32, i32, i32) {
    %c0_i32 = arith.constant 0 : i32
    %c0_i32_0 = arith.constant 0 : i32
    %c0_i32_1 = arith.constant 0 : i32
    %c0_i32_2 = arith.constant 0 : i32
    return %arg0, %c0_i32, %c0_i32_0, %c0_i32_1 : i32, i32, i32, i32
  }
  func.func @transform_2(%arg0: i32) -> (i32, i32) {
    %c0_i32 = arith.constant 0 : i32
    %c0_i32_0 = arith.constant 0 : i32
    %c0_i32_1 = arith.constant 0 : i32
    return %c0_i32, %c0_i32_0 : i32, i32
  }
  func.func @transform_3(%arg0: i32) -> (i32, i32) {
    %c0_i32 = arith.constant 0 : i32
    %c0_i32_0 = arith.constant 0 : i32
    %c0_i32_1 = arith.constant 0 : i32
    return %c0_i32, %c0_i32_0 : i32, i32
  }
  func.func @transform_4(%arg0: i32) -> (i32, i32) {
    %c0_i32 = arith.constant 0 : i32
    %c0_i32_0 = arith.constant 0 : i32
    %c0_i32_1 = arith.constant 0 : i32
    return %c0_i32, %c0_i32_0 : i32, i32
  }
  func.func @transform_5(%arg0: i32) -> (i32, i32, i32) {
    %c0_i32 = arith.constant 0 : i32
    %c0_i32_0 = arith.constant 0 : i32
    %c0_i32_1 = arith.constant 0 : i32
    %c0_i32_2 = arith.constant 0 : i32
    return %c0_i32, %c0_i32_0, %c0_i32_1 : i32, i32, i32
  }
  func.func @transform_6(%arg0: i32) -> (i32, i32) {
    %c0_i32 = arith.constant 0 : i32
    %c0_i32_0 = arith.constant 0 : i32
    %c0_i32_1 = arith.constant 0 : i32
    return %c0_i32, %c0_i32_0 : i32, i32
  }
  func.func @transform_7(%arg0: i32) -> (i32, i32, i32, i32) {
    %c0_i32 = arith.constant 0 : i32
    %c0_i32_0 = arith.constant 0 : i32
    %c0_i32_1 = arith.constant 0 : i32
    %c0_i32_2 = arith.constant 0 : i32
    return %arg0, %c0_i32, %c0_i32_0, %c0_i32_1 : i32, i32, i32, i32
  }
}

module attributes {stable_mosaic.version = 11 : i64} {
  func.func @_fused_1x1_3x3_kernel(%arg0: i32, %arg1: memref<1x8x8x128xbf16, #tpu.memory_space<vmem>>, %arg2: memref<1x8x8x128xbf16, #tpu.memory_space<vmem>>, %arg3: memref<1x8x8x128xbf16, #tpu.memory_space<vmem>>, %arg4: memref<128x128xbf16, #tpu.memory_space<vmem>>, %arg5: memref<128x128xbf16, #tpu.memory_space<vmem>>, %arg6: memref<128x128xbf16, #tpu.memory_space<vmem>>, %arg7: memref<1x128xf32, #tpu.memory_space<vmem>>, %arg8: memref<9x128x128xbf16, #tpu.memory_space<vmem>>, %arg9: memref<1x128xf32, #tpu.memory_space<vmem>>, %arg10: memref<1x8x8x128xf32, #tpu.memory_space<vmem>>, %arg11: memref<10x10x128xbf16, #tpu.memory_space<vmem>>) attributes {dimension_semantics = [#tpu.dimension_semantics<parallel>], iteration_bounds = array<i64: 2>, scalar_prefetch = 0 : i64, scratch_operands = 1 : i64, tpu.core_type = #tpu.core_type<tc>, window_params = [{transform_indices = @transform_0, window_bounds = array<i64: 1, 8, 8, 128>}, {transform_indices = @transform_1, window_bounds = array<i64: 1, 8, 8, 128>}, {transform_indices = @transform_2, window_bounds = array<i64: 1, 8, 8, 128>}, {pipeline_mode = #tpu.pipeline_mode<synchronous>, transform_indices = @transform_3, window_bounds = array<i64: 128, 128>}, {pipeline_mode = #tpu.pipeline_mode<synchronous>, transform_indices = @transform_4, window_bounds = array<i64: 128, 128>}, {pipeline_mode = #tpu.pipeline_mode<synchronous>, transform_indices = @transform_5, window_bounds = array<i64: 128, 128>}, {pipeline_mode = #tpu.pipeline_mode<synchronous>, transform_indices = @transform_6, window_bounds = array<i64: 1, 128>}, {pipeline_mode = #tpu.pipeline_mode<synchronous>, transform_indices = @transform_7, window_bounds = array<i64: 9, 128, 128>}, {pipeline_mode = #tpu.pipeline_mode<synchronous>, transform_indices = @transform_8, window_bounds = array<i64: 1, 128>}, {transform_indices = @transform_9, window_bounds = array<i64: 1, 8, 8, 128>}]} {
    %cst = arith.constant 0.000000e+00 : f32
    %0 = vector.broadcast %cst : f32 to vector<64x128xf32>
    %c0 = arith.constant 0 : index
    %c0_0 = arith.constant 0 : index
    %c0_1 = arith.constant 0 : index
    %c0_2 = arith.constant 0 : index
    %1 = vector.load %arg1[%c0, %c0_0, %c0_1, %c0_2] : memref<1x8x8x128xbf16, #tpu.memory_space<vmem>>, vector<1x8x8x128xbf16>
    %2 = vector.shape_cast %1 : vector<1x8x8x128xbf16> to vector<8x8x128xbf16>
    %3 = vector.shape_cast %2 : vector<8x8x128xbf16> to vector<64x128xbf16>
    %c0_3 = arith.constant 0 : index
    %c0_4 = arith.constant 0 : index
    %4 = vector.load %arg4[%c0_3, %c0_4] : memref<128x128xbf16, #tpu.memory_space<vmem>>, vector<128x128xbf16>
    %cst_5 = arith.constant dense<0.000000e+00> : vector<64x128xf32>
    %5 = tpu.matmul %3, %4, %cst_5 {dimension_numbers = #tpu.dot_dimension_numbers<[1], [0], [0], [1], [0, 0, 1, 1], [], []>} : vector<64x128xbf16>, vector<128x128xbf16>, vector<64x128xf32> -> vector<64x128xf32>
    %6 = arith.addf %0, %5 : vector<64x128xf32>
    %c0_6 = arith.constant 0 : index
    %c0_7 = arith.constant 0 : index
    %c0_8 = arith.constant 0 : index
    %c0_9 = arith.constant 0 : index
    %7 = vector.load %arg2[%c0_6, %c0_7, %c0_8, %c0_9] : memref<1x8x8x128xbf16, #tpu.memory_space<vmem>>, vector<1x8x8x128xbf16>
    %8 = vector.shape_cast %7 : vector<1x8x8x128xbf16> to vector<8x8x128xbf16>
    %9 = vector.shape_cast %8 : vector<8x8x128xbf16> to vector<64x128xbf16>
    %c0_10 = arith.constant 0 : index
    %c0_11 = arith.constant 0 : index
    %10 = vector.load %arg5[%c0_10, %c0_11] : memref<128x128xbf16, #tpu.memory_space<vmem>>, vector<128x128xbf16>
    %cst_12 = arith.constant dense<0.000000e+00> : vector<64x128xf32>
    %11 = tpu.matmul %9, %10, %cst_12 {dimension_numbers = #tpu.dot_dimension_numbers<[1], [0], [0], [1], [0, 0, 1, 1], [], []>} : vector<64x128xbf16>, vector<128x128xbf16>, vector<64x128xf32> -> vector<64x128xf32>
    %12 = arith.addf %6, %11 : vector<64x128xf32>
    %c0_13 = arith.constant 0 : index
    %c0_14 = arith.constant 0 : index
    %c0_15 = arith.constant 0 : index
    %c0_16 = arith.constant 0 : index
    %13 = vector.load %arg3[%c0_13, %c0_14, %c0_15, %c0_16] : memref<1x8x8x128xbf16, #tpu.memory_space<vmem>>, vector<1x8x8x128xbf16>
    %14 = vector.shape_cast %13 : vector<1x8x8x128xbf16> to vector<8x8x128xbf16>
    %15 = vector.shape_cast %14 : vector<8x8x128xbf16> to vector<64x128xbf16>
    %c0_17 = arith.constant 0 : index
    %c0_18 = arith.constant 0 : index
    %16 = vector.load %arg6[%c0_17, %c0_18] : memref<128x128xbf16, #tpu.memory_space<vmem>>, vector<128x128xbf16>
    %cst_19 = arith.constant dense<0.000000e+00> : vector<64x128xf32>
    %17 = tpu.matmul %15, %16, %cst_19 {dimension_numbers = #tpu.dot_dimension_numbers<[1], [0], [0], [1], [0, 0, 1, 1], [], []>} : vector<64x128xbf16>, vector<128x128xbf16>, vector<64x128xf32> -> vector<64x128xf32>
    %18 = arith.addf %12, %17 : vector<64x128xf32>
    %c0_20 = arith.constant 0 : index
    %c0_21 = arith.constant 0 : index
    %19 = vector.load %arg7[%c0_20, %c0_21] : memref<1x128xf32, #tpu.memory_space<vmem>>, vector<1x128xf32>
    %20 = vector.broadcast %19 : vector<1x128xf32> to vector<64x128xf32>
    %21 = arith.addf %18, %20 : vector<64x128xf32>
    %22 = arith.truncf %21 : vector<64x128xf32> to vector<64x128xbf16>
    %cst_22 = arith.constant 0.000000e+00 : bf16
    %23 = vector.broadcast %cst_22 : bf16 to vector<10x10x128xbf16>
    %c0_23 = arith.constant 0 : index
    %c0_24 = arith.constant 0 : index
    %c0_25 = arith.constant 0 : index
    %24 = vector.load %arg11[%c0_23, %c0_24, %c0_25] : memref<10x10x128xbf16, #tpu.memory_space<vmem>>, vector<10x10x128xbf16>
    tpu.vector_store %arg11[%c0_23, %c0_24, %c0_25], %23 {strides = array<i32>} : memref<10x10x128xbf16, #tpu.memory_space<vmem>>, vector<10x10x128xbf16>,
    %25 = vector.shape_cast %22 : vector<64x128xbf16> to vector<8x8x128xbf16>
    %c1 = arith.constant 1 : index
    %c1_26 = arith.constant 1 : index
    %c0_27 = arith.constant 0 : index
    %26 = vector.load %arg11[%c1, %c1_26, %c0_27] : memref<10x10x128xbf16, #tpu.memory_space<vmem>>, vector<8x8x128xbf16>
    tpu.vector_store %arg11[%c1, %c1_26, %c0_27], %25 {strides = array<i32>} : memref<10x10x128xbf16, #tpu.memory_space<vmem>>, vector<8x8x128xbf16>,
    %cst_28 = arith.constant 0.000000e+00 : f32
    %27 = vector.broadcast %cst_28 : f32 to vector<64x128xf32>
    %c0_29 = arith.constant 0 : index
    %c0_30 = arith.constant 0 : index
    %c0_31 = arith.constant 0 : index
    %28 = vector.load %arg11[%c0_29, %c0_30, %c0_31] : memref<10x10x128xbf16, #tpu.memory_space<vmem>>, vector<8x8x128xbf16>
    %29 = vector.shape_cast %28 : vector<8x8x128xbf16> to vector<64x128xbf16>
    %c0_32 = arith.constant 0 : index
    %c0_33 = arith.constant 0 : index
    %c0_34 = arith.constant 0 : index
    %30 = vector.load %arg8[%c0_32, %c0_33, %c0_34] : memref<9x128x128xbf16, #tpu.memory_space<vmem>>, vector<1x128x128xbf16>
    %31 = vector.shape_cast %30 : vector<1x128x128xbf16> to vector<128x128xbf16>
    %cst_35 = arith.constant dense<0.000000e+00> : vector<64x128xf32>
    %32 = tpu.matmul %29, %31, %cst_35 {dimension_numbers = #tpu.dot_dimension_numbers<[1], [0], [0], [1], [0, 0, 1, 1], [], []>} : vector<64x128xbf16>, vector<128x128xbf16>, vector<64x128xf32> -> vector<64x128xf32>
    %33 = arith.addf %27, %32 : vector<64x128xf32>
    %c0_36 = arith.constant 0 : index
    %c1_37 = arith.constant 1 : index
    %c0_38 = arith.constant 0 : index
    %34 = vector.load %arg11[%c0_36, %c1_37, %c0_38] : memref<10x10x128xbf16, #tpu.memory_space<vmem>>, vector<8x8x128xbf16>
    %35 = vector.shape_cast %34 : vector<8x8x128xbf16> to vector<64x128xbf16>
    %c1_39 = arith.constant 1 : index
    %c0_40 = arith.constant 0 : index
    %c0_41 = arith.constant 0 : index
    %36 = vector.load %arg8[%c1_39, %c0_40, %c0_41] : memref<9x128x128xbf16, #tpu.memory_space<vmem>>, vector<1x128x128xbf16>
    %37 = vector.shape_cast %36 : vector<1x128x128xbf16> to vector<128x128xbf16>
    %cst_42 = arith.constant dense<0.000000e+00> : vector<64x128xf32>
    %38 = tpu.matmul %35, %37, %cst_42 {dimension_numbers = #tpu.dot_dimension_numbers<[1], [0], [0], [1], [0, 0, 1, 1], [], []>} : vector<64x128xbf16>, vector<128x128xbf16>, vector<64x128xf32> -> vector<64x128xf32>
    %39 = arith.addf %33, %38 : vector<64x128xf32>
    %c0_43 = arith.constant 0 : index
    %c2 = arith.constant 2 : index
    %c0_44 = arith.constant 0 : index
    %40 = vector.load %arg11[%c0_43, %c2, %c0_44] : memref<10x10x128xbf16, #tpu.memory_space<vmem>>, vector<8x8x128xbf16>
    %41 = vector.shape_cast %40 : vector<8x8x128xbf16> to vector<64x128xbf16>
    %c2_45 = arith.constant 2 : index
    %c0_46 = arith.constant 0 : index
    %c0_47 = arith.constant 0 : index
    %42 = vector.load %arg8[%c2_45, %c0_46, %c0_47] : memref<9x128x128xbf16, #tpu.memory_space<vmem>>, vector<1x128x128xbf16>
    %43 = vector.shape_cast %42 : vector<1x128x128xbf16> to vector<128x128xbf16>
    %cst_48 = arith.constant dense<0.000000e+00> : vector<64x128xf32>
    %44 = tpu.matmul %41, %43, %cst_48 {dimension_numbers = #tpu.dot_dimension_numbers<[1], [0], [0], [1], [0, 0, 1, 1], [], []>} : vector<64x128xbf16>, vector<128x128xbf16>, vector<64x128xf32> -> vector<64x128xf32>
    %45 = arith.addf %39, %44 : vector<64x128xf32>
    %c1_49 = arith.constant 1 : index
    %c0_50 = arith.constant 0 : index
    %c0_51 = arith.constant 0 : index
    %46 = vector.load %arg11[%c1_49, %c0_50, %c0_51] : memref<10x10x128xbf16, #tpu.memory_space<vmem>>, vector<8x8x128xbf16>
    %47 = vector.shape_cast %46 : vector<8x8x128xbf16> to vector<64x128xbf16>
    %c3 = arith.constant 3 : index
    %c0_52 = arith.constant 0 : index
    %c0_53 = arith.constant 0 : index
    %48 = vector.load %arg8[%c3, %c0_52, %c0_53] : memref<9x128x128xbf16, #tpu.memory_space<vmem>>, vector<1x128x128xbf16>
    %49 = vector.shape_cast %48 : vector<1x128x128xbf16> to vector<128x128xbf16>
    %cst_54 = arith.constant dense<0.000000e+00> : vector<64x128xf32>
    %50 = tpu.matmul %47, %49, %cst_54 {dimension_numbers = #tpu.dot_dimension_numbers<[1], [0], [0], [1], [0, 0, 1, 1], [], []>} : vector<64x128xbf16>, vector<128x128xbf16>, vector<64x128xf32> -> vector<64x128xf32>
    %51 = arith.addf %45, %50 : vector<64x128xf32>
    %c1_55 = arith.constant 1 : index
    %c1_56 = arith.constant 1 : index
    %c0_57 = arith.constant 0 : index
    %52 = vector.load %arg11[%c1_55, %c1_56, %c0_57] : memref<10x10x128xbf16, #tpu.memory_space<vmem>>, vector<8x8x128xbf16>
    %53 = vector.shape_cast %52 : vector<8x8x128xbf16> to vector<64x128xbf16>
    %c4 = arith.constant 4 : index
    %c0_58 = arith.constant 0 : index
    %c0_59 = arith.constant 0 : index
    %54 = vector.load %arg8[%c4, %c0_58, %c0_59] : memref<9x128x128xbf16, #tpu.memory_space<vmem>>, vector<1x128x128xbf16>
    %55 = vector.shape_cast %54 : vector<1x128x128xbf16> to vector<128x128xbf16>
    %cst_60 = arith.constant dense<0.000000e+00> : vector<64x128xf32>
    %56 = tpu.matmul %53, %55, %cst_60 {dimension_numbers = #tpu.dot_dimension_numbers<[1], [0], [0], [1], [0, 0, 1, 1], [], []>} : vector<64x128xbf16>, vector<128x128xbf16>, vector<64x128xf32> -> vector<64x128xf32>
    %57 = arith.addf %51, %56 : vector<64x128xf32>
    %c1_61 = arith.constant 1 : index
    %c2_62 = arith.constant 2 : index
    %c0_63 = arith.constant 0 : index
    %58 = vector.load %arg11[%c1_61, %c2_62, %c0_63] : memref<10x10x128xbf16, #tpu.memory_space<vmem>>, vector<8x8x128xbf16>
    %59 = vector.shape_cast %58 : vector<8x8x128xbf16> to vector<64x128xbf16>
    %c5 = arith.constant 5 : index
    %c0_64 = arith.constant 0 : index
    %c0_65 = arith.constant 0 : index
    %60 = vector.load %arg8[%c5, %c0_64, %c0_65] : memref<9x128x128xbf16, #tpu.memory_space<vmem>>, vector<1x128x128xbf16>
    %61 = vector.shape_cast %60 : vector<1x128x128xbf16> to vector<128x128xbf16>
    %cst_66 = arith.constant dense<0.000000e+00> : vector<64x128xf32>
    %62 = tpu.matmul %59, %61, %cst_66 {dimension_numbers = #tpu.dot_dimension_numbers<[1], [0], [0], [1], [0, 0, 1, 1], [], []>} : vector<64x128xbf16>, vector<128x128xbf16>, vector<64x128xf32> -> vector<64x128xf32>
    %63 = arith.addf %57, %62 : vector<64x128xf32>
    %c2_67 = arith.constant 2 : index
    %c0_68 = arith.constant 0 : index
    %c0_69 = arith.constant 0 : index
    %64 = vector.load %arg11[%c2_67, %c0_68, %c0_69] : memref<10x10x128xbf16, #tpu.memory_space<vmem>>, vector<8x8x128xbf16>
    %65 = vector.shape_cast %64 : vector<8x8x128xbf16> to vector<64x128xbf16>
    %c6 = arith.constant 6 : index
    %c0_70 = arith.constant 0 : index
    %c0_71 = arith.constant 0 : index
    %66 = vector.load %arg8[%c6, %c0_70, %c0_71] : memref<9x128x128xbf16, #tpu.memory_space<vmem>>, vector<1x128x128xbf16>
    %67 = vector.shape_cast %66 : vector<1x128x128xbf16> to vector<128x128xbf16>
    %cst_72 = arith.constant dense<0.000000e+00> : vector<64x128xf32>
    %68 = tpu.matmul %65, %67, %cst_72 {dimension_numbers = #tpu.dot_dimension_numbers<[1], [0], [0], [1], [0, 0, 1, 1], [], []>} : vector<64x128xbf16>, vector<128x128xbf16>, vector<64x128xf32> -> vector<64x128xf32>
    %69 = arith.addf %63, %68 : vector<64x128xf32>
    %c2_73 = arith.constant 2 : index
    %c1_74 = arith.constant 1 : index
    %c0_75 = arith.constant 0 : index
    %70 = vector.load %arg11[%c2_73, %c1_74, %c0_75] : memref<10x10x128xbf16, #tpu.memory_space<vmem>>, vector<8x8x128xbf16>
    %71 = vector.shape_cast %70 : vector<8x8x128xbf16> to vector<64x128xbf16>
    %c7 = arith.constant 7 : index
    %c0_76 = arith.constant 0 : index
    %c0_77 = arith.constant 0 : index
    %72 = vector.load %arg8[%c7, %c0_76, %c0_77] : memref<9x128x128xbf16, #tpu.memory_space<vmem>>, vector<1x128x128xbf16>
    %73 = vector.shape_cast %72 : vector<1x128x128xbf16> to vector<128x128xbf16>
    %cst_78 = arith.constant dense<0.000000e+00> : vector<64x128xf32>
    %74 = tpu.matmul %71, %73, %cst_78 {dimension_numbers = #tpu.dot_dimension_numbers<[1], [0], [0], [1], [0, 0, 1, 1], [], []>} : vector<64x128xbf16>, vector<128x128xbf16>, vector<64x128xf32> -> vector<64x128xf32>
    %75 = arith.addf %69, %74 : vector<64x128xf32>
    %c2_79 = arith.constant 2 : index
    %c2_80 = arith.constant 2 : index
    %c0_81 = arith.constant 0 : index
    %76 = vector.load %arg11[%c2_79, %c2_80, %c0_81] : memref<10x10x128xbf16, #tpu.memory_space<vmem>>, vector<8x8x128xbf16>
    %77 = vector.shape_cast %76 : vector<8x8x128xbf16> to vector<64x128xbf16>
    %c8 = arith.constant 8 : index
    %c0_82 = arith.constant 0 : index
    %c0_83 = arith.constant 0 : index
    %78 = vector.load %arg8[%c8, %c0_82, %c0_83] : memref<9x128x128xbf16, #tpu.memory_space<vmem>>, vector<1x128x128xbf16>
    %79 = vector.shape_cast %78 : vector<1x128x128xbf16> to vector<128x128xbf16>
    %cst_84 = arith.constant dense<0.000000e+00> : vector<64x128xf32>
    %80 = tpu.matmul %77, %79, %cst_84 {dimension_numbers = #tpu.dot_dimension_numbers<[1], [0], [0], [1], [0, 0, 1, 1], [], []>} : vector<64x128xbf16>, vector<128x128xbf16>, vector<64x128xf32> -> vector<64x128xf32>
    %81 = arith.addf %75, %80 : vector<64x128xf32>
    %c0_85 = arith.constant 0 : index
    %c0_86 = arith.constant 0 : index
    %82 = vector.load %arg9[%c0_85, %c0_86] : memref<1x128xf32, #tpu.memory_space<vmem>>, vector<1x128xf32>
    %83 = vector.broadcast %82 : vector<1x128xf32> to vector<64x128xf32>
    %84 = arith.addf %81, %83 : vector<64x128xf32>
    %cst_87 = arith.constant 0.000000e+00 : f32
    %85 = vector.broadcast %cst_87 : f32 to vector<64x128xf32>
    %86 = arith.cmpf oge, %84, %85 : vector<64x128xf32>
    %cst_88 = arith.constant 0.00999999977 : f32
    %87 = vector.broadcast %cst_88 : f32 to vector<64x128xf32>
    %88 = arith.mulf %87, %84 : vector<64x128xf32>
    %89 = arith.select %86, %84, %88 : vector<64x128xi1>, vector<64x128xf32>
    %90 = vector.shape_cast %89 : vector<64x128xf32> to vector<1x8x8x128xf32>
    %c0_89 = arith.constant 0 : index
    %c0_90 = arith.constant 0 : index
    %c0_91 = arith.constant 0 : index
    %c0_92 = arith.constant 0 : index
    %91 = vector.load %arg10[%c0_89, %c0_90, %c0_91, %c0_92] : memref<1x8x8x128xf32, #tpu.memory_space<vmem>>, vector<1x8x8x128xf32>
    tpu.vector_store %arg10[%c0_89, %c0_90, %c0_91, %c0_92], %90 {strides = array<i32>} : memref<1x8x8x128xf32, #tpu.memory_space<vmem>>, vector<1x8x8x128xf32>,
    return
  }
  func.func @transform_0(%arg0: i32) -> (i32, i32, i32, i32) {
    %c0_i32 = arith.constant 0 : i32
    %c0_i32_0 = arith.constant 0 : i32
    %c0_i32_1 = arith.constant 0 : i32
    %c0_i32_2 = arith.constant 0 : i32
    return %arg0, %c0_i32, %c0_i32_0, %c0_i32_1 : i32, i32, i32, i32
  }
  func.func @transform_1(%arg0: i32) -> (i32, i32, i32, i32) {
    %c0_i32 = arith.constant 0 : i32
    %c0_i32_0 = arith.constant 0 : i32
    %c0_i32_1 = arith.constant 0 : i32
    %c0_i32_2 = arith.constant 0 : i32
    return %arg0, %c0_i32, %c0_i32_0, %c0_i32_1 : i32, i32, i32, i32
  }
  func.func @transform_2(%arg0: i32) -> (i32, i32, i32, i32) {
    %c0_i32 = arith.constant 0 : i32
    %c0_i32_0 = arith.constant 0 : i32
    %c0_i32_1 = arith.constant 0 : i32
    %c0_i32_2 = arith.constant 0 : i32
    return %arg0, %c0_i32, %c0_i32_0, %c0_i32_1 : i32, i32, i32, i32
  }
  func.func @transform_3(%arg0: i32) -> (i32, i32) {
    %c0_i32 = arith.constant 0 : i32
    %c0_i32_0 = arith.constant 0 : i32
    %c0_i32_1 = arith.constant 0 : i32
    return %c0_i32, %c0_i32_0 : i32, i32
  }
  func.func @transform_4(%arg0: i32) -> (i32, i32) {
    %c0_i32 = arith.constant 0 : i32
    %c0_i32_0 = arith.constant 0 : i32
    %c0_i32_1 = arith.constant 0 : i32
    return %c0_i32, %c0_i32_0 : i32, i32
  }
  func.func @transform_5(%arg0: i32) -> (i32, i32) {
    %c0_i32 = arith.constant 0 : i32
    %c0_i32_0 = arith.constant 0 : i32
    %c0_i32_1 = arith.constant 0 : i32
    return %c0_i32, %c0_i32_0 : i32, i32
  }
  func.func @transform_6(%arg0: i32) -> (i32, i32) {
    %c0_i32 = arith.constant 0 : i32
    %c0_i32_0 = arith.constant 0 : i32
    %c0_i32_1 = arith.constant 0 : i32
    return %c0_i32, %c0_i32_0 : i32, i32
  }
  func.func @transform_7(%arg0: i32) -> (i32, i32, i32) {
    %c0_i32 = arith.constant 0 : i32
    %c0_i32_0 = arith.constant 0 : i32
    %c0_i32_1 = arith.constant 0 : i32
    %c0_i32_2 = arith.constant 0 : i32
    return %c0_i32, %c0_i32_0, %c0_i32_1 : i32, i32, i32
  }
  func.func @transform_8(%arg0: i32) -> (i32, i32) {
    %c0_i32 = arith.constant 0 : i32
    %c0_i32_0 = arith.constant 0 : i32
    %c0_i32_1 = arith.constant 0 : i32
    return %c0_i32, %c0_i32_0 : i32, i32
  }
  func.func @transform_9(%arg0: i32) -> (i32, i32, i32, i32) {
    %c0_i32 = arith.constant 0 : i32
    %c0_i32_0 = arith.constant 0 : i32
    %c0_i32_1 = arith.constant 0 : i32
    %c0_i32_2 = arith.constant 0 : i32
    return %arg0, %c0_i32, %c0_i32_0, %c0_i32_1 : i32, i32, i32, i32
  }
}

</mosaic_0001>

<llo_original>
// kernel: cfi_forward.4
$region0: #{cfi_forward.4}
  #allocation0 [shape = 'u32[]', space=smem, size = 0x4, offset = 0x4, fixed_abs, tag = 'smem constant byte address 0x4 - core index']
  #allocation1 [shape = 'u32[144,128]{1,0:T(1,128)}', space=vmem, size = 0x12000, scoped, tag = 'internal scratch']
  %s0 = inlined_call_operand.vmem [shape: bf16[2,10,10,128], index: 0, kind: input, shape index: {}]
  %s1 = inlined_call_operand.vmem [shape: bf16[9,128,128], index: 1, kind: input, shape index: {}]
  %s2 = inlined_call_operand.vmem [shape: f32[1,128], index: 2, kind: input, shape index: {}]
  %s3 = inlined_call_operand.vmem [shape: bf16[2,8,8,128], index: 3, kind: output, shape index: {}]
  %s4 = sld [smem:[#allocation0]]
  $region45: #{cfi_forward.4} parent=0
    _
  %s6 = ssub.s32 1, %s4
  %s7 = scalar_select 0, %s6, %s4
  loop: start=0, step=1, limit=4
  $region2: #{cfi_forward.4} parent=0 // loop_pre_header
    _
  $region3: #{cfi_forward.4} parent=0 // loop_header
    %s9 = sphi 0, %s13
    %p10 = scmp.ge.s32.totalorder %s9, 4
    %s19 = sphi 0, %s21
    %s22 = sphi 0, %s19
    %s23 = sphi 0, %s22
    %s39 = sphi 0, %s23
    %s43 = sphi 0, %s43
    %s45 = sphi 0, %s43
    %s46 = sphi 0, %s45
    %s60 = sphi 0, %s46
    %s64 = sphi 0, %s64
    %s66 = sphi 0, %s64
    %s67 = sphi 0, %s66
    %s81 = sphi 0, %s67
    %s87 = sphi 0, %s89
    %s90 = sphi 0, %s87
    %s91 = sphi 0, %s90
    %s107 = sphi 0, %s91
  $region4: #{cfi_forward.4} parent=0 // loop_header_branch
    %12 = sbr.rel (%p10) target = $region8
  $region5: #{cfi_forward.4} parent=0 // loop_body
    %s14 = ssub.s32 %s9, 1
    %s15 = ssub.s32 %s9, 2
    %s16 = sadd.s32 %s9, 1
    %s17 = ssub.s32 %s9, %s16
    %p18 = scmp.eq.s32.totalorder %s17, 0
    %s20 = sadd.s32 %s19, 1
    %s21 = scalar_select %p18, %s19, %s20
    %p24 = pneg %p18
    %p25 = scmp.eq.s32.totalorder %s9, 1
    %p26 = por %p24, %p25
    %p27 = scmp.ne.s32.totalorder %s19, %s22
    %p28 = scmp.eq.s32.totalorder %s9, 0
    %p29 = por %p27, %p28
    %p30 = scmp.ne.s32.totalorder %s19, %s22
    %p31 = scmp.eq.s32.totalorder %s14, 1
    %p32 = por %p30, %p31
    %p33 = scmp.ne.s32.totalorder %s22, %s23
    %p34 = scmp.eq.s32.totalorder %s14, 0
    %p35 = por %p33, %p34
    %p36 = scmp.ne.s32.totalorder %s22, %s23
    %p37 = scmp.eq.s32.totalorder %s15, 1
    %p38 = por %p36, %p37
    %p40 = scmp.ne.s32.totalorder %s23, %s39
    %p41 = scmp.eq.s32.totalorder %s15, 0
    %p42 = por %p40, %p41
    %s44 = sadd.s32 %s43, 1
    %p47 = scmp.eq.s32.totalorder %s9, 1
    %p48 = scmp.ne.s32.totalorder %s43, %s45
    %p49 = scmp.eq.s32.totalorder %s9, 0
    %p50 = por %p48, %p49
    %p51 = scmp.ne.s32.totalorder %s43, %s45
    %p52 = scmp.eq.s32.totalorder %s14, 1
    %p53 = por %p51, %p52
    %p54 = scmp.ne.s32.totalorder %s45, %s46
    %p55 = scmp.eq.s32.totalorder %s14, 0
    %p56 = por %p54, %p55
    %p57 = scmp.ne.s32.totalorder %s45, %s46
    %p58 = scmp.eq.s32.totalorder %s15, 1
    %p59 = por %p57, %p58
    %p61 = scmp.ne.s32.totalorder %s46, %s60
    %p62 = scmp.eq.s32.totalorder %s15, 0
    %p63 = por %p61, %p62
    %s65 = sadd.s32 %s64, 1
    %p68 = scmp.eq.s32.totalorder %s9, 1
    %p69 = scmp.ne.s32.totalorder %s64, %s66
    %p70 = scmp.eq.s32.totalorder %s9, 0
    %p71 = por %p69, %p70
    %p72 = scmp.ne.s32.totalorder %s64, %s66
    %p73 = scmp.eq.s32.totalorder %s14, 1
    %p74 = por %p72, %p73
    %p75 = scmp.ne.s32.totalorder %s66, %s67
    %p76 = scmp.eq.s32.totalorder %s14, 0
    %p77 = por %p75, %p76
    %p78 = scmp.ne.s32.totalorder %s66, %s67
    %p79 = scmp.eq.s32.totalorder %s15, 1
    %p80 = por %p78, %p79
    %p82 = scmp.ne.s32.totalorder %s67, %s81
    %p83 = scmp.eq.s32.totalorder %s15, 0
    %p84 = por %p82, %p83
    %s85 = ssub.s32 %s9, %s16
    %p86 = scmp.eq.s32.totalorder %s85, 0
    %s88 = sadd.s32 %s87, 1
    %s89 = scalar_select %p86, %s87, %s88
    %p92 = pneg %p86
    %p93 = scmp.eq.s32.totalorder %s9, 1
    %p94 = por %p92, %p93
    %p95 = scmp.ne.s32.totalorder %s87, %s90
    %p96 = scmp.eq.s32.totalorder %s9, 0
    %p97 = por %p95, %p96
    %p98 = scmp.ne.s32.totalorder %s87, %s90
    %p99 = scmp.eq.s32.totalorder %s14, 1
    %p100 = por %p98, %p99
    %p101 = scmp.ne.s32.totalorder %s90, %s91
    %p102 = scmp.eq.s32.totalorder %s14, 0
    %p103 = por %p101, %p102
    %p104 = scmp.ne.s32.totalorder %s90, %s91
    %p105 = scmp.eq.s32.totalorder %s15, 1
    %p106 = por %p104, %p105
    %p108 = scmp.ne.s32.totalorder %s91, %s107
    %p109 = scmp.eq.s32.totalorder %s15, 0
    %p110 = por %p108, %p109
    %p111 = scmp.le.s32.totalorder 1, %s9
    %p112 = scmp.lt.s32.totalorder %s9, 3
    %p113 = pnand %p111, %p112
    %p114 = pneg %p113
    // Predicated region
    $region9: #{cfi_forward.4} parent=5 // pred_check
      _
    $region10: #{cfi_forward.4} parent=5 // pred_check_branch
      %116 = sbr.rel (%p113) target = $region12
    $region11: #{cfi_forward.4} parent=5 // pred_region
      %s117 = ssub.s32 %s9, 1
      // Predicated region
      $region13: #{cfi_forward.4} parent=11 // pred_check
        %p118 = pneg %p56
      $region14: #{cfi_forward.4} parent=11 // pred_check_branch
        %120 = sbr.rel (%p118) target = $region16
      $region15: #{cfi_forward.4} parent=11 // pred_region
        _
      $region16: #{cfi_forward.4} parent=11 // pred_fallthru
        _
      // Predicated region
      $region17: #{cfi_forward.4} parent=11 // pred_check
        %p121 = pneg %p77
      $region18: #{cfi_forward.4} parent=11 // pred_check_branch
        %123 = sbr.rel (%p121) target = $region20
      $region19: #{cfi_forward.4} parent=11 // pred_region
        _
      $region20: #{cfi_forward.4} parent=11 // pred_fallthru
        _
    $region12: #{cfi_forward.4} parent=5 // pred_fallthru
      _
    %p124 = scmp.lt.s32.totalorder %s9, 2
    // Predicated region
    $region21: #{cfi_forward.4} parent=5 // pred_check
      %p125 = pneg %p124
    $region22: #{cfi_forward.4} parent=5 // pred_check_branch
      %127 = sbr.rel (%p125) target = $region24
    $region23: #{cfi_forward.4} parent=5 // pred_region
      // Predicated region
      $region25: #{cfi_forward.4} parent=23 // pred_check
        %p128 = pneg %p29
      $region26: #{cfi_forward.4} parent=23 // pred_check_branch
        %130 = sbr.rel (%p128) target = $region28
      $region27: #{cfi_forward.4} parent=23 // pred_region
        %p131 = scmp.lt.s32.totalorder %s9, 1
        %s132 = scalar_select %p131, %s9, 1
        %s133 = smul.addr %s132, 20
        %s134 = smul.addr %s133, 4
        %s135 = scalar_lea.vmem %s0, %s134
      $region28: #{cfi_forward.4} parent=23 // pred_fallthru
        _
    $region24: #{cfi_forward.4} parent=5 // pred_fallthru
      _
    %p136 = scmp.le.s32.totalorder 1, %s9
    %p137 = scmp.lt.s32.totalorder %s9, 3
    %p138 = pnand %p136, %p137
    %p139 = pneg %p138
    // Predicated region
    $region29: #{cfi_forward.4} parent=5 // pred_check
      _
    $region30: #{cfi_forward.4} parent=5 // pred_check_branch
      %141 = sbr.rel (%p138) target = $region32
    $region31: #{cfi_forward.4} parent=5 // pred_region
      %s142 = ssub.s32 %s9, 1
      %p143 = scmp.lt.s32.totalorder %s14, 1
      %s144 = scalar_select %p143, %s14, 1
      %s145 = smul.addr %s144, 20
      %s146 = smul.addr %s145, 4
      %s147 = scalar_lea.vmem %s0, %s146
      %p148 = pneg %p35
      %p149 = pneg %p32
      %p150 = pneg %p56
      %p151 = pneg %p53
      %p152 = pneg %p77
      %p153 = pneg %p74
      %p154 = pneg %p103
      %p155 = pneg %p100
      %p156 = scmp.lt.s32.totalorder %s14, 1
      %s157 = scalar_select %p156, %s14, 1
      %s158 = smul.addr %s157, 8
      %s159 = smul.addr %s158, 4
      %s160 = scalar_lea.vmem %s3, %s159
      %p161 = scmp.lt.s32.totalorder %s14, 1
      %s162 = scalar_select %p161, %s14, 1
      %s163 = smul.addr %s162, 20
      %s164 = smul.addr %s163, 4
      %s165 = scalar_lea.vmem %s0, %s164
      %p166 = scmp.lt.s32.totalorder %s14, 1
      %s167 = scalar_select %p166, %s14, 1
      %s168 = smul.addr %s167, 8
      %s169 = smul.addr %s168, 4
      %s170 = scalar_lea.vmem %s3, %s169
      %v172 = vld [vmem:[%s165] sm:$0xf]
      %v173 = vld [vmem:[%s165 + $0x8] sm:$0xf]
      %v174 = vld [vmem:[%s165 + $0x10] sm:$0xf]
      %v175 = vld [vmem:[%s165 + $0x18] sm:$0xf]
      %v176 = vld [vmem:[%s165 + $0x20] sm:$0xf]
      %v177 = vld [vmem:[%s165 + $0x28] sm:$0xf]
      %v178 = vld [vmem:[%s165 + $0x30] sm:$0xf]
      %v179 = vld [vmem:[%s165 + $0x38] sm:$0xf]
      %v180 = vld [vmem:[%s1] sm:$0xf]
      %v181 = vld [vmem:[%s1 + $0x4] sm:$0xf]
      %v182 = vld [vmem:[%s1 + $0x8] sm:$0xf]
      %v183 = vld [vmem:[%s1 + $0xc] sm:$0xf]
      %v184 = vld [vmem:[%s1 + $0x10] sm:$0xf]
      %v185 = vld [vmem:[%s1 + $0x14] sm:$0xf]
      %v186 = vld [vmem:[%s1 + $0x18] sm:$0xf]
      %v187 = vld [vmem:[%s1 + $0x1c] sm:$0xf]
      %v188 = vld [vmem:[%s1 + $0x20] sm:$0xf]
      %v189 = vld [vmem:[%s1 + $0x24] sm:$0xf]
      %v190 = vld [vmem:[%s1 + $0x28] sm:$0xf]
      %v191 = vld [vmem:[%s1 + $0x2c] sm:$0xf]
      %v192 = vld [vmem:[%s1 + $0x30] sm:$0xf]
      %v193 = vld [vmem:[%s1 + $0x34] sm:$0xf]
      %v194 = vld [vmem:[%s1 + $0x38] sm:$0xf]
      %v195 = vld [vmem:[%s1 + $0x3c] sm:$0xf]
      %v196 = vld [vmem:[%s165 + $0x4] sm:$0x1]
      %v197 = vld [vmem:[%s165 + $0xc] sm:$0x1]
      %v198 = vld [vmem:[%s165 + $0x14] sm:$0x1]
      %v199 = vld [vmem:[%s165 + $0x1c] sm:$0x1]
      %v200 = vld [vmem:[%s165 + $0x24] sm:$0x1]
      %v201 = vld [vmem:[%s165 + $0x2c] sm:$0x1]
      %v202 = vld [vmem:[%s165 + $0x34] sm:$0x1]
      %v203 = vld [vmem:[%s165 + $0x3c] sm:$0x1]
      %vm204 = vsmask.f32 3328
      %vm205 = vsmask.f32 7440
      %vm206 = vmor %vm204, %vm205
      %v208 = vshrl.u32 %v172, 16
      %v210 = vrot.slane %v208, 4
      %v211 = vshll.u32 %v172, 16
      %v213 = vrot.slane %v211, 5
      %v214 = vor.u32 %v210, %v213
      %v215 = vrot.slane %v214, 4
      %v217 = vshll.u32 %v196, 16
      %v219 = vrot.slane %v217, 5
      %v220 = vsel %vm206, %v215, %v219
      %v222 = vshrl.u32 %v173, 16
      %v224 = vrot.slane %v222, 4
      %v225 = vshll.u32 %v173, 16
      %v227 = vrot.slane %v225, 5
      %v228 = vor.u32 %v224, %v227
      %v229 = vrot.slane %v228, 4
      %v231 = vshll.u32 %v197, 16
      %v233 = vrot.slane %v231, 5
      %v234 = vsel %vm206, %v229, %v233
      %v236 = vshrl.u32 %v174, 16
      %v238 = vrot.slane %v236, 4
      %v239 = vshll.u32 %v174, 16
      %v241 = vrot.slane %v239, 5
      %v242 = vor.u32 %v238, %v241
      %v243 = vrot.slane %v242, 4
      %v245 = vshll.u32 %v198, 16
      %v247 = vrot.slane %v245, 5
      %v248 = vsel %vm206, %v243, %v247
      %v250 = vshrl.u32 %v175, 16
      %v252 = vrot.slane %v250, 4
      %v253 = vshll.u32 %v175, 16
      %v255 = vrot.slane %v253, 5
      %v256 = vor.u32 %v252, %v255
      %v257 = vrot.slane %v256, 4
      %v259 = vshll.u32 %v199, 16
      %v261 = vrot.slane %v259, 5
      %v262 = vsel %vm206, %v257, %v261
      %v264 = vshrl.u32 %v176, 16
      %v266 = vrot.slane %v264, 4
      %v267 = vshll.u32 %v176, 16
      %v269 = vrot.slane %v267, 5
      %v270 = vor.u32 %v266, %v269
      %v271 = vrot.slane %v270, 4
      %v273 = vshll.u32 %v200, 16
      %v275 = vrot.slane %v273, 5
      %v276 = vsel %vm206, %v271, %v275
      %v278 = vshrl.u32 %v177, 16
      %v280 = vrot.slane %v278, 4
      %v281 = vshll.u32 %v177, 16
      %v283 = vrot.slane %v281, 5
      %v284 = vor.u32 %v280, %v283
      %v285 = vrot.slane %v284, 4
      %v287 = vshll.u32 %v201, 16
      %v289 = vrot.slane %v287, 5
      %v290 = vsel %vm206, %v285, %v289
      %v292 = vshrl.u32 %v178, 16
      %v294 = vrot.slane %v292, 4
      %v295 = vshll.u32 %v178, 16
      %v297 = vrot.slane %v295, 5
      %v298 = vor.u32 %v294, %v297
      %v299 = vrot.slane %v298, 4
      %v301 = vshll.u32 %v202, 16
      %v303 = vrot.slane %v301, 5
      %v304 = vsel %vm206, %v299, %v303
      %v306 = vshrl.u32 %v179, 16
      %v308 = vrot.slane %v306, 4
      %v309 = vshll.u32 %v179, 16
      %v311 = vrot.slane %v309, 5
      %v312 = vor.u32 %v308, %v311
      %v313 = vrot.slane %v312, 4
      %v315 = vshll.u32 %v203, 16
      %v317 = vrot.slane %v315, 5
      %v318 = vsel %vm206, %v313, %v317
      %s319 = scalar_lea.vmem %s1, 64
      %v320 = vld [vmem:[%s319] sm:$0xf]
      %v321 = vld [vmem:[%s319 + $0x4] sm:$0xf]
      %v322 = vld [vmem:[%s319 + $0x8] sm:$0xf]
      %v323 = vld [vmem:[%s319 + $0xc] sm:$0xf]
      %v324 = vld [vmem:[%s319 + $0x10] sm:$0xf]
      %v325 = vld [vmem:[%s319 + $0x14] sm:$0xf]
      %v326 = vld [vmem:[%s319 + $0x18] sm:$0xf]
      %v327 = vld [vmem:[%s319 + $0x1c] sm:$0xf]
      %v328 = vld [vmem:[%s319 + $0x20] sm:$0xf]
      %v329 = vld [vmem:[%s319 + $0x24] sm:$0xf]
      %v330 = vld [vmem:[%s319 + $0x28] sm:$0xf]
      %v331 = vld [vmem:[%s319 + $0x2c] sm:$0xf]
      %v332 = vld [vmem:[%s319 + $0x30] sm:$0xf]
      %v333 = vld [vmem:[%s319 + $0x34] sm:$0xf]
      %v334 = vld [vmem:[%s319 + $0x38] sm:$0xf]
      %v335 = vld [vmem:[%s319 + $0x3c] sm:$0xf]
      %v336 = vunpack.c.l.b16 %v220
      %v337 = vunpack.c.l.b16 %v234
      %v338 = vunpack.c.l.b16 %v248
      %v339 = vunpack.c.l.b16 %v262
      %v340 = vunpack.c.l.b16 %v276
      %v341 = vunpack.c.l.b16 %v290
      %v342 = vunpack.c.l.b16 %v304
      %v343 = vunpack.c.l.b16 %v318
      %v344 = vpack.c.b16 %v337, %v336
      %v345 = vpack.c.b16 %v339, %v338
      %v346 = vpack.c.b16 %v341, %v340
      %v347 = vpack.c.b16 %v343, %v342
      %v368 = vunpack.c.l.b16 %v320
      %v369 = vunpack.c.l.b16 %v321
      %v370 = vunpack.c.l.b16 %v322
      %v371 = vunpack.c.l.b16 %v323
      %v372 = vunpack.c.l.b16 %v324
      %v373 = vunpack.c.l.b16 %v325
      %v374 = vunpack.c.l.b16 %v326
      %v375 = vunpack.c.l.b16 %v327
      %v376 = vunpack.c.l.b16 %v328
      %v377 = vunpack.c.l.b16 %v329
      %v378 = vunpack.c.l.b16 %v330
      %v379 = vunpack.c.l.b16 %v331
      %v380 = vunpack.c.l.b16 %v332
      %v381 = vunpack.c.l.b16 %v333
      %v382 = vunpack.c.l.b16 %v334
      %v383 = vunpack.c.l.b16 %v335
      %v384 = vpack.c.b16 %v369, %v368
      %v385 = vpack.c.b16 %v371, %v370
      %v386 = vpack.c.b16 %v373, %v372
      %v387 = vpack.c.b16 %v375, %v374
      %v388 = vpack.c.b16 %v377, %v376
      %v389 = vpack.c.b16 %v379, %v378
      %v390 = vpack.c.b16 %v381, %v380
      %v391 = vpack.c.b16 %v383, %v382
      %400 = vmatprep.subr.bf16.mxu0 0
      %401 = vmatpush1.bf16.msra.mxu0 %v384
      %402 = vmatprep.subr.bf16.mxu0 0
      %403 = vmatpush1.bf16.msra.mxu0 %v385
      %404 = vmatprep.subr.bf16.mxu0 0
      %405 = vmatpush1.bf16.msra.mxu0 %v386
      %406 = vmatprep.subr.bf16.mxu0 0
      %407 = vmatpush1.bf16.msra.mxu0 %v387
      %408 = vmatprep.subr.bf16.mxu0 0
      %409 = vmatpush1.bf16.msra.mxu0 %v388
      %410 = vmatprep.subr.bf16.mxu0 0
      %411 = vmatpush1.bf16.msra.mxu0 %v389
      %412 = vmatprep.subr.bf16.mxu0 0
      %413 = vmatpush1.bf16.msra.mxu0 %v390
      %414 = vmatprep.subr.bf16.mxu0 0
      %415 = vmatpush1.bf16.msra.mxu0 %v391
      %416 = vmatprep.subr.bf16.mxu0 0
      %417 = vmatpush1.bf16.msra.mxu0 0
      %418 = vmatprep.subr.bf16.mxu0 0
      %419 = vmatpush1.bf16.msra.mxu0 0
      %420 = vmatprep.subr.bf16.mxu0 0
      %421 = vmatpush1.bf16.msra.mxu0 0
      %422 = vmatprep.subr.bf16.mxu0 0
      %423 = vmatpush1.bf16.msra.mxu0 0
      %424 = vmatprep.subr.bf16.mxu0 0
      %425 = vmatpush1.bf16.msra.mxu0 0
      %426 = vmatprep.subr.bf16.mxu0 0
      %427 = vmatpush1.bf16.msra.mxu0 0
      %428 = vmatprep.subr.bf16.mxu0 0
      %429 = vmatpush1.bf16.msra.mxu0 0
      %430 = vmatprep.subr.bf16.mxu0 0
      %431 = vmatpush1.bf16.msra.mxu0 0
      %432 = vmatprep.mubr.bf16.mxu0 0
      %433 = vmatmul.mubr.bf16.gmra.mrb[0].mxu0 %v344
      %v434 = vpop.f32.mrb[0].mxu0
      %v435 = vadd.f32 0.0, %v434
      %v436 = vpop.f32.mrb[0].mxu0
      %v437 = vpop.f32.mrb[0].mxu0
      %v438 = vadd.f32 0.0, %v437
      %v439 = vpop.f32.mrb[0].mxu0
      %440 = vmatprep.mubr.bf16.mxu0 0
      %441 = vmatmul.mubr.bf16.gmra.mrb[0].mxu0 %v345
      %v442 = vpop.f32.mrb[0].mxu0
      %v443 = vadd.f32 0.0, %v442
      %v444 = vpop.f32.mrb[0].mxu0
      %v445 = vpop.f32.mrb[0].mxu0
      %v446 = vadd.f32 0.0, %v445
      %v447 = vpop.f32.mrb[0].mxu0
      %448 = vmatprep.mubr.bf16.mxu0 0
      %449 = vmatmul.mubr.bf16.gmra.mrb[0].mxu0 %v346
      %v450 = vpop.f32.mrb[0].mxu0
      %v451 = vadd.f32 0.0, %v450
      %v452 = vpop.f32.mrb[0].mxu0
      %v453 = vpop.f32.mrb[0].mxu0
      %v454 = vadd.f32 0.0, %v453
      %v455 = vpop.f32.mrb[0].mxu0
      %456 = vmatprep.mubr.bf16.mxu0 0
      %457 = vmatmul.mubr.bf16.gmra.mrb[0].mxu0 %v347
      %v458 = vpop.f32.mrb[0].mxu0
      %v459 = vadd.f32 0.0, %v458
      %v460 = vpop.f32.mrb[0].mxu0
      %v461 = vpop.f32.mrb[0].mxu0
      %v462 = vadd.f32 0.0, %v461
      %v463 = vpop.f32.mrb[0].mxu0
      %464 = vdwg.mxu0
      %v473 = vunpack.c.l.b16 %v172
      %v474 = vunpack.c.l.b16 %v173
      %v475 = vunpack.c.l.b16 %v174
      %v476 = vunpack.c.l.b16 %v175
      %v477 = vunpack.c.l.b16 %v176
      %v478 = vunpack.c.l.b16 %v177
      %v479 = vunpack.c.l.b16 %v178
      %v480 = vunpack.c.l.b16 %v179
      %v481 = vpack.c.b16 %v474, %v473
      %v482 = vpack.c.b16 %v476, %v475
      %v483 = vpack.c.b16 %v478, %v477
      %v484 = vpack.c.b16 %v480, %v479
      %v505 = vunpack.c.l.b16 %v180
      %v506 = vunpack.c.l.b16 %v181
      %v507 = vunpack.c.l.b16 %v182
      %v508 = vunpack.c.l.b16 %v183
      %v509 = vunpack.c.l.b16 %v184
      %v510 = vunpack.c.l.b16 %v185
      %v511 = vunpack.c.l.b16 %v186
      %v512 = vunpack.c.l.b16 %v187
      %v513 = vunpack.c.l.b16 %v188
      %v514 = vunpack.c.l.b16 %v189
      %v515 = vunpack.c.l.b16 %v190
      %v516 = vunpack.c.l.b16 %v191
      %v517 = vunpack.c.l.b16 %v192
      %v518 = vunpack.c.l.b16 %v193
      %v519 = vunpack.c.l.b16 %v194
      %v520 = vunpack.c.l.b16 %v195
      %v521 = vpack.c.b16 %v506, %v505
      %v522 = vpack.c.b16 %v508, %v507
      %v523 = vpack.c.b16 %v510, %v509
      %v524 = vpack.c.b16 %v512, %v511
      %v525 = vpack.c.b16 %v514, %v513
      %v526 = vpack.c.b16 %v516, %v515
      %v527 = vpack.c.b16 %v518, %v517
      %v528 = vpack.c.b16 %v520, %v519
      %537 = vmatprep.subr.bf16.mxu0 0
      %538 = vmatpush1.bf16.msra.mxu0 %v521
      %539 = vmatprep.subr.bf16.mxu0 0
      %540 = vmatpush1.bf16.msra.mxu0 %v522
      %541 = vmatprep.subr.bf16.mxu0 0
      %542 = vmatpush1.bf16.msra.mxu0 %v523
      %543 = vmatprep.subr.bf16.mxu0 0
      %544 = vmatpush1.bf16.msra.mxu0 %v524
      %545 = vmatprep.subr.bf16.mxu0 0
      %546 = vmatpush1.bf16.msra.mxu0 %v525
      %547 = vmatprep.subr.bf16.mxu0 0
      %548 = vmatpush1.bf16.msra.mxu0 %v526
      %549 = vmatprep.subr.bf16.mxu0 0
      %550 = vmatpush1.bf16.msra.mxu0 %v527
      %551 = vmatprep.subr.bf16.mxu0 0
      %552 = vmatpush1.bf16.msra.mxu0 %v528
      %553 = vmatprep.subr.bf16.mxu0 0
      %554 = vmatpush1.bf16.msra.mxu0 0
      %555 = vmatprep.subr.bf16.mxu0 0
      %556 = vmatpush1.bf16.msra.mxu0 0
      %557 = vmatprep.subr.bf16.mxu0 0
      %558 = vmatpush1.bf16.msra.mxu0 0
      %559 = vmatprep.subr.bf16.mxu0 0
      %560 = vmatpush1.bf16.msra.mxu0 0
      %561 = vmatprep.subr.bf16.mxu0 0
      %562 = vmatpush1.bf16.msra.mxu0 0
      %563 = vmatprep.subr.bf16.mxu0 0
      %564 = vmatpush1.bf16.msra.mxu0 0
      %565 = vmatprep.subr.bf16.mxu0 0
      %566 = vmatpush1.bf16.msra.mxu0 0
      %567 = vmatprep.subr.bf16.mxu0 0
      %568 = vmatpush1.bf16.msra.mxu0 0
      %569 = vmatprep.mubr.bf16.mxu0 0
      %570 = vmatmul.mubr.bf16.gmra.mrb[0].mxu0 %v481
      %v571 = vpop.f32.mrb[0].mxu0
      %v572 = vadd.f32 %v435, %v571
      %v573 = vpop.f32.mrb[0].mxu0
      %v574 = vpop.f32.mrb[0].mxu0
      %v575 = vadd.f32 %v438, %v574
      %v576 = vpop.f32.mrb[0].mxu0
      %577 = vmatprep.mubr.bf16.mxu0 0
      %578 = vmatmul.mubr.bf16.gmra.mrb[0].mxu0 %v482
      %v579 = vpop.f32.mrb[0].mxu0
      %v580 = vadd.f32 %v443, %v579
      %v581 = vpop.f32.mrb[0].mxu0
      %v582 = vpop.f32.mrb[0].mxu0
      %v583 = vadd.f32 %v446, %v582
      %v584 = vpop.f32.mrb[0].mxu0
      %585 = vmatprep.mubr.bf16.mxu0 0
      %586 = vmatmul.mubr.bf16.gmra.mrb[0].mxu0 %v483
      %v587 = vpop.f32.mrb[0].mxu0
      %v588 = vadd.f32 %v451, %v587
      %v589 = vpop.f32.mrb[0].mxu0
      %v590 = vpop.f32.mrb[0].mxu0
      %v591 = vadd.f32 %v454, %v590
      %v592 = vpop.f32.mrb[0].mxu0
      %593 = vmatprep.mubr.bf16.mxu0 0
      %594 = vmatmul.mubr.bf16.gmra.mrb[0].mxu0 %v484
      %v595 = vpop.f32.mrb[0].mxu0
      %v596 = vadd.f32 %v459, %v595
      %v597 = vpop.f32.mrb[0].mxu0
      %v598 = vpop.f32.mrb[0].mxu0
      %v599 = vadd.f32 %v462, %v598
      %v600 = vpop.f32.mrb[0].mxu0
      %601 = vdwg.mxu0
      %v602 = vld [vmem:[%s165] sm:$0xe]
      %v603 = vld [vmem:[%s165 + $0x8] sm:$0xe]
      %v604 = vld [vmem:[%s165 + $0x10] sm:$0xe]
      %v605 = vld [vmem:[%s165 + $0x18] sm:$0xe]
      %v606 = vld [vmem:[%s165 + $0x20] sm:$0xe]
      %v607 = vld [vmem:[%s165 + $0x28] sm:$0xe]
      %v608 = vld [vmem:[%s165 + $0x30] sm:$0xe]
      %v609 = vld [vmem:[%s165 + $0x38] sm:$0xe]
      %vm626 = vcmask 1042432
      %vm627 = vcmask 1046532
      %vm628 = vmor %vm626, %vm627
      %v629 = vrot.slane %v602, 5
      %v630 = vrot.slane %v629, 4
      %v631 = vrot.slane %v196, 5
      %v632 = vsel %vm628, %v630, %v631
      %v633 = vrot.slane %v603, 5
      %v634 = vrot.slane %v633, 4
      %v635 = vrot.slane %v197, 5
      %v636 = vsel %vm628, %v634, %v635
      %v637 = vrot.slane %v604, 5
      %v638 = vrot.slane %v637, 4
      %v639 = vrot.slane %v198, 5
      %v640 = vsel %vm628, %v638, %v639
      %v641 = vrot.slane %v605, 5
      %v642 = vrot.slane %v641, 4
      %v643 = vrot.slane %v199, 5
      %v644 = vsel %vm628, %v642, %v643
      %v645 = vrot.slane %v606, 5
      %v646 = vrot.slane %v645, 4
      %v647 = vrot.slane %v200, 5
      %v648 = vsel %vm628, %v646, %v647
      %v649 = vrot.slane %v607, 5
      %v650 = vrot.slane %v649, 4
      %v651 = vrot.slane %v201, 5
      %v652 = vsel %vm628, %v650, %v651
      %v653 = vrot.slane %v608, 5
      %v654 = vrot.slane %v653, 4
      %v655 = vrot.slane %v202, 5
      %v656 = vsel %vm628, %v654, %v655
      %v657 = vrot.slane %v609, 5
      %v658 = vrot.slane %v657, 4
      %v659 = vrot.slane %v203, 5
      %v660 = vsel %vm628, %v658, %v659
      %s661 = scalar_lea.vmem %s1, 128
      %v662 = vld [vmem:[%s661] sm:$0xf]
      %v663 = vld [vmem:[%s661 + $0x4] sm:$0xf]
      %v664 = vld [vmem:[%s661 + $0x8] sm:$0xf]
      %v665 = vld [vmem:[%s661 + $0xc] sm:$0xf]
      %v666 = vld [vmem:[%s661 + $0x10] sm:$0xf]
      %v667 = vld [vmem:[%s661 + $0x14] sm:$0xf]
      %v668 = vld [vmem:[%s661 + $0x18] sm:$0xf]
      %v669 = vld [vmem:[%s661 + $0x1c] sm:$0xf]
      %v670 = vld [vmem:[%s661 + $0x20] sm:$0xf]
      %v671 = vld [vmem:[%s661 + $0x24] sm:$0xf]
      %v672 = vld [vmem:[%s661 + $0x28] sm:$0xf]
      %v673 = vld [vmem:[%s661 + $0x2c] sm:$0xf]
      %v674 = vld [vmem:[%s661 + $0x30] sm:$0xf]
      %v675 = vld [vmem:[%s661 + $0x34] sm:$0xf]
      %v676 = vld [vmem:[%s661 + $0x38] sm:$0xf]
      %v677 = vld [vmem:[%s661 + $0x3c] sm:$0xf]
      %v678 = vunpack.c.l.b16 %v632
      %v679 = vunpack.c.l.b16 %v636
      %v680 = vunpack.c.l.b16 %v640
      %v681 = vunpack.c.l.b16 %v644
      %v682 = vunpack.c.l.b16 %v648
      %v683 = vunpack.c.l.b16 %v652
      %v684 = vunpack.c.l.b16 %v656
      %v685 = vunpack.c.l.b16 %v660
      %v686 = vpack.c.b16 %v679, %v678
      %v687 = vpack.c.b16 %v681, %v680
      %v688 = vpack.c.b16 %v683, %v682
      %v689 = vpack.c.b16 %v685, %v684
      %v710 = vunpack.c.l.b16 %v662
      %v711 = vunpack.c.l.b16 %v663
      %v712 = vunpack.c.l.b16 %v664
      %v713 = vunpack.c.l.b16 %v665
      %v714 = vunpack.c.l.b16 %v666
      %v715 = vunpack.c.l.b16 %v667
      %v716 = vunpack.c.l.b16 %v668
      %v717 = vunpack.c.l.b16 %v669
      %v718 = vunpack.c.l.b16 %v670
      %v719 = vunpack.c.l.b16 %v671
      %v720 = vunpack.c.l.b16 %v672
      %v721 = vunpack.c.l.b16 %v673
      %v722 = vunpack.c.l.b16 %v674
      %v723 = vunpack.c.l.b16 %v675
      %v724 = vunpack.c.l.b16 %v676
      %v725 = vunpack.c.l.b16 %v677
      %v726 = vpack.c.b16 %v711, %v710
      %v727 = vpack.c.b16 %v713, %v712
      %v728 = vpack.c.b16 %v715, %v714
      %v729 = vpack.c.b16 %v717, %v716
      %v730 = vpack.c.b16 %v719, %v718
      %v731 = vpack.c.b16 %v721, %v720
      %v732 = vpack.c.b16 %v723, %v722
      %v733 = vpack.c.b16 %v725, %v724
      %742 = vmatprep.subr.bf16.mxu0 0
      %743 = vmatpush1.bf16.msra.mxu0 %v726
      %744 = vmatprep.subr.bf16.mxu0 0
      %745 = vmatpush1.bf16.msra.mxu0 %v727
      %746 = vmatprep.subr.bf16.mxu0 0
      %747 = vmatpush1.bf16.msra.mxu0 %v728
      %748 = vmatprep.subr.bf16.mxu0 0
      %749 = vmatpush1.bf16.msra.mxu0 %v729
      %750 = vmatprep.subr.bf16.mxu0 0
      %751 = vmatpush1.bf16.msra.mxu0 %v730
      %752 = vmatprep.subr.bf16.mxu0 0
      %753 = vmatpush1.bf16.msra.mxu0 %v731
      %754 = vmatprep.subr.bf16.mxu0 0
      %755 = vmatpush1.bf16.msra.mxu0 %v732
      %756 = vmatprep.subr.bf16.mxu0 0
      %757 = vmatpush1.bf16.msra.mxu0 %v733
      %758 = vmatprep.subr.bf16.mxu0 0
      %759 = vmatpush1.bf16.msra.mxu0 0
      %760 = vmatprep.subr.bf16.mxu0 0
      %761 = vmatpush1.bf16.msra.mxu0 0
      %762 = vmatprep.subr.bf16.mxu0 0
      %763 = vmatpush1.bf16.msra.mxu0 0
      %764 = vmatprep.subr.bf16.mxu0 0
      %765 = vmatpush1.bf16.msra.mxu0 0
      %766 = vmatprep.subr.bf16.mxu0 0
      %767 = vmatpush1.bf16.msra.mxu0 0
      %768 = vmatprep.subr.bf16.mxu0 0
      %769 = vmatpush1.bf16.msra.mxu0 0
      %770 = vmatprep.subr.bf16.mxu0 0
      %771 = vmatpush1.bf16.msra.mxu0 0
      %772 = vmatprep.subr.bf16.mxu0 0
      %773 = vmatpush1.bf16.msra.mxu0 0
      %774 = vmatprep.mubr.bf16.mxu0 0
      %775 = vmatmul.mubr.bf16.gmra.mrb[0].mxu0 %v686
      %v776 = vpop.f32.mrb[0].mxu0
      %v777 = vadd.f32 0.0, %v776
      %v778 = vpop.f32.mrb[0].mxu0
      %v779 = vpop.f32.mrb[0].mxu0
      %v780 = vadd.f32 0.0, %v779
      %v781 = vpop.f32.mrb[0].mxu0
      %782 = vmatprep.mubr.bf16.mxu0 0
      %783 = vmatmul.mubr.bf16.gmra.mrb[0].mxu0 %v687
      %v784 = vpop.f32.mrb[0].mxu0
      %v785 = vadd.f32 0.0, %v784
      %v786 = vpop.f32.mrb[0].mxu0
      %v787 = vpop.f32.mrb[0].mxu0
      %v788 = vadd.f32 0.0, %v787
      %v789 = vpop.f32.mrb[0].mxu0
      %790 = vmatprep.mubr.bf16.mxu0 0
      %791 = vmatmul.mubr.bf16.gmra.mrb[0].mxu0 %v688
      %v792 = vpop.f32.mrb[0].mxu0
      %v793 = vadd.f32 0.0, %v792
      %v794 = vpop.f32.mrb[0].mxu0
      %v795 = vpop.f32.mrb[0].mxu0
      %v796 = vadd.f32 0.0, %v795
      %v797 = vpop.f32.mrb[0].mxu0
      %798 = vmatprep.mubr.bf16.mxu0 0
      %799 = vmatmul.mubr.bf16.gmra.mrb[0].mxu0 %v689
      %v800 = vpop.f32.mrb[0].mxu0
      %v801 = vadd.f32 0.0, %v800
      %v802 = vpop.f32.mrb[0].mxu0
      %v803 = vpop.f32.mrb[0].mxu0
      %v804 = vadd.f32 0.0, %v803
      %v805 = vpop.f32.mrb[0].mxu0
      %806 = vdwg.mxu0
      %v807 = vadd.f32 %v572, %v777
      %v808 = vadd.f32 %v575, %v780
      %v809 = vadd.f32 %v580, %v785
      %v810 = vadd.f32 %v583, %v788
      %v811 = vadd.f32 %v588, %v793
      %v812 = vadd.f32 %v591, %v796
      %v813 = vadd.f32 %v596, %v801
      %v814 = vadd.f32 %v599, %v804
      %s815 = scalar_lea.vmem %s165, 8
      %v816 = vld [vmem:[%s815] sm:$0xf]
      %v817 = vld [vmem:[%s815 + $0x8] sm:$0xf]
      %v818 = vld [vmem:[%s815 + $0x10] sm:$0xf]
      %v819 = vld [vmem:[%s815 + $0x18] sm:$0xf]
      %v820 = vld [vmem:[%s815 + $0x20] sm:$0xf]
      %v821 = vld [vmem:[%s815 + $0x28] sm:$0xf]
      %v822 = vld [vmem:[%s815 + $0x30] sm:$0xf]
      %v823 = vld [vmem:[%s815 + $0x38] sm:$0xf]
      %s824 = scalar_lea.vmem %s1, 192
      %v825 = vld [vmem:[%s824] sm:$0xf]
      %v826 = vld [vmem:[%s824 + $0x4] sm:$0xf]
      %v827 = vld [vmem:[%s824 + $0x8] sm:$0xf]
      %v828 = vld [vmem:[%s824 + $0xc] sm:$0xf]
      %v829 = vld [vmem:[%s824 + $0x10] sm:$0xf]
      %v830 = vld [vmem:[%s824 + $0x14] sm:$0xf]
      %v831 = vld [vmem:[%s824 + $0x18] sm:$0xf]
      %v832 = vld [vmem:[%s824 + $0x1c] sm:$0xf]
      %v833 = vld [vmem:[%s824 + $0x20] sm:$0xf]
      %v834 = vld [vmem:[%s824 + $0x24] sm:$0xf]
      %v835 = vld [vmem:[%s824 + $0x28] sm:$0xf]
      %v836 = vld [vmem:[%s824 + $0x2c] sm:$0xf]
      %v837 = vld [vmem:[%s824 + $0x30] sm:$0xf]
      %v838 = vld [vmem:[%s824 + $0x34] sm:$0xf]
      %v839 = vld [vmem:[%s824 + $0x38] sm:$0xf]
      %v840 = vld [vmem:[%s824 + $0x3c] sm:$0xf]
      %v849 = vunpack.c.l.b16 %v816
      %v850 = vunpack.c.l.b16 %v817
      %v851 = vunpack.c.l.b16 %v818
      %v852 = vunpack.c.l.b16 %v819
      %v853 = vunpack.c.l.b16 %v820
      %v854 = vunpack.c.l.b16 %v821
      %v855 = vunpack.c.l.b16 %v822
      %v856 = vunpack.c.l.b16 %v823
      %v857 = vpack.c.b16 %v850, %v849
      %v858 = vpack.c.b16 %v852, %v851
      %v859 = vpack.c.b16 %v854, %v853
      %v860 = vpack.c.b16 %v856, %v855
      %v881 = vunpack.c.l.b16 %v825
      %v882 = vunpack.c.l.b16 %v826
      %v883 = vunpack.c.l.b16 %v827
      %v884 = vunpack.c.l.b16 %v828
      %v885 = vunpack.c.l.b16 %v829
      %v886 = vunpack.c.l.b16 %v830
      %v887 = vunpack.c.l.b16 %v831
      %v888 = vunpack.c.l.b16 %v832
      %v889 = vunpack.c.l.b16 %v833
      %v890 = vunpack.c.l.b16 %v834
      %v891 = vunpack.c.l.b16 %v835
      %v892 = vunpack.c.l.b16 %v836
      %v893 = vunpack.c.l.b16 %v837
      %v894 = vunpack.c.l.b16 %v838
      %v895 = vunpack.c.l.b16 %v839
      %v896 = vunpack.c.l.b16 %v840
      %v897 = vpack.c.b16 %v882, %v881
      %v898 = vpack.c.b16 %v884, %v883
      %v899 = vpack.c.b16 %v886, %v885
      %v900 = vpack.c.b16 %v888, %v887
      %v901 = vpack.c.b16 %v890, %v889
      %v902 = vpack.c.b16 %v892, %v891
      %v903 = vpack.c.b16 %v894, %v893
      %v904 = vpack.c.b16 %v896, %v895
      %913 = vmatprep.subr.bf16.mxu0 0
      %914 = vmatpush1.bf16.msra.mxu0 %v897
      %915 = vmatprep.subr.bf16.mxu0 0
      %916 = vmatpush1.bf16.msra.mxu0 %v898
      %917 = vmatprep.subr.bf16.mxu0 0
      %918 = vmatpush1.bf16.msra.mxu0 %v899
      %919 = vmatprep.subr.bf16.mxu0 0
      %920 = vmatpush1.bf16.msra.mxu0 %v900
      %921 = vmatprep.subr.bf16.mxu0 0
      %922 = vmatpush1.bf16.msra.mxu0 %v901
      %923 = vmatprep.subr.bf16.mxu0 0
      %924 = vmatpush1.bf16.msra.mxu0 %v902
      %925 = vmatprep.subr.bf16.mxu0 0
      %926 = vmatpush1.bf16.msra.mxu0 %v903
      %927 = vmatprep.subr.bf16.mxu0 0
      %928 = vmatpush1.bf16.msra.mxu0 %v904
      %929 = vmatprep.subr.bf16.mxu0 0
      %930 = vmatpush1.bf16.msra.mxu0 0
      %931 = vmatprep.subr.bf16.mxu0 0
      %932 = vmatpush1.bf16.msra.mxu0 0
      %933 = vmatprep.subr.bf16.mxu0 0
      %934 = vmatpush1.bf16.msra.mxu0 0
      %935 = vmatprep.subr.bf16.mxu0 0
      %936 = vmatpush1.bf16.msra.mxu0 0
      %937 = vmatprep.subr.bf16.mxu0 0
      %938 = vmatpush1.bf16.msra.mxu0 0
      %939 = vmatprep.subr.bf16.mxu0 0
      %940 = vmatpush1.bf16.msra.mxu0 0
      %941 = vmatprep.subr.bf16.mxu0 0
      %942 = vmatpush1.bf16.msra.mxu0 0
      %943 = vmatprep.subr.bf16.mxu0 0
      %944 = vmatpush1.bf16.msra.mxu0 0
      %945 = vmatprep.mubr.bf16.mxu0 0
      %946 = vmatmul.mubr.bf16.gmra.mrb[0].mxu0 %v857
      %v947 = vpop.f32.mrb[0].mxu0
      %v948 = vadd.f32 0.0, %v947
      %v949 = vpop.f32.mrb[0].mxu0
      %v950 = vpop.f32.mrb[0].mxu0
      %v951 = vadd.f32 0.0, %v950
      %v952 = vpop.f32.mrb[0].mxu0
      %953 = vmatprep.mubr.bf16.mxu0 0
      %954 = vmatmul.mubr.bf16.gmra.mrb[0].mxu0 %v858
      %v955 = vpop.f32.mrb[0].mxu0
      %v956 = vadd.f32 0.0, %v955
      %v957 = vpop.f32.mrb[0].mxu0
      %v958 = vpop.f32.mrb[0].mxu0
      %v959 = vadd.f32 0.0, %v958
      %v960 = vpop.f32.mrb[0].mxu0
      %961 = vmatprep.mubr.bf16.mxu0 0
      %962 = vmatmul.mubr.bf16.gmra.mrb[0].mxu0 %v859
      %v963 = vpop.f32.mrb[0].mxu0
      %v964 = vadd.f32 0.0, %v963
      %v965 = vpop.f32.mrb[0].mxu0
      %v966 = vpop.f32.mrb[0].mxu0
      %v967 = vadd.f32 0.0, %v966
      %v968 = vpop.f32.mrb[0].mxu0
      %969 = vmatprep.mubr.bf16.mxu0 0
      %970 = vmatmul.mubr.bf16.gmra.mrb[0].mxu0 %v860
      %v971 = vpop.f32.mrb[0].mxu0
      %v972 = vadd.f32 0.0, %v971
      %v973 = vpop.f32.mrb[0].mxu0
      %v974 = vpop.f32.mrb[0].mxu0
      %v975 = vadd.f32 0.0, %v974
      %v976 = vpop.f32.mrb[0].mxu0
      %977 = vdwg.mxu0
      %v978 = vadd.f32 %v807, %v948
      %v979 = vadd.f32 %v808, %v951
      %v980 = vadd.f32 %v809, %v956
      %v981 = vadd.f32 %v810, %v959
      %v982 = vadd.f32 %v811, %v964
      %v983 = vadd.f32 %v812, %v967
      %v984 = vadd.f32 %v813, %v972
      %v985 = vadd.f32 %v814, %v975
      %v986 = vld [vmem:[%s815] sm:$0xf]
      %v987 = vld [vmem:[%s815 + $0x4] sm:$0x1]
      %v988 = vld [vmem:[%s815 + $0x8] sm:$0xf]
      %v989 = vld [vmem:[%s815 + $0xc] sm:$0x1]
      %v990 = vld [vmem:[%s815 + $0x10] sm:$0xf]
      %v991 = vld [vmem:[%s815 + $0x14] sm:$0x1]
      %v992 = vld [vmem:[%s815 + $0x18] sm:$0xf]
      %v993 = vld [vmem:[%s815 + $0x1c] sm:$0x1]
      %v994 = vld [vmem:[%s815 + $0x20] sm:$0xf]
      %v995 = vld [vmem:[%s815 + $0x24] sm:$0x1]
      %v996 = vld [vmem:[%s815 + $0x28] sm:$0xf]
      %v997 = vld [vmem:[%s815 + $0x2c] sm:$0x1]
      %v998 = vld [vmem:[%s815 + $0x30] sm:$0xf]
      %v999 = vld [vmem:[%s815 + $0x34] sm:$0x1]
      %v1000 = vld [vmem:[%s815 + $0x38] sm:$0xf]
      %v1001 = vld [vmem:[%s815 + $0x3c] sm:$0x1]
      %v1003 = vshrl.u32 %v986, 16
      %v1005 = vrot.slane %v1003, 4
      %v1006 = vshll.u32 %v986, 16
      %v1008 = vrot.slane %v1006, 5
      %v1009 = vor.u32 %v1005, %v1008
      %v1010 = vrot.slane %v1009, 4
      %v1012 = vshll.u32 %v987, 16
      %v1014 = vrot.slane %v1012, 5
      %v1015 = vsel %vm206, %v1010, %v1014
      %v1017 = vshrl.u32 %v988, 16
      %v1019 = vrot.slane %v1017, 4
      %v1020 = vshll.u32 %v988, 16
      %v1022 = vrot.slane %v1020, 5
      %v1023 = vor.u32 %v1019, %v1022
      %v1024 = vrot.slane %v1023, 4
      %v1026 = vshll.u32 %v989, 16
      %v1028 = vrot.slane %v1026, 5
      %v1029 = vsel %vm206, %v1024, %v1028
      %v1031 = vshrl.u32 %v990, 16
      %v1033 = vrot.slane %v1031, 4
      %v1034 = vshll.u32 %v990, 16
      %v1036 = vrot.slane %v1034, 5
      %v1037 = vor.u32 %v1033, %v1036
      %v1038 = vrot.slane %v1037, 4
      %v1040 = vshll.u32 %v991, 16
      %v1042 = vrot.slane %v1040, 5
      %v1043 = vsel %vm206, %v1038, %v1042
      %v1045 = vshrl.u32 %v992, 16
      %v1047 = vrot.slane %v1045, 4
      %v1048 = vshll.u32 %v992, 16
      %v1050 = vrot.slane %v1048, 5
      %v1051 = vor.u32 %v1047, %v1050
      %v1052 = vrot.slane %v1051, 4
      %v1054 = vshll.u32 %v993, 16
      %v1056 = vrot.slane %v1054, 5
      %v1057 = vsel %vm206, %v1052, %v1056
      %v1059 = vshrl.u32 %v994, 16
      %v1061 = vrot.slane %v1059, 4
      %v1062 = vshll.u32 %v994, 16
      %v1064 = vrot.slane %v1062, 5
      %v1065 = vor.u32 %v1061, %v1064
      %v1066 = vrot.slane %v1065, 4
      %v1068 = vshll.u32 %v995, 16
      %v1070 = vrot.slane %v1068, 5
      %v1071 = vsel %vm206, %v1066, %v1070
      %v1073 = vshrl.u32 %v996, 16
      %v1075 = vrot.slane %v1073, 4
      %v1076 = vshll.u32 %v996, 16
      %v1078 = vrot.slane %v1076, 5
      %v1079 = vor.u32 %v1075, %v1078
      %v1080 = vrot.slane %v1079, 4
      %v1082 = vshll.u32 %v997, 16
      %v1084 = vrot.slane %v1082, 5
      %v1085 = vsel %vm206, %v1080, %v1084
      %v1087 = vshrl.u32 %v998, 16
      %v1089 = vrot.slane %v1087, 4
      %v1090 = vshll.u32 %v998, 16
      %v1092 = vrot.slane %v1090, 5
      %v1093 = vor.u32 %v1089, %v1092
      %v1094 = vrot.slane %v1093, 4
      %v1096 = vshll.u32 %v999, 16
      %v1098 = vrot.slane %v1096, 5
      %v1099 = vsel %vm206, %v1094, %v1098
      %v1101 = vshrl.u32 %v1000, 16
      %v1103 = vrot.slane %v1101, 4
      %v1104 = vshll.u32 %v1000, 16
      %v1106 = vrot.slane %v1104, 5
      %v1107 = vor.u32 %v1103, %v1106
      %v1108 = vrot.slane %v1107, 4
      %v1110 = vshll.u32 %v1001, 16
      %v1112 = vrot.slane %v1110, 5
      %v1113 = vsel %vm206, %v1108, %v1112
      %s1114 = scalar_lea.vmem %s1, 256
      %v1115 = vld [vmem:[%s1114] sm:$0xf]
      %v1116 = vld [vmem:[%s1114 + $0x4] sm:$0xf]
      %v1117 = vld [vmem:[%s1114 + $0x8] sm:$0xf]
      %v1118 = vld [vmem:[%s1114 + $0xc] sm:$0xf]
      %v1119 = vld [vmem:[%s1114 + $0x10] sm:$0xf]
      %v1120 = vld [vmem:[%s1114 + $0x14] sm:$0xf]
      %v1121 = vld [vmem:[%s1114 + $0x18] sm:$0xf]
      %v1122 = vld [vmem:[%s1114 + $0x1c] sm:$0xf]
      %v1123 = vld [vmem:[%s1114 + $0x20] sm:$0xf]
      %v1124 = vld [vmem:[%s1114 + $0x24] sm:$0xf]
      %v1125 = vld [vmem:[%s1114 + $0x28] sm:$0xf]
      %v1126 = vld [vmem:[%s1114 + $0x2c] sm:$0xf]
      %v1127 = vld [vmem:[%s1114 + $0x30] sm:$0xf]
      %v1128 = vld [vmem:[%s1114 + $0x34] sm:$0xf]
      %v1129 = vld [vmem:[%s1114 + $0x38] sm:$0xf]
      %v1130 = vld [vmem:[%s1114 + $0x3c] sm:$0xf]
      %v1131 = vunpack.c.l.b16 %v1015
      %v1132 = vunpack.c.l.b16 %v1029
      %v1133 = vunpack.c.l.b16 %v1043
      %v1134 = vunpack.c.l.b16 %v1057
      %v1135 = vunpack.c.l.b16 %v1071
      %v1136 = vunpack.c.l.b16 %v1085
      %v1137 = vunpack.c.l.b16 %v1099
      %v1138 = vunpack.c.l.b16 %v1113
      %v1139 = vpack.c.b16 %v1132, %v1131
      %v1140 = vpack.c.b16 %v1134, %v1133
      %v1141 = vpack.c.b16 %v1136, %v1135
      %v1142 = vpack.c.b16 %v1138, %v1137
      %v1163 = vunpack.c.l.b16 %v1115
      %v1164 = vunpack.c.l.b16 %v1116
      %v1165 = vunpack.c.l.b16 %v1117
      %v1166 = vunpack.c.l.b16 %v1118
      %v1167 = vunpack.c.l.b16 %v1119
      %v1168 = vunpack.c.l.b16 %v1120
      %v1169 = vunpack.c.l.b16 %v1121
      %v1170 = vunpack.c.l.b16 %v1122
      %v1171 = vunpack.c.l.b16 %v1123
      %v1172 = vunpack.c.l.b16 %v1124
      %v1173 = vunpack.c.l.b16 %v1125
      %v1174 = vunpack.c.l.b16 %v1126
      %v1175 = vunpack.c.l.b16 %v1127
      %v1176 = vunpack.c.l.b16 %v1128
      %v1177 = vunpack.c.l.b16 %v1129
      %v1178 = vunpack.c.l.b16 %v1130
      %v1179 = vpack.c.b16 %v1164, %v1163
      %v1180 = vpack.c.b16 %v1166, %v1165
      %v1181 = vpack.c.b16 %v1168, %v1167
      %v1182 = vpack.c.b16 %v1170, %v1169
      %v1183 = vpack.c.b16 %v1172, %v1171
      %v1184 = vpack.c.b16 %v1174, %v1173
      %v1185 = vpack.c.b16 %v1176, %v1175
      %v1186 = vpack.c.b16 %v1178, %v1177
      %1195 = vmatprep.subr.bf16.mxu0 0
      %1196 = vmatpush1.bf16.msra.mxu0 %v1179
      %1197 = vmatprep.subr.bf16.mxu0 0
      %1198 = vmatpush1.bf16.msra.mxu0 %v1180
      %1199 = vmatprep.subr.bf16.mxu0 0
      %1200 = vmatpush1.bf16.msra.mxu0 %v1181
      %1201 = vmatprep.subr.bf16.mxu0 0
      %1202 = vmatpush1.bf16.msra.mxu0 %v1182
      %1203 = vmatprep.subr.bf16.mxu0 0
      %1204 = vmatpush1.bf16.msra.mxu0 %v1183
      %1205 = vmatprep.subr.bf16.mxu0 0
      %1206 = vmatpush1.bf16.msra.mxu0 %v1184
      %1207 = vmatprep.subr.bf16.mxu0 0
      %1208 = vmatpush1.bf16.msra.mxu0 %v1185
      %1209 = vmatprep.subr.bf16.mxu0 0
      %1210 = vmatpush1.bf16.msra.mxu0 %v1186
      %1211 = vmatprep.subr.bf16.mxu0 0
      %1212 = vmatpush1.bf16.msra.mxu0 0
      %1213 = vmatprep.subr.bf16.mxu0 0
      %1214 = vmatpush1.bf16.msra.mxu0 0
      %1215 = vmatprep.subr.bf16.mxu0 0
      %1216 = vmatpush1.bf16.msra.mxu0 0
      %1217 = vmatprep.subr.bf16.mxu0 0
      %1218 = vmatpush1.bf16.msra.mxu0 0
      %1219 = vmatprep.subr.bf16.mxu0 0
      %1220 = vmatpush1.bf16.msra.mxu0 0
      %1221 = vmatprep.subr.bf16.mxu0 0
      %1222 = vmatpush1.bf16.msra.mxu0 0
      %1223 = vmatprep.subr.bf16.mxu0 0
      %1224 = vmatpush1.bf16.msra.mxu0 0
      %1225 = vmatprep.subr.bf16.mxu0 0
      %1226 = vmatpush1.bf16.msra.mxu0 0
      %1227 = vmatprep.mubr.bf16.mxu0 0
      %1228 = vmatmul.mubr.bf16.gmra.mrb[0].mxu0 %v1139
      %v1229 = vpop.f32.mrb[0].mxu0
      %v1230 = vadd.f32 0.0, %v1229
      %v1231 = vpop.f32.mrb[0].mxu0
      %v1232 = vpop.f32.mrb[0].mxu0
      %v1233 = vadd.f32 0.0, %v1232
      %v1234 = vpop.f32.mrb[0].mxu0
      %1235 = vmatprep.mubr.bf16.mxu0 0
      %1236 = vmatmul.mubr.bf16.gmra.mrb[0].mxu0 %v1140
      %v1237 = vpop.f32.mrb[0].mxu0
      %v1238 = vadd.f32 0.0, %v1237
      %v1239 = vpop.f32.mrb[0].mxu0
      %v1240 = vpop.f32.mrb[0].mxu0
      %v1241 = vadd.f32 0.0, %v1240
      %v1242 = vpop.f32.mrb[0].mxu0
      %1243 = vmatprep.mubr.bf16.mxu0 0
      %1244 = vmatmul.mubr.bf16.gmra.mrb[0].mxu0 %v1141
      %v1245 = vpop.f32.mrb[0].mxu0
      %v1246 = vadd.f32 0.0, %v1245
      %v1247 = vpop.f32.mrb[0].mxu0
      %v1248 = vpop.f32.mrb[0].mxu0
      %v1249 = vadd.f32 0.0, %v1248
      %v1250 = vpop.f32.mrb[0].mxu0
      %1251 = vmatprep.mubr.bf16.mxu0 0
      %1252 = vmatmul.mubr.bf16.gmra.mrb[0].mxu0 %v1142
      %v1253 = vpop.f32.mrb[0].mxu0
      %v1254 = vadd.f32 0.0, %v1253
      %v1255 = vpop.f32.mrb[0].mxu0
      %v1256 = vpop.f32.mrb[0].mxu0
      %v1257 = vadd.f32 0.0, %v1256
      %v1258 = vpop.f32.mrb[0].mxu0
      %1259 = vdwg.mxu0
      %v1260 = vadd.f32 %v978, %v1230
      %v1261 = vadd.f32 %v979, %v1233
      %v1262 = vadd.f32 %v980, %v1238
      %v1263 = vadd.f32 %v981, %v1241
      %v1264 = vadd.f32 %v982, %v1246
      %v1265 = vadd.f32 %v983, %v1249
      %v1266 = vadd.f32 %v984, %v1254
      %v1267 = vadd.f32 %v985, %v1257
      %v1268 = vld [vmem:[%s815] sm:$0xe]
      %v1269 = vld [vmem:[%s815 + $0x8] sm:$0xe]
      %v1270 = vld [vmem:[%s815 + $0x10] sm:$0xe]
      %v1271 = vld [vmem:[%s815 + $0x18] sm:$0xe]
      %v1272 = vld [vmem:[%s815 + $0x20] sm:$0xe]
      %v1273 = vld [vmem:[%s815 + $0x28] sm:$0xe]
      %v1274 = vld [vmem:[%s815 + $0x30] sm:$0xe]
      %v1275 = vld [vmem:[%s815 + $0x38] sm:$0xe]
      %v1292 = vrot.slane %v1268, 5
      %v1293 = vrot.slane %v1292, 4
      %v1294 = vrot.slane %v987, 5
      %v1295 = vsel %vm628, %v1293, %v1294
      %v1296 = vrot.slane %v1269, 5
      %v1297 = vrot.slane %v1296, 4
      %v1298 = vrot.slane %v989, 5
      %v1299 = vsel %vm628, %v1297, %v1298
      %v1300 = vrot.slane %v1270, 5
      %v1301 = vrot.slane %v1300, 4
      %v1302 = vrot.slane %v991, 5
      %v1303 = vsel %vm628, %v1301, %v1302
      %v1304 = vrot.slane %v1271, 5
      %v1305 = vrot.slane %v1304, 4
      %v1306 = vrot.slane %v993, 5
      %v1307 = vsel %vm628, %v1305, %v1306
      %v1308 = vrot.slane %v1272, 5
      %v1309 = vrot.slane %v1308, 4
      %v1310 = vrot.slane %v995, 5
      %v1311 = vsel %vm628, %v1309, %v1310
      %v1312 = vrot.slane %v1273, 5
      %v1313 = vrot.slane %v1312, 4
      %v1314 = vrot.slane %v997, 5
      %v1315 = vsel %vm628, %v1313, %v1314
      %v1316 = vrot.slane %v1274, 5
      %v1317 = vrot.slane %v1316, 4
      %v1318 = vrot.slane %v999, 5
      %v1319 = vsel %vm628, %v1317, %v1318
      %v1320 = vrot.slane %v1275, 5
      %v1321 = vrot.slane %v1320, 4
      %v1322 = vrot.slane %v1001, 5
      %v1323 = vsel %vm628, %v1321, %v1322
      %s1324 = scalar_lea.vmem %s1, 320
      %v1325 = vld [vmem:[%s1324] sm:$0xf]
      %v1326 = vld [vmem:[%s1324 + $0x4] sm:$0xf]
      %v1327 = vld [vmem:[%s1324 + $0x8] sm:$0xf]
      %v1328 = vld [vmem:[%s1324 + $0xc] sm:$0xf]
      %v1329 = vld [vmem:[%s1324 + $0x10] sm:$0xf]
      %v1330 = vld [vmem:[%s1324 + $0x14] sm:$0xf]
      %v1331 = vld [vmem:[%s1324 + $0x18] sm:$0xf]
      %v1332 = vld [vmem:[%s1324 + $0x1c] sm:$0xf]
      %v1333 = vld [vmem:[%s1324 + $0x20] sm:$0xf]
      %v1334 = vld [vmem:[%s1324 + $0x24] sm:$0xf]
      %v1335 = vld [vmem:[%s1324 + $0x28] sm:$0xf]
      %v1336 = vld [vmem:[%s1324 + $0x2c] sm:$0xf]
      %v1337 = vld [vmem:[%s1324 + $0x30] sm:$0xf]
      %v1338 = vld [vmem:[%s1324 + $0x34] sm:$0xf]
      %v1339 = vld [vmem:[%s1324 + $0x38] sm:$0xf]
      %v1340 = vld [vmem:[%s1324 + $0x3c] sm:$0xf]
      %v1341 = vunpack.c.l.b16 %v1295
      %v1342 = vunpack.c.l.b16 %v1299
      %v1343 = vunpack.c.l.b16 %v1303
      %v1344 = vunpack.c.l.b16 %v1307
      %v1345 = vunpack.c.l.b16 %v1311
      %v1346 = vunpack.c.l.b16 %v1315
      %v1347 = vunpack.c.l.b16 %v1319
      %v1348 = vunpack.c.l.b16 %v1323
      %v1349 = vpack.c.b16 %v1342, %v1341
      %v1350 = vpack.c.b16 %v1344, %v1343
      %v1351 = vpack.c.b16 %v1346, %v1345
      %v1352 = vpack.c.b16 %v1348, %v1347
      %v1373 = vunpack.c.l.b16 %v1325
      %v1374 = vunpack.c.l.b16 %v1326
      %v1375 = vunpack.c.l.b16 %v1327
      %v1376 = vunpack.c.l.b16 %v1328
      %v1377 = vunpack.c.l.b16 %v1329
      %v1378 = vunpack.c.l.b16 %v1330
      %v1379 = vunpack.c.l.b16 %v1331
      %v1380 = vunpack.c.l.b16 %v1332
      %v1381 = vunpack.c.l.b16 %v1333
      %v1382 = vunpack.c.l.b16 %v1334
      %v1383 = vunpack.c.l.b16 %v1335
      %v1384 = vunpack.c.l.b16 %v1336
      %v1385 = vunpack.c.l.b16 %v1337
      %v1386 = vunpack.c.l.b16 %v1338
      %v1387 = vunpack.c.l.b16 %v1339
      %v1388 = vunpack.c.l.b16 %v1340
      %v1389 = vpack.c.b16 %v1374, %v1373
      %v1390 = vpack.c.b16 %v1376, %v1375
      %v1391 = vpack.c.b16 %v1378, %v1377
      %v1392 = vpack.c.b16 %v1380, %v1379
      %v1393 = vpack.c.b16 %v1382, %v1381
      %v1394 = vpack.c.b16 %v1384, %v1383
      %v1395 = vpack.c.b16 %v1386, %v1385
      %v1396 = vpack.c.b16 %v1388, %v1387
      %1405 = vmatprep.subr.bf16.mxu0 0
      %1406 = vmatpush1.bf16.msra.mxu0 %v1389
      %1407 = vmatprep.subr.bf16.mxu0 0
      %1408 = vmatpush1.bf16.msra.mxu0 %v1390
      %1409 = vmatprep.subr.bf16.mxu0 0
      %1410 = vmatpush1.bf16.msra.mxu0 %v1391
      %1411 = vmatprep.subr.bf16.mxu0 0
      %1412 = vmatpush1.bf16.msra.mxu0 %v1392
      %1413 = vmatprep.subr.bf16.mxu0 0
      %1414 = vmatpush1.bf16.msra.mxu0 %v1393
      %1415 = vmatprep.subr.bf16.mxu0 0
      %1416 = vmatpush1.bf16.msra.mxu0 %v1394
      %1417 = vmatprep.subr.bf16.mxu0 0
      %1418 = vmatpush1.bf16.msra.mxu0 %v1395
      %1419 = vmatprep.subr.bf16.mxu0 0
      %1420 = vmatpush1.bf16.msra.mxu0 %v1396
      %1421 = vmatprep.subr.bf16.mxu0 0
      %1422 = vmatpush1.bf16.msra.mxu0 0
      %1423 = vmatprep.subr.bf16.mxu0 0
      %1424 = vmatpush1.bf16.msra.mxu0 0
      %1425 = vmatprep.subr.bf16.mxu0 0
      %1426 = vmatpush1.bf16.msra.mxu0 0
      %1427 = vmatprep.subr.bf16.mxu0 0
      %1428 = vmatpush1.bf16.msra.mxu0 0
      %1429 = vmatprep.subr.bf16.mxu0 0
      %1430 = vmatpush1.bf16.msra.mxu0 0
      %1431 = vmatprep.subr.bf16.mxu0 0
      %1432 = vmatpush1.bf16.msra.mxu0 0
      %1433 = vmatprep.subr.bf16.mxu0 0
      %1434 = vmatpush1.bf16.msra.mxu0 0
      %1435 = vmatprep.subr.bf16.mxu0 0
      %1436 = vmatpush1.bf16.msra.mxu0 0
      %1437 = vmatprep.mubr.bf16.mxu0 0
      %1438 = vmatmul.mubr.bf16.gmra.mrb[0].mxu0 %v1349
      %v1439 = vpop.f32.mrb[0].mxu0
      %v1440 = vadd.f32 0.0, %v1439
      %v1441 = vpop.f32.mrb[0].mxu0
      %v1442 = vpop.f32.mrb[0].mxu0
      %v1443 = vadd.f32 0.0, %v1442
      %v1444 = vpop.f32.mrb[0].mxu0
      %1445 = vmatprep.mubr.bf16.mxu0 0
      %1446 = vmatmul.mubr.bf16.gmra.mrb[0].mxu0 %v1350
      %v1447 = vpop.f32.mrb[0].mxu0
      %v1448 = vadd.f32 0.0, %v1447
      %v1449 = vpop.f32.mrb[0].mxu0
      %v1450 = vpop.f32.mrb[0].mxu0
      %v1451 = vadd.f32 0.0, %v1450
      %v1452 = vpop.f32.mrb[0].mxu0
      %1453 = vmatprep.mubr.bf16.mxu0 0
      %1454 = vmatmul.mubr.bf16.gmra.mrb[0].mxu0 %v1351
      %v1455 = vpop.f32.mrb[0].mxu0
      %v1456 = vadd.f32 0.0, %v1455
      %v1457 = vpop.f32.mrb[0].mxu0
      %v1458 = vpop.f32.mrb[0].mxu0
      %v1459 = vadd.f32 0.0, %v1458
      %v1460 = vpop.f32.mrb[0].mxu0
      %1461 = vmatprep.mubr.bf16.mxu0 0
      %1462 = vmatmul.mubr.bf16.gmra.mrb[0].mxu0 %v1352
      %v1463 = vpop.f32.mrb[0].mxu0
      %v1464 = vadd.f32 0.0, %v1463
      %v1465 = vpop.f32.mrb[0].mxu0
      %v1466 = vpop.f32.mrb[0].mxu0
      %v1467 = vadd.f32 0.0, %v1466
      %v1468 = vpop.f32.mrb[0].mxu0
      %1469 = vdwg.mxu0
      %v1470 = vadd.f32 %v1260, %v1440
      %v1471 = vadd.f32 %v1261, %v1443
      %v1472 = vadd.f32 %v1262, %v1448
      %v1473 = vadd.f32 %v1263, %v1451
      %v1474 = vadd.f32 %v1264, %v1456
      %v1475 = vadd.f32 %v1265, %v1459
      %v1476 = vadd.f32 %v1266, %v1464
      %v1477 = vadd.f32 %v1267, %v1467
      %s1478 = scalar_lea.vmem %s165, 16
      %v1479 = vld [vmem:[%s1478] sm:$0xf]
      %v1480 = vld [vmem:[%s1478 + $0x8] sm:$0xf]
      %v1481 = vld [vmem:[%s1478 + $0x10] sm:$0xf]
      %v1482 = vld [vmem:[%s1478 + $0x18] sm:$0xf]
      %v1483 = vld [vmem:[%s1478 + $0x20] sm:$0xf]
      %v1484 = vld [vmem:[%s1478 + $0x28] sm:$0xf]
      %v1485 = vld [vmem:[%s1478 + $0x30] sm:$0xf]
      %v1486 = vld [vmem:[%s1478 + $0x38] sm:$0xf]
      %s1487 = scalar_lea.vmem %s1, 384
      %v1488 = vld [vmem:[%s1487] sm:$0xf]
      %v1489 = vld [vmem:[%s1487 + $0x4] sm:$0xf]
      %v1490 = vld [vmem:[%s1487 + $0x8] sm:$0xf]
      %v1491 = vld [vmem:[%s1487 + $0xc] sm:$0xf]
      %v1492 = vld [vmem:[%s1487 + $0x10] sm:$0xf]
      %v1493 = vld [vmem:[%s1487 + $0x14] sm:$0xf]
      %v1494 = vld [vmem:[%s1487 + $0x18] sm:$0xf]
      %v1495 = vld [vmem:[%s1487 + $0x1c] sm:$0xf]
      %v1496 = vld [vmem:[%s1487 + $0x20] sm:$0xf]
      %v1497 = vld [vmem:[%s1487 + $0x24] sm:$0xf]
      %v1498 = vld [vmem:[%s1487 + $0x28] sm:$0xf]
      %v1499 = vld [vmem:[%s1487 + $0x2c] sm:$0xf]
      %v1500 = vld [vmem:[%s1487 + $0x30] sm:$0xf]
      %v1501 = vld [vmem:[%s1487 + $0x34] sm:$0xf]
      %v1502 = vld [vmem:[%s1487 + $0x38] sm:$0xf]
      %v1503 = vld [vmem:[%s1487 + $0x3c] sm:$0xf]
      %v1512 = vunpack.c.l.b16 %v1479
      %v1513 = vunpack.c.l.b16 %v1480
      %v1514 = vunpack.c.l.b16 %v1481
      %v1515 = vunpack.c.l.b16 %v1482
      %v1516 = vunpack.c.l.b16 %v1483
      %v1517 = vunpack.c.l.b16 %v1484
      %v1518 = vunpack.c.l.b16 %v1485
      %v1519 = vunpack.c.l.b16 %v1486
      %v1520 = vpack.c.b16 %v1513, %v1512
      %v1521 = vpack.c.b16 %v1515, %v1514
      %v1522 = vpack.c.b16 %v1517, %v1516
      %v1523 = vpack.c.b16 %v1519, %v1518
      %v1544 = vunpack.c.l.b16 %v1488
      %v1545 = vunpack.c.l.b16 %v1489
      %v1546 = vunpack.c.l.b16 %v1490
      %v1547 = vunpack.c.l.b16 %v1491
      %v1548 = vunpack.c.l.b16 %v1492
      %v1549 = vunpack.c.l.b16 %v1493
      %v1550 = vunpack.c.l.b16 %v1494
      %v1551 = vunpack.c.l.b16 %v1495
      %v1552 = vunpack.c.l.b16 %v1496
      %v1553 = vunpack.c.l.b16 %v1497
      %v1554 = vunpack.c.l.b16 %v1498
      %v1555 = vunpack.c.l.b16 %v1499
      %v1556 = vunpack.c.l.b16 %v1500
      %v1557 = vunpack.c.l.b16 %v1501
      %v1558 = vunpack.c.l.b16 %v1502
      %v1559 = vunpack.c.l.b16 %v1503
      %v1560 = vpack.c.b16 %v1545, %v1544
      %v1561 = vpack.c.b16 %v1547, %v1546
      %v1562 = vpack.c.b16 %v1549, %v1548
      %v1563 = vpack.c.b16 %v1551, %v1550
      %v1564 = vpack.c.b16 %v1553, %v1552
      %v1565 = vpack.c.b16 %v1555, %v1554
      %v1566 = vpack.c.b16 %v1557, %v1556
      %v1567 = vpack.c.b16 %v1559, %v1558
      %1576 = vmatprep.subr.bf16.mxu0 0
      %1577 = vmatpush1.bf16.msra.mxu0 %v1560
      %1578 = vmatprep.subr.bf16.mxu0 0
      %1579 = vmatpush1.bf16.msra.mxu0 %v1561
      %1580 = vmatprep.subr.bf16.mxu0 0
      %1581 = vmatpush1.bf16.msra.mxu0 %v1562
      %1582 = vmatprep.subr.bf16.mxu0 0
      %1583 = vmatpush1.bf16.msra.mxu0 %v1563
      %1584 = vmatprep.subr.bf16.mxu0 0
      %1585 = vmatpush1.bf16.msra.mxu0 %v1564
      %1586 = vmatprep.subr.bf16.mxu0 0
      %1587 = vmatpush1.bf16.msra.mxu0 %v1565
      %1588 = vmatprep.subr.bf16.mxu0 0
      %1589 = vmatpush1.bf16.msra.mxu0 %v1566
      %1590 = vmatprep.subr.bf16.mxu0 0
      %1591 = vmatpush1.bf16.msra.mxu0 %v1567
      %1592 = vmatprep.subr.bf16.mxu0 0
      %1593 = vmatpush1.bf16.msra.mxu0 0
      %1594 = vmatprep.subr.bf16.mxu0 0
      %1595 = vmatpush1.bf16.msra.mxu0 0
      %1596 = vmatprep.subr.bf16.mxu0 0
      %1597 = vmatpush1.bf16.msra.mxu0 0
      %1598 = vmatprep.subr.bf16.mxu0 0
      %1599 = vmatpush1.bf16.msra.mxu0 0
      %1600 = vmatprep.subr.bf16.mxu0 0
      %1601 = vmatpush1.bf16.msra.mxu0 0
      %1602 = vmatprep.subr.bf16.mxu0 0
      %1603 = vmatpush1.bf16.msra.mxu0 0
      %1604 = vmatprep.subr.bf16.mxu0 0
      %1605 = vmatpush1.bf16.msra.mxu0 0
      %1606 = vmatprep.subr.bf16.mxu0 0
      %1607 = vmatpush1.bf16.msra.mxu0 0
      %1608 = vmatprep.mubr.bf16.mxu0 0
      %1609 = vmatmul.mubr.bf16.gmra.mrb[0].mxu0 %v1520
      %v1610 = vpop.f32.mrb[0].mxu0
      %v1611 = vadd.f32 0.0, %v1610
      %v1612 = vpop.f32.mrb[0].mxu0
      %v1613 = vpop.f32.mrb[0].mxu0
      %v1614 = vadd.f32 0.0, %v1613
      %v1615 = vpop.f32.mrb[0].mxu0
      %1616 = vmatprep.mubr.bf16.mxu0 0
      %1617 = vmatmul.mubr.bf16.gmra.mrb[0].mxu0 %v1521
      %v1618 = vpop.f32.mrb[0].mxu0
      %v1619 = vadd.f32 0.0, %v1618
      %v1620 = vpop.f32.mrb[0].mxu0
      %v1621 = vpop.f32.mrb[0].mxu0
      %v1622 = vadd.f32 0.0, %v1621
      %v1623 = vpop.f32.mrb[0].mxu0
      %1624 = vmatprep.mubr.bf16.mxu0 0
      %1625 = vmatmul.mubr.bf16.gmra.mrb[0].mxu0 %v1522
      %v1626 = vpop.f32.mrb[0].mxu0
      %v1627 = vadd.f32 0.0, %v1626
      %v1628 = vpop.f32.mrb[0].mxu0
      %v1629 = vpop.f32.mrb[0].mxu0
      %v1630 = vadd.f32 0.0, %v1629
      %v1631 = vpop.f32.mrb[0].mxu0
      %1632 = vmatprep.mubr.bf16.mxu0 0
      %1633 = vmatmul.mubr.bf16.gmra.mrb[0].mxu0 %v1523
      %v1634 = vpop.f32.mrb[0].mxu0
      %v1635 = vadd.f32 0.0, %v1634
      %v1636 = vpop.f32.mrb[0].mxu0
      %v1637 = vpop.f32.mrb[0].mxu0
      %v1638 = vadd.f32 0.0, %v1637
      %v1639 = vpop.f32.mrb[0].mxu0
      %1640 = vdwg.mxu0
      %v1641 = vadd.f32 %v1470, %v1611
      %v1642 = vadd.f32 %v1471, %v1614
      %v1643 = vadd.f32 %v1472, %v1619
      %v1644 = vadd.f32 %v1473, %v1622
      %v1645 = vadd.f32 %v1474, %v1627
      %v1646 = vadd.f32 %v1475, %v1630
      %v1647 = vadd.f32 %v1476, %v1635
      %v1648 = vadd.f32 %v1477, %v1638
      %v1649 = vld [vmem:[%s1478] sm:$0xf]
      %v1650 = vld [vmem:[%s1478 + $0x4] sm:$0x1]
      %v1651 = vld [vmem:[%s1478 + $0x8] sm:$0xf]
      %v1652 = vld [vmem:[%s1478 + $0xc] sm:$0x1]
      %v1653 = vld [vmem:[%s1478 + $0x10] sm:$0xf]
      %v1654 = vld [vmem:[%s1478 + $0x14] sm:$0x1]
      %v1655 = vld [vmem:[%s1478 + $0x18] sm:$0xf]
      %v1656 = vld [vmem:[%s1478 + $0x1c] sm:$0x1]
      %v1657 = vld [vmem:[%s1478 + $0x20] sm:$0xf]
      %v1658 = vld [vmem:[%s1478 + $0x24] sm:$0x1]
      %v1659 = vld [vmem:[%s1478 + $0x28] sm:$0xf]
      %v1660 = vld [vmem:[%s1478 + $0x2c] sm:$0x1]
      %v1661 = vld [vmem:[%s1478 + $0x30] sm:$0xf]
      %v1662 = vld [vmem:[%s1478 + $0x34] sm:$0x1]
      %v1663 = vld [vmem:[%s1478 + $0x38] sm:$0xf]
      %v1664 = vld [vmem:[%s1478 + $0x3c] sm:$0x1]
      %v1666 = vshrl.u32 %v1649, 16
      %v1668 = vrot.slane %v1666, 4
      %v1669 = vshll.u32 %v1649, 16
      %v1671 = vrot.slane %v1669, 5
      %v1672 = vor.u32 %v1668, %v1671
      %v1673 = vrot.slane %v1672, 4
      %v1675 = vshll.u32 %v1650, 16
      %v1677 = vrot.slane %v1675, 5
      %v1678 = vsel %vm206, %v1673, %v1677
      %v1680 = vshrl.u32 %v1651, 16
      %v1682 = vrot.slane %v1680, 4
      %v1683 = vshll.u32 %v1651, 16
      %v1685 = vrot.slane %v1683, 5
      %v1686 = vor.u32 %v1682, %v1685
      %v1687 = vrot.slane %v1686, 4
      %v1689 = vshll.u32 %v1652, 16
      %v1691 = vrot.slane %v1689, 5
      %v1692 = vsel %vm206, %v1687, %v1691
      %v1694 = vshrl.u32 %v1653, 16
      %v1696 = vrot.slane %v1694, 4
      %v1697 = vshll.u32 %v1653, 16
      %v1699 = vrot.slane %v1697, 5
      %v1700 = vor.u32 %v1696, %v1699
      %v1701 = vrot.slane %v1700, 4
      %v1703 = vshll.u32 %v1654, 16
      %v1705 = vrot.slane %v1703, 5
      %v1706 = vsel %vm206, %v1701, %v1705
      %v1708 = vshrl.u32 %v1655, 16
      %v1710 = vrot.slane %v1708, 4
      %v1711 = vshll.u32 %v1655, 16
      %v1713 = vrot.slane %v1711, 5
      %v1714 = vor.u32 %v1710, %v1713
      %v1715 = vrot.slane %v1714, 4
      %v1717 = vshll.u32 %v1656, 16
      %v1719 = vrot.slane %v1717, 5
      %v1720 = vsel %vm206, %v1715, %v1719
      %v1722 = vshrl.u32 %v1657, 16
      %v1724 = vrot.slane %v1722, 4
      %v1725 = vshll.u32 %v1657, 16
      %v1727 = vrot.slane %v1725, 5
      %v1728 = vor.u32 %v1724, %v1727
      %v1729 = vrot.slane %v1728, 4
      %v1731 = vshll.u32 %v1658, 16
      %v1733 = vrot.slane %v1731, 5
      %v1734 = vsel %vm206, %v1729, %v1733
      %v1736 = vshrl.u32 %v1659, 16
      %v1738 = vrot.slane %v1736, 4
      %v1739 = vshll.u32 %v1659, 16
      %v1741 = vrot.slane %v1739, 5
      %v1742 = vor.u32 %v1738, %v1741
      %v1743 = vrot.slane %v1742, 4
      %v1745 = vshll.u32 %v1660, 16
      %v1747 = vrot.slane %v1745, 5
      %v1748 = vsel %vm206, %v1743, %v1747
      %v1750 = vshrl.u32 %v1661, 16
      %v1752 = vrot.slane %v1750, 4
      %v1753 = vshll.u32 %v1661, 16
      %v1755 = vrot.slane %v1753, 5
      %v1756 = vor.u32 %v1752, %v1755
      %v1757 = vrot.slane %v1756, 4
      %v1759 = vshll.u32 %v1662, 16
      %v1761 = vrot.slane %v1759, 5
      %v1762 = vsel %vm206, %v1757, %v1761
      %v1764 = vshrl.u32 %v1663, 16
      %v1766 = vrot.slane %v1764, 4
      %v1767 = vshll.u32 %v1663, 16
      %v1769 = vrot.slane %v1767, 5
      %v1770 = vor.u32 %v1766, %v1769
      %v1771 = vrot.slane %v1770, 4
      %v1773 = vshll.u32 %v1664, 16
      %v1775 = vrot.slane %v1773, 5
      %v1776 = vsel %vm206, %v1771, %v1775
      %s1777 = scalar_lea.vmem %s1, 448
      %v1778 = vld [vmem:[%s1777] sm:$0xf]
      %v1779 = vld [vmem:[%s1777 + $0x4] sm:$0xf]
      %v1780 = vld [vmem:[%s1777 + $0x8] sm:$0xf]
      %v1781 = vld [vmem:[%s1777 + $0xc] sm:$0xf]
      %v1782 = vld [vmem:[%s1777 + $0x10] sm:$0xf]
      %v1783 = vld [vmem:[%s1777 + $0x14] sm:$0xf]
      %v1784 = vld [vmem:[%s1777 + $0x18] sm:$0xf]
      %v1785 = vld [vmem:[%s1777 + $0x1c] sm:$0xf]
      %v1786 = vld [vmem:[%s1777 + $0x20] sm:$0xf]
      %v1787 = vld [vmem:[%s1777 + $0x24] sm:$0xf]
      %v1788 = vld [vmem:[%s1777 + $0x28] sm:$0xf]
      %v1789 = vld [vmem:[%s1777 + $0x2c] sm:$0xf]
      %v1790 = vld [vmem:[%s1777 + $0x30] sm:$0xf]
      %v1791 = vld [vmem:[%s1777 + $0x34] sm:$0xf]
      %v1792 = vld [vmem:[%s1777 + $0x38] sm:$0xf]
      %v1793 = vld [vmem:[%s1777 + $0x3c] sm:$0xf]
      %v1794 = vunpack.c.l.b16 %v1678
      %v1795 = vunpack.c.l.b16 %v1692
      %v1796 = vunpack.c.l.b16 %v1706
      %v1797 = vunpack.c.l.b16 %v1720
      %v1798 = vunpack.c.l.b16 %v1734
      %v1799 = vunpack.c.l.b16 %v1748
      %v1800 = vunpack.c.l.b16 %v1762
      %v1801 = vunpack.c.l.b16 %v1776
      %v1802 = vpack.c.b16 %v1795, %v1794
      %v1803 = vpack.c.b16 %v1797, %v1796
      %v1804 = vpack.c.b16 %v1799, %v1798
      %v1805 = vpack.c.b16 %v1801, %v1800
      %v1826 = vunpack.c.l.b16 %v1778
      %v1827 = vunpack.c.l.b16 %v1779
      %v1828 = vunpack.c.l.b16 %v1780
      %v1829 = vunpack.c.l.b16 %v1781
      %v1830 = vunpack.c.l.b16 %v1782
      %v1831 = vunpack.c.l.b16 %v1783
      %v1832 = vunpack.c.l.b16 %v1784
      %v1833 = vunpack.c.l.b16 %v1785
      %v1834 = vunpack.c.l.b16 %v1786
      %v1835 = vunpack.c.l.b16 %v1787
      %v1836 = vunpack.c.l.b16 %v1788
      %v1837 = vunpack.c.l.b16 %v1789
      %v1838 = vunpack.c.l.b16 %v1790
      %v1839 = vunpack.c.l.b16 %v1791
      %v1840 = vunpack.c.l.b16 %v1792
      %v1841 = vunpack.c.l.b16 %v1793
      %v1842 = vpack.c.b16 %v1827, %v1826
      %v1843 = vpack.c.b16 %v1829, %v1828
      %v1844 = vpack.c.b16 %v1831, %v1830
      %v1845 = vpack.c.b16 %v1833, %v1832
      %v1846 = vpack.c.b16 %v1835, %v1834
      %v1847 = vpack.c.b16 %v1837, %v1836
      %v1848 = vpack.c.b16 %v1839, %v1838
      %v1849 = vpack.c.b16 %v1841, %v1840
      %1858 = vmatprep.subr.bf16.mxu0 0
      %1859 = vmatpush1.bf16.msra.mxu0 %v1842
      %1860 = vmatprep.subr.bf16.mxu0 0
      %1861 = vmatpush1.bf16.msra.mxu0 %v1843
      %1862 = vmatprep.subr.bf16.mxu0 0
      %1863 = vmatpush1.bf16.msra.mxu0 %v1844
      %1864 = vmatprep.subr.bf16.mxu0 0
      %1865 = vmatpush1.bf16.msra.mxu0 %v1845
      %1866 = vmatprep.subr.bf16.mxu0 0
      %1867 = vmatpush1.bf16.msra.mxu0 %v1846
      %1868 = vmatprep.subr.bf16.mxu0 0
      %1869 = vmatpush1.bf16.msra.mxu0 %v1847
      %1870 = vmatprep.subr.bf16.mxu0 0
      %1871 = vmatpush1.bf16.msra.mxu0 %v1848
      %1872 = vmatprep.subr.bf16.mxu0 0
      %1873 = vmatpush1.bf16.msra.mxu0 %v1849
      %1874 = vmatprep.subr.bf16.mxu0 0
      %1875 = vmatpush1.bf16.msra.mxu0 0
      %1876 = vmatprep.subr.bf16.mxu0 0
      %1877 = vmatpush1.bf16.msra.mxu0 0
      %1878 = vmatprep.subr.bf16.mxu0 0
      %1879 = vmatpush1.bf16.msra.mxu0 0
      %1880 = vmatprep.subr.bf16.mxu0 0
      %1881 = vmatpush1.bf16.msra.mxu0 0
      %1882 = vmatprep.subr.bf16.mxu0 0
      %1883 = vmatpush1.bf16.msra.mxu0 0
      %1884 = vmatprep.subr.bf16.mxu0 0
      %1885 = vmatpush1.bf16.msra.mxu0 0
      %1886 = vmatprep.subr.bf16.mxu0 0
      %1887 = vmatpush1.bf16.msra.mxu0 0
      %1888 = vmatprep.subr.bf16.mxu0 0
      %1889 = vmatpush1.bf16.msra.mxu0 0
      %1890 = vmatprep.mubr.bf16.mxu0 0
      %1891 = vmatmul.mubr.bf16.gmra.mrb[0].mxu0 %v1802
      %v1892 = vpop.f32.mrb[0].mxu0
      %v1893 = vadd.f32 0.0, %v1892
      %v1894 = vpop.f32.mrb[0].mxu0
      %v1895 = vpop.f32.mrb[0].mxu0
      %v1896 = vadd.f32 0.0, %v1895
      %v1897 = vpop.f32.mrb[0].mxu0
      %1898 = vmatprep.mubr.bf16.mxu0 0
      %1899 = vmatmul.mubr.bf16.gmra.mrb[0].mxu0 %v1803
      %v1900 = vpop.f32.mrb[0].mxu0
      %v1901 = vadd.f32 0.0, %v1900
      %v1902 = vpop.f32.mrb[0].mxu0
      %v1903 = vpop.f32.mrb[0].mxu0
      %v1904 = vadd.f32 0.0, %v1903
      %v1905 = vpop.f32.mrb[0].mxu0
      %1906 = vmatprep.mubr.bf16.mxu0 0
      %1907 = vmatmul.mubr.bf16.gmra.mrb[0].mxu0 %v1804
      %v1908 = vpop.f32.mrb[0].mxu0
      %v1909 = vadd.f32 0.0, %v1908
      %v1910 = vpop.f32.mrb[0].mxu0
      %v1911 = vpop.f32.mrb[0].mxu0
      %v1912 = vadd.f32 0.0, %v1911
      %v1913 = vpop.f32.mrb[0].mxu0
      %1914 = vmatprep.mubr.bf16.mxu0 0
      %1915 = vmatmul.mubr.bf16.gmra.mrb[0].mxu0 %v1805
      %v1916 = vpop.f32.mrb[0].mxu0
      %v1917 = vadd.f32 0.0, %v1916
      %v1918 = vpop.f32.mrb[0].mxu0
      %v1919 = vpop.f32.mrb[0].mxu0
      %v1920 = vadd.f32 0.0, %v1919
      %v1921 = vpop.f32.mrb[0].mxu0
      %1922 = vdwg.mxu0
      %v1923 = vadd.f32 %v1641, %v1893
      %v1924 = vadd.f32 %v1642, %v1896
      %v1925 = vadd.f32 %v1643, %v1901
      %v1926 = vadd.f32 %v1644, %v1904
      %v1927 = vadd.f32 %v1645, %v1909
      %v1928 = vadd.f32 %v1646, %v1912
      %v1929 = vadd.f32 %v1647, %v1917
      %v1930 = vadd.f32 %v1648, %v1920
      %v1931 = vld [vmem:[%s1478] sm:$0xe]
      %v1932 = vld [vmem:[%s1478 + $0x8] sm:$0xe]
      %v1933 = vld [vmem:[%s1478 + $0x10] sm:$0xe]
      %v1934 = vld [vmem:[%s1478 + $0x18] sm:$0xe]
      %v1935 = vld [vmem:[%s1478 + $0x20] sm:$0xe]
      %v1936 = vld [vmem:[%s1478 + $0x28] sm:$0xe]
      %v1937 = vld [vmem:[%s1478 + $0x30] sm:$0xe]
      %v1938 = vld [vmem:[%s1478 + $0x38] sm:$0xe]
      %v1955 = vrot.slane %v1931, 5
      %v1956 = vrot.slane %v1955, 4
      %v1957 = vrot.slane %v1650, 5
      %v1958 = vsel %vm628, %v1956, %v1957
      %v1959 = vrot.slane %v1932, 5
      %v1960 = vrot.slane %v1959, 4
      %v1961 = vrot.slane %v1652, 5
      %v1962 = vsel %vm628, %v1960, %v1961
      %v1963 = vrot.slane %v1933, 5
      %v1964 = vrot.slane %v1963, 4
      %v1965 = vrot.slane %v1654, 5
      %v1966 = vsel %vm628, %v1964, %v1965
      %v1967 = vrot.slane %v1934, 5
      %v1968 = vrot.slane %v1967, 4
      %v1969 = vrot.slane %v1656, 5
      %v1970 = vsel %vm628, %v1968, %v1969
      %v1971 = vrot.slane %v1935, 5
      %v1972 = vrot.slane %v1971, 4
      %v1973 = vrot.slane %v1658, 5
      %v1974 = vsel %vm628, %v1972, %v1973
      %v1975 = vrot.slane %v1936, 5
      %v1976 = vrot.slane %v1975, 4
      %v1977 = vrot.slane %v1660, 5
      %v1978 = vsel %vm628, %v1976, %v1977
      %v1979 = vrot.slane %v1937, 5
      %v1980 = vrot.slane %v1979, 4
      %v1981 = vrot.slane %v1662, 5
      %v1982 = vsel %vm628, %v1980, %v1981
      %v1983 = vrot.slane %v1938, 5
      %v1984 = vrot.slane %v1983, 4
      %v1985 = vrot.slane %v1664, 5
      %v1986 = vsel %vm628, %v1984, %v1985
      %s1987 = scalar_lea.vmem %s1, 512
      %v1988 = vld [vmem:[%s1987] sm:$0xf]
      %v1989 = vld [vmem:[%s1987 + $0x4] sm:$0xf]
      %v1990 = vld [vmem:[%s1987 + $0x8] sm:$0xf]
      %v1991 = vld [vmem:[%s1987 + $0xc] sm:$0xf]
      %v1992 = vld [vmem:[%s1987 + $0x10] sm:$0xf]
      %v1993 = vld [vmem:[%s1987 + $0x14] sm:$0xf]
      %v1994 = vld [vmem:[%s1987 + $0x18] sm:$0xf]
      %v1995 = vld [vmem:[%s1987 + $0x1c] sm:$0xf]
      %v1996 = vld [vmem:[%s1987 + $0x20] sm:$0xf]
      %v1997 = vld [vmem:[%s1987 + $0x24] sm:$0xf]
      %v1998 = vld [vmem:[%s1987 + $0x28] sm:$0xf]
      %v1999 = vld [vmem:[%s1987 + $0x2c] sm:$0xf]
      %v2000 = vld [vmem:[%s1987 + $0x30] sm:$0xf]
      %v2001 = vld [vmem:[%s1987 + $0x34] sm:$0xf]
      %v2002 = vld [vmem:[%s1987 + $0x38] sm:$0xf]
      %v2003 = vld [vmem:[%s1987 + $0x3c] sm:$0xf]
      %v2004 = vunpack.c.l.b16 %v1958
      %v2005 = vunpack.c.l.b16 %v1962
      %v2006 = vunpack.c.l.b16 %v1966
      %v2007 = vunpack.c.l.b16 %v1970
      %v2008 = vunpack.c.l.b16 %v1974
      %v2009 = vunpack.c.l.b16 %v1978
      %v2010 = vunpack.c.l.b16 %v1982
      %v2011 = vunpack.c.l.b16 %v1986
      %v2012 = vpack.c.b16 %v2005, %v2004
      %v2013 = vpack.c.b16 %v2007, %v2006
      %v2014 = vpack.c.b16 %v2009, %v2008
      %v2015 = vpack.c.b16 %v2011, %v2010
      %v2036 = vunpack.c.l.b16 %v1988
      %v2037 = vunpack.c.l.b16 %v1989
      %v2038 = vunpack.c.l.b16 %v1990
      %v2039 = vunpack.c.l.b16 %v1991
      %v2040 = vunpack.c.l.b16 %v1992
      %v2041 = vunpack.c.l.b16 %v1993
      %v2042 = vunpack.c.l.b16 %v1994
      %v2043 = vunpack.c.l.b16 %v1995
      %v2044 = vunpack.c.l.b16 %v1996
      %v2045 = vunpack.c.l.b16 %v1997
      %v2046 = vunpack.c.l.b16 %v1998
      %v2047 = vunpack.c.l.b16 %v1999
      %v2048 = vunpack.c.l.b16 %v2000
      %v2049 = vunpack.c.l.b16 %v2001
      %v2050 = vunpack.c.l.b16 %v2002
      %v2051 = vunpack.c.l.b16 %v2003
      %v2052 = vpack.c.b16 %v2037, %v2036
      %v2053 = vpack.c.b16 %v2039, %v2038
      %v2054 = vpack.c.b16 %v2041, %v2040
      %v2055 = vpack.c.b16 %v2043, %v2042
      %v2056 = vpack.c.b16 %v2045, %v2044
      %v2057 = vpack.c.b16 %v2047, %v2046
      %v2058 = vpack.c.b16 %v2049, %v2048
      %v2059 = vpack.c.b16 %v2051, %v2050
      %2068 = vmatprep.subr.bf16.mxu0 0
      %2069 = vmatpush1.bf16.msra.mxu0 %v2052
      %2070 = vmatprep.subr.bf16.mxu0 0
      %2071 = vmatpush1.bf16.msra.mxu0 %v2053
      %2072 = vmatprep.subr.bf16.mxu0 0
      %2073 = vmatpush1.bf16.msra.mxu0 %v2054
      %2074 = vmatprep.subr.bf16.mxu0 0
      %2075 = vmatpush1.bf16.msra.mxu0 %v2055
      %2076 = vmatprep.subr.bf16.mxu0 0
      %2077 = vmatpush1.bf16.msra.mxu0 %v2056
      %2078 = vmatprep.subr.bf16.mxu0 0
      %2079 = vmatpush1.bf16.msra.mxu0 %v2057
      %2080 = vmatprep.subr.bf16.mxu0 0
      %2081 = vmatpush1.bf16.msra.mxu0 %v2058
      %2082 = vmatprep.subr.bf16.mxu0 0
      %2083 = vmatpush1.bf16.msra.mxu0 %v2059
      %2084 = vmatprep.subr.bf16.mxu0 0
      %2085 = vmatpush1.bf16.msra.mxu0 0
      %2086 = vmatprep.subr.bf16.mxu0 0
      %2087 = vmatpush1.bf16.msra.mxu0 0
      %2088 = vmatprep.subr.bf16.mxu0 0
      %2089 = vmatpush1.bf16.msra.mxu0 0
      %2090 = vmatprep.subr.bf16.mxu0 0
      %2091 = vmatpush1.bf16.msra.mxu0 0
      %2092 = vmatprep.subr.bf16.mxu0 0
      %2093 = vmatpush1.bf16.msra.mxu0 0
      %2094 = vmatprep.subr.bf16.mxu0 0
      %2095 = vmatpush1.bf16.msra.mxu0 0
      %2096 = vmatprep.subr.bf16.mxu0 0
      %2097 = vmatpush1.bf16.msra.mxu0 0
      %2098 = vmatprep.subr.bf16.mxu0 0
      %2099 = vmatpush1.bf16.msra.mxu0 0
      %2100 = vmatprep.mubr.bf16.mxu0 0
      %2101 = vmatmul.mubr.bf16.gmra.mrb[0].mxu0 %v2012
      %v2102 = vpop.f32.mrb[0].mxu0
      %v2103 = vadd.f32 0.0, %v2102
      %v2104 = vpop.f32.mrb[0].mxu0
      %v2105 = vpop.f32.mrb[0].mxu0
      %v2106 = vadd.f32 0.0, %v2105
      %v2107 = vpop.f32.mrb[0].mxu0
      %2108 = vmatprep.mubr.bf16.mxu0 0
      %2109 = vmatmul.mubr.bf16.gmra.mrb[0].mxu0 %v2013
      %v2110 = vpop.f32.mrb[0].mxu0
      %v2111 = vadd.f32 0.0, %v2110
      %v2112 = vpop.f32.mrb[0].mxu0
      %v2113 = vpop.f32.mrb[0].mxu0
      %v2114 = vadd.f32 0.0, %v2113
      %v2115 = vpop.f32.mrb[0].mxu0
      %2116 = vmatprep.mubr.bf16.mxu0 0
      %2117 = vmatmul.mubr.bf16.gmra.mrb[0].mxu0 %v2014
      %v2118 = vpop.f32.mrb[0].mxu0
      %v2119 = vadd.f32 0.0, %v2118
      %v2120 = vpop.f32.mrb[0].mxu0
      %v2121 = vpop.f32.mrb[0].mxu0
      %v2122 = vadd.f32 0.0, %v2121
      %v2123 = vpop.f32.mrb[0].mxu0
      %2124 = vmatprep.mubr.bf16.mxu0 0
      %2125 = vmatmul.mubr.bf16.gmra.mrb[0].mxu0 %v2015
      %v2126 = vpop.f32.mrb[0].mxu0
      %v2127 = vadd.f32 0.0, %v2126
      %v2128 = vpop.f32.mrb[0].mxu0
      %v2129 = vpop.f32.mrb[0].mxu0
      %v2130 = vadd.f32 0.0, %v2129
      %v2131 = vpop.f32.mrb[0].mxu0
      %2132 = vdwg.mxu0
      %v2133 = vadd.f32 %v1923, %v2103
      %v2134 = vadd.f32 %v1924, %v2106
      %v2135 = vadd.f32 %v1925, %v2111
      %v2136 = vadd.f32 %v1926, %v2114
      %v2137 = vadd.f32 %v1927, %v2119
      %v2138 = vadd.f32 %v1928, %v2122
      %v2139 = vadd.f32 %v1929, %v2127
      %v2140 = vadd.f32 %v1930, %v2130
      %v2141 = vld [vmem:[%s2] sm:$0x1]
      %v2143 = vlaneseq
      %v2144 = vshrl.u32 %v2143, 7
      %v2145 = vsub.s32 0, %v2144
      %v2146 = vrot.slane %v2141, %v2145
      %v2148 = vadd.f32 %v2133, %v2146
      %v2149 = vadd.f32 %v2134, %v2146
      %v2150 = vadd.f32 %v2135, %v2146
      %v2151 = vadd.f32 %v2136, %v2146
      %v2152 = vadd.f32 %v2137, %v2146
      %v2153 = vadd.f32 %v2138, %v2146
      %v2154 = vadd.f32 %v2139, %v2146
      %v2155 = vadd.f32 %v2140, %v2146
      %vm2156 = vcmp.ge.f32.partialorder %v2148, 0.0
      %vm2157 = vcmp.ge.f32.partialorder %v2149, 0.0
      %vm2158 = vcmp.ge.f32.partialorder %v2150, 0.0
      %vm2159 = vcmp.ge.f32.partialorder %v2151, 0.0
      %vm2160 = vcmp.ge.f32.partialorder %v2152, 0.0
      %vm2161 = vcmp.ge.f32.partialorder %v2153, 0.0
      %vm2162 = vcmp.ge.f32.partialorder %v2154, 0.0
      %vm2163 = vcmp.ge.f32.partialorder %v2155, 0.0
      %v2164 = vmul.f32 %v2148, 0.01
      %v2165 = vmul.f32 %v2149, 0.01
      %v2166 = vmul.f32 %v2150, 0.01
      %v2167 = vmul.f32 %v2151, 0.01
      %v2168 = vmul.f32 %v2152, 0.01
      %v2169 = vmul.f32 %v2153, 0.01
      %v2170 = vmul.f32 %v2154, 0.01
      %v2171 = vmul.f32 %v2155, 0.01
      %v2172 = vsel %vm2156, %v2148, %v2164
      %v2173 = vsel %vm2157, %v2149, %v2165
      %v2174 = vsel %vm2158, %v2150, %v2166
      %v2175 = vsel %vm2159, %v2151, %v2167
      %v2176 = vsel %vm2160, %v2152, %v2168
      %v2177 = vsel %vm2161, %v2153, %v2169
      %v2178 = vsel %vm2162, %v2154, %v2170
      %v2179 = vsel %vm2163, %v2155, %v2171
      %v2180 = vpack.c.bf16 %v2172, %v2172
      %v2181 = vpack.c.bf16 %v2173, %v2173
      %v2182 = vpack.c.bf16 %v2174, %v2174
      %v2183 = vpack.c.bf16 %v2175, %v2175
      %v2184 = vpack.c.bf16 %v2176, %v2176
      %v2185 = vpack.c.bf16 %v2177, %v2177
      %v2186 = vpack.c.bf16 %v2178, %v2178
      %v2187 = vpack.c.bf16 %v2179, %v2179
      %2188 = vst [vmem:[%s170] sm:$0xf] %v2180
      %2189 = vst [vmem:[%s170 + $0x4] sm:$0xf] %v2181
      %2190 = vst [vmem:[%s170 + $0x8] sm:$0xf] %v2182
      %2191 = vst [vmem:[%s170 + $0xc] sm:$0xf] %v2183
      %2192 = vst [vmem:[%s170 + $0x10] sm:$0xf] %v2184
      %2193 = vst [vmem:[%s170 + $0x14] sm:$0xf] %v2185
      %2194 = vst [vmem:[%s170 + $0x18] sm:$0xf] %v2186
      %2195 = vst [vmem:[%s170 + $0x1c] sm:$0xf] %v2187
      %p2196 = scmp.lt.s32.totalorder %s14, 1
      %s2197 = scalar_select %p2196, %s14, 1
      %s2198 = smul.addr %s2197, 8
      %s2199 = smul.addr %s2198, 4
      %s2200 = scalar_lea.vmem %s3, %s2199
      // Predicated region
      $region33: #{cfi_forward.4} parent=31 // pred_check
        %p2201 = pneg %p100
      $region34: #{cfi_forward.4} parent=31 // pred_check_branch
        %2203 = sbr.rel (%p2201) target = $region36
      $region35: #{cfi_forward.4} parent=31 // pred_region
        _
      $region36: #{cfi_forward.4} parent=31 // pred_fallthru
        _
    $region32: #{cfi_forward.4} parent=5 // pred_fallthru
      _
    %p2204 = scmp.le.s32.totalorder 2, %s9
    // Predicated region
    $region37: #{cfi_forward.4} parent=5 // pred_check
      %p2205 = pneg %p2204
    $region38: #{cfi_forward.4} parent=5 // pred_check_branch
      %2207 = sbr.rel (%p2205) target = $region40
    $region39: #{cfi_forward.4} parent=5 // pred_region
      %s2208 = ssub.s32 %s9, 2
      // Predicated region
      $region41: #{cfi_forward.4} parent=39 // pred_check
        %p2209 = pneg %p106
      $region42: #{cfi_forward.4} parent=39 // pred_check_branch
        %2211 = sbr.rel (%p2209) target = $region44
      $region43: #{cfi_forward.4} parent=39 // pred_region
        %p2212 = scmp.lt.s32.totalorder %s15, 1
        %s2213 = scalar_select %p2212, %s15, 1
        %s2214 = smul.addr %s2213, 8
        %s2215 = smul.addr %s2214, 4
        %s2216 = scalar_lea.vmem %s3, %s2215
      $region44: #{cfi_forward.4} parent=39 // pred_fallthru
        _
    $region40: #{cfi_forward.4} parent=5 // pred_fallthru
      _
  $region6: #{cfi_forward.4} parent=0 // loop_footer
    %s13 = sadd.s32 1, %s9
  $region7: #{cfi_forward.4} parent=0 // loop_footer_branch
    %8 = sbr.rel target = $region3
  $region8: #{cfi_forward.4} parent=0 // loop_exit
    _

// kernel: cfi_forward.6
$region0: #{cfi_forward.6}
  #allocation0 [shape = 'u32[]', space=smem, size = 0x4, offset = 0x4, fixed_abs, tag = 'smem constant byte address 0x4 - core index']
  #allocation1 [shape = 'u32[144,128]{1,0:T(1,128)}', space=vmem, size = 0x12000, scoped, tag = 'internal scratch']
  #allocation2 [shape = 'bf16[10,10,128]{2,1,0:T(8,128)(2,1)}', space=vmem, size = 0xa000, scoped, tag = 'scratch operand']
  %s0 = inlined_call_operand.vmem [shape: bf16[2,8,8,128], index: 0, kind: input, shape index: {}]
  %s1 = inlined_call_operand.vmem [shape: bf16[2,8,8,128], index: 1, kind: input, shape index: {}]
  %s2 = inlined_call_operand.vmem [shape: bf16[128,128], index: 2, kind: input, shape index: {}]
  %s3 = inlined_call_operand.vmem [shape: bf16[128,128], index: 3, kind: input, shape index: {}]
  %s4 = inlined_call_operand.vmem [shape: f32[1,128], index: 4, kind: input, shape index: {}]
  %s5 = inlined_call_operand.vmem [shape: bf16[9,128,128], index: 5, kind: input, shape index: {}]
  %s6 = inlined_call_operand.vmem [shape: f32[1,128], index: 6, kind: input, shape index: {}]
  %s7 = inlined_call_operand.vmem [shape: bf16[2,8,8,128], index: 7, kind: output, shape index: {}]
  %s8 = sld [smem:[#allocation0]]
  $region61: #{cfi_forward.6} parent=0
    _
  %s10 = ssub.s32 1, %s8
  %s11 = scalar_select 0, %s10, %s8
  loop: start=0, step=1, limit=4
  $region2: #{cfi_forward.6} parent=0 // loop_pre_header
    _
  $region3: #{cfi_forward.6} parent=0 // loop_header
    %s13 = sphi 0, %s17
    %p14 = scmp.ge.s32.totalorder %s13, 4
    %s23 = sphi 0, %s25
    %s26 = sphi 0, %s23
    %s27 = sphi 0, %s26
    %s43 = sphi 0, %s27
    %s49 = sphi 0, %s51
    %s52 = sphi 0, %s49
    %s53 = sphi 0, %s52
    %s69 = sphi 0, %s53
    %s73 = sphi 0, %s73
    %s75 = sphi 0, %s73
    %s76 = sphi 0, %s75
    %s90 = sphi 0, %s76
    %s94 = sphi 0, %s94
    %s96 = sphi 0, %s94
    %s97 = sphi 0, %s96
    %s111 = sphi 0, %s97
    %s115 = sphi 0, %s115
    %s117 = sphi 0, %s115
    %s118 = sphi 0, %s117
    %s132 = sphi 0, %s118
    %s136 = sphi 0, %s136
    %s138 = sphi 0, %s136
    %s139 = sphi 0, %s138
    %s153 = sphi 0, %s139
    %s157 = sphi 0, %s157
    %s159 = sphi 0, %s157
    %s160 = sphi 0, %s159
    %s174 = sphi 0, %s160
    %s180 = sphi 0, %s182
    %s183 = sphi 0, %s180
    %s184 = sphi 0, %s183
    %s200 = sphi 0, %s184
  $region4: #{cfi_forward.6} parent=0 // loop_header_branch
    %16 = sbr.rel (%p14) target = $region8
  $region5: #{cfi_forward.6} parent=0 // loop_body
    %s18 = ssub.s32 %s13, 1
    %s19 = ssub.s32 %s13, 2
    %s20 = sadd.s32 %s13, 1
    %s21 = ssub.s32 %s13, %s20
    %p22 = scmp.eq.s32.totalorder %s21, 0
    %s24 = sadd.s32 %s23, 1
    %s25 = scalar_select %p22, %s23, %s24
    %p28 = pneg %p22
    %p29 = scmp.eq.s32.totalorder %s13, 1
    %p30 = por %p28, %p29
    %p31 = scmp.ne.s32.totalorder %s23, %s26
    %p32 = scmp.eq.s32.totalorder %s13, 0
    %p33 = por %p31, %p32
    %p34 = scmp.ne.s32.totalorder %s23, %s26
    %p35 = scmp.eq.s32.totalorder %s18, 1
    %p36 = por %p34, %p35
    %p37 = scmp.ne.s32.totalorder %s26, %s27
    %p38 = scmp.eq.s32.totalorder %s18, 0
    %p39 = por %p37, %p38
    %p40 = scmp.ne.s32.totalorder %s26, %s27
    %p41 = scmp.eq.s32.totalorder %s19, 1
    %p42 = por %p40, %p41
    %p44 = scmp.ne.s32.totalorder %s27, %s43
    %p45 = scmp.eq.s32.totalorder %s19, 0
    %p46 = por %p44, %p45
    %s47 = ssub.s32 %s13, %s20
    %p48 = scmp.eq.s32.totalorder %s47, 0
    %s50 = sadd.s32 %s49, 1
    %s51 = scalar_select %p48, %s49, %s50
    %p54 = pneg %p48
    %p55 = scmp.eq.s32.totalorder %s13, 1
    %p56 = por %p54, %p55
    %p57 = scmp.ne.s32.totalorder %s49, %s52
    %p58 = scmp.eq.s32.totalorder %s13, 0
    %p59 = por %p57, %p58
    %p60 = scmp.ne.s32.totalorder %s49, %s52
    %p61 = scmp.eq.s32.totalorder %s18, 1
    %p62 = por %p60, %p61
    %p63 = scmp.ne.s32.totalorder %s52, %s53
    %p64 = scmp.eq.s32.totalorder %s18, 0
    %p65 = por %p63, %p64
    %p66 = scmp.ne.s32.totalorder %s52, %s53
    %p67 = scmp.eq.s32.totalorder %s19, 1
    %p68 = por %p66, %p67
    %p70 = scmp.ne.s32.totalorder %s53, %s69
    %p71 = scmp.eq.s32.totalorder %s19, 0
    %p72 = por %p70, %p71
    %s74 = sadd.s32 %s73, 1
    %p77 = scmp.eq.s32.totalorder %s13, 1
    %p78 = scmp.ne.s32.totalorder %s73, %s75
    %p79 = scmp.eq.s32.totalorder %s13, 0
    %p80 = por %p78, %p79
    %p81 = scmp.ne.s32.totalorder %s73, %s75
    %p82 = scmp.eq.s32.totalorder %s18, 1
    %p83 = por %p81, %p82
    %p84 = scmp.ne.s32.totalorder %s75, %s76
    %p85 = scmp.eq.s32.totalorder %s18, 0
    %p86 = por %p84, %p85
    %p87 = scmp.ne.s32.totalorder %s75, %s76
    %p88 = scmp.eq.s32.totalorder %s19, 1
    %p89 = por %p87, %p88
    %p91 = scmp.ne.s32.totalorder %s76, %s90
    %p92 = scmp.eq.s32.totalorder %s19, 0
    %p93 = por %p91, %p92
    %s95 = sadd.s32 %s94, 1
    %p98 = scmp.eq.s32.totalorder %s13, 1
    %p99 = scmp.ne.s32.totalorder %s94, %s96
    %p100 = scmp.eq.s32.totalorder %s13, 0
    %p101 = por %p99, %p100
    %p102 = scmp.ne.s32.totalorder %s94, %s96
    %p103 = scmp.eq.s32.totalorder %s18, 1
    %p104 = por %p102, %p103
    %p105 = scmp.ne.s32.totalorder %s96, %s97
    %p106 = scmp.eq.s32.totalorder %s18, 0
    %p107 = por %p105, %p106
    %p108 = scmp.ne.s32.totalorder %s96, %s97
    %p109 = scmp.eq.s32.totalorder %s19, 1
    %p110 = por %p108, %p109
    %p112 = scmp.ne.s32.totalorder %s97, %s111
    %p113 = scmp.eq.s32.totalorder %s19, 0
    %p114 = por %p112, %p113
    %s116 = sadd.s32 %s115, 1
    %p119 = scmp.eq.s32.totalorder %s13, 1
    %p120 = scmp.ne.s32.totalorder %s115, %s117
    %p121 = scmp.eq.s32.totalorder %s13, 0
    %p122 = por %p120, %p121
    %p123 = scmp.ne.s32.totalorder %s115, %s117
    %p124 = scmp.eq.s32.totalorder %s18, 1
    %p125 = por %p123, %p124
    %p126 = scmp.ne.s32.totalorder %s117, %s118
    %p127 = scmp.eq.s32.totalorder %s18, 0
    %p128 = por %p126, %p127
    %p129 = scmp.ne.s32.totalorder %s117, %s118
    %p130 = scmp.eq.s32.totalorder %s19, 1
    %p131 = por %p129, %p130
    %p133 = scmp.ne.s32.totalorder %s118, %s132
    %p134 = scmp.eq.s32.totalorder %s19, 0
    %p135 = por %p133, %p134
    %s137 = sadd.s32 %s136, 1
    %p140 = scmp.eq.s32.totalorder %s13, 1
    %p141 = scmp.ne.s32.totalorder %s136, %s138
    %p142 = scmp.eq.s32.totalorder %s13, 0
    %p143 = por %p141, %p142
    %p144 = scmp.ne.s32.totalorder %s136, %s138
    %p145 = scmp.eq.s32.totalorder %s18, 1
    %p146 = por %p144, %p145
    %p147 = scmp.ne.s32.totalorder %s138, %s139
    %p148 = scmp.eq.s32.totalorder %s18, 0
    %p149 = por %p147, %p148
    %p150 = scmp.ne.s32.totalorder %s138, %s139
    %p151 = scmp.eq.s32.totalorder %s19, 1
    %p152 = por %p150, %p151
    %p154 = scmp.ne.s32.totalorder %s139, %s153
    %p155 = scmp.eq.s32.totalorder %s19, 0
    %p156 = por %p154, %p155
    %s158 = sadd.s32 %s157, 1
    %p161 = scmp.eq.s32.totalorder %s13, 1
    %p162 = scmp.ne.s32.totalorder %s157, %s159
    %p163 = scmp.eq.s32.totalorder %s13, 0
    %p164 = por %p162, %p163
    %p165 = scmp.ne.s32.totalorder %s157, %s159
    %p166 = scmp.eq.s32.totalorder %s18, 1
    %p167 = por %p165, %p166
    %p168 = scmp.ne.s32.totalorder %s159, %s160
    %p169 = scmp.eq.s32.totalorder %s18, 0
    %p170 = por %p168, %p169
    %p171 = scmp.ne.s32.totalorder %s159, %s160
    %p172 = scmp.eq.s32.totalorder %s19, 1
    %p173 = por %p171, %p172
    %p175 = scmp.ne.s32.totalorder %s160, %s174
    %p176 = scmp.eq.s32.totalorder %s19, 0
    %p177 = por %p175, %p176
    %s178 = ssub.s32 %s13, %s20
    %p179 = scmp.eq.s32.totalorder %s178, 0
    %s181 = sadd.s32 %s180, 1
    %s182 = scalar_select %p179, %s180, %s181
    %p185 = pneg %p179
    %p186 = scmp.eq.s32.totalorder %s13, 1
    %p187 = por %p185, %p186
    %p188 = scmp.ne.s32.totalorder %s180, %s183
    %p189 = scmp.eq.s32.totalorder %s13, 0
    %p190 = por %p188, %p189
    %p191 = scmp.ne.s32.totalorder %s180, %s183
    %p192 = scmp.eq.s32.totalorder %s18, 1
    %p193 = por %p191, %p192
    %p194 = scmp.ne.s32.totalorder %s183, %s184
    %p195 = scmp.eq.s32.totalorder %s18, 0
    %p196 = por %p194, %p195
    %p197 = scmp.ne.s32.totalorder %s183, %s184
    %p198 = scmp.eq.s32.totalorder %s19, 1
    %p199 = por %p197, %p198
    %p201 = scmp.ne.s32.totalorder %s184, %s200
    %p202 = scmp.eq.s32.totalorder %s19, 0
    %p203 = por %p201, %p202
    %p204 = scmp.le.s32.totalorder 1, %s13
    %p205 = scmp.lt.s32.totalorder %s13, 3
    %p206 = pnand %p204, %p205
    %p207 = pneg %p206
    // Predicated region
    $region9: #{cfi_forward.6} parent=5 // pred_check
      _
    $region10: #{cfi_forward.6} parent=5 // pred_check_branch
      %209 = sbr.rel (%p206) target = $region12
    $region11: #{cfi_forward.6} parent=5 // pred_region
      %s210 = ssub.s32 %s13, 1
      // Predicated region
      $region13: #{cfi_forward.6} parent=11 // pred_check
        %p211 = pneg %p86
      $region14: #{cfi_forward.6} parent=11 // pred_check_branch
        %213 = sbr.rel (%p211) target = $region16
      $region15: #{cfi_forward.6} parent=11 // pred_region
        _
      $region16: #{cfi_forward.6} parent=11 // pred_fallthru
        _
      // Predicated region
      $region17: #{cfi_forward.6} parent=11 // pred_check
        %p214 = pneg %p107
      $region18: #{cfi_forward.6} parent=11 // pred_check_branch
        %216 = sbr.rel (%p214) target = $region20
      $region19: #{cfi_forward.6} parent=11 // pred_region
        _
      $region20: #{cfi_forward.6} parent=11 // pred_fallthru
        _
      // Predicated region
      $region21: #{cfi_forward.6} parent=11 // pred_check
        %p217 = pneg %p128
      $region22: #{cfi_forward.6} parent=11 // pred_check_branch
        %219 = sbr.rel (%p217) target = $region24
      $region23: #{cfi_forward.6} parent=11 // pred_region
        _
      $region24: #{cfi_forward.6} parent=11 // pred_fallthru
        _
      // Predicated region
      $region25: #{cfi_forward.6} parent=11 // pred_check
        %p220 = pneg %p149
      $region26: #{cfi_forward.6} parent=11 // pred_check_branch
        %222 = sbr.rel (%p220) target = $region28
      $region27: #{cfi_forward.6} parent=11 // pred_region
        _
      $region28: #{cfi_forward.6} parent=11 // pred_fallthru
        _
      // Predicated region
      $region29: #{cfi_forward.6} parent=11 // pred_check
        %p223 = pneg %p170
      $region30: #{cfi_forward.6} parent=11 // pred_check_branch
        %225 = sbr.rel (%p223) target = $region32
      $region31: #{cfi_forward.6} parent=11 // pred_region
        _
      $region32: #{cfi_forward.6} parent=11 // pred_fallthru
        _
    $region12: #{cfi_forward.6} parent=5 // pred_fallthru
      _
    %p226 = scmp.lt.s32.totalorder %s13, 2
    // Predicated region
    $region33: #{cfi_forward.6} parent=5 // pred_check
      %p227 = pneg %p226
    $region34: #{cfi_forward.6} parent=5 // pred_check_branch
      %229 = sbr.rel (%p227) target = $region36
    $region35: #{cfi_forward.6} parent=5 // pred_region
      // Predicated region
      $region37: #{cfi_forward.6} parent=35 // pred_check
        %p230 = pneg %p33
      $region38: #{cfi_forward.6} parent=35 // pred_check_branch
        %232 = sbr.rel (%p230) target = $region40
      $region39: #{cfi_forward.6} parent=35 // pred_region
        %p233 = scmp.lt.s32.totalorder %s13, 1
        %s234 = scalar_select %p233, %s13, 1
        %s235 = smul.addr %s234, 8
        %s236 = smul.addr %s235, 4
        %s237 = scalar_lea.vmem %s0, %s236
      $region40: #{cfi_forward.6} parent=35 // pred_fallthru
        _
      // Predicated region
      $region41: #{cfi_forward.6} parent=35 // pred_check
        %p238 = pneg %p59
      $region42: #{cfi_forward.6} parent=35 // pred_check_branch
        %240 = sbr.rel (%p238) target = $region44
      $region43: #{cfi_forward.6} parent=35 // pred_region
        %p241 = scmp.lt.s32.totalorder %s13, 1
        %s242 = scalar_select %p241, %s13, 1
        %s243 = smul.addr %s242, 8
        %s244 = smul.addr %s243, 4
        %s245 = scalar_lea.vmem %s1, %s244
      $region44: #{cfi_forward.6} parent=35 // pred_fallthru
        _
    $region36: #{cfi_forward.6} parent=5 // pred_fallthru
      _
    %p246 = scmp.le.s32.totalorder 1, %s13
    %p247 = scmp.lt.s32.totalorder %s13, 3
    %p248 = pnand %p246, %p247
    %p249 = pneg %p248
    // Predicated region
    $region45: #{cfi_forward.6} parent=5 // pred_check
      _
    $region46: #{cfi_forward.6} parent=5 // pred_check_branch
      %251 = sbr.rel (%p248) target = $region48
    $region47: #{cfi_forward.6} parent=5 // pred_region
      %s252 = ssub.s32 %s13, 1
      %p253 = scmp.lt.s32.totalorder %s18, 1
      %s254 = scalar_select %p253, %s18, 1
      %s255 = smul.addr %s254, 8
      %s256 = smul.addr %s255, 4
      %s257 = scalar_lea.vmem %s0, %s256
      %p258 = pneg %p39
      %p259 = pneg %p36
      %p260 = scmp.lt.s32.totalorder %s18, 1
      %s261 = scalar_select %p260, %s18, 1
      %s262 = smul.addr %s261, 8
      %s263 = smul.addr %s262, 4
      %s264 = scalar_lea.vmem %s1, %s263
      %p265 = pneg %p65
      %p266 = pneg %p62
      %p267 = pneg %p86
      %p268 = pneg %p83
      %p269 = pneg %p107
      %p270 = pneg %p104
      %p271 = pneg %p128
      %p272 = pneg %p125
      %p273 = pneg %p149
      %p274 = pneg %p146
      %p275 = pneg %p170
      %p276 = pneg %p167
      %p277 = pneg %p196
      %p278 = pneg %p193
      %p279 = scmp.lt.s32.totalorder %s18, 1
      %s280 = scalar_select %p279, %s18, 1
      %s281 = smul.addr %s280, 8
      %s282 = smul.addr %s281, 4
      %s283 = scalar_lea.vmem %s7, %s282
      %p284 = scmp.lt.s32.totalorder %s18, 1
      %s285 = scalar_select %p284, %s18, 1
      %s286 = smul.addr %s285, 8
      %s287 = smul.addr %s286, 4
      %s288 = scalar_lea.vmem %s0, %s287
      %p289 = scmp.lt.s32.totalorder %s18, 1
      %s290 = scalar_select %p289, %s18, 1
      %s291 = smul.addr %s290, 8
      %s292 = smul.addr %s291, 4
      %s293 = scalar_lea.vmem %s1, %s292
      %p294 = scmp.lt.s32.totalorder %s18, 1
      %s295 = scalar_select %p294, %s18, 1
      %s296 = smul.addr %s295, 8
      %s297 = smul.addr %s296, 4
      %s298 = scalar_lea.vmem %s7, %s297
      %v300 = vld [vmem:[%s288] sm:$0xf]
      %v301 = vld [vmem:[%s288 + $0x4] sm:$0xf]
      %v302 = vld [vmem:[%s288 + $0x8] sm:$0xf]
      %v303 = vld [vmem:[%s288 + $0xc] sm:$0xf]
      %v304 = vld [vmem:[%s288 + $0x10] sm:$0xf]
      %v305 = vld [vmem:[%s288 + $0x14] sm:$0xf]
      %v306 = vld [vmem:[%s288 + $0x18] sm:$0xf]
      %v307 = vld [vmem:[%s288 + $0x1c] sm:$0xf]
      %v308 = vld [vmem:[%s2] sm:$0xf]
      %v309 = vld [vmem:[%s2 + $0x4] sm:$0xf]
      %v310 = vld [vmem:[%s2 + $0x8] sm:$0xf]
      %v311 = vld [vmem:[%s2 + $0xc] sm:$0xf]
      %v312 = vld [vmem:[%s2 + $0x10] sm:$0xf]
      %v313 = vld [vmem:[%s2 + $0x14] sm:$0xf]
      %v314 = vld [vmem:[%s2 + $0x18] sm:$0xf]
      %v315 = vld [vmem:[%s2 + $0x1c] sm:$0xf]
      %v316 = vld [vmem:[%s2 + $0x20] sm:$0xf]
      %v317 = vld [vmem:[%s2 + $0x24] sm:$0xf]
      %v318 = vld [vmem:[%s2 + $0x28] sm:$0xf]
      %v319 = vld [vmem:[%s2 + $0x2c] sm:$0xf]
      %v320 = vld [vmem:[%s2 + $0x30] sm:$0xf]
      %v321 = vld [vmem:[%s2 + $0x34] sm:$0xf]
      %v322 = vld [vmem:[%s2 + $0x38] sm:$0xf]
      %v323 = vld [vmem:[%s2 + $0x3c] sm:$0xf]
      %v324 = vld [vmem:[%s293] sm:$0xf]
      %v325 = vld [vmem:[%s293 + $0x4] sm:$0xf]
      %v326 = vld [vmem:[%s293 + $0x8] sm:$0xf]
      %v327 = vld [vmem:[%s293 + $0xc] sm:$0xf]
      %v328 = vld [vmem:[%s293 + $0x10] sm:$0xf]
      %v329 = vld [vmem:[%s293 + $0x14] sm:$0xf]
      %v330 = vld [vmem:[%s293 + $0x18] sm:$0xf]
      %v331 = vld [vmem:[%s293 + $0x1c] sm:$0xf]
      %v332 = vld [vmem:[%s3] sm:$0xf]
      %v333 = vld [vmem:[%s3 + $0x4] sm:$0xf]
      %v334 = vld [vmem:[%s3 + $0x8] sm:$0xf]
      %v335 = vld [vmem:[%s3 + $0xc] sm:$0xf]
      %v336 = vld [vmem:[%s3 + $0x10] sm:$0xf]
      %v337 = vld [vmem:[%s3 + $0x14] sm:$0xf]
      %v338 = vld [vmem:[%s3 + $0x18] sm:$0xf]
      %v339 = vld [vmem:[%s3 + $0x1c] sm:$0xf]
      %v340 = vld [vmem:[%s3 + $0x20] sm:$0xf]
      %v341 = vld [vmem:[%s3 + $0x24] sm:$0xf]
      %v342 = vld [vmem:[%s3 + $0x28] sm:$0xf]
      %v343 = vld [vmem:[%s3 + $0x2c] sm:$0xf]
      %v344 = vld [vmem:[%s3 + $0x30] sm:$0xf]
      %v345 = vld [vmem:[%s3 + $0x34] sm:$0xf]
      %v346 = vld [vmem:[%s3 + $0x38] sm:$0xf]
      %v347 = vld [vmem:[%s3 + $0x3c] sm:$0xf]
      %v356 = vunpack.c.l.b16 %v324
      %v357 = vunpack.c.l.b16 %v325
      %v358 = vunpack.c.l.b16 %v326
      %v359 = vunpack.c.l.b16 %v327
      %v360 = vunpack.c.l.b16 %v328
      %v361 = vunpack.c.l.b16 %v329
      %v362 = vunpack.c.l.b16 %v330
      %v363 = vunpack.c.l.b16 %v331
      %v364 = vpack.c.b16 %v357, %v356
      %v365 = vpack.c.b16 %v359, %v358
      %v366 = vpack.c.b16 %v361, %v360
      %v367 = vpack.c.b16 %v363, %v362
      %v388 = vunpack.c.l.b16 %v332
      %v389 = vunpack.c.l.b16 %v333
      %v390 = vunpack.c.l.b16 %v334
      %v391 = vunpack.c.l.b16 %v335
      %v392 = vunpack.c.l.b16 %v336
      %v393 = vunpack.c.l.b16 %v337
      %v394 = vunpack.c.l.b16 %v338
      %v395 = vunpack.c.l.b16 %v339
      %v396 = vunpack.c.l.b16 %v340
      %v397 = vunpack.c.l.b16 %v341
      %v398 = vunpack.c.l.b16 %v342
      %v399 = vunpack.c.l.b16 %v343
      %v400 = vunpack.c.l.b16 %v344
      %v401 = vunpack.c.l.b16 %v345
      %v402 = vunpack.c.l.b16 %v346
      %v403 = vunpack.c.l.b16 %v347
      %v404 = vpack.c.b16 %v389, %v388
      %v405 = vpack.c.b16 %v391, %v390
      %v406 = vpack.c.b16 %v393, %v392
      %v407 = vpack.c.b16 %v395, %v394
      %v408 = vpack.c.b16 %v397, %v396
      %v409 = vpack.c.b16 %v399, %v398
      %v410 = vpack.c.b16 %v401, %v400
      %v411 = vpack.c.b16 %v403, %v402
      %420 = vmatprep.subr.bf16.mxu0 0
      %421 = vmatpush1.bf16.msra.mxu0 %v404
      %422 = vmatprep.subr.bf16.mxu0 0
      %423 = vmatpush1.bf16.msra.mxu0 %v405
      %424 = vmatprep.subr.bf16.mxu0 0
      %425 = vmatpush1.bf16.msra.mxu0 %v406
      %426 = vmatprep.subr.bf16.mxu0 0
      %427 = vmatpush1.bf16.msra.mxu0 %v407
      %428 = vmatprep.subr.bf16.mxu0 0
      %429 = vmatpush1.bf16.msra.mxu0 %v408
      %430 = vmatprep.subr.bf16.mxu0 0
      %431 = vmatpush1.bf16.msra.mxu0 %v409
      %432 = vmatprep.subr.bf16.mxu0 0
      %433 = vmatpush1.bf16.msra.mxu0 %v410
      %434 = vmatprep.subr.bf16.mxu0 0
      %435 = vmatpush1.bf16.msra.mxu0 %v411
      %436 = vmatprep.subr.bf16.mxu0 0
      %437 = vmatpush1.bf16.msra.mxu0 0
      %438 = vmatprep.subr.bf16.mxu0 0
      %439 = vmatpush1.bf16.msra.mxu0 0
      %440 = vmatprep.subr.bf16.mxu0 0
      %441 = vmatpush1.bf16.msra.mxu0 0
      %442 = vmatprep.subr.bf16.mxu0 0
      %443 = vmatpush1.bf16.msra.mxu0 0
      %444 = vmatprep.subr.bf16.mxu0 0
      %445 = vmatpush1.bf16.msra.mxu0 0
      %446 = vmatprep.subr.bf16.mxu0 0
      %447 = vmatpush1.bf16.msra.mxu0 0
      %448 = vmatprep.subr.bf16.mxu0 0
      %449 = vmatpush1.bf16.msra.mxu0 0
      %450 = vmatprep.subr.bf16.mxu0 0
      %451 = vmatpush1.bf16.msra.mxu0 0
      %452 = vmatprep.mubr.bf16.mxu0 0
      %453 = vmatmul.mubr.bf16.gmra.mrb[0].mxu0 %v364
      %v454 = vpop.f32.mrb[0].mxu0
      %v455 = vadd.f32 0.0, %v454
      %v456 = vpop.f32.mrb[0].mxu0
      %v457 = vpop.f32.mrb[0].mxu0
      %v458 = vadd.f32 0.0, %v457
      %v459 = vpop.f32.mrb[0].mxu0
      %460 = vmatprep.mubr.bf16.mxu0 0
      %461 = vmatmul.mubr.bf16.gmra.mrb[0].mxu0 %v365
      %v462 = vpop.f32.mrb[0].mxu0
      %v463 = vadd.f32 0.0, %v462
      %v464 = vpop.f32.mrb[0].mxu0
      %v465 = vpop.f32.mrb[0].mxu0
      %v466 = vadd.f32 0.0, %v465
      %v467 = vpop.f32.mrb[0].mxu0
      %468 = vmatprep.mubr.bf16.mxu0 0
      %469 = vmatmul.mubr.bf16.gmra.mrb[0].mxu0 %v366
      %v470 = vpop.f32.mrb[0].mxu0
      %v471 = vadd.f32 0.0, %v470
      %v472 = vpop.f32.mrb[0].mxu0
      %v473 = vpop.f32.mrb[0].mxu0
      %v474 = vadd.f32 0.0, %v473
      %v475 = vpop.f32.mrb[0].mxu0
      %476 = vmatprep.mubr.bf16.mxu0 0
      %477 = vmatmul.mubr.bf16.gmra.mrb[0].mxu0 %v367
      %v478 = vpop.f32.mrb[0].mxu0
      %v479 = vadd.f32 0.0, %v478
      %v480 = vpop.f32.mrb[0].mxu0
      %v481 = vpop.f32.mrb[0].mxu0
      %v482 = vadd.f32 0.0, %v481
      %v483 = vpop.f32.mrb[0].mxu0
      %484 = vdwg.mxu0
      %v493 = vunpack.c.l.b16 %v300
      %v494 = vunpack.c.l.b16 %v301
      %v495 = vunpack.c.l.b16 %v302
      %v496 = vunpack.c.l.b16 %v303
      %v497 = vunpack.c.l.b16 %v304
      %v498 = vunpack.c.l.b16 %v305
      %v499 = vunpack.c.l.b16 %v306
      %v500 = vunpack.c.l.b16 %v307
      %v501 = vpack.c.b16 %v494, %v493
      %v502 = vpack.c.b16 %v496, %v495
      %v503 = vpack.c.b16 %v498, %v497
      %v504 = vpack.c.b16 %v500, %v499
      %v525 = vunpack.c.l.b16 %v308
      %v526 = vunpack.c.l.b16 %v309
      %v527 = vunpack.c.l.b16 %v310
      %v528 = vunpack.c.l.b16 %v311
      %v529 = vunpack.c.l.b16 %v312
      %v530 = vunpack.c.l.b16 %v313
      %v531 = vunpack.c.l.b16 %v314
      %v532 = vunpack.c.l.b16 %v315
      %v533 = vunpack.c.l.b16 %v316
      %v534 = vunpack.c.l.b16 %v317
      %v535 = vunpack.c.l.b16 %v318
      %v536 = vunpack.c.l.b16 %v319
      %v537 = vunpack.c.l.b16 %v320
      %v538 = vunpack.c.l.b16 %v321
      %v539 = vunpack.c.l.b16 %v322
      %v540 = vunpack.c.l.b16 %v323
      %v541 = vpack.c.b16 %v526, %v525
      %v542 = vpack.c.b16 %v528, %v527
      %v543 = vpack.c.b16 %v530, %v529
      %v544 = vpack.c.b16 %v532, %v531
      %v545 = vpack.c.b16 %v534, %v533
      %v546 = vpack.c.b16 %v536, %v535
      %v547 = vpack.c.b16 %v538, %v537
      %v548 = vpack.c.b16 %v540, %v539
      %557 = vmatprep.subr.bf16.mxu0 0
      %558 = vmatpush1.bf16.msra.mxu0 %v541
      %559 = vmatprep.subr.bf16.mxu0 0
      %560 = vmatpush1.bf16.msra.mxu0 %v542
      %561 = vmatprep.subr.bf16.mxu0 0
      %562 = vmatpush1.bf16.msra.mxu0 %v543
      %563 = vmatprep.subr.bf16.mxu0 0
      %564 = vmatpush1.bf16.msra.mxu0 %v544
      %565 = vmatprep.subr.bf16.mxu0 0
      %566 = vmatpush1.bf16.msra.mxu0 %v545
      %567 = vmatprep.subr.bf16.mxu0 0
      %568 = vmatpush1.bf16.msra.mxu0 %v546
      %569 = vmatprep.subr.bf16.mxu0 0
      %570 = vmatpush1.bf16.msra.mxu0 %v547
      %571 = vmatprep.subr.bf16.mxu0 0
      %572 = vmatpush1.bf16.msra.mxu0 %v548
      %573 = vmatprep.subr.bf16.mxu0 0
      %574 = vmatpush1.bf16.msra.mxu0 0
      %575 = vmatprep.subr.bf16.mxu0 0
      %576 = vmatpush1.bf16.msra.mxu0 0
      %577 = vmatprep.subr.bf16.mxu0 0
      %578 = vmatpush1.bf16.msra.mxu0 0
      %579 = vmatprep.subr.bf16.mxu0 0
      %580 = vmatpush1.bf16.msra.mxu0 0
      %581 = vmatprep.subr.bf16.mxu0 0
      %582 = vmatpush1.bf16.msra.mxu0 0
      %583 = vmatprep.subr.bf16.mxu0 0
      %584 = vmatpush1.bf16.msra.mxu0 0
      %585 = vmatprep.subr.bf16.mxu0 0
      %586 = vmatpush1.bf16.msra.mxu0 0
      %587 = vmatprep.subr.bf16.mxu0 0
      %588 = vmatpush1.bf16.msra.mxu0 0
      %589 = vmatprep.mubr.bf16.mxu0 0
      %590 = vmatmul.mubr.bf16.gmra.mrb[0].mxu0 %v501
      %v591 = vpop.f32.mrb[0].mxu0
      %v592 = vadd.f32 %v455, %v591
      %v593 = vpop.f32.mrb[0].mxu0
      %v594 = vpop.f32.mrb[0].mxu0
      %v595 = vadd.f32 %v458, %v594
      %v596 = vpop.f32.mrb[0].mxu0
      %597 = vmatprep.mubr.bf16.mxu0 0
      %598 = vmatmul.mubr.bf16.gmra.mrb[0].mxu0 %v502
      %v599 = vpop.f32.mrb[0].mxu0
      %v600 = vadd.f32 %v463, %v599
      %v601 = vpop.f32.mrb[0].mxu0
      %v602 = vpop.f32.mrb[0].mxu0
      %v603 = vadd.f32 %v466, %v602
      %v604 = vpop.f32.mrb[0].mxu0
      %605 = vmatprep.mubr.bf16.mxu0 0
      %606 = vmatmul.mubr.bf16.gmra.mrb[0].mxu0 %v503
      %v607 = vpop.f32.mrb[0].mxu0
      %v608 = vadd.f32 %v471, %v607
      %v609 = vpop.f32.mrb[0].mxu0
      %v610 = vpop.f32.mrb[0].mxu0
      %v611 = vadd.f32 %v474, %v610
      %v612 = vpop.f32.mrb[0].mxu0
      %613 = vmatprep.mubr.bf16.mxu0 0
      %614 = vmatmul.mubr.bf16.gmra.mrb[0].mxu0 %v504
      %v615 = vpop.f32.mrb[0].mxu0
      %v616 = vadd.f32 %v479, %v615
      %v617 = vpop.f32.mrb[0].mxu0
      %v618 = vpop.f32.mrb[0].mxu0
      %v619 = vadd.f32 %v482, %v618
      %v620 = vpop.f32.mrb[0].mxu0
      %621 = vdwg.mxu0
      %v622 = vld [vmem:[%s4] sm:$0x1]
      %v624 = vlaneseq
      %v625 = vshrl.u32 %v624, 7
      %v626 = vsub.s32 0, %v625
      %v627 = vrot.slane %v622, %v626
      %v629 = vadd.f32 %v592, %v627
      %v630 = vadd.f32 %v595, %v627
      %v631 = vadd.f32 %v600, %v627
      %v632 = vadd.f32 %v603, %v627
      %v633 = vadd.f32 %v608, %v627
      %v634 = vadd.f32 %v611, %v627
      %v635 = vadd.f32 %v616, %v627
      %v636 = vadd.f32 %v619, %v627
      %v637 = vpack.c.bf16 %v630, %v629
      %v638 = vpack.c.bf16 %v632, %v631
      %v639 = vpack.c.bf16 %v634, %v633
      %v640 = vpack.c.bf16 %v636, %v635
      %641 = vst [vmem:[#allocation2] sm:$0xf] 0
      %642 = vst [vmem:[#allocation2 + $0x4] sm:$0x1] 0
      %643 = vst [vmem:[#allocation2 + $0x8] sm:$0xf] 0
      %644 = vst [vmem:[#allocation2 + $0xc] sm:$0x1] 0
      %645 = vst [vmem:[#allocation2 + $0x10] sm:$0xf] 0
      %646 = vst [vmem:[#allocation2 + $0x14] sm:$0x1] 0
      %647 = vst [vmem:[#allocation2 + $0x18] sm:$0xf] 0
      %648 = vst [vmem:[#allocation2 + $0x1c] sm:$0x1] 0
      %649 = vst [vmem:[#allocation2 + $0x20] sm:$0xf] 0
      %650 = vst [vmem:[#allocation2 + $0x24] sm:$0x1] 0
      %651 = vst [vmem:[#allocation2 + $0x28] sm:$0xf] 0
      %652 = vst [vmem:[#allocation2 + $0x2c] sm:$0x1] 0
      %653 = vst [vmem:[#allocation2 + $0x30] sm:$0xf] 0
      %654 = vst [vmem:[#allocation2 + $0x34] sm:$0x1] 0
      %655 = vst [vmem:[#allocation2 + $0x38] sm:$0xf] 0
      %656 = vst [vmem:[#allocation2 + $0x3c] sm:$0x1] 0
      %657 = vst [vmem:[#allocation2 + $0x40] sm:$0xf] 0
      %658 = vst [vmem:[#allocation2 + $0x44] sm:$0x1] 0
      %659 = vst [vmem:[#allocation2 + $0x48] sm:$0xf] 0
      %660 = vst [vmem:[#allocation2 + $0x4c] sm:$0x1] 0
      %v665 = vunpack.c.l.b16 %v637
      %v666 = vunpack.c.h.b16 %v637
      %v667 = vunpack.c.l.b16 %v638
      %v668 = vunpack.c.h.b16 %v638
      %v669 = vunpack.c.l.b16 %v639
      %v670 = vunpack.c.h.b16 %v639
      %v671 = vunpack.c.l.b16 %v640
      %v672 = vunpack.c.h.b16 %v640
      %v673 = vpack.c.b16 %v665, %v665
      %v674 = vpack.c.b16 %v666, %v666
      %v675 = vpack.c.b16 %v667, %v667
      %v676 = vpack.c.b16 %v668, %v668
      %v677 = vpack.c.b16 %v669, %v669
      %v678 = vpack.c.b16 %v670, %v670
      %v679 = vpack.c.b16 %v671, %v671
      %v680 = vpack.c.b16 %v672, %v672
      %v682 = vshrl.u32 %v673, 16
      %v684 = vrot.slane %v682, 7
      %v685 = vshll.u32 %v673, 16
      %v687 = vor.u32 %v684, %v685
      %v688 = vrot.slane %v684, 4
      %v690 = vshrl.u32 %v674, 16
      %v692 = vrot.slane %v690, 7
      %v693 = vshll.u32 %v674, 16
      %v695 = vor.u32 %v692, %v693
      %v696 = vrot.slane %v692, 4
      %v698 = vshrl.u32 %v675, 16
      %v700 = vrot.slane %v698, 7
      %v701 = vshll.u32 %v675, 16
      %v703 = vor.u32 %v700, %v701
      %v704 = vrot.slane %v700, 4
      %v706 = vshrl.u32 %v676, 16
      %v708 = vrot.slane %v706, 7
      %v709 = vshll.u32 %v676, 16
      %v711 = vor.u32 %v708, %v709
      %v712 = vrot.slane %v708, 4
      %v714 = vshrl.u32 %v677, 16
      %v716 = vrot.slane %v714, 7
      %v717 = vshll.u32 %v677, 16
      %v719 = vor.u32 %v716, %v717
      %v720 = vrot.slane %v716, 4
      %v722 = vshrl.u32 %v678, 16
      %v724 = vrot.slane %v722, 7
      %v725 = vshll.u32 %v678, 16
      %v727 = vor.u32 %v724, %v725
      %v728 = vrot.slane %v724, 4
      %v730 = vshrl.u32 %v679, 16
      %v732 = vrot.slane %v730, 7
      %v733 = vshll.u32 %v679, 16
      %v735 = vor.u32 %v732, %v733
      %v736 = vrot.slane %v732, 4
      %v738 = vshrl.u32 %v680, 16
      %v740 = vrot.slane %v738, 7
      %v741 = vshll.u32 %v680, 16
      %v743 = vor.u32 %v740, %v741
      %v744 = vrot.slane %v740, 4
      %s761 = scalar_lea.vmem [#allocation2], 8
      %vm762 = vcmask 1043456
      %vm763 = vsmask.f32 7938
      %vm764 = vmand %vm762, %vm763
      %v765 = vld [vmem:[%s761] sm:$0xf]
      %v766 = vsel %vm764, %v687, %v765
      %767 = vst [vmem:[%s761] sm:$0xf] %v766
      %vm768 = vcmask 1040384
      %vm769 = vsmask.f32 256
      %vm770 = vmand %vm768, %vm769
      %v771 = vld [vmem:[%s761 + $0x4] sm:$0x1]
      %v772 = vsel %vm770, %v688, %v771
      %773 = vst [vmem:[%s761 + $0x4] sm:$0x1] %v772
      %v774 = vld [vmem:[%s761 + $0x8] sm:$0xf]
      %v775 = vsel %vm764, %v695, %v774
      %776 = vst [vmem:[%s761 + $0x8] sm:$0xf] %v775
      %v777 = vld [vmem:[%s761 + $0xc] sm:$0x1]
      %v778 = vsel %vm770, %v696, %v777
      %779 = vst [vmem:[%s761 + $0xc] sm:$0x1] %v778
      %v780 = vld [vmem:[%s761 + $0x10] sm:$0xf]
      %v781 = vsel %vm764, %v703, %v780
      %782 = vst [vmem:[%s761 + $0x10] sm:$0xf] %v781
      %v783 = vld [vmem:[%s761 + $0x14] sm:$0x1]
      %v784 = vsel %vm770, %v704, %v783
      %785 = vst [vmem:[%s761 + $0x14] sm:$0x1] %v784
      %v786 = vld [vmem:[%s761 + $0x18] sm:$0xf]
      %v787 = vsel %vm764, %v711, %v786
      %788 = vst [vmem:[%s761 + $0x18] sm:$0xf] %v787
      %v789 = vld [vmem:[%s761 + $0x1c] sm:$0x1]
      %v790 = vsel %vm770, %v712, %v789
      %791 = vst [vmem:[%s761 + $0x1c] sm:$0x1] %v790
      %v792 = vld [vmem:[%s761 + $0x20] sm:$0xf]
      %v793 = vsel %vm764, %v719, %v792
      %794 = vst [vmem:[%s761 + $0x20] sm:$0xf] %v793
      %v795 = vld [vmem:[%s761 + $0x24] sm:$0x1]
      %v796 = vsel %vm770, %v720, %v795
      %797 = vst [vmem:[%s761 + $0x24] sm:$0x1] %v796
      %v798 = vld [vmem:[%s761 + $0x28] sm:$0xf]
      %v799 = vsel %vm764, %v727, %v798
      %800 = vst [vmem:[%s761 + $0x28] sm:$0xf] %v799
      %v801 = vld [vmem:[%s761 + $0x2c] sm:$0x1]
      %v802 = vsel %vm770, %v728, %v801
      %803 = vst [vmem:[%s761 + $0x2c] sm:$0x1] %v802
      %v804 = vld [vmem:[%s761 + $0x30] sm:$0xf]
      %v805 = vsel %vm764, %v735, %v804
      %806 = vst [vmem:[%s761 + $0x30] sm:$0xf] %v805
      %v807 = vld [vmem:[%s761 + $0x34] sm:$0x1]
      %v808 = vsel %vm770, %v736, %v807
      %809 = vst [vmem:[%s761 + $0x34] sm:$0x1] %v808
      %v810 = vld [vmem:[%s761 + $0x38] sm:$0xf]
      %v811 = vsel %vm764, %v743, %v810
      %812 = vst [vmem:[%s761 + $0x38] sm:$0xf] %v811
      %v813 = vld [vmem:[%s761 + $0x3c] sm:$0x1]
      %v814 = vsel %vm770, %v744, %v813
      %815 = vst [vmem:[%s761 + $0x3c] sm:$0x1] %v814
      %v816 = vld [vmem:[#allocation2] sm:$0xf]
      %v817 = vld [vmem:[#allocation2 + $0x8] sm:$0xf]
      %v818 = vld [vmem:[#allocation2 + $0x10] sm:$0xf]
      %v819 = vld [vmem:[#allocation2 + $0x18] sm:$0xf]
      %v820 = vld [vmem:[#allocation2 + $0x20] sm:$0xf]
      %v821 = vld [vmem:[#allocation2 + $0x28] sm:$0xf]
      %v822 = vld [vmem:[#allocation2 + $0x30] sm:$0xf]
      %v823 = vld [vmem:[#allocation2 + $0x38] sm:$0xf]
      %v824 = vld [vmem:[%s5] sm:$0xf]
      %v825 = vld [vmem:[%s5 + $0x4] sm:$0xf]
      %v826 = vld [vmem:[%s5 + $0x8] sm:$0xf]
      %v827 = vld [vmem:[%s5 + $0xc] sm:$0xf]
      %v828 = vld [vmem:[%s5 + $0x10] sm:$0xf]
      %v829 = vld [vmem:[%s5 + $0x14] sm:$0xf]
      %v830 = vld [vmem:[%s5 + $0x18] sm:$0xf]
      %v831 = vld [vmem:[%s5 + $0x1c] sm:$0xf]
      %v832 = vld [vmem:[%s5 + $0x20] sm:$0xf]
      %v833 = vld [vmem:[%s5 + $0x24] sm:$0xf]
      %v834 = vld [vmem:[%s5 + $0x28] sm:$0xf]
      %v835 = vld [vmem:[%s5 + $0x2c] sm:$0xf]
      %v836 = vld [vmem:[%s5 + $0x30] sm:$0xf]
      %v837 = vld [vmem:[%s5 + $0x34] sm:$0xf]
      %v838 = vld [vmem:[%s5 + $0x38] sm:$0xf]
      %v839 = vld [vmem:[%s5 + $0x3c] sm:$0xf]
      %v840 = vld [vmem:[#allocation2 + $0x4] sm:$0x1]
      %v841 = vld [vmem:[#allocation2 + $0xc] sm:$0x1]
      %v842 = vld [vmem:[#allocation2 + $0x14] sm:$0x1]
      %v843 = vld [vmem:[#allocation2 + $0x1c] sm:$0x1]
      %v844 = vld [vmem:[#allocation2 + $0x24] sm:$0x1]
      %v845 = vld [vmem:[#allocation2 + $0x2c] sm:$0x1]
      %v846 = vld [vmem:[#allocation2 + $0x34] sm:$0x1]
      %v847 = vld [vmem:[#allocation2 + $0x3c] sm:$0x1]
      %vm848 = vsmask.f32 3328
      %vm849 = vsmask.f32 7440
      %vm850 = vmor %vm848, %vm849
      %v852 = vshrl.u32 %v816, 16
      %v854 = vrot.slane %v852, 4
      %v855 = vshll.u32 %v816, 16
      %v857 = vrot.slane %v855, 5
      %v858 = vor.u32 %v854, %v857
      %v859 = vrot.slane %v858, 4
      %v861 = vshll.u32 %v840, 16
      %v863 = vrot.slane %v861, 5
      %v864 = vsel %vm850, %v859, %v863
      %v866 = vshrl.u32 %v817, 16
      %v868 = vrot.slane %v866, 4
      %v869 = vshll.u32 %v817, 16
      %v871 = vrot.slane %v869, 5
      %v872 = vor.u32 %v868, %v871
      %v873 = vrot.slane %v872, 4
      %v875 = vshll.u32 %v841, 16
      %v877 = vrot.slane %v875, 5
      %v878 = vsel %vm850, %v873, %v877
      %v880 = vshrl.u32 %v818, 16
      %v882 = vrot.slane %v880, 4
      %v883 = vshll.u32 %v818, 16
      %v885 = vrot.slane %v883, 5
      %v886 = vor.u32 %v882, %v885
      %v887 = vrot.slane %v886, 4
      %v889 = vshll.u32 %v842, 16
      %v891 = vrot.slane %v889, 5
      %v892 = vsel %vm850, %v887, %v891
      %v894 = vshrl.u32 %v819, 16
      %v896 = vrot.slane %v894, 4
      %v897 = vshll.u32 %v819, 16
      %v899 = vrot.slane %v897, 5
      %v900 = vor.u32 %v896, %v899
      %v901 = vrot.slane %v900, 4
      %v903 = vshll.u32 %v843, 16
      %v905 = vrot.slane %v903, 5
      %v906 = vsel %vm850, %v901, %v905
      %v908 = vshrl.u32 %v820, 16
      %v910 = vrot.slane %v908, 4
      %v911 = vshll.u32 %v820, 16
      %v913 = vrot.slane %v911, 5
      %v914 = vor.u32 %v910, %v913
      %v915 = vrot.slane %v914, 4
      %v917 = vshll.u32 %v844, 16
      %v919 = vrot.slane %v917, 5
      %v920 = vsel %vm850, %v915, %v919
      %v922 = vshrl.u32 %v821, 16
      %v924 = vrot.slane %v922, 4
      %v925 = vshll.u32 %v821, 16
      %v927 = vrot.slane %v925, 5
      %v928 = vor.u32 %v924, %v927
      %v929 = vrot.slane %v928, 4
      %v931 = vshll.u32 %v845, 16
      %v933 = vrot.slane %v931, 5
      %v934 = vsel %vm850, %v929, %v933
      %v936 = vshrl.u32 %v822, 16
      %v938 = vrot.slane %v936, 4
      %v939 = vshll.u32 %v822, 16
      %v941 = vrot.slane %v939, 5
      %v942 = vor.u32 %v938, %v941
      %v943 = vrot.slane %v942, 4
      %v945 = vshll.u32 %v846, 16
      %v947 = vrot.slane %v945, 5
      %v948 = vsel %vm850, %v943, %v947
      %v950 = vshrl.u32 %v823, 16
      %v952 = vrot.slane %v950, 4
      %v953 = vshll.u32 %v823, 16
      %v955 = vrot.slane %v953, 5
      %v956 = vor.u32 %v952, %v955
      %v957 = vrot.slane %v956, 4
      %v959 = vshll.u32 %v847, 16
      %v961 = vrot.slane %v959, 5
      %v962 = vsel %vm850, %v957, %v961
      %s963 = scalar_lea.vmem %s5, 64
      %v964 = vld [vmem:[%s963] sm:$0xf]
      %v965 = vld [vmem:[%s963 + $0x4] sm:$0xf]
      %v966 = vld [vmem:[%s963 + $0x8] sm:$0xf]
      %v967 = vld [vmem:[%s963 + $0xc] sm:$0xf]
      %v968 = vld [vmem:[%s963 + $0x10] sm:$0xf]
      %v969 = vld [vmem:[%s963 + $0x14] sm:$0xf]
      %v970 = vld [vmem:[%s963 + $0x18] sm:$0xf]
      %v971 = vld [vmem:[%s963 + $0x1c] sm:$0xf]
      %v972 = vld [vmem:[%s963 + $0x20] sm:$0xf]
      %v973 = vld [vmem:[%s963 + $0x24] sm:$0xf]
      %v974 = vld [vmem:[%s963 + $0x28] sm:$0xf]
      %v975 = vld [vmem:[%s963 + $0x2c] sm:$0xf]
      %v976 = vld [vmem:[%s963 + $0x30] sm:$0xf]
      %v977 = vld [vmem:[%s963 + $0x34] sm:$0xf]
      %v978 = vld [vmem:[%s963 + $0x38] sm:$0xf]
      %v979 = vld [vmem:[%s963 + $0x3c] sm:$0xf]
      %v980 = vunpack.c.l.b16 %v864
      %v981 = vunpack.c.l.b16 %v878
      %v982 = vunpack.c.l.b16 %v892
      %v983 = vunpack.c.l.b16 %v906
      %v984 = vunpack.c.l.b16 %v920
      %v985 = vunpack.c.l.b16 %v934
      %v986 = vunpack.c.l.b16 %v948
      %v987 = vunpack.c.l.b16 %v962
      %v988 = vpack.c.b16 %v981, %v980
      %v989 = vpack.c.b16 %v983, %v982
      %v990 = vpack.c.b16 %v985, %v984
      %v991 = vpack.c.b16 %v987, %v986
      %v1012 = vunpack.c.l.b16 %v964
      %v1013 = vunpack.c.l.b16 %v965
      %v1014 = vunpack.c.l.b16 %v966
      %v1015 = vunpack.c.l.b16 %v967
      %v1016 = vunpack.c.l.b16 %v968
      %v1017 = vunpack.c.l.b16 %v969
      %v1018 = vunpack.c.l.b16 %v970
      %v1019 = vunpack.c.l.b16 %v971
      %v1020 = vunpack.c.l.b16 %v972
      %v1021 = vunpack.c.l.b16 %v973
      %v1022 = vunpack.c.l.b16 %v974
      %v1023 = vunpack.c.l.b16 %v975
      %v1024 = vunpack.c.l.b16 %v976
      %v1025 = vunpack.c.l.b16 %v977
      %v1026 = vunpack.c.l.b16 %v978
      %v1027 = vunpack.c.l.b16 %v979
      %v1028 = vpack.c.b16 %v1013, %v1012
      %v1029 = vpack.c.b16 %v1015, %v1014
      %v1030 = vpack.c.b16 %v1017, %v1016
      %v1031 = vpack.c.b16 %v1019, %v1018
      %v1032 = vpack.c.b16 %v1021, %v1020
      %v1033 = vpack.c.b16 %v1023, %v1022
      %v1034 = vpack.c.b16 %v1025, %v1024
      %v1035 = vpack.c.b16 %v1027, %v1026
      %1044 = vmatprep.subr.bf16.mxu0 0
      %1045 = vmatpush1.bf16.msra.mxu0 %v1028
      %1046 = vmatprep.subr.bf16.mxu0 0
      %1047 = vmatpush1.bf16.msra.mxu0 %v1029
      %1048 = vmatprep.subr.bf16.mxu0 0
      %1049 = vmatpush1.bf16.msra.mxu0 %v1030
      %1050 = vmatprep.subr.bf16.mxu0 0
      %1051 = vmatpush1.bf16.msra.mxu0 %v1031
      %1052 = vmatprep.subr.bf16.mxu0 0
      %1053 = vmatpush1.bf16.msra.mxu0 %v1032
      %1054 = vmatprep.subr.bf16.mxu0 0
      %1055 = vmatpush1.bf16.msra.mxu0 %v1033
      %1056 = vmatprep.subr.bf16.mxu0 0
      %1057 = vmatpush1.bf16.msra.mxu0 %v1034
      %1058 = vmatprep.subr.bf16.mxu0 0
      %1059 = vmatpush1.bf16.msra.mxu0 %v1035
      %1060 = vmatprep.subr.bf16.mxu0 0
      %1061 = vmatpush1.bf16.msra.mxu0 0
      %1062 = vmatprep.subr.bf16.mxu0 0
      %1063 = vmatpush1.bf16.msra.mxu0 0
      %1064 = vmatprep.subr.bf16.mxu0 0
      %1065 = vmatpush1.bf16.msra.mxu0 0
      %1066 = vmatprep.subr.bf16.mxu0 0
      %1067 = vmatpush1.bf16.msra.mxu0 0
      %1068 = vmatprep.subr.bf16.mxu0 0
      %1069 = vmatpush1.bf16.msra.mxu0 0
      %1070 = vmatprep.subr.bf16.mxu0 0
      %1071 = vmatpush1.bf16.msra.mxu0 0
      %1072 = vmatprep.subr.bf16.mxu0 0
      %1073 = vmatpush1.bf16.msra.mxu0 0
      %1074 = vmatprep.subr.bf16.mxu0 0
      %1075 = vmatpush1.bf16.msra.mxu0 0
      %1076 = vmatprep.mubr.bf16.mxu0 0
      %1077 = vmatmul.mubr.bf16.gmra.mrb[0].mxu0 %v988
      %v1078 = vpop.f32.mrb[0].mxu0
      %v1079 = vadd.f32 0.0, %v1078
      %v1080 = vpop.f32.mrb[0].mxu0
      %v1081 = vpop.f32.mrb[0].mxu0
      %v1082 = vadd.f32 0.0, %v1081
      %v1083 = vpop.f32.mrb[0].mxu0
      %1084 = vmatprep.mubr.bf16.mxu0 0
      %1085 = vmatmul.mubr.bf16.gmra.mrb[0].mxu0 %v989
      %v1086 = vpop.f32.mrb[0].mxu0
      %v1087 = vadd.f32 0.0, %v1086
      %v1088 = vpop.f32.mrb[0].mxu0
      %v1089 = vpop.f32.mrb[0].mxu0
      %v1090 = vadd.f32 0.0, %v1089
      %v1091 = vpop.f32.mrb[0].mxu0
      %1092 = vmatprep.mubr.bf16.mxu0 0
      %1093 = vmatmul.mubr.bf16.gmra.mrb[0].mxu0 %v990
      %v1094 = vpop.f32.mrb[0].mxu0
      %v1095 = vadd.f32 0.0, %v1094
      %v1096 = vpop.f32.mrb[0].mxu0
      %v1097 = vpop.f32.mrb[0].mxu0
      %v1098 = vadd.f32 0.0, %v1097
      %v1099 = vpop.f32.mrb[0].mxu0
      %1100 = vmatprep.mubr.bf16.mxu0 0
      %1101 = vmatmul.mubr.bf16.gmra.mrb[0].mxu0 %v991
      %v1102 = vpop.f32.mrb[0].mxu0
      %v1103 = vadd.f32 0.0, %v1102
      %v1104 = vpop.f32.mrb[0].mxu0
      %v1105 = vpop.f32.mrb[0].mxu0
      %v1106 = vadd.f32 0.0, %v1105
      %v1107 = vpop.f32.mrb[0].mxu0
      %1108 = vdwg.mxu0
      %v1117 = vunpack.c.l.b16 %v816
      %v1118 = vunpack.c.l.b16 %v817
      %v1119 = vunpack.c.l.b16 %v818
      %v1120 = vunpack.c.l.b16 %v819
      %v1121 = vunpack.c.l.b16 %v820
      %v1122 = vunpack.c.l.b16 %v821
      %v1123 = vunpack.c.l.b16 %v822
      %v1124 = vunpack.c.l.b16 %v823
      %v1125 = vpack.c.b16 %v1118, %v1117
      %v1126 = vpack.c.b16 %v1120, %v1119
      %v1127 = vpack.c.b16 %v1122, %v1121
      %v1128 = vpack.c.b16 %v1124, %v1123
      %v1149 = vunpack.c.l.b16 %v824
      %v1150 = vunpack.c.l.b16 %v825
      %v1151 = vunpack.c.l.b16 %v826
      %v1152 = vunpack.c.l.b16 %v827
      %v1153 = vunpack.c.l.b16 %v828
      %v1154 = vunpack.c.l.b16 %v829
      %v1155 = vunpack.c.l.b16 %v830
      %v1156 = vunpack.c.l.b16 %v831
      %v1157 = vunpack.c.l.b16 %v832
      %v1158 = vunpack.c.l.b16 %v833
      %v1159 = vunpack.c.l.b16 %v834
      %v1160 = vunpack.c.l.b16 %v835
      %v1161 = vunpack.c.l.b16 %v836
      %v1162 = vunpack.c.l.b16 %v837
      %v1163 = vunpack.c.l.b16 %v838
      %v1164 = vunpack.c.l.b16 %v839
      %v1165 = vpack.c.b16 %v1150, %v1149
      %v1166 = vpack.c.b16 %v1152, %v1151
      %v1167 = vpack.c.b16 %v1154, %v1153
      %v1168 = vpack.c.b16 %v1156, %v1155
      %v1169 = vpack.c.b16 %v1158, %v1157
      %v1170 = vpack.c.b16 %v1160, %v1159
      %v1171 = vpack.c.b16 %v1162, %v1161
      %v1172 = vpack.c.b16 %v1164, %v1163
      %1181 = vmatprep.subr.bf16.mxu0 0
      %1182 = vmatpush1.bf16.msra.mxu0 %v1165
      %1183 = vmatprep.subr.bf16.mxu0 0
      %1184 = vmatpush1.bf16.msra.mxu0 %v1166
      %1185 = vmatprep.subr.bf16.mxu0 0
      %1186 = vmatpush1.bf16.msra.mxu0 %v1167
      %1187 = vmatprep.subr.bf16.mxu0 0
      %1188 = vmatpush1.bf16.msra.mxu0 %v1168
      %1189 = vmatprep.subr.bf16.mxu0 0
      %1190 = vmatpush1.bf16.msra.mxu0 %v1169
      %1191 = vmatprep.subr.bf16.mxu0 0
      %1192 = vmatpush1.bf16.msra.mxu0 %v1170
      %1193 = vmatprep.subr.bf16.mxu0 0
      %1194 = vmatpush1.bf16.msra.mxu0 %v1171
      %1195 = vmatprep.subr.bf16.mxu0 0
      %1196 = vmatpush1.bf16.msra.mxu0 %v1172
      %1197 = vmatprep.subr.bf16.mxu0 0
      %1198 = vmatpush1.bf16.msra.mxu0 0
      %1199 = vmatprep.subr.bf16.mxu0 0
      %1200 = vmatpush1.bf16.msra.mxu0 0
      %1201 = vmatprep.subr.bf16.mxu0 0
      %1202 = vmatpush1.bf16.msra.mxu0 0
      %1203 = vmatprep.subr.bf16.mxu0 0
      %1204 = vmatpush1.bf16.msra.mxu0 0
      %1205 = vmatprep.subr.bf16.mxu0 0
      %1206 = vmatpush1.bf16.msra.mxu0 0
      %1207 = vmatprep.subr.bf16.mxu0 0
      %1208 = vmatpush1.bf16.msra.mxu0 0
      %1209 = vmatprep.subr.bf16.mxu0 0
      %1210 = vmatpush1.bf16.msra.mxu0 0
      %1211 = vmatprep.subr.bf16.mxu0 0
      %1212 = vmatpush1.bf16.msra.mxu0 0
      %1213 = vmatprep.mubr.bf16.mxu0 0
      %1214 = vmatmul.mubr.bf16.gmra.mrb[0].mxu0 %v1125
      %v1215 = vpop.f32.mrb[0].mxu0
      %v1216 = vadd.f32 %v1079, %v1215
      %v1217 = vpop.f32.mrb[0].mxu0
      %v1218 = vpop.f32.mrb[0].mxu0
      %v1219 = vadd.f32 %v1082, %v1218
      %v1220 = vpop.f32.mrb[0].mxu0
      %1221 = vmatprep.mubr.bf16.mxu0 0
      %1222 = vmatmul.mubr.bf16.gmra.mrb[0].mxu0 %v1126
      %v1223 = vpop.f32.mrb[0].mxu0
      %v1224 = vadd.f32 %v1087, %v1223
      %v1225 = vpop.f32.mrb[0].mxu0
      %v1226 = vpop.f32.mrb[0].mxu0
      %v1227 = vadd.f32 %v1090, %v1226
      %v1228 = vpop.f32.mrb[0].mxu0
      %1229 = vmatprep.mubr.bf16.mxu0 0
      %1230 = vmatmul.mubr.bf16.gmra.mrb[0].mxu0 %v1127
      %v1231 = vpop.f32.mrb[0].mxu0
      %v1232 = vadd.f32 %v1095, %v1231
      %v1233 = vpop.f32.mrb[0].mxu0
      %v1234 = vpop.f32.mrb[0].mxu0
      %v1235 = vadd.f32 %v1098, %v1234
      %v1236 = vpop.f32.mrb[0].mxu0
      %1237 = vmatprep.mubr.bf16.mxu0 0
      %1238 = vmatmul.mubr.bf16.gmra.mrb[0].mxu0 %v1128
      %v1239 = vpop.f32.mrb[0].mxu0
      %v1240 = vadd.f32 %v1103, %v1239
      %v1241 = vpop.f32.mrb[0].mxu0
      %v1242 = vpop.f32.mrb[0].mxu0
      %v1243 = vadd.f32 %v1106, %v1242
      %v1244 = vpop.f32.mrb[0].mxu0
      %1245 = vdwg.mxu0
      %v1246 = vld [vmem:[#allocation2] sm:$0xe]
      %v1247 = vld [vmem:[#allocation2 + $0x8] sm:$0xe]
      %v1248 = vld [vmem:[#allocation2 + $0x10] sm:$0xe]
      %v1249 = vld [vmem:[#allocation2 + $0x18] sm:$0xe]
      %v1250 = vld [vmem:[#allocation2 + $0x20] sm:$0xe]
      %v1251 = vld [vmem:[#allocation2 + $0x28] sm:$0xe]
      %v1252 = vld [vmem:[#allocation2 + $0x30] sm:$0xe]
      %v1253 = vld [vmem:[#allocation2 + $0x38] sm:$0xe]
      %vm1270 = vcmask 1042432
      %vm1271 = vcmask 1046532
      %vm1272 = vmor %vm1270, %vm1271
      %v1273 = vrot.slane %v1246, 5
      %v1274 = vrot.slane %v1273, 4
      %v1275 = vrot.slane %v840, 5
      %v1276 = vsel %vm1272, %v1274, %v1275
      %v1277 = vrot.slane %v1247, 5
      %v1278 = vrot.slane %v1277, 4
      %v1279 = vrot.slane %v841, 5
      %v1280 = vsel %vm1272, %v1278, %v1279
      %v1281 = vrot.slane %v1248, 5
      %v1282 = vrot.slane %v1281, 4
      %v1283 = vrot.slane %v842, 5
      %v1284 = vsel %vm1272, %v1282, %v1283
      %v1285 = vrot.slane %v1249, 5
      %v1286 = vrot.slane %v1285, 4
      %v1287 = vrot.slane %v843, 5
      %v1288 = vsel %vm1272, %v1286, %v1287
      %v1289 = vrot.slane %v1250, 5
      %v1290 = vrot.slane %v1289, 4
      %v1291 = vrot.slane %v844, 5
      %v1292 = vsel %vm1272, %v1290, %v1291
      %v1293 = vrot.slane %v1251, 5
      %v1294 = vrot.slane %v1293, 4
      %v1295 = vrot.slane %v845, 5
      %v1296 = vsel %vm1272, %v1294, %v1295
      %v1297 = vrot.slane %v1252, 5
      %v1298 = vrot.slane %v1297, 4
      %v1299 = vrot.slane %v846, 5
      %v1300 = vsel %vm1272, %v1298, %v1299
      %v1301 = vrot.slane %v1253, 5
      %v1302 = vrot.slane %v1301, 4
      %v1303 = vrot.slane %v847, 5
      %v1304 = vsel %vm1272, %v1302, %v1303
      %s1305 = scalar_lea.vmem %s5, 128
      %v1306 = vld [vmem:[%s1305] sm:$0xf]
      %v1307 = vld [vmem:[%s1305 + $0x4] sm:$0xf]
      %v1308 = vld [vmem:[%s1305 + $0x8] sm:$0xf]
      %v1309 = vld [vmem:[%s1305 + $0xc] sm:$0xf]
      %v1310 = vld [vmem:[%s1305 + $0x10] sm:$0xf]
      %v1311 = vld [vmem:[%s1305 + $0x14] sm:$0xf]
      %v1312 = vld [vmem:[%s1305 + $0x18] sm:$0xf]
      %v1313 = vld [vmem:[%s1305 + $0x1c] sm:$0xf]
      %v1314 = vld [vmem:[%s1305 + $0x20] sm:$0xf]
      %v1315 = vld [vmem:[%s1305 + $0x24] sm:$0xf]
      %v1316 = vld [vmem:[%s1305 + $0x28] sm:$0xf]
      %v1317 = vld [vmem:[%s1305 + $0x2c] sm:$0xf]
      %v1318 = vld [vmem:[%s1305 + $0x30] sm:$0xf]
      %v1319 = vld [vmem:[%s1305 + $0x34] sm:$0xf]
      %v1320 = vld [vmem:[%s1305 + $0x38] sm:$0xf]
      %v1321 = vld [vmem:[%s1305 + $0x3c] sm:$0xf]
      %v1322 = vunpack.c.l.b16 %v1276
      %v1323 = vunpack.c.l.b16 %v1280
      %v1324 = vunpack.c.l.b16 %v1284
      %v1325 = vunpack.c.l.b16 %v1288
      %v1326 = vunpack.c.l.b16 %v1292
      %v1327 = vunpack.c.l.b16 %v1296
      %v1328 = vunpack.c.l.b16 %v1300
      %v1329 = vunpack.c.l.b16 %v1304
      %v1330 = vpack.c.b16 %v1323, %v1322
      %v1331 = vpack.c.b16 %v1325, %v1324
      %v1332 = vpack.c.b16 %v1327, %v1326
      %v1333 = vpack.c.b16 %v1329, %v1328
      %v1354 = vunpack.c.l.b16 %v1306
      %v1355 = vunpack.c.l.b16 %v1307
      %v1356 = vunpack.c.l.b16 %v1308
      %v1357 = vunpack.c.l.b16 %v1309
      %v1358 = vunpack.c.l.b16 %v1310
      %v1359 = vunpack.c.l.b16 %v1311
      %v1360 = vunpack.c.l.b16 %v1312
      %v1361 = vunpack.c.l.b16 %v1313
      %v1362 = vunpack.c.l.b16 %v1314
      %v1363 = vunpack.c.l.b16 %v1315
      %v1364 = vunpack.c.l.b16 %v1316
      %v1365 = vunpack.c.l.b16 %v1317
      %v1366 = vunpack.c.l.b16 %v1318
      %v1367 = vunpack.c.l.b16 %v1319
      %v1368 = vunpack.c.l.b16 %v1320
      %v1369 = vunpack.c.l.b16 %v1321
      %v1370 = vpack.c.b16 %v1355, %v1354
      %v1371 = vpack.c.b16 %v1357, %v1356
      %v1372 = vpack.c.b16 %v1359, %v1358
      %v1373 = vpack.c.b16 %v1361, %v1360
      %v1374 = vpack.c.b16 %v1363, %v1362
      %v1375 = vpack.c.b16 %v1365, %v1364
      %v1376 = vpack.c.b16 %v1367, %v1366
      %v1377 = vpack.c.b16 %v1369, %v1368
      %1386 = vmatprep.subr.bf16.mxu0 0
      %1387 = vmatpush1.bf16.msra.mxu0 %v1370
      %1388 = vmatprep.subr.bf16.mxu0 0
      %1389 = vmatpush1.bf16.msra.mxu0 %v1371
      %1390 = vmatprep.subr.bf16.mxu0 0
      %1391 = vmatpush1.bf16.msra.mxu0 %v1372
      %1392 = vmatprep.subr.bf16.mxu0 0
      %1393 = vmatpush1.bf16.msra.mxu0 %v1373
      %1394 = vmatprep.subr.bf16.mxu0 0
      %1395 = vmatpush1.bf16.msra.mxu0 %v1374
      %1396 = vmatprep.subr.bf16.mxu0 0
      %1397 = vmatpush1.bf16.msra.mxu0 %v1375
      %1398 = vmatprep.subr.bf16.mxu0 0
      %1399 = vmatpush1.bf16.msra.mxu0 %v1376
      %1400 = vmatprep.subr.bf16.mxu0 0
      %1401 = vmatpush1.bf16.msra.mxu0 %v1377
      %1402 = vmatprep.subr.bf16.mxu0 0
      %1403 = vmatpush1.bf16.msra.mxu0 0
      %1404 = vmatprep.subr.bf16.mxu0 0
      %1405 = vmatpush1.bf16.msra.mxu0 0
      %1406 = vmatprep.subr.bf16.mxu0 0
      %1407 = vmatpush1.bf16.msra.mxu0 0
      %1408 = vmatprep.subr.bf16.mxu0 0
      %1409 = vmatpush1.bf16.msra.mxu0 0
      %1410 = vmatprep.subr.bf16.mxu0 0
      %1411 = vmatpush1.bf16.msra.mxu0 0
      %1412 = vmatprep.subr.bf16.mxu0 0
      %1413 = vmatpush1.bf16.msra.mxu0 0
      %1414 = vmatprep.subr.bf16.mxu0 0
      %1415 = vmatpush1.bf16.msra.mxu0 0
      %1416 = vmatprep.subr.bf16.mxu0 0
      %1417 = vmatpush1.bf16.msra.mxu0 0
      %1418 = vmatprep.mubr.bf16.mxu0 0
      %1419 = vmatmul.mubr.bf16.gmra.mrb[0].mxu0 %v1330
      %v1420 = vpop.f32.mrb[0].mxu0
      %v1421 = vadd.f32 0.0, %v1420
      %v1422 = vpop.f32.mrb[0].mxu0
      %v1423 = vpop.f32.mrb[0].mxu0
      %v1424 = vadd.f32 0.0, %v1423
      %v1425 = vpop.f32.mrb[0].mxu0
      %1426 = vmatprep.mubr.bf16.mxu0 0
      %1427 = vmatmul.mubr.bf16.gmra.mrb[0].mxu0 %v1331
      %v1428 = vpop.f32.mrb[0].mxu0
      %v1429 = vadd.f32 0.0, %v1428
      %v1430 = vpop.f32.mrb[0].mxu0
      %v1431 = vpop.f32.mrb[0].mxu0
      %v1432 = vadd.f32 0.0, %v1431
      %v1433 = vpop.f32.mrb[0].mxu0
      %1434 = vmatprep.mubr.bf16.mxu0 0
      %1435 = vmatmul.mubr.bf16.gmra.mrb[0].mxu0 %v1332
      %v1436 = vpop.f32.mrb[0].mxu0
      %v1437 = vadd.f32 0.0, %v1436
      %v1438 = vpop.f32.mrb[0].mxu0
      %v1439 = vpop.f32.mrb[0].mxu0
      %v1440 = vadd.f32 0.0, %v1439
      %v1441 = vpop.f32.mrb[0].mxu0
      %1442 = vmatprep.mubr.bf16.mxu0 0
      %1443 = vmatmul.mubr.bf16.gmra.mrb[0].mxu0 %v1333
      %v1444 = vpop.f32.mrb[0].mxu0
      %v1445 = vadd.f32 0.0, %v1444
      %v1446 = vpop.f32.mrb[0].mxu0
      %v1447 = vpop.f32.mrb[0].mxu0
      %v1448 = vadd.f32 0.0, %v1447
      %v1449 = vpop.f32.mrb[0].mxu0
      %1450 = vdwg.mxu0
      %v1451 = vadd.f32 %v1216, %v1421
      %v1452 = vadd.f32 %v1219, %v1424
      %v1453 = vadd.f32 %v1224, %v1429
      %v1454 = vadd.f32 %v1227, %v1432
      %v1455 = vadd.f32 %v1232, %v1437
      %v1456 = vadd.f32 %v1235, %v1440
      %v1457 = vadd.f32 %v1240, %v1445
      %v1458 = vadd.f32 %v1243, %v1448
      %v1459 = vld [vmem:[%s761] sm:$0xf]
      %v1460 = vld [vmem:[%s761 + $0x8] sm:$0xf]
      %v1461 = vld [vmem:[%s761 + $0x10] sm:$0xf]
      %v1462 = vld [vmem:[%s761 + $0x18] sm:$0xf]
      %v1463 = vld [vmem:[%s761 + $0x20] sm:$0xf]
      %v1464 = vld [vmem:[%s761 + $0x28] sm:$0xf]
      %v1465 = vld [vmem:[%s761 + $0x30] sm:$0xf]
      %v1466 = vld [vmem:[%s761 + $0x38] sm:$0xf]
      %s1467 = scalar_lea.vmem %s5, 192
      %v1468 = vld [vmem:[%s1467] sm:$0xf]
      %v1469 = vld [vmem:[%s1467 + $0x4] sm:$0xf]
      %v1470 = vld [vmem:[%s1467 + $0x8] sm:$0xf]
      %v1471 = vld [vmem:[%s1467 + $0xc] sm:$0xf]
      %v1472 = vld [vmem:[%s1467 + $0x10] sm:$0xf]
      %v1473 = vld [vmem:[%s1467 + $0x14] sm:$0xf]
      %v1474 = vld [vmem:[%s1467 + $0x18] sm:$0xf]
      %v1475 = vld [vmem:[%s1467 + $0x1c] sm:$0xf]
      %v1476 = vld [vmem:[%s1467 + $0x20] sm:$0xf]
      %v1477 = vld [vmem:[%s1467 + $0x24] sm:$0xf]
      %v1478 = vld [vmem:[%s1467 + $0x28] sm:$0xf]
      %v1479 = vld [vmem:[%s1467 + $0x2c] sm:$0xf]
      %v1480 = vld [vmem:[%s1467 + $0x30] sm:$0xf]
      %v1481 = vld [vmem:[%s1467 + $0x34] sm:$0xf]
      %v1482 = vld [vmem:[%s1467 + $0x38] sm:$0xf]
      %v1483 = vld [vmem:[%s1467 + $0x3c] sm:$0xf]
      %v1492 = vunpack.c.l.b16 %v1459
      %v1493 = vunpack.c.l.b16 %v1460
      %v1494 = vunpack.c.l.b16 %v1461
      %v1495 = vunpack.c.l.b16 %v1462
      %v1496 = vunpack.c.l.b16 %v1463
      %v1497 = vunpack.c.l.b16 %v1464
      %v1498 = vunpack.c.l.b16 %v1465
      %v1499 = vunpack.c.l.b16 %v1466
      %v1500 = vpack.c.b16 %v1493, %v1492
      %v1501 = vpack.c.b16 %v1495, %v1494
      %v1502 = vpack.c.b16 %v1497, %v1496
      %v1503 = vpack.c.b16 %v1499, %v1498
      %v1524 = vunpack.c.l.b16 %v1468
      %v1525 = vunpack.c.l.b16 %v1469
      %v1526 = vunpack.c.l.b16 %v1470
      %v1527 = vunpack.c.l.b16 %v1471
      %v1528 = vunpack.c.l.b16 %v1472
      %v1529 = vunpack.c.l.b16 %v1473
      %v1530 = vunpack.c.l.b16 %v1474
      %v1531 = vunpack.c.l.b16 %v1475
      %v1532 = vunpack.c.l.b16 %v1476
      %v1533 = vunpack.c.l.b16 %v1477
      %v1534 = vunpack.c.l.b16 %v1478
      %v1535 = vunpack.c.l.b16 %v1479
      %v1536 = vunpack.c.l.b16 %v1480
      %v1537 = vunpack.c.l.b16 %v1481
      %v1538 = vunpack.c.l.b16 %v1482
      %v1539 = vunpack.c.l.b16 %v1483
      %v1540 = vpack.c.b16 %v1525, %v1524
      %v1541 = vpack.c.b16 %v1527, %v1526
      %v1542 = vpack.c.b16 %v1529, %v1528
      %v1543 = vpack.c.b16 %v1531, %v1530
      %v1544 = vpack.c.b16 %v1533, %v1532
      %v1545 = vpack.c.b16 %v1535, %v1534
      %v1546 = vpack.c.b16 %v1537, %v1536
      %v1547 = vpack.c.b16 %v1539, %v1538
      %1556 = vmatprep.subr.bf16.mxu0 0
      %1557 = vmatpush1.bf16.msra.mxu0 %v1540
      %1558 = vmatprep.subr.bf16.mxu0 0
      %1559 = vmatpush1.bf16.msra.mxu0 %v1541
      %1560 = vmatprep.subr.bf16.mxu0 0
      %1561 = vmatpush1.bf16.msra.mxu0 %v1542
      %1562 = vmatprep.subr.bf16.mxu0 0
      %1563 = vmatpush1.bf16.msra.mxu0 %v1543
      %1564 = vmatprep.subr.bf16.mxu0 0
      %1565 = vmatpush1.bf16.msra.mxu0 %v1544
      %1566 = vmatprep.subr.bf16.mxu0 0
      %1567 = vmatpush1.bf16.msra.mxu0 %v1545
      %1568 = vmatprep.subr.bf16.mxu0 0
      %1569 = vmatpush1.bf16.msra.mxu0 %v1546
      %1570 = vmatprep.subr.bf16.mxu0 0
      %1571 = vmatpush1.bf16.msra.mxu0 %v1547
      %1572 = vmatprep.subr.bf16.mxu0 0
      %1573 = vmatpush1.bf16.msra.mxu0 0
      %1574 = vmatprep.subr.bf16.mxu0 0
      %1575 = vmatpush1.bf16.msra.mxu0 0
      %1576 = vmatprep.subr.bf16.mxu0 0
      %1577 = vmatpush1.bf16.msra.mxu0 0
      %1578 = vmatprep.subr.bf16.mxu0 0
      %1579 = vmatpush1.bf16.msra.mxu0 0
      %1580 = vmatprep.subr.bf16.mxu0 0
      %1581 = vmatpush1.bf16.msra.mxu0 0
      %1582 = vmatprep.subr.bf16.mxu0 0
      %1583 = vmatpush1.bf16.msra.mxu0 0
      %1584 = vmatprep.subr.bf16.mxu0 0
      %1585 = vmatpush1.bf16.msra.mxu0 0
      %1586 = vmatprep.subr.bf16.mxu0 0
      %1587 = vmatpush1.bf16.msra.mxu0 0
      %1588 = vmatprep.mubr.bf16.mxu0 0
      %1589 = vmatmul.mubr.bf16.gmra.mrb[0].mxu0 %v1500
      %v1590 = vpop.f32.mrb[0].mxu0
      %v1591 = vadd.f32 0.0, %v1590
      %v1592 = vpop.f32.mrb[0].mxu0
      %v1593 = vpop.f32.mrb[0].mxu0
      %v1594 = vadd.f32 0.0, %v1593
      %v1595 = vpop.f32.mrb[0].mxu0
      %1596 = vmatprep.mubr.bf16.mxu0 0
      %1597 = vmatmul.mubr.bf16.gmra.mrb[0].mxu0 %v1501
      %v1598 = vpop.f32.mrb[0].mxu0
      %v1599 = vadd.f32 0.0, %v1598
      %v1600 = vpop.f32.mrb[0].mxu0
      %v1601 = vpop.f32.mrb[0].mxu0
      %v1602 = vadd.f32 0.0, %v1601
      %v1603 = vpop.f32.mrb[0].mxu0
      %1604 = vmatprep.mubr.bf16.mxu0 0
      %1605 = vmatmul.mubr.bf16.gmra.mrb[0].mxu0 %v1502
      %v1606 = vpop.f32.mrb[0].mxu0
      %v1607 = vadd.f32 0.0, %v1606
      %v1608 = vpop.f32.mrb[0].mxu0
      %v1609 = vpop.f32.mrb[0].mxu0
      %v1610 = vadd.f32 0.0, %v1609
      %v1611 = vpop.f32.mrb[0].mxu0
      %1612 = vmatprep.mubr.bf16.mxu0 0
      %1613 = vmatmul.mubr.bf16.gmra.mrb[0].mxu0 %v1503
      %v1614 = vpop.f32.mrb[0].mxu0
      %v1615 = vadd.f32 0.0, %v1614
      %v1616 = vpop.f32.mrb[0].mxu0
      %v1617 = vpop.f32.mrb[0].mxu0
      %v1618 = vadd.f32 0.0, %v1617
      %v1619 = vpop.f32.mrb[0].mxu0
      %1620 = vdwg.mxu0
      %v1621 = vadd.f32 %v1451, %v1591
      %v1622 = vadd.f32 %v1452, %v1594
      %v1623 = vadd.f32 %v1453, %v1599
      %v1624 = vadd.f32 %v1454, %v1602
      %v1625 = vadd.f32 %v1455, %v1607
      %v1626 = vadd.f32 %v1456, %v1610
      %v1627 = vadd.f32 %v1457, %v1615
      %v1628 = vadd.f32 %v1458, %v1618
      %v1629 = vld [vmem:[%s761] sm:$0xf]
      %v1630 = vld [vmem:[%s761 + $0x4] sm:$0x1]
      %v1631 = vld [vmem:[%s761 + $0x8] sm:$0xf]
      %v1632 = vld [vmem:[%s761 + $0xc] sm:$0x1]
      %v1633 = vld [vmem:[%s761 + $0x10] sm:$0xf]
      %v1634 = vld [vmem:[%s761 + $0x14] sm:$0x1]
      %v1635 = vld [vmem:[%s761 + $0x18] sm:$0xf]
      %v1636 = vld [vmem:[%s761 + $0x1c] sm:$0x1]
      %v1637 = vld [vmem:[%s761 + $0x20] sm:$0xf]
      %v1638 = vld [vmem:[%s761 + $0x24] sm:$0x1]
      %v1639 = vld [vmem:[%s761 + $0x28] sm:$0xf]
      %v1640 = vld [vmem:[%s761 + $0x2c] sm:$0x1]
      %v1641 = vld [vmem:[%s761 + $0x30] sm:$0xf]
      %v1642 = vld [vmem:[%s761 + $0x34] sm:$0x1]
      %v1643 = vld [vmem:[%s761 + $0x38] sm:$0xf]
      %v1644 = vld [vmem:[%s761 + $0x3c] sm:$0x1]
      %v1646 = vshrl.u32 %v1629, 16
      %v1648 = vrot.slane %v1646, 4
      %v1649 = vshll.u32 %v1629, 16
      %v1651 = vrot.slane %v1649, 5
      %v1652 = vor.u32 %v1648, %v1651
      %v1653 = vrot.slane %v1652, 4
      %v1655 = vshll.u32 %v1630, 16
      %v1657 = vrot.slane %v1655, 5
      %v1658 = vsel %vm850, %v1653, %v1657
      %v1660 = vshrl.u32 %v1631, 16
      %v1662 = vrot.slane %v1660, 4
      %v1663 = vshll.u32 %v1631, 16
      %v1665 = vrot.slane %v1663, 5
      %v1666 = vor.u32 %v1662, %v1665
      %v1667 = vrot.slane %v1666, 4
      %v1669 = vshll.u32 %v1632, 16
      %v1671 = vrot.slane %v1669, 5
      %v1672 = vsel %vm850, %v1667, %v1671
      %v1674 = vshrl.u32 %v1633, 16
      %v1676 = vrot.slane %v1674, 4
      %v1677 = vshll.u32 %v1633, 16
      %v1679 = vrot.slane %v1677, 5
      %v1680 = vor.u32 %v1676, %v1679
      %v1681 = vrot.slane %v1680, 4
      %v1683 = vshll.u32 %v1634, 16
      %v1685 = vrot.slane %v1683, 5
      %v1686 = vsel %vm850, %v1681, %v1685
      %v1688 = vshrl.u32 %v1635, 16
      %v1690 = vrot.slane %v1688, 4
      %v1691 = vshll.u32 %v1635, 16
      %v1693 = vrot.slane %v1691, 5
      %v1694 = vor.u32 %v1690, %v1693
      %v1695 = vrot.slane %v1694, 4
      %v1697 = vshll.u32 %v1636, 16
      %v1699 = vrot.slane %v1697, 5
      %v1700 = vsel %vm850, %v1695, %v1699
      %v1702 = vshrl.u32 %v1637, 16
      %v1704 = vrot.slane %v1702, 4
      %v1705 = vshll.u32 %v1637, 16
      %v1707 = vrot.slane %v1705, 5
      %v1708 = vor.u32 %v1704, %v1707
      %v1709 = vrot.slane %v1708, 4
      %v1711 = vshll.u32 %v1638, 16
      %v1713 = vrot.slane %v1711, 5
      %v1714 = vsel %vm850, %v1709, %v1713
      %v1716 = vshrl.u32 %v1639, 16
      %v1718 = vrot.slane %v1716, 4
      %v1719 = vshll.u32 %v1639, 16
      %v1721 = vrot.slane %v1719, 5
      %v1722 = vor.u32 %v1718, %v1721
      %v1723 = vrot.slane %v1722, 4
      %v1725 = vshll.u32 %v1640, 16
      %v1727 = vrot.slane %v1725, 5
      %v1728 = vsel %vm850, %v1723, %v1727
      %v1730 = vshrl.u32 %v1641, 16
      %v1732 = vrot.slane %v1730, 4
      %v1733 = vshll.u32 %v1641, 16
      %v1735 = vrot.slane %v1733, 5
      %v1736 = vor.u32 %v1732, %v1735
      %v1737 = vrot.slane %v1736, 4
      %v1739 = vshll.u32 %v1642, 16
      %v1741 = vrot.slane %v1739, 5
      %v1742 = vsel %vm850, %v1737, %v1741
      %v1744 = vshrl.u32 %v1643, 16
      %v1746 = vrot.slane %v1744, 4
      %v1747 = vshll.u32 %v1643, 16
      %v1749 = vrot.slane %v1747, 5
      %v1750 = vor.u32 %v1746, %v1749
      %v1751 = vrot.slane %v1750, 4
      %v1753 = vshll.u32 %v1644, 16
      %v1755 = vrot.slane %v1753, 5
      %v1756 = vsel %vm850, %v1751, %v1755
      %s1757 = scalar_lea.vmem %s5, 256
      %v1758 = vld [vmem:[%s1757] sm:$0xf]
      %v1759 = vld [vmem:[%s1757 + $0x4] sm:$0xf]
      %v1760 = vld [vmem:[%s1757 + $0x8] sm:$0xf]
      %v1761 = vld [vmem:[%s1757 + $0xc] sm:$0xf]
      %v1762 = vld [vmem:[%s1757 + $0x10] sm:$0xf]
      %v1763 = vld [vmem:[%s1757 + $0x14] sm:$0xf]
      %v1764 = vld [vmem:[%s1757 + $0x18] sm:$0xf]
      %v1765 = vld [vmem:[%s1757 + $0x1c] sm:$0xf]
      %v1766 = vld [vmem:[%s1757 + $0x20] sm:$0xf]
      %v1767 = vld [vmem:[%s1757 + $0x24] sm:$0xf]
      %v1768 = vld [vmem:[%s1757 + $0x28] sm:$0xf]
      %v1769 = vld [vmem:[%s1757 + $0x2c] sm:$0xf]
      %v1770 = vld [vmem:[%s1757 + $0x30] sm:$0xf]
      %v1771 = vld [vmem:[%s1757 + $0x34] sm:$0xf]
      %v1772 = vld [vmem:[%s1757 + $0x38] sm:$0xf]
      %v1773 = vld [vmem:[%s1757 + $0x3c] sm:$0xf]
      %v1774 = vunpack.c.l.b16 %v1658
      %v1775 = vunpack.c.l.b16 %v1672
      %v1776 = vunpack.c.l.b16 %v1686
      %v1777 = vunpack.c.l.b16 %v1700
      %v1778 = vunpack.c.l.b16 %v1714
      %v1779 = vunpack.c.l.b16 %v1728
      %v1780 = vunpack.c.l.b16 %v1742
      %v1781 = vunpack.c.l.b16 %v1756
      %v1782 = vpack.c.b16 %v1775, %v1774
      %v1783 = vpack.c.b16 %v1777, %v1776
      %v1784 = vpack.c.b16 %v1779, %v1778
      %v1785 = vpack.c.b16 %v1781, %v1780
      %v1806 = vunpack.c.l.b16 %v1758
      %v1807 = vunpack.c.l.b16 %v1759
      %v1808 = vunpack.c.l.b16 %v1760
      %v1809 = vunpack.c.l.b16 %v1761
      %v1810 = vunpack.c.l.b16 %v1762
      %v1811 = vunpack.c.l.b16 %v1763
      %v1812 = vunpack.c.l.b16 %v1764
      %v1813 = vunpack.c.l.b16 %v1765
      %v1814 = vunpack.c.l.b16 %v1766
      %v1815 = vunpack.c.l.b16 %v1767
      %v1816 = vunpack.c.l.b16 %v1768
      %v1817 = vunpack.c.l.b16 %v1769
      %v1818 = vunpack.c.l.b16 %v1770
      %v1819 = vunpack.c.l.b16 %v1771
      %v1820 = vunpack.c.l.b16 %v1772
      %v1821 = vunpack.c.l.b16 %v1773
      %v1822 = vpack.c.b16 %v1807, %v1806
      %v1823 = vpack.c.b16 %v1809, %v1808
      %v1824 = vpack.c.b16 %v1811, %v1810
      %v1825 = vpack.c.b16 %v1813, %v1812
      %v1826 = vpack.c.b16 %v1815, %v1814
      %v1827 = vpack.c.b16 %v1817, %v1816
      %v1828 = vpack.c.b16 %v1819, %v1818
      %v1829 = vpack.c.b16 %v1821, %v1820
      %1838 = vmatprep.subr.bf16.mxu0 0
      %1839 = vmatpush1.bf16.msra.mxu0 %v1822
      %1840 = vmatprep.subr.bf16.mxu0 0
      %1841 = vmatpush1.bf16.msra.mxu0 %v1823
      %1842 = vmatprep.subr.bf16.mxu0 0
      %1843 = vmatpush1.bf16.msra.mxu0 %v1824
      %1844 = vmatprep.subr.bf16.mxu0 0
      %1845 = vmatpush1.bf16.msra.mxu0 %v1825
      %1846 = vmatprep.subr.bf16.mxu0 0
      %1847 = vmatpush1.bf16.msra.mxu0 %v1826
      %1848 = vmatprep.subr.bf16.mxu0 0
      %1849 = vmatpush1.bf16.msra.mxu0 %v1827
      %1850 = vmatprep.subr.bf16.mxu0 0
      %1851 = vmatpush1.bf16.msra.mxu0 %v1828
      %1852 = vmatprep.subr.bf16.mxu0 0
      %1853 = vmatpush1.bf16.msra.mxu0 %v1829
      %1854 = vmatprep.subr.bf16.mxu0 0
      %1855 = vmatpush1.bf16.msra.mxu0 0
      %1856 = vmatprep.subr.bf16.mxu0 0
      %1857 = vmatpush1.bf16.msra.mxu0 0
      %1858 = vmatprep.subr.bf16.mxu0 0
      %1859 = vmatpush1.bf16.msra.mxu0 0
      %1860 = vmatprep.subr.bf16.mxu0 0
      %1861 = vmatpush1.bf16.msra.mxu0 0
      %1862 = vmatprep.subr.bf16.mxu0 0
      %1863 = vmatpush1.bf16.msra.mxu0 0
      %1864 = vmatprep.subr.bf16.mxu0 0
      %1865 = vmatpush1.bf16.msra.mxu0 0
      %1866 = vmatprep.subr.bf16.mxu0 0
      %1867 = vmatpush1.bf16.msra.mxu0 0
      %1868 = vmatprep.subr.bf16.mxu0 0
      %1869 = vmatpush1.bf16.msra.mxu0 0
      %1870 = vmatprep.mubr.bf16.mxu0 0
      %1871 = vmatmul.mubr.bf16.gmra.mrb[0].mxu0 %v1782
      %v1872 = vpop.f32.mrb[0].mxu0
      %v1873 = vadd.f32 0.0, %v1872
      %v1874 = vpop.f32.mrb[0].mxu0
      %v1875 = vpop.f32.mrb[0].mxu0
      %v1876 = vadd.f32 0.0, %v1875
      %v1877 = vpop.f32.mrb[0].mxu0
      %1878 = vmatprep.mubr.bf16.mxu0 0
      %1879 = vmatmul.mubr.bf16.gmra.mrb[0].mxu0 %v1783
      %v1880 = vpop.f32.mrb[0].mxu0
      %v1881 = vadd.f32 0.0, %v1880
      %v1882 = vpop.f32.mrb[0].mxu0
      %v1883 = vpop.f32.mrb[0].mxu0
      %v1884 = vadd.f32 0.0, %v1883
      %v1885 = vpop.f32.mrb[0].mxu0
      %1886 = vmatprep.mubr.bf16.mxu0 0
      %1887 = vmatmul.mubr.bf16.gmra.mrb[0].mxu0 %v1784
      %v1888 = vpop.f32.mrb[0].mxu0
      %v1889 = vadd.f32 0.0, %v1888
      %v1890 = vpop.f32.mrb[0].mxu0
      %v1891 = vpop.f32.mrb[0].mxu0
      %v1892 = vadd.f32 0.0, %v1891
      %v1893 = vpop.f32.mrb[0].mxu0
      %1894 = vmatprep.mubr.bf16.mxu0 0
      %1895 = vmatmul.mubr.bf16.gmra.mrb[0].mxu0 %v1785
      %v1896 = vpop.f32.mrb[0].mxu0
      %v1897 = vadd.f32 0.0, %v1896
      %v1898 = vpop.f32.mrb[0].mxu0
      %v1899 = vpop.f32.mrb[0].mxu0
      %v1900 = vadd.f32 0.0, %v1899
      %v1901 = vpop.f32.mrb[0].mxu0
      %1902 = vdwg.mxu0
      %v1903 = vadd.f32 %v1621, %v1873
      %v1904 = vadd.f32 %v1622, %v1876
      %v1905 = vadd.f32 %v1623, %v1881
      %v1906 = vadd.f32 %v1624, %v1884
      %v1907 = vadd.f32 %v1625, %v1889
      %v1908 = vadd.f32 %v1626, %v1892
      %v1909 = vadd.f32 %v1627, %v1897
      %v1910 = vadd.f32 %v1628, %v1900
      %v1911 = vld [vmem:[%s761] sm:$0xe]
      %v1912 = vld [vmem:[%s761 + $0x8] sm:$0xe]
      %v1913 = vld [vmem:[%s761 + $0x10] sm:$0xe]
      %v1914 = vld [vmem:[%s761 + $0x18] sm:$0xe]
      %v1915 = vld [vmem:[%s761 + $0x20] sm:$0xe]
      %v1916 = vld [vmem:[%s761 + $0x28] sm:$0xe]
      %v1917 = vld [vmem:[%s761 + $0x30] sm:$0xe]
      %v1918 = vld [vmem:[%s761 + $0x38] sm:$0xe]
      %v1935 = vrot.slane %v1911, 5
      %v1936 = vrot.slane %v1935, 4
      %v1937 = vrot.slane %v1630, 5
      %v1938 = vsel %vm1272, %v1936, %v1937
      %v1939 = vrot.slane %v1912, 5
      %v1940 = vrot.slane %v1939, 4
      %v1941 = vrot.slane %v1632, 5
      %v1942 = vsel %vm1272, %v1940, %v1941
      %v1943 = vrot.slane %v1913, 5
      %v1944 = vrot.slane %v1943, 4
      %v1945 = vrot.slane %v1634, 5
      %v1946 = vsel %vm1272, %v1944, %v1945
      %v1947 = vrot.slane %v1914, 5
      %v1948 = vrot.slane %v1947, 4
      %v1949 = vrot.slane %v1636, 5
      %v1950 = vsel %vm1272, %v1948, %v1949
      %v1951 = vrot.slane %v1915, 5
      %v1952 = vrot.slane %v1951, 4
      %v1953 = vrot.slane %v1638, 5
      %v1954 = vsel %vm1272, %v1952, %v1953
      %v1955 = vrot.slane %v1916, 5
      %v1956 = vrot.slane %v1955, 4
      %v1957 = vrot.slane %v1640, 5
      %v1958 = vsel %vm1272, %v1956, %v1957
      %v1959 = vrot.slane %v1917, 5
      %v1960 = vrot.slane %v1959, 4
      %v1961 = vrot.slane %v1642, 5
      %v1962 = vsel %vm1272, %v1960, %v1961
      %v1963 = vrot.slane %v1918, 5
      %v1964 = vrot.slane %v1963, 4
      %v1965 = vrot.slane %v1644, 5
      %v1966 = vsel %vm1272, %v1964, %v1965
      %s1967 = scalar_lea.vmem %s5, 320
      %v1968 = vld [vmem:[%s1967] sm:$0xf]
      %v1969 = vld [vmem:[%s1967 + $0x4] sm:$0xf]
      %v1970 = vld [vmem:[%s1967 + $0x8] sm:$0xf]
      %v1971 = vld [vmem:[%s1967 + $0xc] sm:$0xf]
      %v1972 = vld [vmem:[%s1967 + $0x10] sm:$0xf]
      %v1973 = vld [vmem:[%s1967 + $0x14] sm:$0xf]
      %v1974 = vld [vmem:[%s1967 + $0x18] sm:$0xf]
      %v1975 = vld [vmem:[%s1967 + $0x1c] sm:$0xf]
      %v1976 = vld [vmem:[%s1967 + $0x20] sm:$0xf]
      %v1977 = vld [vmem:[%s1967 + $0x24] sm:$0xf]
      %v1978 = vld [vmem:[%s1967 + $0x28] sm:$0xf]
      %v1979 = vld [vmem:[%s1967 + $0x2c] sm:$0xf]
      %v1980 = vld [vmem:[%s1967 + $0x30] sm:$0xf]
      %v1981 = vld [vmem:[%s1967 + $0x34] sm:$0xf]
      %v1982 = vld [vmem:[%s1967 + $0x38] sm:$0xf]
      %v1983 = vld [vmem:[%s1967 + $0x3c] sm:$0xf]
      %v1984 = vunpack.c.l.b16 %v1938
      %v1985 = vunpack.c.l.b16 %v1942
      %v1986 = vunpack.c.l.b16 %v1946
      %v1987 = vunpack.c.l.b16 %v1950
      %v1988 = vunpack.c.l.b16 %v1954
      %v1989 = vunpack.c.l.b16 %v1958
      %v1990 = vunpack.c.l.b16 %v1962
      %v1991 = vunpack.c.l.b16 %v1966
      %v1992 = vpack.c.b16 %v1985, %v1984
      %v1993 = vpack.c.b16 %v1987, %v1986
      %v1994 = vpack.c.b16 %v1989, %v1988
      %v1995 = vpack.c.b16 %v1991, %v1990
      %v2016 = vunpack.c.l.b16 %v1968
      %v2017 = vunpack.c.l.b16 %v1969
      %v2018 = vunpack.c.l.b16 %v1970
      %v2019 = vunpack.c.l.b16 %v1971
      %v2020 = vunpack.c.l.b16 %v1972
      %v2021 = vunpack.c.l.b16 %v1973
      %v2022 = vunpack.c.l.b16 %v1974
      %v2023 = vunpack.c.l.b16 %v1975
      %v2024 = vunpack.c.l.b16 %v1976
      %v2025 = vunpack.c.l.b16 %v1977
      %v2026 = vunpack.c.l.b16 %v1978
      %v2027 = vunpack.c.l.b16 %v1979
      %v2028 = vunpack.c.l.b16 %v1980
      %v2029 = vunpack.c.l.b16 %v1981
      %v2030 = vunpack.c.l.b16 %v1982
      %v2031 = vunpack.c.l.b16 %v1983
      %v2032 = vpack.c.b16 %v2017, %v2016
      %v2033 = vpack.c.b16 %v2019, %v2018
      %v2034 = vpack.c.b16 %v2021, %v2020
      %v2035 = vpack.c.b16 %v2023, %v2022
      %v2036 = vpack.c.b16 %v2025, %v2024
      %v2037 = vpack.c.b16 %v2027, %v2026
      %v2038 = vpack.c.b16 %v2029, %v2028
      %v2039 = vpack.c.b16 %v2031, %v2030
      %2048 = vmatprep.subr.bf16.mxu0 0
      %2049 = vmatpush1.bf16.msra.mxu0 %v2032
      %2050 = vmatprep.subr.bf16.mxu0 0
      %2051 = vmatpush1.bf16.msra.mxu0 %v2033
      %2052 = vmatprep.subr.bf16.mxu0 0
      %2053 = vmatpush1.bf16.msra.mxu0 %v2034
      %2054 = vmatprep.subr.bf16.mxu0 0
      %2055 = vmatpush1.bf16.msra.mxu0 %v2035
      %2056 = vmatprep.subr.bf16.mxu0 0
      %2057 = vmatpush1.bf16.msra.mxu0 %v2036
      %2058 = vmatprep.subr.bf16.mxu0 0
      %2059 = vmatpush1.bf16.msra.mxu0 %v2037
      %2060 = vmatprep.subr.bf16.mxu0 0
      %2061 = vmatpush1.bf16.msra.mxu0 %v2038
      %2062 = vmatprep.subr.bf16.mxu0 0
      %2063 = vmatpush1.bf16.msra.mxu0 %v2039
      %2064 = vmatprep.subr.bf16.mxu0 0
      %2065 = vmatpush1.bf16.msra.mxu0 0
      %2066 = vmatprep.subr.bf16.mxu0 0
      %2067 = vmatpush1.bf16.msra.mxu0 0
      %2068 = vmatprep.subr.bf16.mxu0 0
      %2069 = vmatpush1.bf16.msra.mxu0 0
      %2070 = vmatprep.subr.bf16.mxu0 0
      %2071 = vmatpush1.bf16.msra.mxu0 0
      %2072 = vmatprep.subr.bf16.mxu0 0
      %2073 = vmatpush1.bf16.msra.mxu0 0
      %2074 = vmatprep.subr.bf16.mxu0 0
      %2075 = vmatpush1.bf16.msra.mxu0 0
      %2076 = vmatprep.subr.bf16.mxu0 0
      %2077 = vmatpush1.bf16.msra.mxu0 0
      %2078 = vmatprep.subr.bf16.mxu0 0
      %2079 = vmatpush1.bf16.msra.mxu0 0
      %2080 = vmatprep.mubr.bf16.mxu0 0
      %2081 = vmatmul.mubr.bf16.gmra.mrb[0].mxu0 %v1992
      %v2082 = vpop.f32.mrb[0].mxu0
      %v2083 = vadd.f32 0.0, %v2082
      %v2084 = vpop.f32.mrb[0].mxu0
      %v2085 = vpop.f32.mrb[0].mxu0
      %v2086 = vadd.f32 0.0, %v2085
      %v2087 = vpop.f32.mrb[0].mxu0
      %2088 = vmatprep.mubr.bf16.mxu0 0
      %2089 = vmatmul.mubr.bf16.gmra.mrb[0].mxu0 %v1993
      %v2090 = vpop.f32.mrb[0].mxu0
      %v2091 = vadd.f32 0.0, %v2090
      %v2092 = vpop.f32.mrb[0].mxu0
      %v2093 = vpop.f32.mrb[0].mxu0
      %v2094 = vadd.f32 0.0, %v2093
      %v2095 = vpop.f32.mrb[0].mxu0
      %2096 = vmatprep.mubr.bf16.mxu0 0
      %2097 = vmatmul.mubr.bf16.gmra.mrb[0].mxu0 %v1994
      %v2098 = vpop.f32.mrb[0].mxu0
      %v2099 = vadd.f32 0.0, %v2098
      %v2100 = vpop.f32.mrb[0].mxu0
      %v2101 = vpop.f32.mrb[0].mxu0
      %v2102 = vadd.f32 0.0, %v2101
      %v2103 = vpop.f32.mrb[0].mxu0
      %2104 = vmatprep.mubr.bf16.mxu0 0
      %2105 = vmatmul.mubr.bf16.gmra.mrb[0].mxu0 %v1995
      %v2106 = vpop.f32.mrb[0].mxu0
      %v2107 = vadd.f32 0.0, %v2106
      %v2108 = vpop.f32.mrb[0].mxu0
      %v2109 = vpop.f32.mrb[0].mxu0
      %v2110 = vadd.f32 0.0, %v2109
      %v2111 = vpop.f32.mrb[0].mxu0
      %2112 = vdwg.mxu0
      %v2113 = vadd.f32 %v1903, %v2083
      %v2114 = vadd.f32 %v1904, %v2086
      %v2115 = vadd.f32 %v1905, %v2091
      %v2116 = vadd.f32 %v1906, %v2094
      %v2117 = vadd.f32 %v1907, %v2099
      %v2118 = vadd.f32 %v1908, %v2102
      %v2119 = vadd.f32 %v1909, %v2107
      %v2120 = vadd.f32 %v1910, %v2110
      %s2121 = scalar_lea.vmem [#allocation2], 16
      %v2122 = vld [vmem:[%s2121] sm:$0xf]
      %v2123 = vld [vmem:[%s2121 + $0x8] sm:$0xf]
      %v2124 = vld [vmem:[%s2121 + $0x10] sm:$0xf]
      %v2125 = vld [vmem:[%s2121 + $0x18] sm:$0xf]
      %v2126 = vld [vmem:[%s2121 + $0x20] sm:$0xf]
      %v2127 = vld [vmem:[%s2121 + $0x28] sm:$0xf]
      %v2128 = vld [vmem:[%s2121 + $0x30] sm:$0xf]
      %v2129 = vld [vmem:[%s2121 + $0x38] sm:$0xf]
      %s2130 = scalar_lea.vmem %s5, 384
      %v2131 = vld [vmem:[%s2130] sm:$0xf]
      %v2132 = vld [vmem:[%s2130 + $0x4] sm:$0xf]
      %v2133 = vld [vmem:[%s2130 + $0x8] sm:$0xf]
      %v2134 = vld [vmem:[%s2130 + $0xc] sm:$0xf]
      %v2135 = vld [vmem:[%s2130 + $0x10] sm:$0xf]
      %v2136 = vld [vmem:[%s2130 + $0x14] sm:$0xf]
      %v2137 = vld [vmem:[%s2130 + $0x18] sm:$0xf]
      %v2138 = vld [vmem:[%s2130 + $0x1c] sm:$0xf]
      %v2139 = vld [vmem:[%s2130 + $0x20] sm:$0xf]
      %v2140 = vld [vmem:[%s2130 + $0x24] sm:$0xf]
      %v2141 = vld [vmem:[%s2130 + $0x28] sm:$0xf]
      %v2142 = vld [vmem:[%s2130 + $0x2c] sm:$0xf]
      %v2143 = vld [vmem:[%s2130 + $0x30] sm:$0xf]
      %v2144 = vld [vmem:[%s2130 + $0x34] sm:$0xf]
      %v2145 = vld [vmem:[%s2130 + $0x38] sm:$0xf]
      %v2146 = vld [vmem:[%s2130 + $0x3c] sm:$0xf]
      %v2155 = vunpack.c.l.b16 %v2122
      %v2156 = vunpack.c.l.b16 %v2123
      %v2157 = vunpack.c.l.b16 %v2124
      %v2158 = vunpack.c.l.b16 %v2125
      %v2159 = vunpack.c.l.b16 %v2126
      %v2160 = vunpack.c.l.b16 %v2127
      %v2161 = vunpack.c.l.b16 %v2128
      %v2162 = vunpack.c.l.b16 %v2129
      %v2163 = vpack.c.b16 %v2156, %v2155
      %v2164 = vpack.c.b16 %v2158, %v2157
      %v2165 = vpack.c.b16 %v2160, %v2159
      %v2166 = vpack.c.b16 %v2162, %v2161
      %v2187 = vunpack.c.l.b16 %v2131
      %v2188 = vunpack.c.l.b16 %v2132
      %v2189 = vunpack.c.l.b16 %v2133
      %v2190 = vunpack.c.l.b16 %v2134
      %v2191 = vunpack.c.l.b16 %v2135
      %v2192 = vunpack.c.l.b16 %v2136
      %v2193 = vunpack.c.l.b16 %v2137
      %v2194 = vunpack.c.l.b16 %v2138
      %v2195 = vunpack.c.l.b16 %v2139
      %v2196 = vunpack.c.l.b16 %v2140
      %v2197 = vunpack.c.l.b16 %v2141
      %v2198 = vunpack.c.l.b16 %v2142
      %v2199 = vunpack.c.l.b16 %v2143
      %v2200 = vunpack.c.l.b16 %v2144
      %v2201 = vunpack.c.l.b16 %v2145
      %v2202 = vunpack.c.l.b16 %v2146
      %v2203 = vpack.c.b16 %v2188, %v2187
      %v2204 = vpack.c.b16 %v2190, %v2189
      %v2205 = vpack.c.b16 %v2192, %v2191
      %v2206 = vpack.c.b16 %v2194, %v2193
      %v2207 = vpack.c.b16 %v2196, %v2195
      %v2208 = vpack.c.b16 %v2198, %v2197
      %v2209 = vpack.c.b16 %v2200, %v2199
      %v2210 = vpack.c.b16 %v2202, %v2201
      %2219 = vmatprep.subr.bf16.mxu0 0
      %2220 = vmatpush1.bf16.msra.mxu0 %v2203
      %2221 = vmatprep.subr.bf16.mxu0 0
      %2222 = vmatpush1.bf16.msra.mxu0 %v2204
      %2223 = vmatprep.subr.bf16.mxu0 0
      %2224 = vmatpush1.bf16.msra.mxu0 %v2205
      %2225 = vmatprep.subr.bf16.mxu0 0
      %2226 = vmatpush1.bf16.msra.mxu0 %v2206
      %2227 = vmatprep.subr.bf16.mxu0 0
      %2228 = vmatpush1.bf16.msra.mxu0 %v2207
      %2229 = vmatprep.subr.bf16.mxu0 0
      %2230 = vmatpush1.bf16.msra.mxu0 %v2208
      %2231 = vmatprep.subr.bf16.mxu0 0
      %2232 = vmatpush1.bf16.msra.mxu0 %v2209
      %2233 = vmatprep.subr.bf16.mxu0 0
      %2234 = vmatpush1.bf16.msra.mxu0 %v2210
      %2235 = vmatprep.subr.bf16.mxu0 0
      %2236 = vmatpush1.bf16.msra.mxu0 0
      %2237 = vmatprep.subr.bf16.mxu0 0
      %2238 = vmatpush1.bf16.msra.mxu0 0
      %2239 = vmatprep.subr.bf16.mxu0 0
      %2240 = vmatpush1.bf16.msra.mxu0 0
      %2241 = vmatprep.subr.bf16.mxu0 0
      %2242 = vmatpush1.bf16.msra.mxu0 0
      %2243 = vmatprep.subr.bf16.mxu0 0
      %2244 = vmatpush1.bf16.msra.mxu0 0
      %2245 = vmatprep.subr.bf16.mxu0 0
      %2246 = vmatpush1.bf16.msra.mxu0 0
      %2247 = vmatprep.subr.bf16.mxu0 0
      %2248 = vmatpush1.bf16.msra.mxu0 0
      %2249 = vmatprep.subr.bf16.mxu0 0
      %2250 = vmatpush1.bf16.msra.mxu0 0
      %2251 = vmatprep.mubr.bf16.mxu0 0
      %2252 = vmatmul.mubr.bf16.gmra.mrb[0].mxu0 %v2163
      %v2253 = vpop.f32.mrb[0].mxu0
      %v2254 = vadd.f32 0.0, %v2253
      %v2255 = vpop.f32.mrb[0].mxu0
      %v2256 = vpop.f32.mrb[0].mxu0
      %v2257 = vadd.f32 0.0, %v2256
      %v2258 = vpop.f32.mrb[0].mxu0
      %2259 = vmatprep.mubr.bf16.mxu0 0
      %2260 = vmatmul.mubr.bf16.gmra.mrb[0].mxu0 %v2164
      %v2261 = vpop.f32.mrb[0].mxu0
      %v2262 = vadd.f32 0.0, %v2261
      %v2263 = vpop.f32.mrb[0].mxu0
      %v2264 = vpop.f32.mrb[0].mxu0
      %v2265 = vadd.f32 0.0, %v2264
      %v2266 = vpop.f32.mrb[0].mxu0
      %2267 = vmatprep.mubr.bf16.mxu0 0
      %2268 = vmatmul.mubr.bf16.gmra.mrb[0].mxu0 %v2165
      %v2269 = vpop.f32.mrb[0].mxu0
      %v2270 = vadd.f32 0.0, %v2269
      %v2271 = vpop.f32.mrb[0].mxu0
      %v2272 = vpop.f32.mrb[0].mxu0
      %v2273 = vadd.f32 0.0, %v2272
      %v2274 = vpop.f32.mrb[0].mxu0
      %2275 = vmatprep.mubr.bf16.mxu0 0
      %2276 = vmatmul.mubr.bf16.gmra.mrb[0].mxu0 %v2166
      %v2277 = vpop.f32.mrb[0].mxu0
      %v2278 = vadd.f32 0.0, %v2277
      %v2279 = vpop.f32.mrb[0].mxu0
      %v2280 = vpop.f32.mrb[0].mxu0
      %v2281 = vadd.f32 0.0, %v2280
      %v2282 = vpop.f32.mrb[0].mxu0
      %2283 = vdwg.mxu0
      %v2284 = vadd.f32 %v2113, %v2254
      %v2285 = vadd.f32 %v2114, %v2257
      %v2286 = vadd.f32 %v2115, %v2262
      %v2287 = vadd.f32 %v2116, %v2265
      %v2288 = vadd.f32 %v2117, %v2270
      %v2289 = vadd.f32 %v2118, %v2273
      %v2290 = vadd.f32 %v2119, %v2278
      %v2291 = vadd.f32 %v2120, %v2281
      %v2292 = vld [vmem:[%s2121] sm:$0xf]
      %v2293 = vld [vmem:[%s2121 + $0x4] sm:$0x1]
      %v2294 = vld [vmem:[%s2121 + $0x8] sm:$0xf]
      %v2295 = vld [vmem:[%s2121 + $0xc] sm:$0x1]
      %v2296 = vld [vmem:[%s2121 + $0x10] sm:$0xf]
      %v2297 = vld [vmem:[%s2121 + $0x14] sm:$0x1]
      %v2298 = vld [vmem:[%s2121 + $0x18] sm:$0xf]
      %v2299 = vld [vmem:[%s2121 + $0x1c] sm:$0x1]
      %v2300 = vld [vmem:[%s2121 + $0x20] sm:$0xf]
      %v2301 = vld [vmem:[%s2121 + $0x24] sm:$0x1]
      %v2302 = vld [vmem:[%s2121 + $0x28] sm:$0xf]
      %v2303 = vld [vmem:[%s2121 + $0x2c] sm:$0x1]
      %v2304 = vld [vmem:[%s2121 + $0x30] sm:$0xf]
      %v2305 = vld [vmem:[%s2121 + $0x34] sm:$0x1]
      %v2306 = vld [vmem:[%s2121 + $0x38] sm:$0xf]
      %v2307 = vld [vmem:[%s2121 + $0x3c] sm:$0x1]
      %v2309 = vshrl.u32 %v2292, 16
      %v2311 = vrot.slane %v2309, 4
      %v2312 = vshll.u32 %v2292, 16
      %v2314 = vrot.slane %v2312, 5
      %v2315 = vor.u32 %v2311, %v2314
      %v2316 = vrot.slane %v2315, 4
      %v2318 = vshll.u32 %v2293, 16
      %v2320 = vrot.slane %v2318, 5
      %v2321 = vsel %vm850, %v2316, %v2320
      %v2323 = vshrl.u32 %v2294, 16
      %v2325 = vrot.slane %v2323, 4
      %v2326 = vshll.u32 %v2294, 16
      %v2328 = vrot.slane %v2326, 5
      %v2329 = vor.u32 %v2325, %v2328
      %v2330 = vrot.slane %v2329, 4
      %v2332 = vshll.u32 %v2295, 16
      %v2334 = vrot.slane %v2332, 5
      %v2335 = vsel %vm850, %v2330, %v2334
      %v2337 = vshrl.u32 %v2296, 16
      %v2339 = vrot.slane %v2337, 4
      %v2340 = vshll.u32 %v2296, 16
      %v2342 = vrot.slane %v2340, 5
      %v2343 = vor.u32 %v2339, %v2342
      %v2344 = vrot.slane %v2343, 4
      %v2346 = vshll.u32 %v2297, 16
      %v2348 = vrot.slane %v2346, 5
      %v2349 = vsel %vm850, %v2344, %v2348
      %v2351 = vshrl.u32 %v2298, 16
      %v2353 = vrot.slane %v2351, 4
      %v2354 = vshll.u32 %v2298, 16
      %v2356 = vrot.slane %v2354, 5
      %v2357 = vor.u32 %v2353, %v2356
      %v2358 = vrot.slane %v2357, 4
      %v2360 = vshll.u32 %v2299, 16
      %v2362 = vrot.slane %v2360, 5
      %v2363 = vsel %vm850, %v2358, %v2362
      %v2365 = vshrl.u32 %v2300, 16
      %v2367 = vrot.slane %v2365, 4
      %v2368 = vshll.u32 %v2300, 16
      %v2370 = vrot.slane %v2368, 5
      %v2371 = vor.u32 %v2367, %v2370
      %v2372 = vrot.slane %v2371, 4
      %v2374 = vshll.u32 %v2301, 16
      %v2376 = vrot.slane %v2374, 5
      %v2377 = vsel %vm850, %v2372, %v2376
      %v2379 = vshrl.u32 %v2302, 16
      %v2381 = vrot.slane %v2379, 4
      %v2382 = vshll.u32 %v2302, 16
      %v2384 = vrot.slane %v2382, 5
      %v2385 = vor.u32 %v2381, %v2384
      %v2386 = vrot.slane %v2385, 4
      %v2388 = vshll.u32 %v2303, 16
      %v2390 = vrot.slane %v2388, 5
      %v2391 = vsel %vm850, %v2386, %v2390
      %v2393 = vshrl.u32 %v2304, 16
      %v2395 = vrot.slane %v2393, 4
      %v2396 = vshll.u32 %v2304, 16
      %v2398 = vrot.slane %v2396, 5
      %v2399 = vor.u32 %v2395, %v2398
      %v2400 = vrot.slane %v2399, 4
      %v2402 = vshll.u32 %v2305, 16
      %v2404 = vrot.slane %v2402, 5
      %v2405 = vsel %vm850, %v2400, %v2404
      %v2407 = vshrl.u32 %v2306, 16
      %v2409 = vrot.slane %v2407, 4
      %v2410 = vshll.u32 %v2306, 16
      %v2412 = vrot.slane %v2410, 5
      %v2413 = vor.u32 %v2409, %v2412
      %v2414 = vrot.slane %v2413, 4
      %v2416 = vshll.u32 %v2307, 16
      %v2418 = vrot.slane %v2416, 5
      %v2419 = vsel %vm850, %v2414, %v2418
      %s2420 = scalar_lea.vmem %s5, 448
      %v2421 = vld [vmem:[%s2420] sm:$0xf]
      %v2422 = vld [vmem:[%s2420 + $0x4] sm:$0xf]
      %v2423 = vld [vmem:[%s2420 + $0x8] sm:$0xf]
      %v2424 = vld [vmem:[%s2420 + $0xc] sm:$0xf]
      %v2425 = vld [vmem:[%s2420 + $0x10] sm:$0xf]
      %v2426 = vld [vmem:[%s2420 + $0x14] sm:$0xf]
      %v2427 = vld [vmem:[%s2420 + $0x18] sm:$0xf]
      %v2428 = vld [vmem:[%s2420 + $0x1c] sm:$0xf]
      %v2429 = vld [vmem:[%s2420 + $0x20] sm:$0xf]
      %v2430 = vld [vmem:[%s2420 + $0x24] sm:$0xf]
      %v2431 = vld [vmem:[%s2420 + $0x28] sm:$0xf]
      %v2432 = vld [vmem:[%s2420 + $0x2c] sm:$0xf]
      %v2433 = vld [vmem:[%s2420 + $0x30] sm:$0xf]
      %v2434 = vld [vmem:[%s2420 + $0x34] sm:$0xf]
      %v2435 = vld [vmem:[%s2420 + $0x38] sm:$0xf]
      %v2436 = vld [vmem:[%s2420 + $0x3c] sm:$0xf]
      %v2437 = vunpack.c.l.b16 %v2321
      %v2438 = vunpack.c.l.b16 %v2335
      %v2439 = vunpack.c.l.b16 %v2349
      %v2440 = vunpack.c.l.b16 %v2363
      %v2441 = vunpack.c.l.b16 %v2377
      %v2442 = vunpack.c.l.b16 %v2391
      %v2443 = vunpack.c.l.b16 %v2405
      %v2444 = vunpack.c.l.b16 %v2419
      %v2445 = vpack.c.b16 %v2438, %v2437
      %v2446 = vpack.c.b16 %v2440, %v2439
      %v2447 = vpack.c.b16 %v2442, %v2441
      %v2448 = vpack.c.b16 %v2444, %v2443
      %v2469 = vunpack.c.l.b16 %v2421
      %v2470 = vunpack.c.l.b16 %v2422
      %v2471 = vunpack.c.l.b16 %v2423
      %v2472 = vunpack.c.l.b16 %v2424
      %v2473 = vunpack.c.l.b16 %v2425
      %v2474 = vunpack.c.l.b16 %v2426
      %v2475 = vunpack.c.l.b16 %v2427
      %v2476 = vunpack.c.l.b16 %v2428
      %v2477 = vunpack.c.l.b16 %v2429
      %v2478 = vunpack.c.l.b16 %v2430
      %v2479 = vunpack.c.l.b16 %v2431
      %v2480 = vunpack.c.l.b16 %v2432
      %v2481 = vunpack.c.l.b16 %v2433
      %v2482 = vunpack.c.l.b16 %v2434
      %v2483 = vunpack.c.l.b16 %v2435
      %v2484 = vunpack.c.l.b16 %v2436
      %v2485 = vpack.c.b16 %v2470, %v2469
      %v2486 = vpack.c.b16 %v2472, %v2471
      %v2487 = vpack.c.b16 %v2474, %v2473
      %v2488 = vpack.c.b16 %v2476, %v2475
      %v2489 = vpack.c.b16 %v2478, %v2477
      %v2490 = vpack.c.b16 %v2480, %v2479
      %v2491 = vpack.c.b16 %v2482, %v2481
      %v2492 = vpack.c.b16 %v2484, %v2483
      %2501 = vmatprep.subr.bf16.mxu0 0
      %2502 = vmatpush1.bf16.msra.mxu0 %v2485
      %2503 = vmatprep.subr.bf16.mxu0 0
      %2504 = vmatpush1.bf16.msra.mxu0 %v2486
      %2505 = vmatprep.subr.bf16.mxu0 0
      %2506 = vmatpush1.bf16.msra.mxu0 %v2487
      %2507 = vmatprep.subr.bf16.mxu0 0
      %2508 = vmatpush1.bf16.msra.mxu0 %v2488
      %2509 = vmatprep.subr.bf16.mxu0 0
      %2510 = vmatpush1.bf16.msra.mxu0 %v2489
      %2511 = vmatprep.subr.bf16.mxu0 0
      %2512 = vmatpush1.bf16.msra.mxu0 %v2490
      %2513 = vmatprep.subr.bf16.mxu0 0
      %2514 = vmatpush1.bf16.msra.mxu0 %v2491
      %2515 = vmatprep.subr.bf16.mxu0 0
      %2516 = vmatpush1.bf16.msra.mxu0 %v2492
      %2517 = vmatprep.subr.bf16.mxu0 0
      %2518 = vmatpush1.bf16.msra.mxu0 0
      %2519 = vmatprep.subr.bf16.mxu0 0
      %2520 = vmatpush1.bf16.msra.mxu0 0
      %2521 = vmatprep.subr.bf16.mxu0 0
      %2522 = vmatpush1.bf16.msra.mxu0 0
      %2523 = vmatprep.subr.bf16.mxu0 0
      %2524 = vmatpush1.bf16.msra.mxu0 0
      %2525 = vmatprep.subr.bf16.mxu0 0
      %2526 = vmatpush1.bf16.msra.mxu0 0
      %2527 = vmatprep.subr.bf16.mxu0 0
      %2528 = vmatpush1.bf16.msra.mxu0 0
      %2529 = vmatprep.subr.bf16.mxu0 0
      %2530 = vmatpush1.bf16.msra.mxu0 0
      %2531 = vmatprep.subr.bf16.mxu0 0
      %2532 = vmatpush1.bf16.msra.mxu0 0
      %2533 = vmatprep.mubr.bf16.mxu0 0
      %2534 = vmatmul.mubr.bf16.gmra.mrb[0].mxu0 %v2445
      %v2535 = vpop.f32.mrb[0].mxu0
      %v2536 = vadd.f32 0.0, %v2535
      %v2537 = vpop.f32.mrb[0].mxu0
      %v2538 = vpop.f32.mrb[0].mxu0
      %v2539 = vadd.f32 0.0, %v2538
      %v2540 = vpop.f32.mrb[0].mxu0
      %2541 = vmatprep.mubr.bf16.mxu0 0
      %2542 = vmatmul.mubr.bf16.gmra.mrb[0].mxu0 %v2446
      %v2543 = vpop.f32.mrb[0].mxu0
      %v2544 = vadd.f32 0.0, %v2543
      %v2545 = vpop.f32.mrb[0].mxu0
      %v2546 = vpop.f32.mrb[0].mxu0
      %v2547 = vadd.f32 0.0, %v2546
      %v2548 = vpop.f32.mrb[0].mxu0
      %2549 = vmatprep.mubr.bf16.mxu0 0
      %2550 = vmatmul.mubr.bf16.gmra.mrb[0].mxu0 %v2447
      %v2551 = vpop.f32.mrb[0].mxu0
      %v2552 = vadd.f32 0.0, %v2551
      %v2553 = vpop.f32.mrb[0].mxu0
      %v2554 = vpop.f32.mrb[0].mxu0
      %v2555 = vadd.f32 0.0, %v2554
      %v2556 = vpop.f32.mrb[0].mxu0
      %2557 = vmatprep.mubr.bf16.mxu0 0
      %2558 = vmatmul.mubr.bf16.gmra.mrb[0].mxu0 %v2448
      %v2559 = vpop.f32.mrb[0].mxu0
      %v2560 = vadd.f32 0.0, %v2559
      %v2561 = vpop.f32.mrb[0].mxu0
      %v2562 = vpop.f32.mrb[0].mxu0
      %v2563 = vadd.f32 0.0, %v2562
      %v2564 = vpop.f32.mrb[0].mxu0
      %2565 = vdwg.mxu0
      %v2566 = vadd.f32 %v2284, %v2536
      %v2567 = vadd.f32 %v2285, %v2539
      %v2568 = vadd.f32 %v2286, %v2544
      %v2569 = vadd.f32 %v2287, %v2547
      %v2570 = vadd.f32 %v2288, %v2552
      %v2571 = vadd.f32 %v2289, %v2555
      %v2572 = vadd.f32 %v2290, %v2560
      %v2573 = vadd.f32 %v2291, %v2563
      %v2574 = vld [vmem:[%s2121] sm:$0xe]
      %v2575 = vld [vmem:[%s2121 + $0x8] sm:$0xe]
      %v2576 = vld [vmem:[%s2121 + $0x10] sm:$0xe]
      %v2577 = vld [vmem:[%s2121 + $0x18] sm:$0xe]
      %v2578 = vld [vmem:[%s2121 + $0x20] sm:$0xe]
      %v2579 = vld [vmem:[%s2121 + $0x28] sm:$0xe]
      %v2580 = vld [vmem:[%s2121 + $0x30] sm:$0xe]
      %v2581 = vld [vmem:[%s2121 + $0x38] sm:$0xe]
      %v2598 = vrot.slane %v2574, 5
      %v2599 = vrot.slane %v2598, 4
      %v2600 = vrot.slane %v2293, 5
      %v2601 = vsel %vm1272, %v2599, %v2600
      %v2602 = vrot.slane %v2575, 5
      %v2603 = vrot.slane %v2602, 4
      %v2604 = vrot.slane %v2295, 5
      %v2605 = vsel %vm1272, %v2603, %v2604
      %v2606 = vrot.slane %v2576, 5
      %v2607 = vrot.slane %v2606, 4
      %v2608 = vrot.slane %v2297, 5
      %v2609 = vsel %vm1272, %v2607, %v2608
      %v2610 = vrot.slane %v2577, 5
      %v2611 = vrot.slane %v2610, 4
      %v2612 = vrot.slane %v2299, 5
      %v2613 = vsel %vm1272, %v2611, %v2612
      %v2614 = vrot.slane %v2578, 5
      %v2615 = vrot.slane %v2614, 4
      %v2616 = vrot.slane %v2301, 5
      %v2617 = vsel %vm1272, %v2615, %v2616
      %v2618 = vrot.slane %v2579, 5
      %v2619 = vrot.slane %v2618, 4
      %v2620 = vrot.slane %v2303, 5
      %v2621 = vsel %vm1272, %v2619, %v2620
      %v2622 = vrot.slane %v2580, 5
      %v2623 = vrot.slane %v2622, 4
      %v2624 = vrot.slane %v2305, 5
      %v2625 = vsel %vm1272, %v2623, %v2624
      %v2626 = vrot.slane %v2581, 5
      %v2627 = vrot.slane %v2626, 4
      %v2628 = vrot.slane %v2307, 5
      %v2629 = vsel %vm1272, %v2627, %v2628
      %s2630 = scalar_lea.vmem %s5, 512
      %v2631 = vld [vmem:[%s2630] sm:$0xf]
      %v2632 = vld [vmem:[%s2630 + $0x4] sm:$0xf]
      %v2633 = vld [vmem:[%s2630 + $0x8] sm:$0xf]
      %v2634 = vld [vmem:[%s2630 + $0xc] sm:$0xf]
      %v2635 = vld [vmem:[%s2630 + $0x10] sm:$0xf]
      %v2636 = vld [vmem:[%s2630 + $0x14] sm:$0xf]
      %v2637 = vld [vmem:[%s2630 + $0x18] sm:$0xf]
      %v2638 = vld [vmem:[%s2630 + $0x1c] sm:$0xf]
      %v2639 = vld [vmem:[%s2630 + $0x20] sm:$0xf]
      %v2640 = vld [vmem:[%s2630 + $0x24] sm:$0xf]
      %v2641 = vld [vmem:[%s2630 + $0x28] sm:$0xf]
      %v2642 = vld [vmem:[%s2630 + $0x2c] sm:$0xf]
      %v2643 = vld [vmem:[%s2630 + $0x30] sm:$0xf]
      %v2644 = vld [vmem:[%s2630 + $0x34] sm:$0xf]
      %v2645 = vld [vmem:[%s2630 + $0x38] sm:$0xf]
      %v2646 = vld [vmem:[%s2630 + $0x3c] sm:$0xf]
      %v2647 = vunpack.c.l.b16 %v2601
      %v2648 = vunpack.c.l.b16 %v2605
      %v2649 = vunpack.c.l.b16 %v2609
      %v2650 = vunpack.c.l.b16 %v2613
      %v2651 = vunpack.c.l.b16 %v2617
      %v2652 = vunpack.c.l.b16 %v2621
      %v2653 = vunpack.c.l.b16 %v2625
      %v2654 = vunpack.c.l.b16 %v2629
      %v2655 = vpack.c.b16 %v2648, %v2647
      %v2656 = vpack.c.b16 %v2650, %v2649
      %v2657 = vpack.c.b16 %v2652, %v2651
      %v2658 = vpack.c.b16 %v2654, %v2653
      %v2679 = vunpack.c.l.b16 %v2631
      %v2680 = vunpack.c.l.b16 %v2632
      %v2681 = vunpack.c.l.b16 %v2633
      %v2682 = vunpack.c.l.b16 %v2634
      %v2683 = vunpack.c.l.b16 %v2635
      %v2684 = vunpack.c.l.b16 %v2636
      %v2685 = vunpack.c.l.b16 %v2637
      %v2686 = vunpack.c.l.b16 %v2638
      %v2687 = vunpack.c.l.b16 %v2639
      %v2688 = vunpack.c.l.b16 %v2640
      %v2689 = vunpack.c.l.b16 %v2641
      %v2690 = vunpack.c.l.b16 %v2642
      %v2691 = vunpack.c.l.b16 %v2643
      %v2692 = vunpack.c.l.b16 %v2644
      %v2693 = vunpack.c.l.b16 %v2645
      %v2694 = vunpack.c.l.b16 %v2646
      %v2695 = vpack.c.b16 %v2680, %v2679
      %v2696 = vpack.c.b16 %v2682, %v2681
      %v2697 = vpack.c.b16 %v2684, %v2683
      %v2698 = vpack.c.b16 %v2686, %v2685
      %v2699 = vpack.c.b16 %v2688, %v2687
      %v2700 = vpack.c.b16 %v2690, %v2689
      %v2701 = vpack.c.b16 %v2692, %v2691
      %v2702 = vpack.c.b16 %v2694, %v2693
      %2711 = vmatprep.subr.bf16.mxu0 0
      %2712 = vmatpush1.bf16.msra.mxu0 %v2695
      %2713 = vmatprep.subr.bf16.mxu0 0
      %2714 = vmatpush1.bf16.msra.mxu0 %v2696
      %2715 = vmatprep.subr.bf16.mxu0 0
      %2716 = vmatpush1.bf16.msra.mxu0 %v2697
      %2717 = vmatprep.subr.bf16.mxu0 0
      %2718 = vmatpush1.bf16.msra.mxu0 %v2698
      %2719 = vmatprep.subr.bf16.mxu0 0
      %2720 = vmatpush1.bf16.msra.mxu0 %v2699
      %2721 = vmatprep.subr.bf16.mxu0 0
      %2722 = vmatpush1.bf16.msra.mxu0 %v2700
      %2723 = vmatprep.subr.bf16.mxu0 0
      %2724 = vmatpush1.bf16.msra.mxu0 %v2701
      %2725 = vmatprep.subr.bf16.mxu0 0
      %2726 = vmatpush1.bf16.msra.mxu0 %v2702
      %2727 = vmatprep.subr.bf16.mxu0 0
      %2728 = vmatpush1.bf16.msra.mxu0 0
      %2729 = vmatprep.subr.bf16.mxu0 0
      %2730 = vmatpush1.bf16.msra.mxu0 0
      %2731 = vmatprep.subr.bf16.mxu0 0
      %2732 = vmatpush1.bf16.msra.mxu0 0
      %2733 = vmatprep.subr.bf16.mxu0 0
      %2734 = vmatpush1.bf16.msra.mxu0 0
      %2735 = vmatprep.subr.bf16.mxu0 0
      %2736 = vmatpush1.bf16.msra.mxu0 0
      %2737 = vmatprep.subr.bf16.mxu0 0
      %2738 = vmatpush1.bf16.msra.mxu0 0
      %2739 = vmatprep.subr.bf16.mxu0 0
      %2740 = vmatpush1.bf16.msra.mxu0 0
      %2741 = vmatprep.subr.bf16.mxu0 0
      %2742 = vmatpush1.bf16.msra.mxu0 0
      %2743 = vmatprep.mubr.bf16.mxu0 0
      %2744 = vmatmul.mubr.bf16.gmra.mrb[0].mxu0 %v2655
      %v2745 = vpop.f32.mrb[0].mxu0
      %v2746 = vadd.f32 0.0, %v2745
      %v2747 = vpop.f32.mrb[0].mxu0
      %v2748 = vpop.f32.mrb[0].mxu0
      %v2749 = vadd.f32 0.0, %v2748
      %v2750 = vpop.f32.mrb[0].mxu0
      %2751 = vmatprep.mubr.bf16.mxu0 0
      %2752 = vmatmul.mubr.bf16.gmra.mrb[0].mxu0 %v2656
      %v2753 = vpop.f32.mrb[0].mxu0
      %v2754 = vadd.f32 0.0, %v2753
      %v2755 = vpop.f32.mrb[0].mxu0
      %v2756 = vpop.f32.mrb[0].mxu0
      %v2757 = vadd.f32 0.0, %v2756
      %v2758 = vpop.f32.mrb[0].mxu0
      %2759 = vmatprep.mubr.bf16.mxu0 0
      %2760 = vmatmul.mubr.bf16.gmra.mrb[0].mxu0 %v2657
      %v2761 = vpop.f32.mrb[0].mxu0
      %v2762 = vadd.f32 0.0, %v2761
      %v2763 = vpop.f32.mrb[0].mxu0
      %v2764 = vpop.f32.mrb[0].mxu0
      %v2765 = vadd.f32 0.0, %v2764
      %v2766 = vpop.f32.mrb[0].mxu0
      %2767 = vmatprep.mubr.bf16.mxu0 0
      %2768 = vmatmul.mubr.bf16.gmra.mrb[0].mxu0 %v2658
      %v2769 = vpop.f32.mrb[0].mxu0
      %v2770 = vadd.f32 0.0, %v2769
      %v2771 = vpop.f32.mrb[0].mxu0
      %v2772 = vpop.f32.mrb[0].mxu0
      %v2773 = vadd.f32 0.0, %v2772
      %v2774 = vpop.f32.mrb[0].mxu0
      %2775 = vdwg.mxu0
      %v2776 = vadd.f32 %v2566, %v2746
      %v2777 = vadd.f32 %v2567, %v2749
      %v2778 = vadd.f32 %v2568, %v2754
      %v2779 = vadd.f32 %v2569, %v2757
      %v2780 = vadd.f32 %v2570, %v2762
      %v2781 = vadd.f32 %v2571, %v2765
      %v2782 = vadd.f32 %v2572, %v2770
      %v2783 = vadd.f32 %v2573, %v2773
      %v2784 = vld [vmem:[%s6] sm:$0x1]
      %v2786 = vlaneseq
      %v2787 = vshrl.u32 %v2786, 7
      %v2788 = vsub.s32 0, %v2787
      %v2789 = vrot.slane %v2784, %v2788
      %v2791 = vadd.f32 %v2776, %v2789
      %v2792 = vadd.f32 %v2777, %v2789
      %v2793 = vadd.f32 %v2778, %v2789
      %v2794 = vadd.f32 %v2779, %v2789
      %v2795 = vadd.f32 %v2780, %v2789
      %v2796 = vadd.f32 %v2781, %v2789
      %v2797 = vadd.f32 %v2782, %v2789
      %v2798 = vadd.f32 %v2783, %v2789
      %vm2799 = vcmp.ge.f32.partialorder %v2791, 0.0
      %vm2800 = vcmp.ge.f32.partialorder %v2792, 0.0
      %vm2801 = vcmp.ge.f32.partialorder %v2793, 0.0
      %vm2802 = vcmp.ge.f32.partialorder %v2794, 0.0
      %vm2803 = vcmp.ge.f32.partialorder %v2795, 0.0
      %vm2804 = vcmp.ge.f32.partialorder %v2796, 0.0
      %vm2805 = vcmp.ge.f32.partialorder %v2797, 0.0
      %vm2806 = vcmp.ge.f32.partialorder %v2798, 0.0
      %v2807 = vmul.f32 %v2791, 0.01
      %v2808 = vmul.f32 %v2792, 0.01
      %v2809 = vmul.f32 %v2793, 0.01
      %v2810 = vmul.f32 %v2794, 0.01
      %v2811 = vmul.f32 %v2795, 0.01
      %v2812 = vmul.f32 %v2796, 0.01
      %v2813 = vmul.f32 %v2797, 0.01
      %v2814 = vmul.f32 %v2798, 0.01
      %v2815 = vsel %vm2799, %v2791, %v2807
      %v2816 = vsel %vm2800, %v2792, %v2808
      %v2817 = vsel %vm2801, %v2793, %v2809
      %v2818 = vsel %vm2802, %v2794, %v2810
      %v2819 = vsel %vm2803, %v2795, %v2811
      %v2820 = vsel %vm2804, %v2796, %v2812
      %v2821 = vsel %vm2805, %v2797, %v2813
      %v2822 = vsel %vm2806, %v2798, %v2814
      %v2823 = vpack.c.bf16 %v2815, %v2815
      %v2824 = vpack.c.bf16 %v2816, %v2816
      %v2825 = vpack.c.bf16 %v2817, %v2817
      %v2826 = vpack.c.bf16 %v2818, %v2818
      %v2827 = vpack.c.bf16 %v2819, %v2819
      %v2828 = vpack.c.bf16 %v2820, %v2820
      %v2829 = vpack.c.bf16 %v2821, %v2821
      %v2830 = vpack.c.bf16 %v2822, %v2822
      %2831 = vst [vmem:[%s298] sm:$0xf] %v2823
      %2832 = vst [vmem:[%s298 + $0x4] sm:$0xf] %v2824
      %2833 = vst [vmem:[%s298 + $0x8] sm:$0xf] %v2825
      %2834 = vst [vmem:[%s298 + $0xc] sm:$0xf] %v2826
      %2835 = vst [vmem:[%s298 + $0x10] sm:$0xf] %v2827
      %2836 = vst [vmem:[%s298 + $0x14] sm:$0xf] %v2828
      %2837 = vst [vmem:[%s298 + $0x18] sm:$0xf] %v2829
      %2838 = vst [vmem:[%s298 + $0x1c] sm:$0xf] %v2830
      %p2839 = scmp.lt.s32.totalorder %s18, 1
      %s2840 = scalar_select %p2839, %s18, 1
      %s2841 = smul.addr %s2840, 8
      %s2842 = smul.addr %s2841, 4
      %s2843 = scalar_lea.vmem %s7, %s2842
      // Predicated region
      $region49: #{cfi_forward.6} parent=47 // pred_check
        %p2844 = pneg %p193
      $region50: #{cfi_forward.6} parent=47 // pred_check_branch
        %2846 = sbr.rel (%p2844) target = $region52
      $region51: #{cfi_forward.6} parent=47 // pred_region
        _
      $region52: #{cfi_forward.6} parent=47 // pred_fallthru
        _
    $region48: #{cfi_forward.6} parent=5 // pred_fallthru
      _
    %p2847 = scmp.le.s32.totalorder 2, %s13
    // Predicated region
    $region53: #{cfi_forward.6} parent=5 // pred_check
      %p2848 = pneg %p2847
    $region54: #{cfi_forward.6} parent=5 // pred_check_branch
      %2850 = sbr.rel (%p2848) target = $region56
    $region55: #{cfi_forward.6} parent=5 // pred_region
      %s2851 = ssub.s32 %s13, 2
      // Predicated region
      $region57: #{cfi_forward.6} parent=55 // pred_check
        %p2852 = pneg %p199
      $region58: #{cfi_forward.6} parent=55 // pred_check_branch
        %2854 = sbr.rel (%p2852) target = $region60
      $region59: #{cfi_forward.6} parent=55 // pred_region
        %p2855 = scmp.lt.s32.totalorder %s19, 1
        %s2856 = scalar_select %p2855, %s19, 1
        %s2857 = smul.addr %s2856, 8
        %s2858 = smul.addr %s2857, 4
        %s2859 = scalar_lea.vmem %s7, %s2858
      $region60: #{cfi_forward.6} parent=55 // pred_fallthru
        _
    $region56: #{cfi_forward.6} parent=5 // pred_fallthru
      _
  $region6: #{cfi_forward.6} parent=0 // loop_footer
    %s17 = sadd.s32 1, %s13
  $region7: #{cfi_forward.6} parent=0 // loop_footer_branch
    %12 = sbr.rel target = $region3
  $region8: #{cfi_forward.6} parent=0 // loop_exit
    _

// kernel: cfi_forward.7
$region0: #{cfi_forward.7}
  #allocation0 [shape = 'u32[]', space=smem, size = 0x4, offset = 0x4, fixed_abs, tag = 'smem constant byte address 0x4 - core index']
  #allocation1 [shape = 'u32[144,128]{1,0:T(1,128)}', space=vmem, size = 0x12000, scoped, tag = 'internal scratch']
  #allocation2 [shape = 'bf16[10,10,128]{2,1,0:T(8,128)(2,1)}', space=vmem, size = 0xa000, scoped, tag = 'scratch operand']
  %s0 = inlined_call_operand.vmem [shape: bf16[2,8,8,128], index: 0, kind: input, shape index: {}]
  %s1 = inlined_call_operand.vmem [shape: bf16[2,8,8,128], index: 1, kind: input, shape index: {}]
  %s2 = inlined_call_operand.vmem [shape: bf16[2,8,8,128], index: 2, kind: input, shape index: {}]
  %s3 = inlined_call_operand.vmem [shape: bf16[128,128], index: 3, kind: input, shape index: {}]
  %s4 = inlined_call_operand.vmem [shape: bf16[128,128], index: 4, kind: input, shape index: {}]
  %s5 = inlined_call_operand.vmem [shape: bf16[128,128], index: 5, kind: input, shape index: {}]
  %s6 = inlined_call_operand.vmem [shape: f32[1,128], index: 6, kind: input, shape index: {}]
  %s7 = inlined_call_operand.vmem [shape: bf16[9,128,128], index: 7, kind: input, shape index: {}]
  %s8 = inlined_call_operand.vmem [shape: f32[1,128], index: 8, kind: input, shape index: {}]
  %s9 = inlined_call_operand.hbm [shape: f32[2,8,8,128], index: 9, kind: output, shape index: {}]
  %s10 = sld [smem:[#allocation0]]
  $region69: #{cfi_forward.7} parent=0
    _
  %s12 = ssub.s32 1, %s10
  %s13 = scalar_select 0, %s12, %s10
  $region1: #{cfi_forward.7} parent=0
    #allocation3 [shape = 'u8[65536]{0}', space=vmem, size = 0x10000, scoped, tag = 'output window, operand 0']
    #allocation4 [shape = 's32[2]{0}', space=sflag, size = 0x8, scoped, tag = 'scoped memory for cfi_forward.7']
    %14 = vsyncpa [#allocation4], 0
    %s15 = scalar_lea.sflag [#allocation4], 1
    %16 = vsyncpa %s15, 0
    loop: start=0, step=1, limit=4
    $region2: #{cfi_forward.7} parent=1 // loop_pre_header
      _
    $region3: #{cfi_forward.7} parent=1 // loop_header
      %s18 = sphi 0, %s22
      %p19 = scmp.ge.s32.totalorder %s18, 4
      %s28 = sphi 0, %s30
      %s31 = sphi 0, %s28
      %s32 = sphi 0, %s31
      %s48 = sphi 0, %s32
      %s54 = sphi 0, %s56
      %s57 = sphi 0, %s54
      %s58 = sphi 0, %s57
      %s74 = sphi 0, %s58
      %s80 = sphi 0, %s82
      %s83 = sphi 0, %s80
      %s84 = sphi 0, %s83
      %s100 = sphi 0, %s84
      %s104 = sphi 0, %s104
      %s106 = sphi 0, %s104
      %s107 = sphi 0, %s106
      %s121 = sphi 0, %s107
      %s125 = sphi 0, %s125
      %s127 = sphi 0, %s125
      %s128 = sphi 0, %s127
      %s142 = sphi 0, %s128
      %s146 = sphi 0, %s146
      %s148 = sphi 0, %s146
      %s149 = sphi 0, %s148
      %s163 = sphi 0, %s149
      %s167 = sphi 0, %s167
      %s169 = sphi 0, %s167
      %s170 = sphi 0, %s169
      %s184 = sphi 0, %s170
      %s188 = sphi 0, %s188
      %s190 = sphi 0, %s188
      %s191 = sphi 0, %s190
      %s205 = sphi 0, %s191
      %s209 = sphi 0, %s209
      %s211 = sphi 0, %s209
      %s212 = sphi 0, %s211
      %s226 = sphi 0, %s212
      %s232 = sphi 0, %s234
      %s235 = sphi 0, %s232
      %s236 = sphi 0, %s235
      %s252 = sphi 0, %s236
    $region4: #{cfi_forward.7} parent=1 // loop_header_branch
      %21 = sbr.rel (%p19) target = $region8
    $region5: #{cfi_forward.7} parent=1 // loop_body
      %s23 = ssub.s32 %s18, 1
      %s24 = ssub.s32 %s18, 2
      %s25 = sadd.s32 %s18, 1
      %s26 = ssub.s32 %s18, %s25
      %p27 = scmp.eq.s32.totalorder %s26, 0
      %s29 = sadd.s32 %s28, 1
      %s30 = scalar_select %p27, %s28, %s29
      %p33 = pneg %p27
      %p34 = scmp.eq.s32.totalorder %s18, 1
      %p35 = por %p33, %p34
      %p36 = scmp.ne.s32.totalorder %s28, %s31
      %p37 = scmp.eq.s32.totalorder %s18, 0
      %p38 = por %p36, %p37
      %p39 = scmp.ne.s32.totalorder %s28, %s31
      %p40 = scmp.eq.s32.totalorder %s23, 1
      %p41 = por %p39, %p40
      %p42 = scmp.ne.s32.totalorder %s31, %s32
      %p43 = scmp.eq.s32.totalorder %s23, 0
      %p44 = por %p42, %p43
      %p45 = scmp.ne.s32.totalorder %s31, %s32
      %p46 = scmp.eq.s32.totalorder %s24, 1
      %p47 = por %p45, %p46
      %p49 = scmp.ne.s32.totalorder %s32, %s48
      %p50 = scmp.eq.s32.totalorder %s24, 0
      %p51 = por %p49, %p50
      %s52 = ssub.s32 %s18, %s25
      %p53 = scmp.eq.s32.totalorder %s52, 0
      %s55 = sadd.s32 %s54, 1
      %s56 = scalar_select %p53, %s54, %s55
      %p59 = pneg %p53
      %p60 = scmp.eq.s32.totalorder %s18, 1
      %p61 = por %p59, %p60
      %p62 = scmp.ne.s32.totalorder %s54, %s57
      %p63 = scmp.eq.s32.totalorder %s18, 0
      %p64 = por %p62, %p63
      %p65 = scmp.ne.s32.totalorder %s54, %s57
      %p66 = scmp.eq.s32.totalorder %s23, 1
      %p67 = por %p65, %p66
      %p68 = scmp.ne.s32.totalorder %s57, %s58
      %p69 = scmp.eq.s32.totalorder %s23, 0
      %p70 = por %p68, %p69
      %p71 = scmp.ne.s32.totalorder %s57, %s58
      %p72 = scmp.eq.s32.totalorder %s24, 1
      %p73 = por %p71, %p72
      %p75 = scmp.ne.s32.totalorder %s58, %s74
      %p76 = scmp.eq.s32.totalorder %s24, 0
      %p77 = por %p75, %p76
      %s78 = ssub.s32 %s18, %s25
      %p79 = scmp.eq.s32.totalorder %s78, 0
      %s81 = sadd.s32 %s80, 1
      %s82 = scalar_select %p79, %s80, %s81
      %p85 = pneg %p79
      %p86 = scmp.eq.s32.totalorder %s18, 1
      %p87 = por %p85, %p86
      %p88 = scmp.ne.s32.totalorder %s80, %s83
      %p89 = scmp.eq.s32.totalorder %s18, 0
      %p90 = por %p88, %p89
      %p91 = scmp.ne.s32.totalorder %s80, %s83
      %p92 = scmp.eq.s32.totalorder %s23, 1
      %p93 = por %p91, %p92
      %p94 = scmp.ne.s32.totalorder %s83, %s84
      %p95 = scmp.eq.s32.totalorder %s23, 0
      %p96 = por %p94, %p95
      %p97 = scmp.ne.s32.totalorder %s83, %s84
      %p98 = scmp.eq.s32.totalorder %s24, 1
      %p99 = por %p97, %p98
      %p101 = scmp.ne.s32.totalorder %s84, %s100
      %p102 = scmp.eq.s32.totalorder %s24, 0
      %p103 = por %p101, %p102
      %s105 = sadd.s32 %s104, 1
      %p108 = scmp.eq.s32.totalorder %s18, 1
      %p109 = scmp.ne.s32.totalorder %s104, %s106
      %p110 = scmp.eq.s32.totalorder %s18, 0
      %p111 = por %p109, %p110
      %p112 = scmp.ne.s32.totalorder %s104, %s106
      %p113 = scmp.eq.s32.totalorder %s23, 1
      %p114 = por %p112, %p113
      %p115 = scmp.ne.s32.totalorder %s106, %s107
      %p116 = scmp.eq.s32.totalorder %s23, 0
      %p117 = por %p115, %p116
      %p118 = scmp.ne.s32.totalorder %s106, %s107
      %p119 = scmp.eq.s32.totalorder %s24, 1
      %p120 = por %p118, %p119
      %p122 = scmp.ne.s32.totalorder %s107, %s121
      %p123 = scmp.eq.s32.totalorder %s24, 0
      %p124 = por %p122, %p123
      %s126 = sadd.s32 %s125, 1
      %p129 = scmp.eq.s32.totalorder %s18, 1
      %p130 = scmp.ne.s32.totalorder %s125, %s127
      %p131 = scmp.eq.s32.totalorder %s18, 0
      %p132 = por %p130, %p131
      %p133 = scmp.ne.s32.totalorder %s125, %s127
      %p134 = scmp.eq.s32.totalorder %s23, 1
      %p135 = por %p133, %p134
      %p136 = scmp.ne.s32.totalorder %s127, %s128
      %p137 = scmp.eq.s32.totalorder %s23, 0
      %p138 = por %p136, %p137
      %p139 = scmp.ne.s32.totalorder %s127, %s128
      %p140 = scmp.eq.s32.totalorder %s24, 1
      %p141 = por %p139, %p140
      %p143 = scmp.ne.s32.totalorder %s128, %s142
      %p144 = scmp.eq.s32.totalorder %s24, 0
      %p145 = por %p143, %p144
      %s147 = sadd.s32 %s146, 1
      %p150 = scmp.eq.s32.totalorder %s18, 1
      %p151 = scmp.ne.s32.totalorder %s146, %s148
      %p152 = scmp.eq.s32.totalorder %s18, 0
      %p153 = por %p151, %p152
      %p154 = scmp.ne.s32.totalorder %s146, %s148
      %p155 = scmp.eq.s32.totalorder %s23, 1
      %p156 = por %p154, %p155
      %p157 = scmp.ne.s32.totalorder %s148, %s149
      %p158 = scmp.eq.s32.totalorder %s23, 0
      %p159 = por %p157, %p158
      %p160 = scmp.ne.s32.totalorder %s148, %s149
      %p161 = scmp.eq.s32.totalorder %s24, 1
      %p162 = por %p160, %p161
      %p164 = scmp.ne.s32.totalorder %s149, %s163
      %p165 = scmp.eq.s32.totalorder %s24, 0
      %p166 = por %p164, %p165
      %s168 = sadd.s32 %s167, 1
      %p171 = scmp.eq.s32.totalorder %s18, 1
      %p172 = scmp.ne.s32.totalorder %s167, %s169
      %p173 = scmp.eq.s32.totalorder %s18, 0
      %p174 = por %p172, %p173
      %p175 = scmp.ne.s32.totalorder %s167, %s169
      %p176 = scmp.eq.s32.totalorder %s23, 1
      %p177 = por %p175, %p176
      %p178 = scmp.ne.s32.totalorder %s169, %s170
      %p179 = scmp.eq.s32.totalorder %s23, 0
      %p180 = por %p178, %p179
      %p181 = scmp.ne.s32.totalorder %s169, %s170
      %p182 = scmp.eq.s32.totalorder %s24, 1
      %p183 = por %p181, %p182
      %p185 = scmp.ne.s32.totalorder %s170, %s184
      %p186 = scmp.eq.s32.totalorder %s24, 0
      %p187 = por %p185, %p186
      %s189 = sadd.s32 %s188, 1
      %p192 = scmp.eq.s32.totalorder %s18, 1
      %p193 = scmp.ne.s32.totalorder %s188, %s190
      %p194 = scmp.eq.s32.totalorder %s18, 0
      %p195 = por %p193, %p194
      %p196 = scmp.ne.s32.totalorder %s188, %s190
      %p197 = scmp.eq.s32.totalorder %s23, 1
      %p198 = por %p196, %p197
      %p199 = scmp.ne.s32.totalorder %s190, %s191
      %p200 = scmp.eq.s32.totalorder %s23, 0
      %p201 = por %p199, %p200
      %p202 = scmp.ne.s32.totalorder %s190, %s191
      %p203 = scmp.eq.s32.totalorder %s24, 1
      %p204 = por %p202, %p203
      %p206 = scmp.ne.s32.totalorder %s191, %s205
      %p207 = scmp.eq.s32.totalorder %s24, 0
      %p208 = por %p206, %p207
      %s210 = sadd.s32 %s209, 1
      %p213 = scmp.eq.s32.totalorder %s18, 1
      %p214 = scmp.ne.s32.totalorder %s209, %s211
      %p215 = scmp.eq.s32.totalorder %s18, 0
      %p216 = por %p214, %p215
      %p217 = scmp.ne.s32.totalorder %s209, %s211
      %p218 = scmp.eq.s32.totalorder %s23, 1
      %p219 = por %p217, %p218
      %p220 = scmp.ne.s32.totalorder %s211, %s212
      %p221 = scmp.eq.s32.totalorder %s23, 0
      %p222 = por %p220, %p221
      %p223 = scmp.ne.s32.totalorder %s211, %s212
      %p224 = scmp.eq.s32.totalorder %s24, 1
      %p225 = por %p223, %p224
      %p227 = scmp.ne.s32.totalorder %s212, %s226
      %p228 = scmp.eq.s32.totalorder %s24, 0
      %p229 = por %p227, %p228
      %s230 = ssub.s32 %s18, %s25
      %p231 = scmp.eq.s32.totalorder %s230, 0
      %s233 = sadd.s32 %s232, 1
      %s234 = scalar_select %p231, %s232, %s233
      %p237 = pneg %p231
      %p238 = scmp.eq.s32.totalorder %s18, 1
      %p239 = por %p237, %p238
      %p240 = scmp.ne.s32.totalorder %s232, %s235
      %p241 = scmp.eq.s32.totalorder %s18, 0
      %p242 = por %p240, %p241
      %p243 = scmp.ne.s32.totalorder %s232, %s235
      %p244 = scmp.eq.s32.totalorder %s23, 1
      %p245 = por %p243, %p244
      %p246 = scmp.ne.s32.totalorder %s235, %s236
      %p247 = scmp.eq.s32.totalorder %s23, 0
      %p248 = por %p246, %p247
      %p249 = scmp.ne.s32.totalorder %s235, %s236
      %p250 = scmp.eq.s32.totalorder %s24, 1
      %p251 = por %p249, %p250
      %p253 = scmp.ne.s32.totalorder %s236, %s252
      %p254 = scmp.eq.s32.totalorder %s24, 0
      %p255 = por %p253, %p254
      %p256 = scmp.le.s32.totalorder 1, %s18
      %p257 = scmp.lt.s32.totalorder %s18, 3
      %p258 = pnand %p256, %p257
      %p259 = pneg %p258
      // Predicated region
      $region9: #{cfi_forward.7} parent=5 // pred_check
        _
      $region10: #{cfi_forward.7} parent=5 // pred_check_branch
        %261 = sbr.rel (%p258) target = $region12
      $region11: #{cfi_forward.7} parent=5 // pred_region
        %s262 = ssub.s32 %s18, 1
        // Predicated region
        $region13: #{cfi_forward.7} parent=11 // pred_check
          %p263 = pneg %p117
        $region14: #{cfi_forward.7} parent=11 // pred_check_branch
          %265 = sbr.rel (%p263) target = $region16
        $region15: #{cfi_forward.7} parent=11 // pred_region
          _
        $region16: #{cfi_forward.7} parent=11 // pred_fallthru
          _
        // Predicated region
        $region17: #{cfi_forward.7} parent=11 // pred_check
          %p266 = pneg %p138
        $region18: #{cfi_forward.7} parent=11 // pred_check_branch
          %268 = sbr.rel (%p266) target = $region20
        $region19: #{cfi_forward.7} parent=11 // pred_region
          _
        $region20: #{cfi_forward.7} parent=11 // pred_fallthru
          _
        // Predicated region
        $region21: #{cfi_forward.7} parent=11 // pred_check
          %p269 = pneg %p159
        $region22: #{cfi_forward.7} parent=11 // pred_check_branch
          %271 = sbr.rel (%p269) target = $region24
        $region23: #{cfi_forward.7} parent=11 // pred_region
          _
        $region24: #{cfi_forward.7} parent=11 // pred_fallthru
          _
        // Predicated region
        $region25: #{cfi_forward.7} parent=11 // pred_check
          %p272 = pneg %p180
        $region26: #{cfi_forward.7} parent=11 // pred_check_branch
          %274 = sbr.rel (%p272) target = $region28
        $region27: #{cfi_forward.7} parent=11 // pred_region
          _
        $region28: #{cfi_forward.7} parent=11 // pred_fallthru
          _
        // Predicated region
        $region29: #{cfi_forward.7} parent=11 // pred_check
          %p275 = pneg %p201
        $region30: #{cfi_forward.7} parent=11 // pred_check_branch
          %277 = sbr.rel (%p275) target = $region32
        $region31: #{cfi_forward.7} parent=11 // pred_region
          _
        $region32: #{cfi_forward.7} parent=11 // pred_fallthru
          _
        // Predicated region
        $region33: #{cfi_forward.7} parent=11 // pred_check
          %p278 = pneg %p222
        $region34: #{cfi_forward.7} parent=11 // pred_check_branch
          %280 = sbr.rel (%p278) target = $region36
        $region35: #{cfi_forward.7} parent=11 // pred_region
          _
        $region36: #{cfi_forward.7} parent=11 // pred_fallthru
          _
      $region12: #{cfi_forward.7} parent=5 // pred_fallthru
        _
      %p281 = scmp.lt.s32.totalorder %s18, 2
      // Predicated region
      $region37: #{cfi_forward.7} parent=5 // pred_check
        %p282 = pneg %p281
      $region38: #{cfi_forward.7} parent=5 // pred_check_branch
        %284 = sbr.rel (%p282) target = $region40
      $region39: #{cfi_forward.7} parent=5 // pred_region
        // Predicated region
        $region41: #{cfi_forward.7} parent=39 // pred_check
          %p285 = pneg %p38
        $region42: #{cfi_forward.7} parent=39 // pred_check_branch
          %287 = sbr.rel (%p285) target = $region44
        $region43: #{cfi_forward.7} parent=39 // pred_region
          %p288 = scmp.lt.s32.totalorder %s18, 1
          %s289 = scalar_select %p288, %s18, 1
          %s290 = smul.addr %s289, 8
          %s291 = smul.addr %s290, 4
          %s292 = scalar_lea.vmem %s0, %s291
        $region44: #{cfi_forward.7} parent=39 // pred_fallthru
          _
        // Predicated region
        $region45: #{cfi_forward.7} parent=39 // pred_check
          %p293 = pneg %p64
        $region46: #{cfi_forward.7} parent=39 // pred_check_branch
          %295 = sbr.rel (%p293) target = $region48
        $region47: #{cfi_forward.7} parent=39 // pred_region
          %p296 = scmp.lt.s32.totalorder %s18, 1
          %s297 = scalar_select %p296, %s18, 1
          %s298 = smul.addr %s297, 8
          %s299 = smul.addr %s298, 4
          %s300 = scalar_lea.vmem %s1, %s299
        $region48: #{cfi_forward.7} parent=39 // pred_fallthru
          _
        // Predicated region
        $region49: #{cfi_forward.7} parent=39 // pred_check
          %p301 = pneg %p90
        $region50: #{cfi_forward.7} parent=39 // pred_check_branch
          %303 = sbr.rel (%p301) target = $region52
        $region51: #{cfi_forward.7} parent=39 // pred_region
          %p304 = scmp.lt.s32.totalorder %s18, 1
          %s305 = scalar_select %p304, %s18, 1
          %s306 = smul.addr %s305, 8
          %s307 = smul.addr %s306, 4
          %s308 = scalar_lea.vmem %s2, %s307
        $region52: #{cfi_forward.7} parent=39 // pred_fallthru
          _
      $region40: #{cfi_forward.7} parent=5 // pred_fallthru
        _
      %p309 = scmp.le.s32.totalorder 1, %s18
      %p310 = scmp.lt.s32.totalorder %s18, 3
      %p311 = pnand %p309, %p310
      %p312 = pneg %p311
      // Predicated region
      $region53: #{cfi_forward.7} parent=5 // pred_check
        _
      $region54: #{cfi_forward.7} parent=5 // pred_check_branch
        %314 = sbr.rel (%p311) target = $region56
      $region55: #{cfi_forward.7} parent=5 // pred_region
        %s315 = ssub.s32 %s18, 1
        %p316 = scmp.lt.s32.totalorder %s23, 1
        %s317 = scalar_select %p316, %s23, 1
        %s318 = smul.addr %s317, 8
        %s319 = smul.addr %s318, 4
        %s320 = scalar_lea.vmem %s0, %s319
        %p321 = pneg %p44
        %p322 = pneg %p41
        %p323 = scmp.lt.s32.totalorder %s23, 1
        %s324 = scalar_select %p323, %s23, 1
        %s325 = smul.addr %s324, 8
        %s326 = smul.addr %s325, 4
        %s327 = scalar_lea.vmem %s1, %s326
        %p328 = pneg %p70
        %p329 = pneg %p67
        %p330 = scmp.lt.s32.totalorder %s23, 1
        %s331 = scalar_select %p330, %s23, 1
        %s332 = smul.addr %s331, 8
        %s333 = smul.addr %s332, 4
        %s334 = scalar_lea.vmem %s2, %s333
        %p335 = pneg %p96
        %p336 = pneg %p93
        %p337 = pneg %p117
        %p338 = pneg %p114
        %p339 = pneg %p138
        %p340 = pneg %p135
        %p341 = pneg %p159
        %p342 = pneg %p156
        %p343 = pneg %p180
        %p344 = pneg %p177
        %p345 = pneg %p201
        %p346 = pneg %p198
        %p347 = pneg %p222
        %p348 = pneg %p219
        %p349 = pneg %p248
        %p350 = pneg %p245
        %s351 = sand.u32 %s235, 1
        %s352 = scalar_lea.sflag [#allocation4], %s351
        %s353 = sand.u32 %s235, 1
        %s354 = smul.addr %s353, 64
        %s355 = scalar_lea.vmem [#allocation3], %s354
        %p356 = scmp.lt.s32.totalorder %s23, 1
        %s357 = scalar_select %p356, %s23, 1
        %s358 = smul.addr %s357, 8
        %s359 = smul.addr %s358, 4
        %s360 = scalar_lea.vmem %s0, %s359
        %p361 = scmp.lt.s32.totalorder %s23, 1
        %s362 = scalar_select %p361, %s23, 1
        %s363 = smul.addr %s362, 8
        %s364 = smul.addr %s363, 4
        %s365 = scalar_lea.vmem %s1, %s364
        %p366 = scmp.lt.s32.totalorder %s23, 1
        %s367 = scalar_select %p366, %s23, 1
        %s368 = smul.addr %s367, 8
        %s369 = smul.addr %s368, 4
        %s370 = scalar_lea.vmem %s2, %s369
        %v372 = vld [vmem:[%s360] sm:$0xf]
        %v373 = vld [vmem:[%s360 + $0x4] sm:$0xf]
        %v374 = vld [vmem:[%s360 + $0x8] sm:$0xf]
        %v375 = vld [vmem:[%s360 + $0xc] sm:$0xf]
        %v376 = vld [vmem:[%s360 + $0x10] sm:$0xf]
        %v377 = vld [vmem:[%s360 + $0x14] sm:$0xf]
        %v378 = vld [vmem:[%s360 + $0x18] sm:$0xf]
        %v379 = vld [vmem:[%s360 + $0x1c] sm:$0xf]
        %v380 = vld [vmem:[%s3] sm:$0xf]
        %v381 = vld [vmem:[%s3 + $0x4] sm:$0xf]
        %v382 = vld [vmem:[%s3 + $0x8] sm:$0xf]
        %v383 = vld [vmem:[%s3 + $0xc] sm:$0xf]
        %v384 = vld [vmem:[%s3 + $0x10] sm:$0xf]
        %v385 = vld [vmem:[%s3 + $0x14] sm:$0xf]
        %v386 = vld [vmem:[%s3 + $0x18] sm:$0xf]
        %v387 = vld [vmem:[%s3 + $0x1c] sm:$0xf]
        %v388 = vld [vmem:[%s3 + $0x20] sm:$0xf]
        %v389 = vld [vmem:[%s3 + $0x24] sm:$0xf]
        %v390 = vld [vmem:[%s3 + $0x28] sm:$0xf]
        %v391 = vld [vmem:[%s3 + $0x2c] sm:$0xf]
        %v392 = vld [vmem:[%s3 + $0x30] sm:$0xf]
        %v393 = vld [vmem:[%s3 + $0x34] sm:$0xf]
        %v394 = vld [vmem:[%s3 + $0x38] sm:$0xf]
        %v395 = vld [vmem:[%s3 + $0x3c] sm:$0xf]
        %v396 = vld [vmem:[%s365] sm:$0xf]
        %v397 = vld [vmem:[%s365 + $0x4] sm:$0xf]
        %v398 = vld [vmem:[%s365 + $0x8] sm:$0xf]
        %v399 = vld [vmem:[%s365 + $0xc] sm:$0xf]
        %v400 = vld [vmem:[%s365 + $0x10] sm:$0xf]
        %v401 = vld [vmem:[%s365 + $0x14] sm:$0xf]
        %v402 = vld [vmem:[%s365 + $0x18] sm:$0xf]
        %v403 = vld [vmem:[%s365 + $0x1c] sm:$0xf]
        %v404 = vld [vmem:[%s4] sm:$0xf]
        %v405 = vld [vmem:[%s4 + $0x4] sm:$0xf]
        %v406 = vld [vmem:[%s4 + $0x8] sm:$0xf]
        %v407 = vld [vmem:[%s4 + $0xc] sm:$0xf]
        %v408 = vld [vmem:[%s4 + $0x10] sm:$0xf]
        %v409 = vld [vmem:[%s4 + $0x14] sm:$0xf]
        %v410 = vld [vmem:[%s4 + $0x18] sm:$0xf]
        %v411 = vld [vmem:[%s4 + $0x1c] sm:$0xf]
        %v412 = vld [vmem:[%s4 + $0x20] sm:$0xf]
        %v413 = vld [vmem:[%s4 + $0x24] sm:$0xf]
        %v414 = vld [vmem:[%s4 + $0x28] sm:$0xf]
        %v415 = vld [vmem:[%s4 + $0x2c] sm:$0xf]
        %v416 = vld [vmem:[%s4 + $0x30] sm:$0xf]
        %v417 = vld [vmem:[%s4 + $0x34] sm:$0xf]
        %v418 = vld [vmem:[%s4 + $0x38] sm:$0xf]
        %v419 = vld [vmem:[%s4 + $0x3c] sm:$0xf]
        %v428 = vunpack.c.l.b16 %v396
        %v429 = vunpack.c.l.b16 %v397
        %v430 = vunpack.c.l.b16 %v398
        %v431 = vunpack.c.l.b16 %v399
        %v432 = vunpack.c.l.b16 %v400
        %v433 = vunpack.c.l.b16 %v401
        %v434 = vunpack.c.l.b16 %v402
        %v435 = vunpack.c.l.b16 %v403
        %v436 = vpack.c.b16 %v429, %v428
        %v437 = vpack.c.b16 %v431, %v430
        %v438 = vpack.c.b16 %v433, %v432
        %v439 = vpack.c.b16 %v435, %v434
        %v460 = vunpack.c.l.b16 %v404
        %v461 = vunpack.c.l.b16 %v405
        %v462 = vunpack.c.l.b16 %v406
        %v463 = vunpack.c.l.b16 %v407
        %v464 = vunpack.c.l.b16 %v408
        %v465 = vunpack.c.l.b16 %v409
        %v466 = vunpack.c.l.b16 %v410
        %v467 = vunpack.c.l.b16 %v411
        %v468 = vunpack.c.l.b16 %v412
        %v469 = vunpack.c.l.b16 %v413
        %v470 = vunpack.c.l.b16 %v414
        %v471 = vunpack.c.l.b16 %v415
        %v472 = vunpack.c.l.b16 %v416
        %v473 = vunpack.c.l.b16 %v417
        %v474 = vunpack.c.l.b16 %v418
        %v475 = vunpack.c.l.b16 %v419
        %v476 = vpack.c.b16 %v461, %v460
        %v477 = vpack.c.b16 %v463, %v462
        %v478 = vpack.c.b16 %v465, %v464
        %v479 = vpack.c.b16 %v467, %v466
        %v480 = vpack.c.b16 %v469, %v468
        %v481 = vpack.c.b16 %v471, %v470
        %v482 = vpack.c.b16 %v473, %v472
        %v483 = vpack.c.b16 %v475, %v474
        %492 = vmatprep.subr.bf16.mxu0 0
        %493 = vmatpush1.bf16.msra.mxu0 %v476
        %494 = vmatprep.subr.bf16.mxu0 0
        %495 = vmatpush1.bf16.msra.mxu0 %v477
        %496 = vmatprep.subr.bf16.mxu0 0
        %497 = vmatpush1.bf16.msra.mxu0 %v478
        %498 = vmatprep.subr.bf16.mxu0 0
        %499 = vmatpush1.bf16.msra.mxu0 %v479
        %500 = vmatprep.subr.bf16.mxu0 0
        %501 = vmatpush1.bf16.msra.mxu0 %v480
        %502 = vmatprep.subr.bf16.mxu0 0
        %503 = vmatpush1.bf16.msra.mxu0 %v481
        %504 = vmatprep.subr.bf16.mxu0 0
        %505 = vmatpush1.bf16.msra.mxu0 %v482
        %506 = vmatprep.subr.bf16.mxu0 0
        %507 = vmatpush1.bf16.msra.mxu0 %v483
        %508 = vmatprep.subr.bf16.mxu0 0
        %509 = vmatpush1.bf16.msra.mxu0 0
        %510 = vmatprep.subr.bf16.mxu0 0
        %511 = vmatpush1.bf16.msra.mxu0 0
        %512 = vmatprep.subr.bf16.mxu0 0
        %513 = vmatpush1.bf16.msra.mxu0 0
        %514 = vmatprep.subr.bf16.mxu0 0
        %515 = vmatpush1.bf16.msra.mxu0 0
        %516 = vmatprep.subr.bf16.mxu0 0
        %517 = vmatpush1.bf16.msra.mxu0 0
        %518 = vmatprep.subr.bf16.mxu0 0
        %519 = vmatpush1.bf16.msra.mxu0 0
        %520 = vmatprep.subr.bf16.mxu0 0
        %521 = vmatpush1.bf16.msra.mxu0 0
        %522 = vmatprep.subr.bf16.mxu0 0
        %523 = vmatpush1.bf16.msra.mxu0 0
        %524 = vmatprep.mubr.bf16.mxu0 0
        %525 = vmatmul.mubr.bf16.gmra.mrb[0].mxu0 %v436
        %v526 = vpop.f32.mrb[0].mxu0
        %v527 = vadd.f32 0.0, %v526
        %v528 = vpop.f32.mrb[0].mxu0
        %v529 = vpop.f32.mrb[0].mxu0
        %v530 = vadd.f32 0.0, %v529
        %v531 = vpop.f32.mrb[0].mxu0
        %532 = vmatprep.mubr.bf16.mxu0 0
        %533 = vmatmul.mubr.bf16.gmra.mrb[0].mxu0 %v437
        %v534 = vpop.f32.mrb[0].mxu0
        %v535 = vadd.f32 0.0, %v534
        %v536 = vpop.f32.mrb[0].mxu0
        %v537 = vpop.f32.mrb[0].mxu0
        %v538 = vadd.f32 0.0, %v537
        %v539 = vpop.f32.mrb[0].mxu0
        %540 = vmatprep.mubr.bf16.mxu0 0
        %541 = vmatmul.mubr.bf16.gmra.mrb[0].mxu0 %v438
        %v542 = vpop.f32.mrb[0].mxu0
        %v543 = vadd.f32 0.0, %v542
        %v544 = vpop.f32.mrb[0].mxu0
        %v545 = vpop.f32.mrb[0].mxu0
        %v546 = vadd.f32 0.0, %v545
        %v547 = vpop.f32.mrb[0].mxu0
        %548 = vmatprep.mubr.bf16.mxu0 0
        %549 = vmatmul.mubr.bf16.gmra.mrb[0].mxu0 %v439
        %v550 = vpop.f32.mrb[0].mxu0
        %v551 = vadd.f32 0.0, %v550
        %v552 = vpop.f32.mrb[0].mxu0
        %v553 = vpop.f32.mrb[0].mxu0
        %v554 = vadd.f32 0.0, %v553
        %v555 = vpop.f32.mrb[0].mxu0
        %556 = vdwg.mxu0
        %v565 = vunpack.c.l.b16 %v372
        %v566 = vunpack.c.l.b16 %v373
        %v567 = vunpack.c.l.b16 %v374
        %v568 = vunpack.c.l.b16 %v375
        %v569 = vunpack.c.l.b16 %v376
        %v570 = vunpack.c.l.b16 %v377
        %v571 = vunpack.c.l.b16 %v378
        %v572 = vunpack.c.l.b16 %v379
        %v573 = vpack.c.b16 %v566, %v565
        %v574 = vpack.c.b16 %v568, %v567
        %v575 = vpack.c.b16 %v570, %v569
        %v576 = vpack.c.b16 %v572, %v571
        %v597 = vunpack.c.l.b16 %v380
        %v598 = vunpack.c.l.b16 %v381
        %v599 = vunpack.c.l.b16 %v382
        %v600 = vunpack.c.l.b16 %v383
        %v601 = vunpack.c.l.b16 %v384
        %v602 = vunpack.c.l.b16 %v385
        %v603 = vunpack.c.l.b16 %v386
        %v604 = vunpack.c.l.b16 %v387
        %v605 = vunpack.c.l.b16 %v388
        %v606 = vunpack.c.l.b16 %v389
        %v607 = vunpack.c.l.b16 %v390
        %v608 = vunpack.c.l.b16 %v391
        %v609 = vunpack.c.l.b16 %v392
        %v610 = vunpack.c.l.b16 %v393
        %v611 = vunpack.c.l.b16 %v394
        %v612 = vunpack.c.l.b16 %v395
        %v613 = vpack.c.b16 %v598, %v597
        %v614 = vpack.c.b16 %v600, %v599
        %v615 = vpack.c.b16 %v602, %v601
        %v616 = vpack.c.b16 %v604, %v603
        %v617 = vpack.c.b16 %v606, %v605
        %v618 = vpack.c.b16 %v608, %v607
        %v619 = vpack.c.b16 %v610, %v609
        %v620 = vpack.c.b16 %v612, %v611
        %629 = vmatprep.subr.bf16.mxu0 0
        %630 = vmatpush1.bf16.msra.mxu0 %v613
        %631 = vmatprep.subr.bf16.mxu0 0
        %632 = vmatpush1.bf16.msra.mxu0 %v614
        %633 = vmatprep.subr.bf16.mxu0 0
        %634 = vmatpush1.bf16.msra.mxu0 %v615
        %635 = vmatprep.subr.bf16.mxu0 0
        %636 = vmatpush1.bf16.msra.mxu0 %v616
        %637 = vmatprep.subr.bf16.mxu0 0
        %638 = vmatpush1.bf16.msra.mxu0 %v617
        %639 = vmatprep.subr.bf16.mxu0 0
        %640 = vmatpush1.bf16.msra.mxu0 %v618
        %641 = vmatprep.subr.bf16.mxu0 0
        %642 = vmatpush1.bf16.msra.mxu0 %v619
        %643 = vmatprep.subr.bf16.mxu0 0
        %644 = vmatpush1.bf16.msra.mxu0 %v620
        %645 = vmatprep.subr.bf16.mxu0 0
        %646 = vmatpush1.bf16.msra.mxu0 0
        %647 = vmatprep.subr.bf16.mxu0 0
        %648 = vmatpush1.bf16.msra.mxu0 0
        %649 = vmatprep.subr.bf16.mxu0 0
        %650 = vmatpush1.bf16.msra.mxu0 0
        %651 = vmatprep.subr.bf16.mxu0 0
        %652 = vmatpush1.bf16.msra.mxu0 0
        %653 = vmatprep.subr.bf16.mxu0 0
        %654 = vmatpush1.bf16.msra.mxu0 0
        %655 = vmatprep.subr.bf16.mxu0 0
        %656 = vmatpush1.bf16.msra.mxu0 0
        %657 = vmatprep.subr.bf16.mxu0 0
        %658 = vmatpush1.bf16.msra.mxu0 0
        %659 = vmatprep.subr.bf16.mxu0 0
        %660 = vmatpush1.bf16.msra.mxu0 0
        %661 = vmatprep.mubr.bf16.mxu0 0
        %662 = vmatmul.mubr.bf16.gmra.mrb[0].mxu0 %v573
        %v663 = vpop.f32.mrb[0].mxu0
        %v664 = vadd.f32 %v527, %v663
        %v665 = vpop.f32.mrb[0].mxu0
        %v666 = vpop.f32.mrb[0].mxu0
        %v667 = vadd.f32 %v530, %v666
        %v668 = vpop.f32.mrb[0].mxu0
        %669 = vmatprep.mubr.bf16.mxu0 0
        %670 = vmatmul.mubr.bf16.gmra.mrb[0].mxu0 %v574
        %v671 = vpop.f32.mrb[0].mxu0
        %v672 = vadd.f32 %v535, %v671
        %v673 = vpop.f32.mrb[0].mxu0
        %v674 = vpop.f32.mrb[0].mxu0
        %v675 = vadd.f32 %v538, %v674
        %v676 = vpop.f32.mrb[0].mxu0
        %677 = vmatprep.mubr.bf16.mxu0 0
        %678 = vmatmul.mubr.bf16.gmra.mrb[0].mxu0 %v575
        %v679 = vpop.f32.mrb[0].mxu0
        %v680 = vadd.f32 %v543, %v679
        %v681 = vpop.f32.mrb[0].mxu0
        %v682 = vpop.f32.mrb[0].mxu0
        %v683 = vadd.f32 %v546, %v682
        %v684 = vpop.f32.mrb[0].mxu0
        %685 = vmatprep.mubr.bf16.mxu0 0
        %686 = vmatmul.mubr.bf16.gmra.mrb[0].mxu0 %v576
        %v687 = vpop.f32.mrb[0].mxu0
        %v688 = vadd.f32 %v551, %v687
        %v689 = vpop.f32.mrb[0].mxu0
        %v690 = vpop.f32.mrb[0].mxu0
        %v691 = vadd.f32 %v554, %v690
        %v692 = vpop.f32.mrb[0].mxu0
        %693 = vdwg.mxu0
        %v694 = vld [vmem:[%s370] sm:$0xf]
        %v695 = vld [vmem:[%s370 + $0x4] sm:$0xf]
        %v696 = vld [vmem:[%s370 + $0x8] sm:$0xf]
        %v697 = vld [vmem:[%s370 + $0xc] sm:$0xf]
        %v698 = vld [vmem:[%s370 + $0x10] sm:$0xf]
        %v699 = vld [vmem:[%s370 + $0x14] sm:$0xf]
        %v700 = vld [vmem:[%s370 + $0x18] sm:$0xf]
        %v701 = vld [vmem:[%s370 + $0x1c] sm:$0xf]
        %v702 = vld [vmem:[%s5] sm:$0xf]
        %v703 = vld [vmem:[%s5 + $0x4] sm:$0xf]
        %v704 = vld [vmem:[%s5 + $0x8] sm:$0xf]
        %v705 = vld [vmem:[%s5 + $0xc] sm:$0xf]
        %v706 = vld [vmem:[%s5 + $0x10] sm:$0xf]
        %v707 = vld [vmem:[%s5 + $0x14] sm:$0xf]
        %v708 = vld [vmem:[%s5 + $0x18] sm:$0xf]
        %v709 = vld [vmem:[%s5 + $0x1c] sm:$0xf]
        %v710 = vld [vmem:[%s5 + $0x20] sm:$0xf]
        %v711 = vld [vmem:[%s5 + $0x24] sm:$0xf]
        %v712 = vld [vmem:[%s5 + $0x28] sm:$0xf]
        %v713 = vld [vmem:[%s5 + $0x2c] sm:$0xf]
        %v714 = vld [vmem:[%s5 + $0x30] sm:$0xf]
        %v715 = vld [vmem:[%s5 + $0x34] sm:$0xf]
        %v716 = vld [vmem:[%s5 + $0x38] sm:$0xf]
        %v717 = vld [vmem:[%s5 + $0x3c] sm:$0xf]
        %v726 = vunpack.c.l.b16 %v694
        %v727 = vunpack.c.l.b16 %v695
        %v728 = vunpack.c.l.b16 %v696
        %v729 = vunpack.c.l.b16 %v697
        %v730 = vunpack.c.l.b16 %v698
        %v731 = vunpack.c.l.b16 %v699
        %v732 = vunpack.c.l.b16 %v700
        %v733 = vunpack.c.l.b16 %v701
        %v734 = vpack.c.b16 %v727, %v726
        %v735 = vpack.c.b16 %v729, %v728
        %v736 = vpack.c.b16 %v731, %v730
        %v737 = vpack.c.b16 %v733, %v732
        %v758 = vunpack.c.l.b16 %v702
        %v759 = vunpack.c.l.b16 %v703
        %v760 = vunpack.c.l.b16 %v704
        %v761 = vunpack.c.l.b16 %v705
        %v762 = vunpack.c.l.b16 %v706
        %v763 = vunpack.c.l.b16 %v707
        %v764 = vunpack.c.l.b16 %v708
        %v765 = vunpack.c.l.b16 %v709
        %v766 = vunpack.c.l.b16 %v710
        %v767 = vunpack.c.l.b16 %v711
        %v768 = vunpack.c.l.b16 %v712
        %v769 = vunpack.c.l.b16 %v713
        %v770 = vunpack.c.l.b16 %v714
        %v771 = vunpack.c.l.b16 %v715
        %v772 = vunpack.c.l.b16 %v716
        %v773 = vunpack.c.l.b16 %v717
        %v774 = vpack.c.b16 %v759, %v758
        %v775 = vpack.c.b16 %v761, %v760
        %v776 = vpack.c.b16 %v763, %v762
        %v777 = vpack.c.b16 %v765, %v764
        %v778 = vpack.c.b16 %v767, %v766
        %v779 = vpack.c.b16 %v769, %v768
        %v780 = vpack.c.b16 %v771, %v770
        %v781 = vpack.c.b16 %v773, %v772
        %790 = vmatprep.subr.bf16.mxu0 0
        %791 = vmatpush1.bf16.msra.mxu0 %v774
        %792 = vmatprep.subr.bf16.mxu0 0
        %793 = vmatpush1.bf16.msra.mxu0 %v775
        %794 = vmatprep.subr.bf16.mxu0 0
        %795 = vmatpush1.bf16.msra.mxu0 %v776
        %796 = vmatprep.subr.bf16.mxu0 0
        %797 = vmatpush1.bf16.msra.mxu0 %v777
        %798 = vmatprep.subr.bf16.mxu0 0
        %799 = vmatpush1.bf16.msra.mxu0 %v778
        %800 = vmatprep.subr.bf16.mxu0 0
        %801 = vmatpush1.bf16.msra.mxu0 %v779
        %802 = vmatprep.subr.bf16.mxu0 0
        %803 = vmatpush1.bf16.msra.mxu0 %v780
        %804 = vmatprep.subr.bf16.mxu0 0
        %805 = vmatpush1.bf16.msra.mxu0 %v781
        %806 = vmatprep.subr.bf16.mxu0 0
        %807 = vmatpush1.bf16.msra.mxu0 0
        %808 = vmatprep.subr.bf16.mxu0 0
        %809 = vmatpush1.bf16.msra.mxu0 0
        %810 = vmatprep.subr.bf16.mxu0 0
        %811 = vmatpush1.bf16.msra.mxu0 0
        %812 = vmatprep.subr.bf16.mxu0 0
        %813 = vmatpush1.bf16.msra.mxu0 0
        %814 = vmatprep.subr.bf16.mxu0 0
        %815 = vmatpush1.bf16.msra.mxu0 0
        %816 = vmatprep.subr.bf16.mxu0 0
        %817 = vmatpush1.bf16.msra.mxu0 0
        %818 = vmatprep.subr.bf16.mxu0 0
        %819 = vmatpush1.bf16.msra.mxu0 0
        %820 = vmatprep.subr.bf16.mxu0 0
        %821 = vmatpush1.bf16.msra.mxu0 0
        %822 = vmatprep.mubr.bf16.mxu0 0
        %823 = vmatmul.mubr.bf16.gmra.mrb[0].mxu0 %v734
        %v824 = vpop.f32.mrb[0].mxu0
        %v825 = vadd.f32 0.0, %v824
        %v826 = vpop.f32.mrb[0].mxu0
        %v827 = vpop.f32.mrb[0].mxu0
        %v828 = vadd.f32 0.0, %v827
        %v829 = vpop.f32.mrb[0].mxu0
        %830 = vmatprep.mubr.bf16.mxu0 0
        %831 = vmatmul.mubr.bf16.gmra.mrb[0].mxu0 %v735
        %v832 = vpop.f32.mrb[0].mxu0
        %v833 = vadd.f32 0.0, %v832
        %v834 = vpop.f32.mrb[0].mxu0
        %v835 = vpop.f32.mrb[0].mxu0
        %v836 = vadd.f32 0.0, %v835
        %v837 = vpop.f32.mrb[0].mxu0
        %838 = vmatprep.mubr.bf16.mxu0 0
        %839 = vmatmul.mubr.bf16.gmra.mrb[0].mxu0 %v736
        %v840 = vpop.f32.mrb[0].mxu0
        %v841 = vadd.f32 0.0, %v840
        %v842 = vpop.f32.mrb[0].mxu0
        %v843 = vpop.f32.mrb[0].mxu0
        %v844 = vadd.f32 0.0, %v843
        %v845 = vpop.f32.mrb[0].mxu0
        %846 = vmatprep.mubr.bf16.mxu0 0
        %847 = vmatmul.mubr.bf16.gmra.mrb[0].mxu0 %v737
        %v848 = vpop.f32.mrb[0].mxu0
        %v849 = vadd.f32 0.0, %v848
        %v850 = vpop.f32.mrb[0].mxu0
        %v851 = vpop.f32.mrb[0].mxu0
        %v852 = vadd.f32 0.0, %v851
        %v853 = vpop.f32.mrb[0].mxu0
        %854 = vdwg.mxu0
        %v855 = vadd.f32 %v664, %v825
        %v856 = vadd.f32 %v667, %v828
        %v857 = vadd.f32 %v672, %v833
        %v858 = vadd.f32 %v675, %v836
        %v859 = vadd.f32 %v680, %v841
        %v860 = vadd.f32 %v683, %v844
        %v861 = vadd.f32 %v688, %v849
        %v862 = vadd.f32 %v691, %v852
        %v863 = vld [vmem:[%s6] sm:$0x1]
        %v865 = vlaneseq
        %v866 = vshrl.u32 %v865, 7
        %v867 = vsub.s32 0, %v866
        %v868 = vrot.slane %v863, %v867
        %v870 = vadd.f32 %v855, %v868
        %v871 = vadd.f32 %v856, %v868
        %v872 = vadd.f32 %v857, %v868
        %v873 = vadd.f32 %v858, %v868
        %v874 = vadd.f32 %v859, %v868
        %v875 = vadd.f32 %v860, %v868
        %v876 = vadd.f32 %v861, %v868
        %v877 = vadd.f32 %v862, %v868
        %v878 = vpack.c.bf16 %v871, %v870
        %v879 = vpack.c.bf16 %v873, %v872
        %v880 = vpack.c.bf16 %v875, %v874
        %v881 = vpack.c.bf16 %v877, %v876
        %882 = vst [vmem:[#allocation2] sm:$0xf] 0
        %883 = vst [vmem:[#allocation2 + $0x4] sm:$0x1] 0
        %884 = vst [vmem:[#allocation2 + $0x8] sm:$0xf] 0
        %885 = vst [vmem:[#allocation2 + $0xc] sm:$0x1] 0
        %886 = vst [vmem:[#allocation2 + $0x10] sm:$0xf] 0
        %887 = vst [vmem:[#allocation2 + $0x14] sm:$0x1] 0
        %888 = vst [vmem:[#allocation2 + $0x18] sm:$0xf] 0
        %889 = vst [vmem:[#allocation2 + $0x1c] sm:$0x1] 0
        %890 = vst [vmem:[#allocation2 + $0x20] sm:$0xf] 0
        %891 = vst [vmem:[#allocation2 + $0x24] sm:$0x1] 0
        %892 = vst [vmem:[#allocation2 + $0x28] sm:$0xf] 0
        %893 = vst [vmem:[#allocation2 + $0x2c] sm:$0x1] 0
        %894 = vst [vmem:[#allocation2 + $0x30] sm:$0xf] 0
        %895 = vst [vmem:[#allocation2 + $0x34] sm:$0x1] 0
        %896 = vst [vmem:[#allocation2 + $0x38] sm:$0xf] 0
        %897 = vst [vmem:[#allocation2 + $0x3c] sm:$0x1] 0
        %898 = vst [vmem:[#allocation2 + $0x40] sm:$0xf] 0
        %899 = vst [vmem:[#allocation2 + $0x44] sm:$0x1] 0
        %900 = vst [vmem:[#allocation2 + $0x48] sm:$0xf] 0
        %901 = vst [vmem:[#allocation2 + $0x4c] sm:$0x1] 0
        %v906 = vunpack.c.l.b16 %v878
        %v907 = vunpack.c.h.b16 %v878
        %v908 = vunpack.c.l.b16 %v879
        %v909 = vunpack.c.h.b16 %v879
        %v910 = vunpack.c.l.b16 %v880
        %v911 = vunpack.c.h.b16 %v880
        %v912 = vunpack.c.l.b16 %v881
        %v913 = vunpack.c.h.b16 %v881
        %v914 = vpack.c.b16 %v906, %v906
        %v915 = vpack.c.b16 %v907, %v907
        %v916 = vpack.c.b16 %v908, %v908
        %v917 = vpack.c.b16 %v909, %v909
        %v918 = vpack.c.b16 %v910, %v910
        %v919 = vpack.c.b16 %v911, %v911
        %v920 = vpack.c.b16 %v912, %v912
        %v921 = vpack.c.b16 %v913, %v913
        %v923 = vshrl.u32 %v914, 16
        %v925 = vrot.slane %v923, 7
        %v926 = vshll.u32 %v914, 16
        %v928 = vor.u32 %v925, %v926
        %v929 = vrot.slane %v925, 4
        %v931 = vshrl.u32 %v915, 16
        %v933 = vrot.slane %v931, 7
        %v934 = vshll.u32 %v915, 16
        %v936 = vor.u32 %v933, %v934
        %v937 = vrot.slane %v933, 4
        %v939 = vshrl.u32 %v916, 16
        %v941 = vrot.slane %v939, 7
        %v942 = vshll.u32 %v916, 16
        %v944 = vor.u32 %v941, %v942
        %v945 = vrot.slane %v941, 4
        %v947 = vshrl.u32 %v917, 16
        %v949 = vrot.slane %v947, 7
        %v950 = vshll.u32 %v917, 16
        %v952 = vor.u32 %v949, %v950
        %v953 = vrot.slane %v949, 4
        %v955 = vshrl.u32 %v918, 16
        %v957 = vrot.slane %v955, 7
        %v958 = vshll.u32 %v918, 16
        %v960 = vor.u32 %v957, %v958
        %v961 = vrot.slane %v957, 4
        %v963 = vshrl.u32 %v919, 16
        %v965 = vrot.slane %v963, 7
        %v966 = vshll.u32 %v919, 16
        %v968 = vor.u32 %v965, %v966
        %v969 = vrot.slane %v965, 4
        %v971 = vshrl.u32 %v920, 16
        %v973 = vrot.slane %v971, 7
        %v974 = vshll.u32 %v920, 16
        %v976 = vor.u32 %v973, %v974
        %v977 = vrot.slane %v973, 4
        %v979 = vshrl.u32 %v921, 16
        %v981 = vrot.slane %v979, 7
        %v982 = vshll.u32 %v921, 16
        %v984 = vor.u32 %v981, %v982
        %v985 = vrot.slane %v981, 4
        %s1002 = scalar_lea.vmem [#allocation2], 8
        %vm1003 = vcmask 1043456
        %vm1004 = vsmask.f32 7938
        %vm1005 = vmand %vm1003, %vm1004
        %v1006 = vld [vmem:[%s1002] sm:$0xf]
        %v1007 = vsel %vm1005, %v928, %v1006
        %1008 = vst [vmem:[%s1002] sm:$0xf] %v1007
        %vm1009 = vcmask 1040384
        %vm1010 = vsmask.f32 256
        %vm1011 = vmand %vm1009, %vm1010
        %v1012 = vld [vmem:[%s1002 + $0x4] sm:$0x1]
        %v1013 = vsel %vm1011, %v929, %v1012
        %1014 = vst [vmem:[%s1002 + $0x4] sm:$0x1] %v1013
        %v1015 = vld [vmem:[%s1002 + $0x8] sm:$0xf]
        %v1016 = vsel %vm1005, %v936, %v1015
        %1017 = vst [vmem:[%s1002 + $0x8] sm:$0xf] %v1016
        %v1018 = vld [vmem:[%s1002 + $0xc] sm:$0x1]
        %v1019 = vsel %vm1011, %v937, %v1018
        %1020 = vst [vmem:[%s1002 + $0xc] sm:$0x1] %v1019
        %v1021 = vld [vmem:[%s1002 + $0x10] sm:$0xf]
        %v1022 = vsel %vm1005, %v944, %v1021
        %1023 = vst [vmem:[%s1002 + $0x10] sm:$0xf] %v1022
        %v1024 = vld [vmem:[%s1002 + $0x14] sm:$0x1]
        %v1025 = vsel %vm1011, %v945, %v1024
        %1026 = vst [vmem:[%s1002 + $0x14] sm:$0x1] %v1025
        %v1027 = vld [vmem:[%s1002 + $0x18] sm:$0xf]
        %v1028 = vsel %vm1005, %v952, %v1027
        %1029 = vst [vmem:[%s1002 + $0x18] sm:$0xf] %v1028
        %v1030 = vld [vmem:[%s1002 + $0x1c] sm:$0x1]
        %v1031 = vsel %vm1011, %v953, %v1030
        %1032 = vst [vmem:[%s1002 + $0x1c] sm:$0x1] %v1031
        %v1033 = vld [vmem:[%s1002 + $0x20] sm:$0xf]
        %v1034 = vsel %vm1005, %v960, %v1033
        %1035 = vst [vmem:[%s1002 + $0x20] sm:$0xf] %v1034
        %v1036 = vld [vmem:[%s1002 + $0x24] sm:$0x1]
        %v1037 = vsel %vm1011, %v961, %v1036
        %1038 = vst [vmem:[%s1002 + $0x24] sm:$0x1] %v1037
        %v1039 = vld [vmem:[%s1002 + $0x28] sm:$0xf]
        %v1040 = vsel %vm1005, %v968, %v1039
        %1041 = vst [vmem:[%s1002 + $0x28] sm:$0xf] %v1040
        %v1042 = vld [vmem:[%s1002 + $0x2c] sm:$0x1]
        %v1043 = vsel %vm1011, %v969, %v1042
        %1044 = vst [vmem:[%s1002 + $0x2c] sm:$0x1] %v1043
        %v1045 = vld [vmem:[%s1002 + $0x30] sm:$0xf]
        %v1046 = vsel %vm1005, %v976, %v1045
        %1047 = vst [vmem:[%s1002 + $0x30] sm:$0xf] %v1046
        %v1048 = vld [vmem:[%s1002 + $0x34] sm:$0x1]
        %v1049 = vsel %vm1011, %v977, %v1048
        %1050 = vst [vmem:[%s1002 + $0x34] sm:$0x1] %v1049
        %v1051 = vld [vmem:[%s1002 + $0x38] sm:$0xf]
        %v1052 = vsel %vm1005, %v984, %v1051
        %1053 = vst [vmem:[%s1002 + $0x38] sm:$0xf] %v1052
        %v1054 = vld [vmem:[%s1002 + $0x3c] sm:$0x1]
        %v1055 = vsel %vm1011, %v985, %v1054
        %1056 = vst [vmem:[%s1002 + $0x3c] sm:$0x1] %v1055
        %v1057 = vld [vmem:[#allocation2] sm:$0xf]
        %v1058 = vld [vmem:[#allocation2 + $0x8] sm:$0xf]
        %v1059 = vld [vmem:[#allocation2 + $0x10] sm:$0xf]
        %v1060 = vld [vmem:[#allocation2 + $0x18] sm:$0xf]
        %v1061 = vld [vmem:[#allocation2 + $0x20] sm:$0xf]
        %v1062 = vld [vmem:[#allocation2 + $0x28] sm:$0xf]
        %v1063 = vld [vmem:[#allocation2 + $0x30] sm:$0xf]
        %v1064 = vld [vmem:[#allocation2 + $0x38] sm:$0xf]
        %v1065 = vld [vmem:[%s7] sm:$0xf]
        %v1066 = vld [vmem:[%s7 + $0x4] sm:$0xf]
        %v1067 = vld [vmem:[%s7 + $0x8] sm:$0xf]
        %v1068 = vld [vmem:[%s7 + $0xc] sm:$0xf]
        %v1069 = vld [vmem:[%s7 + $0x10] sm:$0xf]
        %v1070 = vld [vmem:[%s7 + $0x14] sm:$0xf]
        %v1071 = vld [vmem:[%s7 + $0x18] sm:$0xf]
        %v1072 = vld [vmem:[%s7 + $0x1c] sm:$0xf]
        %v1073 = vld [vmem:[%s7 + $0x20] sm:$0xf]
        %v1074 = vld [vmem:[%s7 + $0x24] sm:$0xf]
        %v1075 = vld [vmem:[%s7 + $0x28] sm:$0xf]
        %v1076 = vld [vmem:[%s7 + $0x2c] sm:$0xf]
        %v1077 = vld [vmem:[%s7 + $0x30] sm:$0xf]
        %v1078 = vld [vmem:[%s7 + $0x34] sm:$0xf]
        %v1079 = vld [vmem:[%s7 + $0x38] sm:$0xf]
        %v1080 = vld [vmem:[%s7 + $0x3c] sm:$0xf]
        %v1081 = vld [vmem:[#allocation2 + $0x4] sm:$0x1]
        %v1082 = vld [vmem:[#allocation2 + $0xc] sm:$0x1]
        %v1083 = vld [vmem:[#allocation2 + $0x14] sm:$0x1]
        %v1084 = vld [vmem:[#allocation2 + $0x1c] sm:$0x1]
        %v1085 = vld [vmem:[#allocation2 + $0x24] sm:$0x1]
        %v1086 = vld [vmem:[#allocation2 + $0x2c] sm:$0x1]
        %v1087 = vld [vmem:[#allocation2 + $0x34] sm:$0x1]
        %v1088 = vld [vmem:[#allocation2 + $0x3c] sm:$0x1]
        %vm1089 = vsmask.f32 3328
        %vm1090 = vsmask.f32 7440
        %vm1091 = vmor %vm1089, %vm1090
        %v1093 = vshrl.u32 %v1057, 16
        %v1095 = vrot.slane %v1093, 4
        %v1096 = vshll.u32 %v1057, 16
        %v1098 = vrot.slane %v1096, 5
        %v1099 = vor.u32 %v1095, %v1098
        %v1100 = vrot.slane %v1099, 4
        %v1102 = vshll.u32 %v1081, 16
        %v1104 = vrot.slane %v1102, 5
        %v1105 = vsel %vm1091, %v1100, %v1104
        %v1107 = vshrl.u32 %v1058, 16
        %v1109 = vrot.slane %v1107, 4
        %v1110 = vshll.u32 %v1058, 16
        %v1112 = vrot.slane %v1110, 5
        %v1113 = vor.u32 %v1109, %v1112
        %v1114 = vrot.slane %v1113, 4
        %v1116 = vshll.u32 %v1082, 16
        %v1118 = vrot.slane %v1116, 5
        %v1119 = vsel %vm1091, %v1114, %v1118
        %v1121 = vshrl.u32 %v1059, 16
        %v1123 = vrot.slane %v1121, 4
        %v1124 = vshll.u32 %v1059, 16
        %v1126 = vrot.slane %v1124, 5
        %v1127 = vor.u32 %v1123, %v1126
        %v1128 = vrot.slane %v1127, 4
        %v1130 = vshll.u32 %v1083, 16
        %v1132 = vrot.slane %v1130, 5
        %v1133 = vsel %vm1091, %v1128, %v1132
        %v1135 = vshrl.u32 %v1060, 16
        %v1137 = vrot.slane %v1135, 4
        %v1138 = vshll.u32 %v1060, 16
        %v1140 = vrot.slane %v1138, 5
        %v1141 = vor.u32 %v1137, %v1140
        %v1142 = vrot.slane %v1141, 4
        %v1144 = vshll.u32 %v1084, 16
        %v1146 = vrot.slane %v1144, 5
        %v1147 = vsel %vm1091, %v1142, %v1146
        %v1149 = vshrl.u32 %v1061, 16
        %v1151 = vrot.slane %v1149, 4
        %v1152 = vshll.u32 %v1061, 16
        %v1154 = vrot.slane %v1152, 5
        %v1155 = vor.u32 %v1151, %v1154
        %v1156 = vrot.slane %v1155, 4
        %v1158 = vshll.u32 %v1085, 16
        %v1160 = vrot.slane %v1158, 5
        %v1161 = vsel %vm1091, %v1156, %v1160
        %v1163 = vshrl.u32 %v1062, 16
        %v1165 = vrot.slane %v1163, 4
        %v1166 = vshll.u32 %v1062, 16
        %v1168 = vrot.slane %v1166, 5
        %v1169 = vor.u32 %v1165, %v1168
        %v1170 = vrot.slane %v1169, 4
        %v1172 = vshll.u32 %v1086, 16
        %v1174 = vrot.slane %v1172, 5
        %v1175 = vsel %vm1091, %v1170, %v1174
        %v1177 = vshrl.u32 %v1063, 16
        %v1179 = vrot.slane %v1177, 4
        %v1180 = vshll.u32 %v1063, 16
        %v1182 = vrot.slane %v1180, 5
        %v1183 = vor.u32 %v1179, %v1182
        %v1184 = vrot.slane %v1183, 4
        %v1186 = vshll.u32 %v1087, 16
        %v1188 = vrot.slane %v1186, 5
        %v1189 = vsel %vm1091, %v1184, %v1188
        %v1191 = vshrl.u32 %v1064, 16
        %v1193 = vrot.slane %v1191, 4
        %v1194 = vshll.u32 %v1064, 16
        %v1196 = vrot.slane %v1194, 5
        %v1197 = vor.u32 %v1193, %v1196
        %v1198 = vrot.slane %v1197, 4
        %v1200 = vshll.u32 %v1088, 16
        %v1202 = vrot.slane %v1200, 5
        %v1203 = vsel %vm1091, %v1198, %v1202
        %s1204 = scalar_lea.vmem %s7, 64
        %v1205 = vld [vmem:[%s1204] sm:$0xf]
        %v1206 = vld [vmem:[%s1204 + $0x4] sm:$0xf]
        %v1207 = vld [vmem:[%s1204 + $0x8] sm:$0xf]
        %v1208 = vld [vmem:[%s1204 + $0xc] sm:$0xf]
        %v1209 = vld [vmem:[%s1204 + $0x10] sm:$0xf]
        %v1210 = vld [vmem:[%s1204 + $0x14] sm:$0xf]
        %v1211 = vld [vmem:[%s1204 + $0x18] sm:$0xf]
        %v1212 = vld [vmem:[%s1204 + $0x1c] sm:$0xf]
        %v1213 = vld [vmem:[%s1204 + $0x20] sm:$0xf]
        %v1214 = vld [vmem:[%s1204 + $0x24] sm:$0xf]
        %v1215 = vld [vmem:[%s1204 + $0x28] sm:$0xf]
        %v1216 = vld [vmem:[%s1204 + $0x2c] sm:$0xf]
        %v1217 = vld [vmem:[%s1204 + $0x30] sm:$0xf]
        %v1218 = vld [vmem:[%s1204 + $0x34] sm:$0xf]
        %v1219 = vld [vmem:[%s1204 + $0x38] sm:$0xf]
        %v1220 = vld [vmem:[%s1204 + $0x3c] sm:$0xf]
        %v1221 = vunpack.c.l.b16 %v1105
        %v1222 = vunpack.c.l.b16 %v1119
        %v1223 = vunpack.c.l.b16 %v1133
        %v1224 = vunpack.c.l.b16 %v1147
        %v1225 = vunpack.c.l.b16 %v1161
        %v1226 = vunpack.c.l.b16 %v1175
        %v1227 = vunpack.c.l.b16 %v1189
        %v1228 = vunpack.c.l.b16 %v1203
        %v1229 = vpack.c.b16 %v1222, %v1221
        %v1230 = vpack.c.b16 %v1224, %v1223
        %v1231 = vpack.c.b16 %v1226, %v1225
        %v1232 = vpack.c.b16 %v1228, %v1227
        %v1253 = vunpack.c.l.b16 %v1205
        %v1254 = vunpack.c.l.b16 %v1206
        %v1255 = vunpack.c.l.b16 %v1207
        %v1256 = vunpack.c.l.b16 %v1208
        %v1257 = vunpack.c.l.b16 %v1209
        %v1258 = vunpack.c.l.b16 %v1210
        %v1259 = vunpack.c.l.b16 %v1211
        %v1260 = vunpack.c.l.b16 %v1212
        %v1261 = vunpack.c.l.b16 %v1213
        %v1262 = vunpack.c.l.b16 %v1214
        %v1263 = vunpack.c.l.b16 %v1215
        %v1264 = vunpack.c.l.b16 %v1216
        %v1265 = vunpack.c.l.b16 %v1217
        %v1266 = vunpack.c.l.b16 %v1218
        %v1267 = vunpack.c.l.b16 %v1219
        %v1268 = vunpack.c.l.b16 %v1220
        %v1269 = vpack.c.b16 %v1254, %v1253
        %v1270 = vpack.c.b16 %v1256, %v1255
        %v1271 = vpack.c.b16 %v1258, %v1257
        %v1272 = vpack.c.b16 %v1260, %v1259
        %v1273 = vpack.c.b16 %v1262, %v1261
        %v1274 = vpack.c.b16 %v1264, %v1263
        %v1275 = vpack.c.b16 %v1266, %v1265
        %v1276 = vpack.c.b16 %v1268, %v1267
        %1285 = vmatprep.subr.bf16.mxu0 0
        %1286 = vmatpush1.bf16.msra.mxu0 %v1269
        %1287 = vmatprep.subr.bf16.mxu0 0
        %1288 = vmatpush1.bf16.msra.mxu0 %v1270
        %1289 = vmatprep.subr.bf16.mxu0 0
        %1290 = vmatpush1.bf16.msra.mxu0 %v1271
        %1291 = vmatprep.subr.bf16.mxu0 0
        %1292 = vmatpush1.bf16.msra.mxu0 %v1272
        %1293 = vmatprep.subr.bf16.mxu0 0
        %1294 = vmatpush1.bf16.msra.mxu0 %v1273
        %1295 = vmatprep.subr.bf16.mxu0 0
        %1296 = vmatpush1.bf16.msra.mxu0 %v1274
        %1297 = vmatprep.subr.bf16.mxu0 0
        %1298 = vmatpush1.bf16.msra.mxu0 %v1275
        %1299 = vmatprep.subr.bf16.mxu0 0
        %1300 = vmatpush1.bf16.msra.mxu0 %v1276
        %1301 = vmatprep.subr.bf16.mxu0 0
        %1302 = vmatpush1.bf16.msra.mxu0 0
        %1303 = vmatprep.subr.bf16.mxu0 0
        %1304 = vmatpush1.bf16.msra.mxu0 0
        %1305 = vmatprep.subr.bf16.mxu0 0
        %1306 = vmatpush1.bf16.msra.mxu0 0
        %1307 = vmatprep.subr.bf16.mxu0 0
        %1308 = vmatpush1.bf16.msra.mxu0 0
        %1309 = vmatprep.subr.bf16.mxu0 0
        %1310 = vmatpush1.bf16.msra.mxu0 0
        %1311 = vmatprep.subr.bf16.mxu0 0
        %1312 = vmatpush1.bf16.msra.mxu0 0
        %1313 = vmatprep.subr.bf16.mxu0 0
        %1314 = vmatpush1.bf16.msra.mxu0 0
        %1315 = vmatprep.subr.bf16.mxu0 0
        %1316 = vmatpush1.bf16.msra.mxu0 0
        %1317 = vmatprep.mubr.bf16.mxu0 0
        %1318 = vmatmul.mubr.bf16.gmra.mrb[0].mxu0 %v1229
        %v1319 = vpop.f32.mrb[0].mxu0
        %v1320 = vadd.f32 0.0, %v1319
        %v1321 = vpop.f32.mrb[0].mxu0
        %v1322 = vpop.f32.mrb[0].mxu0
        %v1323 = vadd.f32 0.0, %v1322
        %v1324 = vpop.f32.mrb[0].mxu0
        %1325 = vmatprep.mubr.bf16.mxu0 0
        %1326 = vmatmul.mubr.bf16.gmra.mrb[0].mxu0 %v1230
        %v1327 = vpop.f32.mrb[0].mxu0
        %v1328 = vadd.f32 0.0, %v1327
        %v1329 = vpop.f32.mrb[0].mxu0
        %v1330 = vpop.f32.mrb[0].mxu0
        %v1331 = vadd.f32 0.0, %v1330
        %v1332 = vpop.f32.mrb[0].mxu0
        %1333 = vmatprep.mubr.bf16.mxu0 0
        %1334 = vmatmul.mubr.bf16.gmra.mrb[0].mxu0 %v1231
        %v1335 = vpop.f32.mrb[0].mxu0
        %v1336 = vadd.f32 0.0, %v1335
        %v1337 = vpop.f32.mrb[0].mxu0
        %v1338 = vpop.f32.mrb[0].mxu0
        %v1339 = vadd.f32 0.0, %v1338
        %v1340 = vpop.f32.mrb[0].mxu0
        %1341 = vmatprep.mubr.bf16.mxu0 0
        %1342 = vmatmul.mubr.bf16.gmra.mrb[0].mxu0 %v1232
        %v1343 = vpop.f32.mrb[0].mxu0
        %v1344 = vadd.f32 0.0, %v1343
        %v1345 = vpop.f32.mrb[0].mxu0
        %v1346 = vpop.f32.mrb[0].mxu0
        %v1347 = vadd.f32 0.0, %v1346
        %v1348 = vpop.f32.mrb[0].mxu0
        %1349 = vdwg.mxu0
        %v1358 = vunpack.c.l.b16 %v1057
        %v1359 = vunpack.c.l.b16 %v1058
        %v1360 = vunpack.c.l.b16 %v1059
        %v1361 = vunpack.c.l.b16 %v1060
        %v1362 = vunpack.c.l.b16 %v1061
        %v1363 = vunpack.c.l.b16 %v1062
        %v1364 = vunpack.c.l.b16 %v1063
        %v1365 = vunpack.c.l.b16 %v1064
        %v1366 = vpack.c.b16 %v1359, %v1358
        %v1367 = vpack.c.b16 %v1361, %v1360
        %v1368 = vpack.c.b16 %v1363, %v1362
        %v1369 = vpack.c.b16 %v1365, %v1364
        %v1390 = vunpack.c.l.b16 %v1065
        %v1391 = vunpack.c.l.b16 %v1066
        %v1392 = vunpack.c.l.b16 %v1067
        %v1393 = vunpack.c.l.b16 %v1068
        %v1394 = vunpack.c.l.b16 %v1069
        %v1395 = vunpack.c.l.b16 %v1070
        %v1396 = vunpack.c.l.b16 %v1071
        %v1397 = vunpack.c.l.b16 %v1072
        %v1398 = vunpack.c.l.b16 %v1073
        %v1399 = vunpack.c.l.b16 %v1074
        %v1400 = vunpack.c.l.b16 %v1075
        %v1401 = vunpack.c.l.b16 %v1076
        %v1402 = vunpack.c.l.b16 %v1077
        %v1403 = vunpack.c.l.b16 %v1078
        %v1404 = vunpack.c.l.b16 %v1079
        %v1405 = vunpack.c.l.b16 %v1080
        %v1406 = vpack.c.b16 %v1391, %v1390
        %v1407 = vpack.c.b16 %v1393, %v1392
        %v1408 = vpack.c.b16 %v1395, %v1394
        %v1409 = vpack.c.b16 %v1397, %v1396
        %v1410 = vpack.c.b16 %v1399, %v1398
        %v1411 = vpack.c.b16 %v1401, %v1400
        %v1412 = vpack.c.b16 %v1403, %v1402
        %v1413 = vpack.c.b16 %v1405, %v1404
        %1422 = vmatprep.subr.bf16.mxu0 0
        %1423 = vmatpush1.bf16.msra.mxu0 %v1406
        %1424 = vmatprep.subr.bf16.mxu0 0
        %1425 = vmatpush1.bf16.msra.mxu0 %v1407
        %1426 = vmatprep.subr.bf16.mxu0 0
        %1427 = vmatpush1.bf16.msra.mxu0 %v1408
        %1428 = vmatprep.subr.bf16.mxu0 0
        %1429 = vmatpush1.bf16.msra.mxu0 %v1409
        %1430 = vmatprep.subr.bf16.mxu0 0
        %1431 = vmatpush1.bf16.msra.mxu0 %v1410
        %1432 = vmatprep.subr.bf16.mxu0 0
        %1433 = vmatpush1.bf16.msra.mxu0 %v1411
        %1434 = vmatprep.subr.bf16.mxu0 0
        %1435 = vmatpush1.bf16.msra.mxu0 %v1412
        %1436 = vmatprep.subr.bf16.mxu0 0
        %1437 = vmatpush1.bf16.msra.mxu0 %v1413
        %1438 = vmatprep.subr.bf16.mxu0 0
        %1439 = vmatpush1.bf16.msra.mxu0 0
        %1440 = vmatprep.subr.bf16.mxu0 0
        %1441 = vmatpush1.bf16.msra.mxu0 0
        %1442 = vmatprep.subr.bf16.mxu0 0
        %1443 = vmatpush1.bf16.msra.mxu0 0
        %1444 = vmatprep.subr.bf16.mxu0 0
        %1445 = vmatpush1.bf16.msra.mxu0 0
        %1446 = vmatprep.subr.bf16.mxu0 0
        %1447 = vmatpush1.bf16.msra.mxu0 0
        %1448 = vmatprep.subr.bf16.mxu0 0
        %1449 = vmatpush1.bf16.msra.mxu0 0
        %1450 = vmatprep.subr.bf16.mxu0 0
        %1451 = vmatpush1.bf16.msra.mxu0 0
        %1452 = vmatprep.subr.bf16.mxu0 0
        %1453 = vmatpush1.bf16.msra.mxu0 0
        %1454 = vmatprep.mubr.bf16.mxu0 0
        %1455 = vmatmul.mubr.bf16.gmra.mrb[0].mxu0 %v1366
        %v1456 = vpop.f32.mrb[0].mxu0
        %v1457 = vadd.f32 %v1320, %v1456
        %v1458 = vpop.f32.mrb[0].mxu0
        %v1459 = vpop.f32.mrb[0].mxu0
        %v1460 = vadd.f32 %v1323, %v1459
        %v1461 = vpop.f32.mrb[0].mxu0
        %1462 = vmatprep.mubr.bf16.mxu0 0
        %1463 = vmatmul.mubr.bf16.gmra.mrb[0].mxu0 %v1367
        %v1464 = vpop.f32.mrb[0].mxu0
        %v1465 = vadd.f32 %v1328, %v1464
        %v1466 = vpop.f32.mrb[0].mxu0
        %v1467 = vpop.f32.mrb[0].mxu0
        %v1468 = vadd.f32 %v1331, %v1467
        %v1469 = vpop.f32.mrb[0].mxu0
        %1470 = vmatprep.mubr.bf16.mxu0 0
        %1471 = vmatmul.mubr.bf16.gmra.mrb[0].mxu0 %v1368
        %v1472 = vpop.f32.mrb[0].mxu0
        %v1473 = vadd.f32 %v1336, %v1472
        %v1474 = vpop.f32.mrb[0].mxu0
        %v1475 = vpop.f32.mrb[0].mxu0
        %v1476 = vadd.f32 %v1339, %v1475
        %v1477 = vpop.f32.mrb[0].mxu0
        %1478 = vmatprep.mubr.bf16.mxu0 0
        %1479 = vmatmul.mubr.bf16.gmra.mrb[0].mxu0 %v1369
        %v1480 = vpop.f32.mrb[0].mxu0
        %v1481 = vadd.f32 %v1344, %v1480
        %v1482 = vpop.f32.mrb[0].mxu0
        %v1483 = vpop.f32.mrb[0].mxu0
        %v1484 = vadd.f32 %v1347, %v1483
        %v1485 = vpop.f32.mrb[0].mxu0
        %1486 = vdwg.mxu0
        %v1487 = vld [vmem:[#allocation2] sm:$0xe]
        %v1488 = vld [vmem:[#allocation2 + $0x8] sm:$0xe]
        %v1489 = vld [vmem:[#allocation2 + $0x10] sm:$0xe]
        %v1490 = vld [vmem:[#allocation2 + $0x18] sm:$0xe]
        %v1491 = vld [vmem:[#allocation2 + $0x20] sm:$0xe]
        %v1492 = vld [vmem:[#allocation2 + $0x28] sm:$0xe]
        %v1493 = vld [vmem:[#allocation2 + $0x30] sm:$0xe]
        %v1494 = vld [vmem:[#allocation2 + $0x38] sm:$0xe]
        %vm1511 = vcmask 1042432
        %vm1512 = vcmask 1046532
        %vm1513 = vmor %vm1511, %vm1512
        %v1514 = vrot.slane %v1487, 5
        %v1515 = vrot.slane %v1514, 4
        %v1516 = vrot.slane %v1081, 5
        %v1517 = vsel %vm1513, %v1515, %v1516
        %v1518 = vrot.slane %v1488, 5
        %v1519 = vrot.slane %v1518, 4
        %v1520 = vrot.slane %v1082, 5
        %v1521 = vsel %vm1513, %v1519, %v1520
        %v1522 = vrot.slane %v1489, 5
        %v1523 = vrot.slane %v1522, 4
        %v1524 = vrot.slane %v1083, 5
        %v1525 = vsel %vm1513, %v1523, %v1524
        %v1526 = vrot.slane %v1490, 5
        %v1527 = vrot.slane %v1526, 4
        %v1528 = vrot.slane %v1084, 5
        %v1529 = vsel %vm1513, %v1527, %v1528
        %v1530 = vrot.slane %v1491, 5
        %v1531 = vrot.slane %v1530, 4
        %v1532 = vrot.slane %v1085, 5
        %v1533 = vsel %vm1513, %v1531, %v1532
        %v1534 = vrot.slane %v1492, 5
        %v1535 = vrot.slane %v1534, 4
        %v1536 = vrot.slane %v1086, 5
        %v1537 = vsel %vm1513, %v1535, %v1536
        %v1538 = vrot.slane %v1493, 5
        %v1539 = vrot.slane %v1538, 4
        %v1540 = vrot.slane %v1087, 5
        %v1541 = vsel %vm1513, %v1539, %v1540
        %v1542 = vrot.slane %v1494, 5
        %v1543 = vrot.slane %v1542, 4
        %v1544 = vrot.slane %v1088, 5
        %v1545 = vsel %vm1513, %v1543, %v1544
        %s1546 = scalar_lea.vmem %s7, 128
        %v1547 = vld [vmem:[%s1546] sm:$0xf]
        %v1548 = vld [vmem:[%s1546 + $0x4] sm:$0xf]
        %v1549 = vld [vmem:[%s1546 + $0x8] sm:$0xf]
        %v1550 = vld [vmem:[%s1546 + $0xc] sm:$0xf]
        %v1551 = vld [vmem:[%s1546 + $0x10] sm:$0xf]
        %v1552 = vld [vmem:[%s1546 + $0x14] sm:$0xf]
        %v1553 = vld [vmem:[%s1546 + $0x18] sm:$0xf]
        %v1554 = vld [vmem:[%s1546 + $0x1c] sm:$0xf]
        %v1555 = vld [vmem:[%s1546 + $0x20] sm:$0xf]
        %v1556 = vld [vmem:[%s1546 + $0x24] sm:$0xf]
        %v1557 = vld [vmem:[%s1546 + $0x28] sm:$0xf]
        %v1558 = vld [vmem:[%s1546 + $0x2c] sm:$0xf]
        %v1559 = vld [vmem:[%s1546 + $0x30] sm:$0xf]
        %v1560 = vld [vmem:[%s1546 + $0x34] sm:$0xf]
        %v1561 = vld [vmem:[%s1546 + $0x38] sm:$0xf]
        %v1562 = vld [vmem:[%s1546 + $0x3c] sm:$0xf]
        %v1563 = vunpack.c.l.b16 %v1517
        %v1564 = vunpack.c.l.b16 %v1521
        %v1565 = vunpack.c.l.b16 %v1525
        %v1566 = vunpack.c.l.b16 %v1529
        %v1567 = vunpack.c.l.b16 %v1533
        %v1568 = vunpack.c.l.b16 %v1537
        %v1569 = vunpack.c.l.b16 %v1541
        %v1570 = vunpack.c.l.b16 %v1545
        %v1571 = vpack.c.b16 %v1564, %v1563
        %v1572 = vpack.c.b16 %v1566, %v1565
        %v1573 = vpack.c.b16 %v1568, %v1567
        %v1574 = vpack.c.b16 %v1570, %v1569
        %v1595 = vunpack.c.l.b16 %v1547
        %v1596 = vunpack.c.l.b16 %v1548
        %v1597 = vunpack.c.l.b16 %v1549
        %v1598 = vunpack.c.l.b16 %v1550
        %v1599 = vunpack.c.l.b16 %v1551
        %v1600 = vunpack.c.l.b16 %v1552
        %v1601 = vunpack.c.l.b16 %v1553
        %v1602 = vunpack.c.l.b16 %v1554
        %v1603 = vunpack.c.l.b16 %v1555
        %v1604 = vunpack.c.l.b16 %v1556
        %v1605 = vunpack.c.l.b16 %v1557
        %v1606 = vunpack.c.l.b16 %v1558
        %v1607 = vunpack.c.l.b16 %v1559
        %v1608 = vunpack.c.l.b16 %v1560
        %v1609 = vunpack.c.l.b16 %v1561
        %v1610 = vunpack.c.l.b16 %v1562
        %v1611 = vpack.c.b16 %v1596, %v1595
        %v1612 = vpack.c.b16 %v1598, %v1597
        %v1613 = vpack.c.b16 %v1600, %v1599
        %v1614 = vpack.c.b16 %v1602, %v1601
        %v1615 = vpack.c.b16 %v1604, %v1603
        %v1616 = vpack.c.b16 %v1606, %v1605
        %v1617 = vpack.c.b16 %v1608, %v1607
        %v1618 = vpack.c.b16 %v1610, %v1609
        %1627 = vmatprep.subr.bf16.mxu0 0
        %1628 = vmatpush1.bf16.msra.mxu0 %v1611
        %1629 = vmatprep.subr.bf16.mxu0 0
        %1630 = vmatpush1.bf16.msra.mxu0 %v1612
        %1631 = vmatprep.subr.bf16.mxu0 0
        %1632 = vmatpush1.bf16.msra.mxu0 %v1613
        %1633 = vmatprep.subr.bf16.mxu0 0
        %1634 = vmatpush1.bf16.msra.mxu0 %v1614
        %1635 = vmatprep.subr.bf16.mxu0 0
        %1636 = vmatpush1.bf16.msra.mxu0 %v1615
        %1637 = vmatprep.subr.bf16.mxu0 0
        %1638 = vmatpush1.bf16.msra.mxu0 %v1616
        %1639 = vmatprep.subr.bf16.mxu0 0
        %1640 = vmatpush1.bf16.msra.mxu0 %v1617
        %1641 = vmatprep.subr.bf16.mxu0 0
        %1642 = vmatpush1.bf16.msra.mxu0 %v1618
        %1643 = vmatprep.subr.bf16.mxu0 0
        %1644 = vmatpush1.bf16.msra.mxu0 0
        %1645 = vmatprep.subr.bf16.mxu0 0
        %1646 = vmatpush1.bf16.msra.mxu0 0
        %1647 = vmatprep.subr.bf16.mxu0 0
        %1648 = vmatpush1.bf16.msra.mxu0 0
        %1649 = vmatprep.subr.bf16.mxu0 0
        %1650 = vmatpush1.bf16.msra.mxu0 0
        %1651 = vmatprep.subr.bf16.mxu0 0
        %1652 = vmatpush1.bf16.msra.mxu0 0
        %1653 = vmatprep.subr.bf16.mxu0 0
        %1654 = vmatpush1.bf16.msra.mxu0 0
        %1655 = vmatprep.subr.bf16.mxu0 0
        %1656 = vmatpush1.bf16.msra.mxu0 0
        %1657 = vmatprep.subr.bf16.mxu0 0
        %1658 = vmatpush1.bf16.msra.mxu0 0
        %1659 = vmatprep.mubr.bf16.mxu0 0
        %1660 = vmatmul.mubr.bf16.gmra.mrb[0].mxu0 %v1571
        %v1661 = vpop.f32.mrb[0].mxu0
        %v1662 = vadd.f32 0.0, %v1661
        %v1663 = vpop.f32.mrb[0].mxu0
        %v1664 = vpop.f32.mrb[0].mxu0
        %v1665 = vadd.f32 0.0, %v1664
        %v1666 = vpop.f32.mrb[0].mxu0
        %1667 = vmatprep.mubr.bf16.mxu0 0
        %1668 = vmatmul.mubr.bf16.gmra.mrb[0].mxu0 %v1572
        %v1669 = vpop.f32.mrb[0].mxu0
        %v1670 = vadd.f32 0.0, %v1669
        %v1671 = vpop.f32.mrb[0].mxu0
        %v1672 = vpop.f32.mrb[0].mxu0
        %v1673 = vadd.f32 0.0, %v1672
        %v1674 = vpop.f32.mrb[0].mxu0
        %1675 = vmatprep.mubr.bf16.mxu0 0
        %1676 = vmatmul.mubr.bf16.gmra.mrb[0].mxu0 %v1573
        %v1677 = vpop.f32.mrb[0].mxu0
        %v1678 = vadd.f32 0.0, %v1677
        %v1679 = vpop.f32.mrb[0].mxu0
        %v1680 = vpop.f32.mrb[0].mxu0
        %v1681 = vadd.f32 0.0, %v1680
        %v1682 = vpop.f32.mrb[0].mxu0
        %1683 = vmatprep.mubr.bf16.mxu0 0
        %1684 = vmatmul.mubr.bf16.gmra.mrb[0].mxu0 %v1574
        %v1685 = vpop.f32.mrb[0].mxu0
        %v1686 = vadd.f32 0.0, %v1685
        %v1687 = vpop.f32.mrb[0].mxu0
        %v1688 = vpop.f32.mrb[0].mxu0
        %v1689 = vadd.f32 0.0, %v1688
        %v1690 = vpop.f32.mrb[0].mxu0
        %1691 = vdwg.mxu0
        %v1692 = vadd.f32 %v1457, %v1662
        %v1693 = vadd.f32 %v1460, %v1665
        %v1694 = vadd.f32 %v1465, %v1670
        %v1695 = vadd.f32 %v1468, %v1673
        %v1696 = vadd.f32 %v1473, %v1678
        %v1697 = vadd.f32 %v1476, %v1681
        %v1698 = vadd.f32 %v1481, %v1686
        %v1699 = vadd.f32 %v1484, %v1689
        %v1700 = vld [vmem:[%s1002] sm:$0xf]
        %v1701 = vld [vmem:[%s1002 + $0x8] sm:$0xf]
        %v1702 = vld [vmem:[%s1002 + $0x10] sm:$0xf]
        %v1703 = vld [vmem:[%s1002 + $0x18] sm:$0xf]
        %v1704 = vld [vmem:[%s1002 + $0x20] sm:$0xf]
        %v1705 = vld [vmem:[%s1002 + $0x28] sm:$0xf]
        %v1706 = vld [vmem:[%s1002 + $0x30] sm:$0xf]
        %v1707 = vld [vmem:[%s1002 + $0x38] sm:$0xf]
        %s1708 = scalar_lea.vmem %s7, 192
        %v1709 = vld [vmem:[%s1708] sm:$0xf]
        %v1710 = vld [vmem:[%s1708 + $0x4] sm:$0xf]
        %v1711 = vld [vmem:[%s1708 + $0x8] sm:$0xf]
        %v1712 = vld [vmem:[%s1708 + $0xc] sm:$0xf]
        %v1713 = vld [vmem:[%s1708 + $0x10] sm:$0xf]
        %v1714 = vld [vmem:[%s1708 + $0x14] sm:$0xf]
        %v1715 = vld [vmem:[%s1708 + $0x18] sm:$0xf]
        %v1716 = vld [vmem:[%s1708 + $0x1c] sm:$0xf]
        %v1717 = vld [vmem:[%s1708 + $0x20] sm:$0xf]
        %v1718 = vld [vmem:[%s1708 + $0x24] sm:$0xf]
        %v1719 = vld [vmem:[%s1708 + $0x28] sm:$0xf]
        %v1720 = vld [vmem:[%s1708 + $0x2c] sm:$0xf]
        %v1721 = vld [vmem:[%s1708 + $0x30] sm:$0xf]
        %v1722 = vld [vmem:[%s1708 + $0x34] sm:$0xf]
        %v1723 = vld [vmem:[%s1708 + $0x38] sm:$0xf]
        %v1724 = vld [vmem:[%s1708 + $0x3c] sm:$0xf]
        %v1733 = vunpack.c.l.b16 %v1700
        %v1734 = vunpack.c.l.b16 %v1701
        %v1735 = vunpack.c.l.b16 %v1702
        %v1736 = vunpack.c.l.b16 %v1703
        %v1737 = vunpack.c.l.b16 %v1704
        %v1738 = vunpack.c.l.b16 %v1705
        %v1739 = vunpack.c.l.b16 %v1706
        %v1740 = vunpack.c.l.b16 %v1707
        %v1741 = vpack.c.b16 %v1734, %v1733
        %v1742 = vpack.c.b16 %v1736, %v1735
        %v1743 = vpack.c.b16 %v1738, %v1737
        %v1744 = vpack.c.b16 %v1740, %v1739
        %v1765 = vunpack.c.l.b16 %v1709
        %v1766 = vunpack.c.l.b16 %v1710
        %v1767 = vunpack.c.l.b16 %v1711
        %v1768 = vunpack.c.l.b16 %v1712
        %v1769 = vunpack.c.l.b16 %v1713
        %v1770 = vunpack.c.l.b16 %v1714
        %v1771 = vunpack.c.l.b16 %v1715
        %v1772 = vunpack.c.l.b16 %v1716
        %v1773 = vunpack.c.l.b16 %v1717
        %v1774 = vunpack.c.l.b16 %v1718
        %v1775 = vunpack.c.l.b16 %v1719
        %v1776 = vunpack.c.l.b16 %v1720
        %v1777 = vunpack.c.l.b16 %v1721
        %v1778 = vunpack.c.l.b16 %v1722
        %v1779 = vunpack.c.l.b16 %v1723
        %v1780 = vunpack.c.l.b16 %v1724
        %v1781 = vpack.c.b16 %v1766, %v1765
        %v1782 = vpack.c.b16 %v1768, %v1767
        %v1783 = vpack.c.b16 %v1770, %v1769
        %v1784 = vpack.c.b16 %v1772, %v1771
        %v1785 = vpack.c.b16 %v1774, %v1773
        %v1786 = vpack.c.b16 %v1776, %v1775
        %v1787 = vpack.c.b16 %v1778, %v1777
        %v1788 = vpack.c.b16 %v1780, %v1779
        %1797 = vmatprep.subr.bf16.mxu0 0
        %1798 = vmatpush1.bf16.msra.mxu0 %v1781
        %1799 = vmatprep.subr.bf16.mxu0 0
        %1800 = vmatpush1.bf16.msra.mxu0 %v1782
        %1801 = vmatprep.subr.bf16.mxu0 0
        %1802 = vmatpush1.bf16.msra.mxu0 %v1783
        %1803 = vmatprep.subr.bf16.mxu0 0
        %1804 = vmatpush1.bf16.msra.mxu0 %v1784
        %1805 = vmatprep.subr.bf16.mxu0 0
        %1806 = vmatpush1.bf16.msra.mxu0 %v1785
        %1807 = vmatprep.subr.bf16.mxu0 0
        %1808 = vmatpush1.bf16.msra.mxu0 %v1786
        %1809 = vmatprep.subr.bf16.mxu0 0
        %1810 = vmatpush1.bf16.msra.mxu0 %v1787
        %1811 = vmatprep.subr.bf16.mxu0 0
        %1812 = vmatpush1.bf16.msra.mxu0 %v1788
        %1813 = vmatprep.subr.bf16.mxu0 0
        %1814 = vmatpush1.bf16.msra.mxu0 0
        %1815 = vmatprep.subr.bf16.mxu0 0
        %1816 = vmatpush1.bf16.msra.mxu0 0
        %1817 = vmatprep.subr.bf16.mxu0 0
        %1818 = vmatpush1.bf16.msra.mxu0 0
        %1819 = vmatprep.subr.bf16.mxu0 0
        %1820 = vmatpush1.bf16.msra.mxu0 0
        %1821 = vmatprep.subr.bf16.mxu0 0
        %1822 = vmatpush1.bf16.msra.mxu0 0
        %1823 = vmatprep.subr.bf16.mxu0 0
        %1824 = vmatpush1.bf16.msra.mxu0 0
        %1825 = vmatprep.subr.bf16.mxu0 0
        %1826 = vmatpush1.bf16.msra.mxu0 0
        %1827 = vmatprep.subr.bf16.mxu0 0
        %1828 = vmatpush1.bf16.msra.mxu0 0
        %1829 = vmatprep.mubr.bf16.mxu0 0
        %1830 = vmatmul.mubr.bf16.gmra.mrb[0].mxu0 %v1741
        %v1831 = vpop.f32.mrb[0].mxu0
        %v1832 = vadd.f32 0.0, %v1831
        %v1833 = vpop.f32.mrb[0].mxu0
        %v1834 = vpop.f32.mrb[0].mxu0
        %v1835 = vadd.f32 0.0, %v1834
        %v1836 = vpop.f32.mrb[0].mxu0
        %1837 = vmatprep.mubr.bf16.mxu0 0
        %1838 = vmatmul.mubr.bf16.gmra.mrb[0].mxu0 %v1742
        %v1839 = vpop.f32.mrb[0].mxu0
        %v1840 = vadd.f32 0.0, %v1839
        %v1841 = vpop.f32.mrb[0].mxu0
        %v1842 = vpop.f32.mrb[0].mxu0
        %v1843 = vadd.f32 0.0, %v1842
        %v1844 = vpop.f32.mrb[0].mxu0
        %1845 = vmatprep.mubr.bf16.mxu0 0
        %1846 = vmatmul.mubr.bf16.gmra.mrb[0].mxu0 %v1743
        %v1847 = vpop.f32.mrb[0].mxu0
        %v1848 = vadd.f32 0.0, %v1847
        %v1849 = vpop.f32.mrb[0].mxu0
        %v1850 = vpop.f32.mrb[0].mxu0
        %v1851 = vadd.f32 0.0, %v1850
        %v1852 = vpop.f32.mrb[0].mxu0
        %1853 = vmatprep.mubr.bf16.mxu0 0
        %1854 = vmatmul.mubr.bf16.gmra.mrb[0].mxu0 %v1744
        %v1855 = vpop.f32.mrb[0].mxu0
        %v1856 = vadd.f32 0.0, %v1855
        %v1857 = vpop.f32.mrb[0].mxu0
        %v1858 = vpop.f32.mrb[0].mxu0
        %v1859 = vadd.f32 0.0, %v1858
        %v1860 = vpop.f32.mrb[0].mxu0
        %1861 = vdwg.mxu0
        %v1862 = vadd.f32 %v1692, %v1832
        %v1863 = vadd.f32 %v1693, %v1835
        %v1864 = vadd.f32 %v1694, %v1840
        %v1865 = vadd.f32 %v1695, %v1843
        %v1866 = vadd.f32 %v1696, %v1848
        %v1867 = vadd.f32 %v1697, %v1851
        %v1868 = vadd.f32 %v1698, %v1856
        %v1869 = vadd.f32 %v1699, %v1859
        %v1870 = vld [vmem:[%s1002] sm:$0xf]
        %v1871 = vld [vmem:[%s1002 + $0x4] sm:$0x1]
        %v1872 = vld [vmem:[%s1002 + $0x8] sm:$0xf]
        %v1873 = vld [vmem:[%s1002 + $0xc] sm:$0x1]
        %v1874 = vld [vmem:[%s1002 + $0x10] sm:$0xf]
        %v1875 = vld [vmem:[%s1002 + $0x14] sm:$0x1]
        %v1876 = vld [vmem:[%s1002 + $0x18] sm:$0xf]
        %v1877 = vld [vmem:[%s1002 + $0x1c] sm:$0x1]
        %v1878 = vld [vmem:[%s1002 + $0x20] sm:$0xf]
        %v1879 = vld [vmem:[%s1002 + $0x24] sm:$0x1]
        %v1880 = vld [vmem:[%s1002 + $0x28] sm:$0xf]
        %v1881 = vld [vmem:[%s1002 + $0x2c] sm:$0x1]
        %v1882 = vld [vmem:[%s1002 + $0x30] sm:$0xf]
        %v1883 = vld [vmem:[%s1002 + $0x34] sm:$0x1]
        %v1884 = vld [vmem:[%s1002 + $0x38] sm:$0xf]
        %v1885 = vld [vmem:[%s1002 + $0x3c] sm:$0x1]
        %v1887 = vshrl.u32 %v1870, 16
        %v1889 = vrot.slane %v1887, 4
        %v1890 = vshll.u32 %v1870, 16
        %v1892 = vrot.slane %v1890, 5
        %v1893 = vor.u32 %v1889, %v1892
        %v1894 = vrot.slane %v1893, 4
        %v1896 = vshll.u32 %v1871, 16
        %v1898 = vrot.slane %v1896, 5
        %v1899 = vsel %vm1091, %v1894, %v1898
        %v1901 = vshrl.u32 %v1872, 16
        %v1903 = vrot.slane %v1901, 4
        %v1904 = vshll.u32 %v1872, 16
        %v1906 = vrot.slane %v1904, 5
        %v1907 = vor.u32 %v1903, %v1906
        %v1908 = vrot.slane %v1907, 4
        %v1910 = vshll.u32 %v1873, 16
        %v1912 = vrot.slane %v1910, 5
        %v1913 = vsel %vm1091, %v1908, %v1912
        %v1915 = vshrl.u32 %v1874, 16
        %v1917 = vrot.slane %v1915, 4
        %v1918 = vshll.u32 %v1874, 16
        %v1920 = vrot.slane %v1918, 5
        %v1921 = vor.u32 %v1917, %v1920
        %v1922 = vrot.slane %v1921, 4
        %v1924 = vshll.u32 %v1875, 16
        %v1926 = vrot.slane %v1924, 5
        %v1927 = vsel %vm1091, %v1922, %v1926
        %v1929 = vshrl.u32 %v1876, 16
        %v1931 = vrot.slane %v1929, 4
        %v1932 = vshll.u32 %v1876, 16
        %v1934 = vrot.slane %v1932, 5
        %v1935 = vor.u32 %v1931, %v1934
        %v1936 = vrot.slane %v1935, 4
        %v1938 = vshll.u32 %v1877, 16
        %v1940 = vrot.slane %v1938, 5
        %v1941 = vsel %vm1091, %v1936, %v1940
        %v1943 = vshrl.u32 %v1878, 16
        %v1945 = vrot.slane %v1943, 4
        %v1946 = vshll.u32 %v1878, 16
        %v1948 = vrot.slane %v1946, 5
        %v1949 = vor.u32 %v1945, %v1948
        %v1950 = vrot.slane %v1949, 4
        %v1952 = vshll.u32 %v1879, 16
        %v1954 = vrot.slane %v1952, 5
        %v1955 = vsel %vm1091, %v1950, %v1954
        %v1957 = vshrl.u32 %v1880, 16
        %v1959 = vrot.slane %v1957, 4
        %v1960 = vshll.u32 %v1880, 16
        %v1962 = vrot.slane %v1960, 5
        %v1963 = vor.u32 %v1959, %v1962
        %v1964 = vrot.slane %v1963, 4
        %v1966 = vshll.u32 %v1881, 16
        %v1968 = vrot.slane %v1966, 5
        %v1969 = vsel %vm1091, %v1964, %v1968
        %v1971 = vshrl.u32 %v1882, 16
        %v1973 = vrot.slane %v1971, 4
        %v1974 = vshll.u32 %v1882, 16
        %v1976 = vrot.slane %v1974, 5
        %v1977 = vor.u32 %v1973, %v1976
        %v1978 = vrot.slane %v1977, 4
        %v1980 = vshll.u32 %v1883, 16
        %v1982 = vrot.slane %v1980, 5
        %v1983 = vsel %vm1091, %v1978, %v1982
        %v1985 = vshrl.u32 %v1884, 16
        %v1987 = vrot.slane %v1985, 4
        %v1988 = vshll.u32 %v1884, 16
        %v1990 = vrot.slane %v1988, 5
        %v1991 = vor.u32 %v1987, %v1990
        %v1992 = vrot.slane %v1991, 4
        %v1994 = vshll.u32 %v1885, 16
        %v1996 = vrot.slane %v1994, 5
        %v1997 = vsel %vm1091, %v1992, %v1996
        %s1998 = scalar_lea.vmem %s7, 256
        %v1999 = vld [vmem:[%s1998] sm:$0xf]
        %v2000 = vld [vmem:[%s1998 + $0x4] sm:$0xf]
        %v2001 = vld [vmem:[%s1998 + $0x8] sm:$0xf]
        %v2002 = vld [vmem:[%s1998 + $0xc] sm:$0xf]
        %v2003 = vld [vmem:[%s1998 + $0x10] sm:$0xf]
        %v2004 = vld [vmem:[%s1998 + $0x14] sm:$0xf]
        %v2005 = vld [vmem:[%s1998 + $0x18] sm:$0xf]
        %v2006 = vld [vmem:[%s1998 + $0x1c] sm:$0xf]
        %v2007 = vld [vmem:[%s1998 + $0x20] sm:$0xf]
        %v2008 = vld [vmem:[%s1998 + $0x24] sm:$0xf]
        %v2009 = vld [vmem:[%s1998 + $0x28] sm:$0xf]
        %v2010 = vld [vmem:[%s1998 + $0x2c] sm:$0xf]
        %v2011 = vld [vmem:[%s1998 + $0x30] sm:$0xf]
        %v2012 = vld [vmem:[%s1998 + $0x34] sm:$0xf]
        %v2013 = vld [vmem:[%s1998 + $0x38] sm:$0xf]
        %v2014 = vld [vmem:[%s1998 + $0x3c] sm:$0xf]
        %v2015 = vunpack.c.l.b16 %v1899
        %v2016 = vunpack.c.l.b16 %v1913
        %v2017 = vunpack.c.l.b16 %v1927
        %v2018 = vunpack.c.l.b16 %v1941
        %v2019 = vunpack.c.l.b16 %v1955
        %v2020 = vunpack.c.l.b16 %v1969
        %v2021 = vunpack.c.l.b16 %v1983
        %v2022 = vunpack.c.l.b16 %v1997
        %v2023 = vpack.c.b16 %v2016, %v2015
        %v2024 = vpack.c.b16 %v2018, %v2017
        %v2025 = vpack.c.b16 %v2020, %v2019
        %v2026 = vpack.c.b16 %v2022, %v2021
        %v2047 = vunpack.c.l.b16 %v1999
        %v2048 = vunpack.c.l.b16 %v2000
        %v2049 = vunpack.c.l.b16 %v2001
        %v2050 = vunpack.c.l.b16 %v2002
        %v2051 = vunpack.c.l.b16 %v2003
        %v2052 = vunpack.c.l.b16 %v2004
        %v2053 = vunpack.c.l.b16 %v2005
        %v2054 = vunpack.c.l.b16 %v2006
        %v2055 = vunpack.c.l.b16 %v2007
        %v2056 = vunpack.c.l.b16 %v2008
        %v2057 = vunpack.c.l.b16 %v2009
        %v2058 = vunpack.c.l.b16 %v2010
        %v2059 = vunpack.c.l.b16 %v2011
        %v2060 = vunpack.c.l.b16 %v2012
        %v2061 = vunpack.c.l.b16 %v2013
        %v2062 = vunpack.c.l.b16 %v2014
        %v2063 = vpack.c.b16 %v2048, %v2047
        %v2064 = vpack.c.b16 %v2050, %v2049
        %v2065 = vpack.c.b16 %v2052, %v2051
        %v2066 = vpack.c.b16 %v2054, %v2053
        %v2067 = vpack.c.b16 %v2056, %v2055
        %v2068 = vpack.c.b16 %v2058, %v2057
        %v2069 = vpack.c.b16 %v2060, %v2059
        %v2070 = vpack.c.b16 %v2062, %v2061
        %2079 = vmatprep.subr.bf16.mxu0 0
        %2080 = vmatpush1.bf16.msra.mxu0 %v2063
        %2081 = vmatprep.subr.bf16.mxu0 0
        %2082 = vmatpush1.bf16.msra.mxu0 %v2064
        %2083 = vmatprep.subr.bf16.mxu0 0
        %2084 = vmatpush1.bf16.msra.mxu0 %v2065
        %2085 = vmatprep.subr.bf16.mxu0 0
        %2086 = vmatpush1.bf16.msra.mxu0 %v2066
        %2087 = vmatprep.subr.bf16.mxu0 0
        %2088 = vmatpush1.bf16.msra.mxu0 %v2067
        %2089 = vmatprep.subr.bf16.mxu0 0
        %2090 = vmatpush1.bf16.msra.mxu0 %v2068
        %2091 = vmatprep.subr.bf16.mxu0 0
        %2092 = vmatpush1.bf16.msra.mxu0 %v2069
        %2093 = vmatprep.subr.bf16.mxu0 0
        %2094 = vmatpush1.bf16.msra.mxu0 %v2070
        %2095 = vmatprep.subr.bf16.mxu0 0
        %2096 = vmatpush1.bf16.msra.mxu0 0
        %2097 = vmatprep.subr.bf16.mxu0 0
        %2098 = vmatpush1.bf16.msra.mxu0 0
        %2099 = vmatprep.subr.bf16.mxu0 0
        %2100 = vmatpush1.bf16.msra.mxu0 0
        %2101 = vmatprep.subr.bf16.mxu0 0
        %2102 = vmatpush1.bf16.msra.mxu0 0
        %2103 = vmatprep.subr.bf16.mxu0 0
        %2104 = vmatpush1.bf16.msra.mxu0 0
        %2105 = vmatprep.subr.bf16.mxu0 0
        %2106 = vmatpush1.bf16.msra.mxu0 0
        %2107 = vmatprep.subr.bf16.mxu0 0
        %2108 = vmatpush1.bf16.msra.mxu0 0
        %2109 = vmatprep.subr.bf16.mxu0 0
        %2110 = vmatpush1.bf16.msra.mxu0 0
        %2111 = vmatprep.mubr.bf16.mxu0 0
        %2112 = vmatmul.mubr.bf16.gmra.mrb[0].mxu0 %v2023
        %v2113 = vpop.f32.mrb[0].mxu0
        %v2114 = vadd.f32 0.0, %v2113
        %v2115 = vpop.f32.mrb[0].mxu0
        %v2116 = vpop.f32.mrb[0].mxu0
        %v2117 = vadd.f32 0.0, %v2116
        %v2118 = vpop.f32.mrb[0].mxu0
        %2119 = vmatprep.mubr.bf16.mxu0 0
        %2120 = vmatmul.mubr.bf16.gmra.mrb[0].mxu0 %v2024
        %v2121 = vpop.f32.mrb[0].mxu0
        %v2122 = vadd.f32 0.0, %v2121
        %v2123 = vpop.f32.mrb[0].mxu0
        %v2124 = vpop.f32.mrb[0].mxu0
        %v2125 = vadd.f32 0.0, %v2124
        %v2126 = vpop.f32.mrb[0].mxu0
        %2127 = vmatprep.mubr.bf16.mxu0 0
        %2128 = vmatmul.mubr.bf16.gmra.mrb[0].mxu0 %v2025
        %v2129 = vpop.f32.mrb[0].mxu0
        %v2130 = vadd.f32 0.0, %v2129
        %v2131 = vpop.f32.mrb[0].mxu0
        %v2132 = vpop.f32.mrb[0].mxu0
        %v2133 = vadd.f32 0.0, %v2132
        %v2134 = vpop.f32.mrb[0].mxu0
        %2135 = vmatprep.mubr.bf16.mxu0 0
        %2136 = vmatmul.mubr.bf16.gmra.mrb[0].mxu0 %v2026
        %v2137 = vpop.f32.mrb[0].mxu0
        %v2138 = vadd.f32 0.0, %v2137
        %v2139 = vpop.f32.mrb[0].mxu0
        %v2140 = vpop.f32.mrb[0].mxu0
        %v2141 = vadd.f32 0.0, %v2140
        %v2142 = vpop.f32.mrb[0].mxu0
        %2143 = vdwg.mxu0
        %v2144 = vadd.f32 %v1862, %v2114
        %v2145 = vadd.f32 %v1863, %v2117
        %v2146 = vadd.f32 %v1864, %v2122
        %v2147 = vadd.f32 %v1865, %v2125
        %v2148 = vadd.f32 %v1866, %v2130
        %v2149 = vadd.f32 %v1867, %v2133
        %v2150 = vadd.f32 %v1868, %v2138
        %v2151 = vadd.f32 %v1869, %v2141
        %v2152 = vld [vmem:[%s1002] sm:$0xe]
        %v2153 = vld [vmem:[%s1002 + $0x8] sm:$0xe]
        %v2154 = vld [vmem:[%s1002 + $0x10] sm:$0xe]
        %v2155 = vld [vmem:[%s1002 + $0x18] sm:$0xe]
        %v2156 = vld [vmem:[%s1002 + $0x20] sm:$0xe]
        %v2157 = vld [vmem:[%s1002 + $0x28] sm:$0xe]
        %v2158 = vld [vmem:[%s1002 + $0x30] sm:$0xe]
        %v2159 = vld [vmem:[%s1002 + $0x38] sm:$0xe]
        %v2176 = vrot.slane %v2152, 5
        %v2177 = vrot.slane %v2176, 4
        %v2178 = vrot.slane %v1871, 5
        %v2179 = vsel %vm1513, %v2177, %v2178
        %v2180 = vrot.slane %v2153, 5
        %v2181 = vrot.slane %v2180, 4
        %v2182 = vrot.slane %v1873, 5
        %v2183 = vsel %vm1513, %v2181, %v2182
        %v2184 = vrot.slane %v2154, 5
        %v2185 = vrot.slane %v2184, 4
        %v2186 = vrot.slane %v1875, 5
        %v2187 = vsel %vm1513, %v2185, %v2186
        %v2188 = vrot.slane %v2155, 5
        %v2189 = vrot.slane %v2188, 4
        %v2190 = vrot.slane %v1877, 5
        %v2191 = vsel %vm1513, %v2189, %v2190
        %v2192 = vrot.slane %v2156, 5
        %v2193 = vrot.slane %v2192, 4
        %v2194 = vrot.slane %v1879, 5
        %v2195 = vsel %vm1513, %v2193, %v2194
        %v2196 = vrot.slane %v2157, 5
        %v2197 = vrot.slane %v2196, 4
        %v2198 = vrot.slane %v1881, 5
        %v2199 = vsel %vm1513, %v2197, %v2198
        %v2200 = vrot.slane %v2158, 5
        %v2201 = vrot.slane %v2200, 4
        %v2202 = vrot.slane %v1883, 5
        %v2203 = vsel %vm1513, %v2201, %v2202
        %v2204 = vrot.slane %v2159, 5
        %v2205 = vrot.slane %v2204, 4
        %v2206 = vrot.slane %v1885, 5
        %v2207 = vsel %vm1513, %v2205, %v2206
        %s2208 = scalar_lea.vmem %s7, 320
        %v2209 = vld [vmem:[%s2208] sm:$0xf]
        %v2210 = vld [vmem:[%s2208 + $0x4] sm:$0xf]
        %v2211 = vld [vmem:[%s2208 + $0x8] sm:$0xf]
        %v2212 = vld [vmem:[%s2208 + $0xc] sm:$0xf]
        %v2213 = vld [vmem:[%s2208 + $0x10] sm:$0xf]
        %v2214 = vld [vmem:[%s2208 + $0x14] sm:$0xf]
        %v2215 = vld [vmem:[%s2208 + $0x18] sm:$0xf]
        %v2216 = vld [vmem:[%s2208 + $0x1c] sm:$0xf]
        %v2217 = vld [vmem:[%s2208 + $0x20] sm:$0xf]
        %v2218 = vld [vmem:[%s2208 + $0x24] sm:$0xf]
        %v2219 = vld [vmem:[%s2208 + $0x28] sm:$0xf]
        %v2220 = vld [vmem:[%s2208 + $0x2c] sm:$0xf]
        %v2221 = vld [vmem:[%s2208 + $0x30] sm:$0xf]
        %v2222 = vld [vmem:[%s2208 + $0x34] sm:$0xf]
        %v2223 = vld [vmem:[%s2208 + $0x38] sm:$0xf]
        %v2224 = vld [vmem:[%s2208 + $0x3c] sm:$0xf]
        %v2225 = vunpack.c.l.b16 %v2179
        %v2226 = vunpack.c.l.b16 %v2183
        %v2227 = vunpack.c.l.b16 %v2187
        %v2228 = vunpack.c.l.b16 %v2191
        %v2229 = vunpack.c.l.b16 %v2195
        %v2230 = vunpack.c.l.b16 %v2199
        %v2231 = vunpack.c.l.b16 %v2203
        %v2232 = vunpack.c.l.b16 %v2207
        %v2233 = vpack.c.b16 %v2226, %v2225
        %v2234 = vpack.c.b16 %v2228, %v2227
        %v2235 = vpack.c.b16 %v2230, %v2229
        %v2236 = vpack.c.b16 %v2232, %v2231
        %v2257 = vunpack.c.l.b16 %v2209
        %v2258 = vunpack.c.l.b16 %v2210
        %v2259 = vunpack.c.l.b16 %v2211
        %v2260 = vunpack.c.l.b16 %v2212
        %v2261 = vunpack.c.l.b16 %v2213
        %v2262 = vunpack.c.l.b16 %v2214
        %v2263 = vunpack.c.l.b16 %v2215
        %v2264 = vunpack.c.l.b16 %v2216
        %v2265 = vunpack.c.l.b16 %v2217
        %v2266 = vunpack.c.l.b16 %v2218
        %v2267 = vunpack.c.l.b16 %v2219
        %v2268 = vunpack.c.l.b16 %v2220
        %v2269 = vunpack.c.l.b16 %v2221
        %v2270 = vunpack.c.l.b16 %v2222
        %v2271 = vunpack.c.l.b16 %v2223
        %v2272 = vunpack.c.l.b16 %v2224
        %v2273 = vpack.c.b16 %v2258, %v2257
        %v2274 = vpack.c.b16 %v2260, %v2259
        %v2275 = vpack.c.b16 %v2262, %v2261
        %v2276 = vpack.c.b16 %v2264, %v2263
        %v2277 = vpack.c.b16 %v2266, %v2265
        %v2278 = vpack.c.b16 %v2268, %v2267
        %v2279 = vpack.c.b16 %v2270, %v2269
        %v2280 = vpack.c.b16 %v2272, %v2271
        %2289 = vmatprep.subr.bf16.mxu0 0
        %2290 = vmatpush1.bf16.msra.mxu0 %v2273
        %2291 = vmatprep.subr.bf16.mxu0 0
        %2292 = vmatpush1.bf16.msra.mxu0 %v2274
        %2293 = vmatprep.subr.bf16.mxu0 0
        %2294 = vmatpush1.bf16.msra.mxu0 %v2275
        %2295 = vmatprep.subr.bf16.mxu0 0
        %2296 = vmatpush1.bf16.msra.mxu0 %v2276
        %2297 = vmatprep.subr.bf16.mxu0 0
        %2298 = vmatpush1.bf16.msra.mxu0 %v2277
        %2299 = vmatprep.subr.bf16.mxu0 0
        %2300 = vmatpush1.bf16.msra.mxu0 %v2278
        %2301 = vmatprep.subr.bf16.mxu0 0
        %2302 = vmatpush1.bf16.msra.mxu0 %v2279
        %2303 = vmatprep.subr.bf16.mxu0 0
        %2304 = vmatpush1.bf16.msra.mxu0 %v2280
        %2305 = vmatprep.subr.bf16.mxu0 0
        %2306 = vmatpush1.bf16.msra.mxu0 0
        %2307 = vmatprep.subr.bf16.mxu0 0
        %2308 = vmatpush1.bf16.msra.mxu0 0
        %2309 = vmatprep.subr.bf16.mxu0 0
        %2310 = vmatpush1.bf16.msra.mxu0 0
        %2311 = vmatprep.subr.bf16.mxu0 0
        %2312 = vmatpush1.bf16.msra.mxu0 0
        %2313 = vmatprep.subr.bf16.mxu0 0
        %2314 = vmatpush1.bf16.msra.mxu0 0
        %2315 = vmatprep.subr.bf16.mxu0 0
        %2316 = vmatpush1.bf16.msra.mxu0 0
        %2317 = vmatprep.subr.bf16.mxu0 0
        %2318 = vmatpush1.bf16.msra.mxu0 0
        %2319 = vmatprep.subr.bf16.mxu0 0
        %2320 = vmatpush1.bf16.msra.mxu0 0
        %2321 = vmatprep.mubr.bf16.mxu0 0
        %2322 = vmatmul.mubr.bf16.gmra.mrb[0].mxu0 %v2233
        %v2323 = vpop.f32.mrb[0].mxu0
        %v2324 = vadd.f32 0.0, %v2323
        %v2325 = vpop.f32.mrb[0].mxu0
        %v2326 = vpop.f32.mrb[0].mxu0
        %v2327 = vadd.f32 0.0, %v2326
        %v2328 = vpop.f32.mrb[0].mxu0
        %2329 = vmatprep.mubr.bf16.mxu0 0
        %2330 = vmatmul.mubr.bf16.gmra.mrb[0].mxu0 %v2234
        %v2331 = vpop.f32.mrb[0].mxu0
        %v2332 = vadd.f32 0.0, %v2331
        %v2333 = vpop.f32.mrb[0].mxu0
        %v2334 = vpop.f32.mrb[0].mxu0
        %v2335 = vadd.f32 0.0, %v2334
        %v2336 = vpop.f32.mrb[0].mxu0
        %2337 = vmatprep.mubr.bf16.mxu0 0
        %2338 = vmatmul.mubr.bf16.gmra.mrb[0].mxu0 %v2235
        %v2339 = vpop.f32.mrb[0].mxu0
        %v2340 = vadd.f32 0.0, %v2339
        %v2341 = vpop.f32.mrb[0].mxu0
        %v2342 = vpop.f32.mrb[0].mxu0
        %v2343 = vadd.f32 0.0, %v2342
        %v2344 = vpop.f32.mrb[0].mxu0
        %2345 = vmatprep.mubr.bf16.mxu0 0
        %2346 = vmatmul.mubr.bf16.gmra.mrb[0].mxu0 %v2236
        %v2347 = vpop.f32.mrb[0].mxu0
        %v2348 = vadd.f32 0.0, %v2347
        %v2349 = vpop.f32.mrb[0].mxu0
        %v2350 = vpop.f32.mrb[0].mxu0
        %v2351 = vadd.f32 0.0, %v2350
        %v2352 = vpop.f32.mrb[0].mxu0
        %2353 = vdwg.mxu0
        %v2354 = vadd.f32 %v2144, %v2324
        %v2355 = vadd.f32 %v2145, %v2327
        %v2356 = vadd.f32 %v2146, %v2332
        %v2357 = vadd.f32 %v2147, %v2335
        %v2358 = vadd.f32 %v2148, %v2340
        %v2359 = vadd.f32 %v2149, %v2343
        %v2360 = vadd.f32 %v2150, %v2348
        %v2361 = vadd.f32 %v2151, %v2351
        %s2362 = scalar_lea.vmem [#allocation2], 16
        %v2363 = vld [vmem:[%s2362] sm:$0xf]
        %v2364 = vld [vmem:[%s2362 + $0x8] sm:$0xf]
        %v2365 = vld [vmem:[%s2362 + $0x10] sm:$0xf]
        %v2366 = vld [vmem:[%s2362 + $0x18] sm:$0xf]
        %v2367 = vld [vmem:[%s2362 + $0x20] sm:$0xf]
        %v2368 = vld [vmem:[%s2362 + $0x28] sm:$0xf]
        %v2369 = vld [vmem:[%s2362 + $0x30] sm:$0xf]
        %v2370 = vld [vmem:[%s2362 + $0x38] sm:$0xf]
        %s2371 = scalar_lea.vmem %s7, 384
        %v2372 = vld [vmem:[%s2371] sm:$0xf]
        %v2373 = vld [vmem:[%s2371 + $0x4] sm:$0xf]
        %v2374 = vld [vmem:[%s2371 + $0x8] sm:$0xf]
        %v2375 = vld [vmem:[%s2371 + $0xc] sm:$0xf]
        %v2376 = vld [vmem:[%s2371 + $0x10] sm:$0xf]
        %v2377 = vld [vmem:[%s2371 + $0x14] sm:$0xf]
        %v2378 = vld [vmem:[%s2371 + $0x18] sm:$0xf]
        %v2379 = vld [vmem:[%s2371 + $0x1c] sm:$0xf]
        %v2380 = vld [vmem:[%s2371 + $0x20] sm:$0xf]
        %v2381 = vld [vmem:[%s2371 + $0x24] sm:$0xf]
        %v2382 = vld [vmem:[%s2371 + $0x28] sm:$0xf]
        %v2383 = vld [vmem:[%s2371 + $0x2c] sm:$0xf]
        %v2384 = vld [vmem:[%s2371 + $0x30] sm:$0xf]
        %v2385 = vld [vmem:[%s2371 + $0x34] sm:$0xf]
        %v2386 = vld [vmem:[%s2371 + $0x38] sm:$0xf]
        %v2387 = vld [vmem:[%s2371 + $0x3c] sm:$0xf]
        %v2396 = vunpack.c.l.b16 %v2363
        %v2397 = vunpack.c.l.b16 %v2364
        %v2398 = vunpack.c.l.b16 %v2365
        %v2399 = vunpack.c.l.b16 %v2366
        %v2400 = vunpack.c.l.b16 %v2367
        %v2401 = vunpack.c.l.b16 %v2368
        %v2402 = vunpack.c.l.b16 %v2369
        %v2403 = vunpack.c.l.b16 %v2370
        %v2404 = vpack.c.b16 %v2397, %v2396
        %v2405 = vpack.c.b16 %v2399, %v2398
        %v2406 = vpack.c.b16 %v2401, %v2400
        %v2407 = vpack.c.b16 %v2403, %v2402
        %v2428 = vunpack.c.l.b16 %v2372
        %v2429 = vunpack.c.l.b16 %v2373
        %v2430 = vunpack.c.l.b16 %v2374
        %v2431 = vunpack.c.l.b16 %v2375
        %v2432 = vunpack.c.l.b16 %v2376
        %v2433 = vunpack.c.l.b16 %v2377
        %v2434 = vunpack.c.l.b16 %v2378
        %v2435 = vunpack.c.l.b16 %v2379
        %v2436 = vunpack.c.l.b16 %v2380
        %v2437 = vunpack.c.l.b16 %v2381
        %v2438 = vunpack.c.l.b16 %v2382
        %v2439 = vunpack.c.l.b16 %v2383
        %v2440 = vunpack.c.l.b16 %v2384
        %v2441 = vunpack.c.l.b16 %v2385
        %v2442 = vunpack.c.l.b16 %v2386
        %v2443 = vunpack.c.l.b16 %v2387
        %v2444 = vpack.c.b16 %v2429, %v2428
        %v2445 = vpack.c.b16 %v2431, %v2430
        %v2446 = vpack.c.b16 %v2433, %v2432
        %v2447 = vpack.c.b16 %v2435, %v2434
        %v2448 = vpack.c.b16 %v2437, %v2436
        %v2449 = vpack.c.b16 %v2439, %v2438
        %v2450 = vpack.c.b16 %v2441, %v2440
        %v2451 = vpack.c.b16 %v2443, %v2442
        %2460 = vmatprep.subr.bf16.mxu0 0
        %2461 = vmatpush1.bf16.msra.mxu0 %v2444
        %2462 = vmatprep.subr.bf16.mxu0 0
        %2463 = vmatpush1.bf16.msra.mxu0 %v2445
        %2464 = vmatprep.subr.bf16.mxu0 0
        %2465 = vmatpush1.bf16.msra.mxu0 %v2446
        %2466 = vmatprep.subr.bf16.mxu0 0
        %2467 = vmatpush1.bf16.msra.mxu0 %v2447
        %2468 = vmatprep.subr.bf16.mxu0 0
        %2469 = vmatpush1.bf16.msra.mxu0 %v2448
        %2470 = vmatprep.subr.bf16.mxu0 0
        %2471 = vmatpush1.bf16.msra.mxu0 %v2449
        %2472 = vmatprep.subr.bf16.mxu0 0
        %2473 = vmatpush1.bf16.msra.mxu0 %v2450
        %2474 = vmatprep.subr.bf16.mxu0 0
        %2475 = vmatpush1.bf16.msra.mxu0 %v2451
        %2476 = vmatprep.subr.bf16.mxu0 0
        %2477 = vmatpush1.bf16.msra.mxu0 0
        %2478 = vmatprep.subr.bf16.mxu0 0
        %2479 = vmatpush1.bf16.msra.mxu0 0
        %2480 = vmatprep.subr.bf16.mxu0 0
        %2481 = vmatpush1.bf16.msra.mxu0 0
        %2482 = vmatprep.subr.bf16.mxu0 0
        %2483 = vmatpush1.bf16.msra.mxu0 0
        %2484 = vmatprep.subr.bf16.mxu0 0
        %2485 = vmatpush1.bf16.msra.mxu0 0
        %2486 = vmatprep.subr.bf16.mxu0 0
        %2487 = vmatpush1.bf16.msra.mxu0 0
        %2488 = vmatprep.subr.bf16.mxu0 0
        %2489 = vmatpush1.bf16.msra.mxu0 0
        %2490 = vmatprep.subr.bf16.mxu0 0
        %2491 = vmatpush1.bf16.msra.mxu0 0
        %2492 = vmatprep.mubr.bf16.mxu0 0
        %2493 = vmatmul.mubr.bf16.gmra.mrb[0].mxu0 %v2404
        %v2494 = vpop.f32.mrb[0].mxu0
        %v2495 = vadd.f32 0.0, %v2494
        %v2496 = vpop.f32.mrb[0].mxu0
        %v2497 = vpop.f32.mrb[0].mxu0
        %v2498 = vadd.f32 0.0, %v2497
        %v2499 = vpop.f32.mrb[0].mxu0
        %2500 = vmatprep.mubr.bf16.mxu0 0
        %2501 = vmatmul.mubr.bf16.gmra.mrb[0].mxu0 %v2405
        %v2502 = vpop.f32.mrb[0].mxu0
        %v2503 = vadd.f32 0.0, %v2502
        %v2504 = vpop.f32.mrb[0].mxu0
        %v2505 = vpop.f32.mrb[0].mxu0
        %v2506 = vadd.f32 0.0, %v2505
        %v2507 = vpop.f32.mrb[0].mxu0
        %2508 = vmatprep.mubr.bf16.mxu0 0
        %2509 = vmatmul.mubr.bf16.gmra.mrb[0].mxu0 %v2406
        %v2510 = vpop.f32.mrb[0].mxu0
        %v2511 = vadd.f32 0.0, %v2510
        %v2512 = vpop.f32.mrb[0].mxu0
        %v2513 = vpop.f32.mrb[0].mxu0
        %v2514 = vadd.f32 0.0, %v2513
        %v2515 = vpop.f32.mrb[0].mxu0
        %2516 = vmatprep.mubr.bf16.mxu0 0
        %2517 = vmatmul.mubr.bf16.gmra.mrb[0].mxu0 %v2407
        %v2518 = vpop.f32.mrb[0].mxu0
        %v2519 = vadd.f32 0.0, %v2518
        %v2520 = vpop.f32.mrb[0].mxu0
        %v2521 = vpop.f32.mrb[0].mxu0
        %v2522 = vadd.f32 0.0, %v2521
        %v2523 = vpop.f32.mrb[0].mxu0
        %2524 = vdwg.mxu0
        %v2525 = vadd.f32 %v2354, %v2495
        %v2526 = vadd.f32 %v2355, %v2498
        %v2527 = vadd.f32 %v2356, %v2503
        %v2528 = vadd.f32 %v2357, %v2506
        %v2529 = vadd.f32 %v2358, %v2511
        %v2530 = vadd.f32 %v2359, %v2514
        %v2531 = vadd.f32 %v2360, %v2519
        %v2532 = vadd.f32 %v2361, %v2522
        %v2533 = vld [vmem:[%s2362] sm:$0xf]
        %v2534 = vld [vmem:[%s2362 + $0x4] sm:$0x1]
        %v2535 = vld [vmem:[%s2362 + $0x8] sm:$0xf]
        %v2536 = vld [vmem:[%s2362 + $0xc] sm:$0x1]
        %v2537 = vld [vmem:[%s2362 + $0x10] sm:$0xf]
        %v2538 = vld [vmem:[%s2362 + $0x14] sm:$0x1]
        %v2539 = vld [vmem:[%s2362 + $0x18] sm:$0xf]
        %v2540 = vld [vmem:[%s2362 + $0x1c] sm:$0x1]
        %v2541 = vld [vmem:[%s2362 + $0x20] sm:$0xf]
        %v2542 = vld [vmem:[%s2362 + $0x24] sm:$0x1]
        %v2543 = vld [vmem:[%s2362 + $0x28] sm:$0xf]
        %v2544 = vld [vmem:[%s2362 + $0x2c] sm:$0x1]
        %v2545 = vld [vmem:[%s2362 + $0x30] sm:$0xf]
        %v2546 = vld [vmem:[%s2362 + $0x34] sm:$0x1]
        %v2547 = vld [vmem:[%s2362 + $0x38] sm:$0xf]
        %v2548 = vld [vmem:[%s2362 + $0x3c] sm:$0x1]
        %v2550 = vshrl.u32 %v2533, 16
        %v2552 = vrot.slane %v2550, 4
        %v2553 = vshll.u32 %v2533, 16
        %v2555 = vrot.slane %v2553, 5
        %v2556 = vor.u32 %v2552, %v2555
        %v2557 = vrot.slane %v2556, 4
        %v2559 = vshll.u32 %v2534, 16
        %v2561 = vrot.slane %v2559, 5
        %v2562 = vsel %vm1091, %v2557, %v2561
        %v2564 = vshrl.u32 %v2535, 16
        %v2566 = vrot.slane %v2564, 4
        %v2567 = vshll.u32 %v2535, 16
        %v2569 = vrot.slane %v2567, 5
        %v2570 = vor.u32 %v2566, %v2569
        %v2571 = vrot.slane %v2570, 4
        %v2573 = vshll.u32 %v2536, 16
        %v2575 = vrot.slane %v2573, 5
        %v2576 = vsel %vm1091, %v2571, %v2575
        %v2578 = vshrl.u32 %v2537, 16
        %v2580 = vrot.slane %v2578, 4
        %v2581 = vshll.u32 %v2537, 16
        %v2583 = vrot.slane %v2581, 5
        %v2584 = vor.u32 %v2580, %v2583
        %v2585 = vrot.slane %v2584, 4
        %v2587 = vshll.u32 %v2538, 16
        %v2589 = vrot.slane %v2587, 5
        %v2590 = vsel %vm1091, %v2585, %v2589
        %v2592 = vshrl.u32 %v2539, 16
        %v2594 = vrot.slane %v2592, 4
        %v2595 = vshll.u32 %v2539, 16
        %v2597 = vrot.slane %v2595, 5
        %v2598 = vor.u32 %v2594, %v2597
        %v2599 = vrot.slane %v2598, 4
        %v2601 = vshll.u32 %v2540, 16
        %v2603 = vrot.slane %v2601, 5
        %v2604 = vsel %vm1091, %v2599, %v2603
        %v2606 = vshrl.u32 %v2541, 16
        %v2608 = vrot.slane %v2606, 4
        %v2609 = vshll.u32 %v2541, 16
        %v2611 = vrot.slane %v2609, 5
        %v2612 = vor.u32 %v2608, %v2611
        %v2613 = vrot.slane %v2612, 4
        %v2615 = vshll.u32 %v2542, 16
        %v2617 = vrot.slane %v2615, 5
        %v2618 = vsel %vm1091, %v2613, %v2617
        %v2620 = vshrl.u32 %v2543, 16
        %v2622 = vrot.slane %v2620, 4
        %v2623 = vshll.u32 %v2543, 16
        %v2625 = vrot.slane %v2623, 5
        %v2626 = vor.u32 %v2622, %v2625
        %v2627 = vrot.slane %v2626, 4
        %v2629 = vshll.u32 %v2544, 16
        %v2631 = vrot.slane %v2629, 5
        %v2632 = vsel %vm1091, %v2627, %v2631
        %v2634 = vshrl.u32 %v2545, 16
        %v2636 = vrot.slane %v2634, 4
        %v2637 = vshll.u32 %v2545, 16
        %v2639 = vrot.slane %v2637, 5
        %v2640 = vor.u32 %v2636, %v2639
        %v2641 = vrot.slane %v2640, 4
        %v2643 = vshll.u32 %v2546, 16
        %v2645 = vrot.slane %v2643, 5
        %v2646 = vsel %vm1091, %v2641, %v2645
        %v2648 = vshrl.u32 %v2547, 16
        %v2650 = vrot.slane %v2648, 4
        %v2651 = vshll.u32 %v2547, 16
        %v2653 = vrot.slane %v2651, 5
        %v2654 = vor.u32 %v2650, %v2653
        %v2655 = vrot.slane %v2654, 4
        %v2657 = vshll.u32 %v2548, 16
        %v2659 = vrot.slane %v2657, 5
        %v2660 = vsel %vm1091, %v2655, %v2659
        %s2661 = scalar_lea.vmem %s7, 448
        %v2662 = vld [vmem:[%s2661] sm:$0xf]
        %v2663 = vld [vmem:[%s2661 + $0x4] sm:$0xf]
        %v2664 = vld [vmem:[%s2661 + $0x8] sm:$0xf]
        %v2665 = vld [vmem:[%s2661 + $0xc] sm:$0xf]
        %v2666 = vld [vmem:[%s2661 + $0x10] sm:$0xf]
        %v2667 = vld [vmem:[%s2661 + $0x14] sm:$0xf]
        %v2668 = vld [vmem:[%s2661 + $0x18] sm:$0xf]
        %v2669 = vld [vmem:[%s2661 + $0x1c] sm:$0xf]
        %v2670 = vld [vmem:[%s2661 + $0x20] sm:$0xf]
        %v2671 = vld [vmem:[%s2661 + $0x24] sm:$0xf]
        %v2672 = vld [vmem:[%s2661 + $0x28] sm:$0xf]
        %v2673 = vld [vmem:[%s2661 + $0x2c] sm:$0xf]
        %v2674 = vld [vmem:[%s2661 + $0x30] sm:$0xf]
        %v2675 = vld [vmem:[%s2661 + $0x34] sm:$0xf]
        %v2676 = vld [vmem:[%s2661 + $0x38] sm:$0xf]
        %v2677 = vld [vmem:[%s2661 + $0x3c] sm:$0xf]
        %v2678 = vunpack.c.l.b16 %v2562
        %v2679 = vunpack.c.l.b16 %v2576
        %v2680 = vunpack.c.l.b16 %v2590
        %v2681 = vunpack.c.l.b16 %v2604
        %v2682 = vunpack.c.l.b16 %v2618
        %v2683 = vunpack.c.l.b16 %v2632
        %v2684 = vunpack.c.l.b16 %v2646
        %v2685 = vunpack.c.l.b16 %v2660
        %v2686 = vpack.c.b16 %v2679, %v2678
        %v2687 = vpack.c.b16 %v2681, %v2680
        %v2688 = vpack.c.b16 %v2683, %v2682
        %v2689 = vpack.c.b16 %v2685, %v2684
        %v2710 = vunpack.c.l.b16 %v2662
        %v2711 = vunpack.c.l.b16 %v2663
        %v2712 = vunpack.c.l.b16 %v2664
        %v2713 = vunpack.c.l.b16 %v2665
        %v2714 = vunpack.c.l.b16 %v2666
        %v2715 = vunpack.c.l.b16 %v2667
        %v2716 = vunpack.c.l.b16 %v2668
        %v2717 = vunpack.c.l.b16 %v2669
        %v2718 = vunpack.c.l.b16 %v2670
        %v2719 = vunpack.c.l.b16 %v2671
        %v2720 = vunpack.c.l.b16 %v2672
        %v2721 = vunpack.c.l.b16 %v2673
        %v2722 = vunpack.c.l.b16 %v2674
        %v2723 = vunpack.c.l.b16 %v2675
        %v2724 = vunpack.c.l.b16 %v2676
        %v2725 = vunpack.c.l.b16 %v2677
        %v2726 = vpack.c.b16 %v2711, %v2710
        %v2727 = vpack.c.b16 %v2713, %v2712
        %v2728 = vpack.c.b16 %v2715, %v2714
        %v2729 = vpack.c.b16 %v2717, %v2716
        %v2730 = vpack.c.b16 %v2719, %v2718
        %v2731 = vpack.c.b16 %v2721, %v2720
        %v2732 = vpack.c.b16 %v2723, %v2722
        %v2733 = vpack.c.b16 %v2725, %v2724
        %2742 = vmatprep.subr.bf16.mxu0 0
        %2743 = vmatpush1.bf16.msra.mxu0 %v2726
        %2744 = vmatprep.subr.bf16.mxu0 0
        %2745 = vmatpush1.bf16.msra.mxu0 %v2727
        %2746 = vmatprep.subr.bf16.mxu0 0
        %2747 = vmatpush1.bf16.msra.mxu0 %v2728
        %2748 = vmatprep.subr.bf16.mxu0 0
        %2749 = vmatpush1.bf16.msra.mxu0 %v2729
        %2750 = vmatprep.subr.bf16.mxu0 0
        %2751 = vmatpush1.bf16.msra.mxu0 %v2730
        %2752 = vmatprep.subr.bf16.mxu0 0
        %2753 = vmatpush1.bf16.msra.mxu0 %v2731
        %2754 = vmatprep.subr.bf16.mxu0 0
        %2755 = vmatpush1.bf16.msra.mxu0 %v2732
        %2756 = vmatprep.subr.bf16.mxu0 0
        %2757 = vmatpush1.bf16.msra.mxu0 %v2733
        %2758 = vmatprep.subr.bf16.mxu0 0
        %2759 = vmatpush1.bf16.msra.mxu0 0
        %2760 = vmatprep.subr.bf16.mxu0 0
        %2761 = vmatpush1.bf16.msra.mxu0 0
        %2762 = vmatprep.subr.bf16.mxu0 0
        %2763 = vmatpush1.bf16.msra.mxu0 0
        %2764 = vmatprep.subr.bf16.mxu0 0
        %2765 = vmatpush1.bf16.msra.mxu0 0
        %2766 = vmatprep.subr.bf16.mxu0 0
        %2767 = vmatpush1.bf16.msra.mxu0 0
        %2768 = vmatprep.subr.bf16.mxu0 0
        %2769 = vmatpush1.bf16.msra.mxu0 0
        %2770 = vmatprep.subr.bf16.mxu0 0
        %2771 = vmatpush1.bf16.msra.mxu0 0
        %2772 = vmatprep.subr.bf16.mxu0 0
        %2773 = vmatpush1.bf16.msra.mxu0 0
        %2774 = vmatprep.mubr.bf16.mxu0 0
        %2775 = vmatmul.mubr.bf16.gmra.mrb[0].mxu0 %v2686
        %v2776 = vpop.f32.mrb[0].mxu0
        %v2777 = vadd.f32 0.0, %v2776
        %v2778 = vpop.f32.mrb[0].mxu0
        %v2779 = vpop.f32.mrb[0].mxu0
        %v2780 = vadd.f32 0.0, %v2779
        %v2781 = vpop.f32.mrb[0].mxu0
        %2782 = vmatprep.mubr.bf16.mxu0 0
        %2783 = vmatmul.mubr.bf16.gmra.mrb[0].mxu0 %v2687
        %v2784 = vpop.f32.mrb[0].mxu0
        %v2785 = vadd.f32 0.0, %v2784
        %v2786 = vpop.f32.mrb[0].mxu0
        %v2787 = vpop.f32.mrb[0].mxu0
        %v2788 = vadd.f32 0.0, %v2787
        %v2789 = vpop.f32.mrb[0].mxu0
        %2790 = vmatprep.mubr.bf16.mxu0 0
        %2791 = vmatmul.mubr.bf16.gmra.mrb[0].mxu0 %v2688
        %v2792 = vpop.f32.mrb[0].mxu0
        %v2793 = vadd.f32 0.0, %v2792
        %v2794 = vpop.f32.mrb[0].mxu0
        %v2795 = vpop.f32.mrb[0].mxu0
        %v2796 = vadd.f32 0.0, %v2795
        %v2797 = vpop.f32.mrb[0].mxu0
        %2798 = vmatprep.mubr.bf16.mxu0 0
        %2799 = vmatmul.mubr.bf16.gmra.mrb[0].mxu0 %v2689
        %v2800 = vpop.f32.mrb[0].mxu0
        %v2801 = vadd.f32 0.0, %v2800
        %v2802 = vpop.f32.mrb[0].mxu0
        %v2803 = vpop.f32.mrb[0].mxu0
        %v2804 = vadd.f32 0.0, %v2803
        %v2805 = vpop.f32.mrb[0].mxu0
        %2806 = vdwg.mxu0
        %v2807 = vadd.f32 %v2525, %v2777
        %v2808 = vadd.f32 %v2526, %v2780
        %v2809 = vadd.f32 %v2527, %v2785
        %v2810 = vadd.f32 %v2528, %v2788
        %v2811 = vadd.f32 %v2529, %v2793
        %v2812 = vadd.f32 %v2530, %v2796
        %v2813 = vadd.f32 %v2531, %v2801
        %v2814 = vadd.f32 %v2532, %v2804
        %v2815 = vld [vmem:[%s2362] sm:$0xe]
        %v2816 = vld [vmem:[%s2362 + $0x8] sm:$0xe]
        %v2817 = vld [vmem:[%s2362 + $0x10] sm:$0xe]
        %v2818 = vld [vmem:[%s2362 + $0x18] sm:$0xe]
        %v2819 = vld [vmem:[%s2362 + $0x20] sm:$0xe]
        %v2820 = vld [vmem:[%s2362 + $0x28] sm:$0xe]
        %v2821 = vld [vmem:[%s2362 + $0x30] sm:$0xe]
        %v2822 = vld [vmem:[%s2362 + $0x38] sm:$0xe]
        %v2839 = vrot.slane %v2815, 5
        %v2840 = vrot.slane %v2839, 4
        %v2841 = vrot.slane %v2534, 5
        %v2842 = vsel %vm1513, %v2840, %v2841
        %v2843 = vrot.slane %v2816, 5
        %v2844 = vrot.slane %v2843, 4
        %v2845 = vrot.slane %v2536, 5
        %v2846 = vsel %vm1513, %v2844, %v2845
        %v2847 = vrot.slane %v2817, 5
        %v2848 = vrot.slane %v2847, 4
        %v2849 = vrot.slane %v2538, 5
        %v2850 = vsel %vm1513, %v2848, %v2849
        %v2851 = vrot.slane %v2818, 5
        %v2852 = vrot.slane %v2851, 4
        %v2853 = vrot.slane %v2540, 5
        %v2854 = vsel %vm1513, %v2852, %v2853
        %v2855 = vrot.slane %v2819, 5
        %v2856 = vrot.slane %v2855, 4
        %v2857 = vrot.slane %v2542, 5
        %v2858 = vsel %vm1513, %v2856, %v2857
        %v2859 = vrot.slane %v2820, 5
        %v2860 = vrot.slane %v2859, 4
        %v2861 = vrot.slane %v2544, 5
        %v2862 = vsel %vm1513, %v2860, %v2861
        %v2863 = vrot.slane %v2821, 5
        %v2864 = vrot.slane %v2863, 4
        %v2865 = vrot.slane %v2546, 5
        %v2866 = vsel %vm1513, %v2864, %v2865
        %v2867 = vrot.slane %v2822, 5
        %v2868 = vrot.slane %v2867, 4
        %v2869 = vrot.slane %v2548, 5
        %v2870 = vsel %vm1513, %v2868, %v2869
        %s2871 = scalar_lea.vmem %s7, 512
        %v2872 = vld [vmem:[%s2871] sm:$0xf]
        %v2873 = vld [vmem:[%s2871 + $0x4] sm:$0xf]
        %v2874 = vld [vmem:[%s2871 + $0x8] sm:$0xf]
        %v2875 = vld [vmem:[%s2871 + $0xc] sm:$0xf]
        %v2876 = vld [vmem:[%s2871 + $0x10] sm:$0xf]
        %v2877 = vld [vmem:[%s2871 + $0x14] sm:$0xf]
        %v2878 = vld [vmem:[%s2871 + $0x18] sm:$0xf]
        %v2879 = vld [vmem:[%s2871 + $0x1c] sm:$0xf]
        %v2880 = vld [vmem:[%s2871 + $0x20] sm:$0xf]
        %v2881 = vld [vmem:[%s2871 + $0x24] sm:$0xf]
        %v2882 = vld [vmem:[%s2871 + $0x28] sm:$0xf]
        %v2883 = vld [vmem:[%s2871 + $0x2c] sm:$0xf]
        %v2884 = vld [vmem:[%s2871 + $0x30] sm:$0xf]
        %v2885 = vld [vmem:[%s2871 + $0x34] sm:$0xf]
        %v2886 = vld [vmem:[%s2871 + $0x38] sm:$0xf]
        %v2887 = vld [vmem:[%s2871 + $0x3c] sm:$0xf]
        %v2888 = vunpack.c.l.b16 %v2842
        %v2889 = vunpack.c.l.b16 %v2846
        %v2890 = vunpack.c.l.b16 %v2850
        %v2891 = vunpack.c.l.b16 %v2854
        %v2892 = vunpack.c.l.b16 %v2858
        %v2893 = vunpack.c.l.b16 %v2862
        %v2894 = vunpack.c.l.b16 %v2866
        %v2895 = vunpack.c.l.b16 %v2870
        %v2896 = vpack.c.b16 %v2889, %v2888
        %v2897 = vpack.c.b16 %v2891, %v2890
        %v2898 = vpack.c.b16 %v2893, %v2892
        %v2899 = vpack.c.b16 %v2895, %v2894
        %v2920 = vunpack.c.l.b16 %v2872
        %v2921 = vunpack.c.l.b16 %v2873
        %v2922 = vunpack.c.l.b16 %v2874
        %v2923 = vunpack.c.l.b16 %v2875
        %v2924 = vunpack.c.l.b16 %v2876
        %v2925 = vunpack.c.l.b16 %v2877
        %v2926 = vunpack.c.l.b16 %v2878
        %v2927 = vunpack.c.l.b16 %v2879
        %v2928 = vunpack.c.l.b16 %v2880
        %v2929 = vunpack.c.l.b16 %v2881
        %v2930 = vunpack.c.l.b16 %v2882
        %v2931 = vunpack.c.l.b16 %v2883
        %v2932 = vunpack.c.l.b16 %v2884
        %v2933 = vunpack.c.l.b16 %v2885
        %v2934 = vunpack.c.l.b16 %v2886
        %v2935 = vunpack.c.l.b16 %v2887
        %v2936 = vpack.c.b16 %v2921, %v2920
        %v2937 = vpack.c.b16 %v2923, %v2922
        %v2938 = vpack.c.b16 %v2925, %v2924
        %v2939 = vpack.c.b16 %v2927, %v2926
        %v2940 = vpack.c.b16 %v2929, %v2928
        %v2941 = vpack.c.b16 %v2931, %v2930
        %v2942 = vpack.c.b16 %v2933, %v2932
        %v2943 = vpack.c.b16 %v2935, %v2934
        %2952 = vmatprep.subr.bf16.mxu0 0
        %2953 = vmatpush1.bf16.msra.mxu0 %v2936
        %2954 = vmatprep.subr.bf16.mxu0 0
        %2955 = vmatpush1.bf16.msra.mxu0 %v2937
        %2956 = vmatprep.subr.bf16.mxu0 0
        %2957 = vmatpush1.bf16.msra.mxu0 %v2938
        %2958 = vmatprep.subr.bf16.mxu0 0
        %2959 = vmatpush1.bf16.msra.mxu0 %v2939
        %2960 = vmatprep.subr.bf16.mxu0 0
        %2961 = vmatpush1.bf16.msra.mxu0 %v2940
        %2962 = vmatprep.subr.bf16.mxu0 0
        %2963 = vmatpush1.bf16.msra.mxu0 %v2941
        %2964 = vmatprep.subr.bf16.mxu0 0
        %2965 = vmatpush1.bf16.msra.mxu0 %v2942
        %2966 = vmatprep.subr.bf16.mxu0 0
        %2967 = vmatpush1.bf16.msra.mxu0 %v2943
        %2968 = vmatprep.subr.bf16.mxu0 0
        %2969 = vmatpush1.bf16.msra.mxu0 0
        %2970 = vmatprep.subr.bf16.mxu0 0
        %2971 = vmatpush1.bf16.msra.mxu0 0
        %2972 = vmatprep.subr.bf16.mxu0 0
        %2973 = vmatpush1.bf16.msra.mxu0 0
        %2974 = vmatprep.subr.bf16.mxu0 0
        %2975 = vmatpush1.bf16.msra.mxu0 0
        %2976 = vmatprep.subr.bf16.mxu0 0
        %2977 = vmatpush1.bf16.msra.mxu0 0
        %2978 = vmatprep.subr.bf16.mxu0 0
        %2979 = vmatpush1.bf16.msra.mxu0 0
        %2980 = vmatprep.subr.bf16.mxu0 0
        %2981 = vmatpush1.bf16.msra.mxu0 0
        %2982 = vmatprep.subr.bf16.mxu0 0
        %2983 = vmatpush1.bf16.msra.mxu0 0
        %2984 = vmatprep.mubr.bf16.mxu0 0
        %2985 = vmatmul.mubr.bf16.gmra.mrb[0].mxu0 %v2896
        %v2986 = vpop.f32.mrb[0].mxu0
        %v2987 = vadd.f32 0.0, %v2986
        %v2988 = vpop.f32.mrb[0].mxu0
        %v2989 = vpop.f32.mrb[0].mxu0
        %v2990 = vadd.f32 0.0, %v2989
        %v2991 = vpop.f32.mrb[0].mxu0
        %2992 = vmatprep.mubr.bf16.mxu0 0
        %2993 = vmatmul.mubr.bf16.gmra.mrb[0].mxu0 %v2897
        %v2994 = vpop.f32.mrb[0].mxu0
        %v2995 = vadd.f32 0.0, %v2994
        %v2996 = vpop.f32.mrb[0].mxu0
        %v2997 = vpop.f32.mrb[0].mxu0
        %v2998 = vadd.f32 0.0, %v2997
        %v2999 = vpop.f32.mrb[0].mxu0
        %3000 = vmatprep.mubr.bf16.mxu0 0
        %3001 = vmatmul.mubr.bf16.gmra.mrb[0].mxu0 %v2898
        %v3002 = vpop.f32.mrb[0].mxu0
        %v3003 = vadd.f32 0.0, %v3002
        %v3004 = vpop.f32.mrb[0].mxu0
        %v3005 = vpop.f32.mrb[0].mxu0
        %v3006 = vadd.f32 0.0, %v3005
        %v3007 = vpop.f32.mrb[0].mxu0
        %3008 = vmatprep.mubr.bf16.mxu0 0
        %3009 = vmatmul.mubr.bf16.gmra.mrb[0].mxu0 %v2899
        %v3010 = vpop.f32.mrb[0].mxu0
        %v3011 = vadd.f32 0.0, %v3010
        %v3012 = vpop.f32.mrb[0].mxu0
        %v3013 = vpop.f32.mrb[0].mxu0
        %v3014 = vadd.f32 0.0, %v3013
        %v3015 = vpop.f32.mrb[0].mxu0
        %3016 = vdwg.mxu0
        %v3017 = vadd.f32 %v2807, %v2987
        %v3018 = vadd.f32 %v2808, %v2990
        %v3019 = vadd.f32 %v2809, %v2995
        %v3020 = vadd.f32 %v2810, %v2998
        %v3021 = vadd.f32 %v2811, %v3003
        %v3022 = vadd.f32 %v2812, %v3006
        %v3023 = vadd.f32 %v2813, %v3011
        %v3024 = vadd.f32 %v2814, %v3014
        %v3025 = vld [vmem:[%s8] sm:$0x1]
        %v3027 = vlaneseq
        %v3028 = vshrl.u32 %v3027, 7
        %v3029 = vsub.s32 0, %v3028
        %v3030 = vrot.slane %v3025, %v3029
        %v3032 = vadd.f32 %v3017, %v3030
        %v3033 = vadd.f32 %v3018, %v3030
        %v3034 = vadd.f32 %v3019, %v3030
        %v3035 = vadd.f32 %v3020, %v3030
        %v3036 = vadd.f32 %v3021, %v3030
        %v3037 = vadd.f32 %v3022, %v3030
        %v3038 = vadd.f32 %v3023, %v3030
        %v3039 = vadd.f32 %v3024, %v3030
        %vm3040 = vcmp.ge.f32.partialorder %v3032, 0.0
        %vm3041 = vcmp.ge.f32.partialorder %v3033, 0.0
        %vm3042 = vcmp.ge.f32.partialorder %v3034, 0.0
        %vm3043 = vcmp.ge.f32.partialorder %v3035, 0.0
        %vm3044 = vcmp.ge.f32.partialorder %v3036, 0.0
        %vm3045 = vcmp.ge.f32.partialorder %v3037, 0.0
        %vm3046 = vcmp.ge.f32.partialorder %v3038, 0.0
        %vm3047 = vcmp.ge.f32.partialorder %v3039, 0.0
        %v3048 = vmul.f32 %v3032, 0.01
        %v3049 = vmul.f32 %v3033, 0.01
        %v3050 = vmul.f32 %v3034, 0.01
        %v3051 = vmul.f32 %v3035, 0.01
        %v3052 = vmul.f32 %v3036, 0.01
        %v3053 = vmul.f32 %v3037, 0.01
        %v3054 = vmul.f32 %v3038, 0.01
        %v3055 = vmul.f32 %v3039, 0.01
        %v3056 = vsel %vm3040, %v3032, %v3048
        %v3057 = vsel %vm3041, %v3033, %v3049
        %v3058 = vsel %vm3042, %v3034, %v3050
        %v3059 = vsel %vm3043, %v3035, %v3051
        %v3060 = vsel %vm3044, %v3036, %v3052
        %v3061 = vsel %vm3045, %v3037, %v3053
        %v3062 = vsel %vm3046, %v3038, %v3054
        %v3063 = vsel %vm3047, %v3039, %v3055
        %3064 = vst [vmem:[%s355] sm:$0xff] %v3056
        %3065 = vst [vmem:[%s355 + $0x8] sm:$0xff] %v3057
        %3066 = vst [vmem:[%s355 + $0x10] sm:$0xff] %v3058
        %3067 = vst [vmem:[%s355 + $0x18] sm:$0xff] %v3059
        %3068 = vst [vmem:[%s355 + $0x20] sm:$0xff] %v3060
        %3069 = vst [vmem:[%s355 + $0x28] sm:$0xff] %v3061
        %3070 = vst [vmem:[%s355 + $0x30] sm:$0xff] %v3062
        %3071 = vst [vmem:[%s355 + $0x38] sm:$0xff] %v3063
        %s3072 = sand.u32 %s235, 1
        %s3073 = scalar_lea.sflag [#allocation4], %s3072
        %s3074 = sand.u32 %s235, 1
        %s3075 = smul.addr %s3074, 64
        %s3076 = scalar_lea.vmem [#allocation3], %s3075
        // Predicated region
        $region57: #{cfi_forward.7} parent=55 // pred_check
          %p3077 = pneg %p245
        $region58: #{cfi_forward.7} parent=55 // pred_check_branch
          %3079 = sbr.rel (%p3077) target = $region60
        $region59: #{cfi_forward.7} parent=55 // pred_region
          %s3081 = ssub.s32 1024, 1024
          %3082 = vsyncadd %s3073, %s3081
          %s3083 = smul.addr %s23, 8
          %s3084 = smul.addr %s3083, 128
          %s3085 = scalar_lea.hbm %s9, %s3084
          %s3086 = sshll.u32 %s3076, 4
          %s3087 = int_to_ptr.vmem [resolvable:$true] %s3086
          %3092 = dma.vmem_to_hbm [thread:$0]  %s3087, 1024, %s3085, %s3073, 128, 128, 8
        $region60: #{cfi_forward.7} parent=55 // pred_fallthru
          _
      $region56: #{cfi_forward.7} parent=5 // pred_fallthru
        _
      %p3093 = scmp.le.s32.totalorder 2, %s18
      // Predicated region
      $region61: #{cfi_forward.7} parent=5 // pred_check
        %p3094 = pneg %p3093
      $region62: #{cfi_forward.7} parent=5 // pred_check_branch
        %3096 = sbr.rel (%p3094) target = $region64
      $region63: #{cfi_forward.7} parent=5 // pred_region
        %s3097 = ssub.s32 %s18, 2
        // Predicated region
        $region65: #{cfi_forward.7} parent=63 // pred_check
          %p3098 = pneg %p251
        $region66: #{cfi_forward.7} parent=63 // pred_check_branch
          %3100 = sbr.rel (%p3098) target = $region68
        $region67: #{cfi_forward.7} parent=63 // pred_region
          %s3101 = sand.u32 %s236, 1
          %s3102 = scalar_lea.sflag [#allocation4], %s3101
          %s3103 = sand.u32 %s236, 1
          %s3104 = smul.addr %s3103, 64
          %s3105 = scalar_lea.vmem [#allocation3], %s3104
          %3106 = dma.done %s3102, 1024
        $region68: #{cfi_forward.7} parent=63 // pred_fallthru
          _
      $region64: #{cfi_forward.7} parent=5 // pred_fallthru
        _
    $region6: #{cfi_forward.7} parent=1 // loop_footer
      %s22 = sadd.s32 1, %s18
    $region7: #{cfi_forward.7} parent=1 // loop_footer_branch
      %17 = sbr.rel target = $region3
    $region8: #{cfi_forward.7} parent=1 // loop_exit
      _
    %3107 = vsyncpa [#allocation4], 1
    %s3108 = scalar_lea.sflag [#allocation4], 1
    %3109 = vsyncpa %s3108, 1

</llo_original>
